<compile_context>
chip_gen: v7x
topology: tpu7x:2x2x1
jax: 0.10.0
libtpu: 0.0.40
codegen_flags: <defaults>
</compile_context>

<pallas_src>
from functools import partial

import jax
import jax.numpy as jnp
from jax.experimental import pallas as pl
from jax.experimental.pallas import tpu as pltpu

LANE = 128


def _round_up(x, m):
    return (x + m - 1) // m * m


# --------------------------------------------------------------------------- #
# Kernel
# --------------------------------------------------------------------------- #
def _double_conv_kernel(x_ref, w1_ref, b1_ref, w2_ref, b2_ref, o_ref,
                        xh_ref, yh_ref):
    """Fused (conv3x3 'same' + BN + ReLU) x2 for a block of B images (NHWC).

    x_ref  : (B, H, W, cin_s)        input images (channels sublane-padded only)
    w1_ref : (3, 3*cin_s, cmid_s)    conv1 weights, BN1 scale folded, dx-major
    b1_ref : (1, cmid_s)  f32        folded BN1 bias
    w2_ref : (3, 3*cmid_s, cout_p)   conv2 weights, BN2 scale folded, dx-major
    b2_ref : (1, cout_p)  f32        folded BN2 bias
    o_ref  : (B, H, W, cout_p)       output (lane-dense: cout_p % 128 == 0)
    xh_ref : (B, H+2, W+2, cin_s)    VMEM scratch: input with 1-px zero halo
    yh_ref : (B, H+2, W+2, cmid_s)   VMEM scratch: conv1 activation with halo
    """
    B, H, W, cout_p = o_ref.shape
    cmid = yh_ref.shape[-1]

    # Zero-fill the halo scratches once: the interior is fully overwritten every
    # grid step and the 1-px border is never written afterwards, so it stays 0.
    @pl.when(pl.program_id(0) == 0)
    def _zero_halos():
        xh_ref[...] = jnp.zeros_like(xh_ref)
        yh_ref[...] = jnp.zeros_like(yh_ref)

    def conv3x3_bn_relu(h_ref, w_ref, b_ref):
        xp = h_ref[...]                                    # (B, H+2, W+2, C)
        c = xp.shape[-1]
        # dy-only concat: slices along the H (outer) axis are free address offsets.
        rows = jnp.concatenate([xp[:, dy:dy + H, :, :] for dy in range(3)],
                               axis=-1)                    # (B, H, W+2, 3C)

        def dx_term(dx):                                   # one MXU matmul per dx
            lhs = rows[:, :, dx:dx + W, :].reshape(B * H * W, 3 * c)
            return jnp.dot(lhs, w_ref[dx], preferred_element_type=jnp.float32)

        acc = dx_term(0) + dx_term(1) + dx_term(2)         # f32 accumulation
        return jnp.maximum(acc + b_ref[...], 0.0)          # BN bias + ReLU in f32

    # conv1: place the image inside the 1-px zero halo (border stays zero).
    xh_ref[:, 1:H + 1, 1:W + 1, :] = x_ref[...].astype(xh_ref.dtype)
    y1 = conv3x3_bn_relu(xh_ref, w1_ref, b1_ref)           # (B*H*W, cmid) f32

    # conv2 consumes the VMEM-resident intermediate: no HBM roundtrip.
    yh_ref[:, 1:H + 1, 1:W + 1, :] = y1.reshape(B, H, W, cmid).astype(yh_ref.dtype)
    y2 = conv3x3_bn_relu(yh_ref, w2_ref, b2_ref)           # (B*H*W, cout_p) f32

    o_ref[...] = y2.reshape(B, H, W, cout_p).astype(o_ref.dtype)


# --------------------------------------------------------------------------- #
# pallas_call wrapper
# --------------------------------------------------------------------------- #
def fused_double_conv(x_nhwc, w1, b1, w2, b2, *, images_per_step, compute_dtype):
    """x_nhwc: (N, H, W, cin_s); w*: (3, 3*C_s, Nout); b*: (1, Nout) f32."""
    N, H, W, cin_s = x_nhwc.shape
    cmid_s = w1.shape[-1]
    cout_p = w2.shape[-1]
    B = images_per_step
    assert N % B == 0, (N, B)

    return pl.pallas_call(
        _double_conv_kernel,
        out_shape=jax.ShapeDtypeStruct((N, H, W, cout_p), jnp.float32),
        grid_spec=pltpu.PrefetchScalarGridSpec(
            num_scalar_prefetch=0,
            grid=(N // B,),
            in_specs=[
                pl.BlockSpec((B, H, W, cin_s), lambda n: (n, 0, 0, 0)),
                # Constant index_map -> weights/biases fetched once, kept resident.
                # TODO(synk): pipeline_mode=pl.Buffered(1) to single-buffer these
                #             once real U-Net channel counts make footprint matter.
                pl.BlockSpec(w1.shape, lambda n: (0, 0, 0)),
                pl.BlockSpec(b1.shape, lambda n: (0, 0)),
                pl.BlockSpec(w2.shape, lambda n: (0, 0, 0)),
                pl.BlockSpec(b2.shape, lambda n: (0, 0)),
            ],
            out_specs=pl.BlockSpec((B, H, W, cout_p), lambda n: (n, 0, 0, 0)),
            scratch_shapes=[
                pltpu.VMEM((B, H + 2, W + 2, cin_s), compute_dtype),   # x + halo
                pltpu.VMEM((B, H + 2, W + 2, cmid_s), compute_dtype),  # conv1 act + halo
            ],
        ),
        compiler_params=pltpu.CompilerParams(
            dimension_semantics=("parallel",),   # batch steps across TCs on v7x
            # TODO(synk): re-derive from per-strip buffers when H-tiling lands;
            #             keep below v7x's 64 MiB per-TC physical VMEM.
            vmem_limit_bytes=32 * 1024 * 1024,
        ),
    )(x_nhwc.astype(compute_dtype), w1, b1, w2, b2)


# --------------------------------------------------------------------------- #
# Parameter packing / BN folding (wrapper side, weight-sized work only)
# --------------------------------------------------------------------------- #
def fold_bn_into_conv(w_hwio, gamma, beta, mean, var, eps=1e-5):
    """Inference-mode BN folded into the conv: returns (w * scale, bias)."""
    scale = gamma / jnp.sqrt(var + eps)                  # (Cout,)
    return w_hwio * scale[None, None, None, :], beta - mean * scale


def _pack_weights(w_hwio, bias, cin_s, nout_p, dtype):
    """Pad channels and fold HWIO into the dx-major im2col layout (3, 3*cin_s, nout_p).

    Row order inside each dx slab is (dy, ci), matching the dy-concat LHS.
    """
    kh, kw, cin, cout = w_hwio.shape
    w = jnp.pad(w_hwio, ((0, 0), (0, 0), (0, cin_s - cin), (0, nout_p - cout)))
    w = jnp.transpose(w, (1, 0, 2, 3)).reshape(kw, kh * cin_s, nout_p)
    b = jnp.pad(bias, (0, nout_p - cout)).reshape(1, nout_p).astype(jnp.float32)
    return w.astype(dtype), b


def _default_images_per_step(n):
    # v7x has 2 TensorCores/chip: give each TC an independent "parallel" step.
    # v5e/v6e have a single TC: one big step (matmul M = N*H*W) halves the
    # per-step pipeline overhead and feeds the MXU more rows per weight push.
    try:
        kind = jax.devices()[0].device_kind.lower()
        if ("v7" in kind or "7x" in kind) and n % 2 == 0 and n >= 2:
            return n // 2
    except Exception:
        pass
    return n


@partial(jax.jit, static_argnames=("compute_dtype", "images_per_step"))
def double_conv_forward(x_nchw, params, *, compute_dtype=jnp.bfloat16,
                        images_per_step=None):
    N, Cin, H, W = x_nchw.shape
    Cout = params["w1"].shape[-1]
    sub = 8 * (4 // jnp.dtype(compute_dtype).itemsize)   # 8 for f32, 16 for bf16
    cin_s = _round_up(Cin, sub)      # contraction channels: sublane multiple only
    cmid_s = _round_up(Cout, sub)    # conv1 output / conv2 input channels
    cout_p = _round_up(Cout, LANE)   # final output: lane-dense (full 128-lane vst)

    if images_per_step is None:
        images_per_step = _default_images_per_step(N)

    # NCHW (PyTorch) -> NHWC channels-last; pad Cin only to the sublane multiple
    # (no spatially-padded HBM copy: the 1-px halo is built in VMEM by the kernel).
    x = jnp.transpose(x_nchw, (0, 2, 3, 1))
    x = jnp.pad(x, ((0, 0), (0, 0), (0, 0), (0, cin_s - Cin)))

    w1, b1 = fold_bn_into_conv(params["w1"], params["gamma1"], params["beta1"],
                               params["mean1"], params["var1"])
    w2, b2 = fold_bn_into_conv(params["w2"], params["gamma2"], params["beta2"],
                               params["mean2"], params["var2"])
    w1, b1 = _pack_weights(w1, b1, cin_s, cmid_s, compute_dtype)
    w2, b2 = _pack_weights(w2, b2, cmid_s, cout_p, compute_dtype)

    y = fused_double_conv(x, w1, b1, w2, b2,
                          images_per_step=images_per_step,
                          compute_dtype=compute_dtype)
    # strip channel padding, NHWC -> NCHW
    return jnp.transpose(y[..., :Cout], (0, 3, 1, 2)).astype(x_nchw.dtype)


# --------------------------------------------------------------------------- #
# Params / reference / test
# --------------------------------------------------------------------------- #
def init_double_conv_params(key, in_channels, out_channels):
    k1, k2, k3, k4 = jax.random.split(key, 4)
    w1 = 0.1 * jax.random.normal(k1, (3, 3, in_channels, out_channels), jnp.float32)
    w2 = 0.1 * jax.random.normal(k2, (3, 3, out_channels, out_channels), jnp.float32)
    return dict(
        w1=w1, w2=w2,
        gamma1=1.0 + 0.05 * jax.random.normal(k3, (out_channels,), jnp.float32),
        beta1=0.01 * jnp.arange(out_channels, dtype=jnp.float32),
        mean1=0.02 * jnp.arange(out_channels, dtype=jnp.float32),
        var1=jnp.ones((out_channels,), jnp.float32),
        gamma2=1.0 + 0.05 * jax.random.normal(k4, (out_channels,), jnp.float32),
        beta2=-0.01 * jnp.arange(out_channels, dtype=jnp.float32),
        mean2=-0.02 * jnp.arange(out_channels, dtype=jnp.float32),
        var2=jnp.ones((out_channels,), jnp.float32),
    )


def double_conv_reference(x_nchw, params):
    """Pure-JAX reference (inference-mode BN) for validation."""
    def one(x, w, g, b, m, v):
        y = jax.lax.conv_general_dilated(
            x, w, window_strides=(1, 1), padding="SAME",
            dimension_numbers=("NCHW", "HWIO", "NCHW"))
        s = g / jnp.sqrt(v + 1e-5)
        y = y * s[None, :, None, None] + (b - m * s)[None, :, None, None]
        return jnp.maximum(y, 0.0)
    y = one(x_nchw, params["w1"], params["gamma1"], params["beta1"],
            params["mean1"], params["var1"])
    y = one(y, params["w2"], params["gamma2"], params["beta2"],
            params["mean2"], params["var2"])
    return y


if __name__ == "__main__":
    key = jax.random.PRNGKey(0)
    kx, kp = jax.random.split(key)

    in_channels, out_channels = 4, 8
    x = jax.random.normal(kx, (2, in_channels, 16, 16), jnp.float32)  # NCHW
    params = init_double_conv_params(kp, in_channels, out_channels)

    ref = double_conv_reference(x, params)

    # f32 operands: tight check against the pure-JAX reference.
    out_f32 = jax.block_until_ready(
        double_conv_forward(x, params, compute_dtype=jnp.float32))
    assert out_f32.shape == (2, out_channels, 16, 16), out_f32.shape
    assert jnp.allclose(out_f32, ref, atol=1e-3, rtol=1e-3), "f32 mismatch vs reference"

    # bf16 operands (default; the fast MXU path on v6e/v7x): looser tolerance is
    # the expected precision tradeoff of bf16 operands + bf16 intermediate.
    out_bf16 = jax.block_until_ready(double_conv_forward(x, params))
    assert out_bf16.shape == (2, out_channels, 16, 16), out_bf16.shape
    assert jnp.allclose(out_bf16, ref, atol=6e-2, rtol=6e-2), "bf16 mismatch vs reference"

    print("KERNEL_OK")
</pallas_src>

<mosaic_0001>
module attributes {stable_mosaic.version = 11 : i64} {
  func.func @_double_conv_kernel(%arg0: i32, %arg1: memref<2x16x16x8xf32, #tpu.memory_space<vmem>>, %arg2: memref<3x24x8xf32, #tpu.memory_space<vmem>>, %arg3: memref<1x8xf32, #tpu.memory_space<vmem>>, %arg4: memref<3x24x128xf32, #tpu.memory_space<vmem>>, %arg5: memref<1x128xf32, #tpu.memory_space<vmem>>, %arg6: memref<2x16x16x128xf32, #tpu.memory_space<vmem>>, %arg7: memref<2x18x18x8xf32, #tpu.memory_space<vmem>>, %arg8: memref<2x18x18x8xf32, #tpu.memory_space<vmem>>) attributes {dimension_semantics = [#tpu.dimension_semantics<parallel>], iteration_bounds = array<i64: 1>, scalar_prefetch = 0 : i64, scratch_operands = 2 : i64, tpu.core_type = #tpu.core_type<tc>, window_params = [{transform_indices = @transform_0, window_bounds = array<i64: 2, 16, 16, 8>}, {pipeline_mode = #tpu.pipeline_mode<synchronous>, transform_indices = @transform_1, window_bounds = array<i64: 3, 24, 8>}, {pipeline_mode = #tpu.pipeline_mode<synchronous>, transform_indices = @transform_2, window_bounds = array<i64: 1, 8>}, {pipeline_mode = #tpu.pipeline_mode<synchronous>, transform_indices = @transform_3, window_bounds = array<i64: 3, 24, 128>}, {pipeline_mode = #tpu.pipeline_mode<synchronous>, transform_indices = @transform_4, window_bounds = array<i64: 1, 128>}, {transform_indices = @transform_5, window_bounds = array<i64: 2, 16, 16, 128>}]} {
    %c0_i32 = arith.constant 0 : i32
    %0 = arith.cmpi eq, %arg0, %c0_i32 : i32
    %1 = arith.extui %0 : i1 to i32
    %c0_i32_0 = arith.constant 0 : i32
    %2 = arith.cmpi ne, %1, %c0_i32_0 : i32
    scf.if %2 {
      %cst_51 = arith.constant 0.000000e+00 : f32
      %63 = vector.broadcast %cst_51 : f32 to vector<2x18x18x8xf32>
      %c0_52 = arith.constant 0 : index
      %c0_53 = arith.constant 0 : index
      %c0_54 = arith.constant 0 : index
      %c0_55 = arith.constant 0 : index
      %64 = vector.load %arg7[%c0_52, %c0_53, %c0_54, %c0_55] : memref<2x18x18x8xf32, #tpu.memory_space<vmem>>, vector<2x18x18x8xf32>
      tpu.vector_store %arg7[%c0_52, %c0_53, %c0_54, %c0_55], %63 {strides = array<i32>} : memref<2x18x18x8xf32, #tpu.memory_space<vmem>>, vector<2x18x18x8xf32>,
      %cst_56 = arith.constant 0.000000e+00 : f32
      %65 = vector.broadcast %cst_56 : f32 to vector<2x18x18x8xf32>
      %c0_57 = arith.constant 0 : index
      %c0_58 = arith.constant 0 : index
      %c0_59 = arith.constant 0 : index
      %c0_60 = arith.constant 0 : index
      %66 = vector.load %arg8[%c0_57, %c0_58, %c0_59, %c0_60] : memref<2x18x18x8xf32, #tpu.memory_space<vmem>>, vector<2x18x18x8xf32>
      tpu.vector_store %arg8[%c0_57, %c0_58, %c0_59, %c0_60], %65 {strides = array<i32>} : memref<2x18x18x8xf32, #tpu.memory_space<vmem>>, vector<2x18x18x8xf32>,
    } else {
    }
    %c0 = arith.constant 0 : index
    %c0_1 = arith.constant 0 : index
    %c0_2 = arith.constant 0 : index
    %c0_3 = arith.constant 0 : index
    %3 = vector.load %arg1[%c0, %c0_1, %c0_2, %c0_3] : memref<2x16x16x8xf32, #tpu.memory_space<vmem>>, vector<2x16x16x8xf32>
    %c0_4 = arith.constant 0 : index
    %c1 = arith.constant 1 : index
    %c1_5 = arith.constant 1 : index
    %c0_6 = arith.constant 0 : index
    %4 = vector.load %arg7[%c0_4, %c1, %c1_5, %c0_6] : memref<2x18x18x8xf32, #tpu.memory_space<vmem>>, vector<2x16x16x8xf32>
    tpu.vector_store %arg7[%c0_4, %c1, %c1_5, %c0_6], %3 {strides = array<i32>} : memref<2x18x18x8xf32, #tpu.memory_space<vmem>>, vector<2x16x16x8xf32>,
    %c0_7 = arith.constant 0 : index
    %c0_8 = arith.constant 0 : index
    %c0_9 = arith.constant 0 : index
    %c0_10 = arith.constant 0 : index
    %5 = vector.load %arg7[%c0_7, %c0_8, %c0_9, %c0_10] : memref<2x18x18x8xf32, #tpu.memory_space<vmem>>, vector<2x18x18x8xf32>
    %6 = vector.extract_strided_slice %5 {offsets = [0, 0, 0, 0], sizes = [2, 16, 18, 8], strides = [1, 1, 1, 1]} : vector<2x18x18x8xf32> to vector<2x16x18x8xf32>
    %7 = vector.extract_strided_slice %5 {offsets = [0, 1, 0, 0], sizes = [2, 16, 18, 8], strides = [1, 1, 1, 1]} : vector<2x18x18x8xf32> to vector<2x16x18x8xf32>
    %8 = vector.extract_strided_slice %5 {offsets = [0, 2, 0, 0], sizes = [2, 16, 18, 8], strides = [1, 1, 1, 1]} : vector<2x18x18x8xf32> to vector<2x16x18x8xf32>
    %9 = tpu.concatenate %6, %7, %8 in 3 : vector<2x16x18x8xf32>, vector<2x16x18x8xf32>, vector<2x16x18x8xf32> -> vector<2x16x18x24xf32>
    %10 = vector.extract_strided_slice %9 {offsets = [0, 0, 0, 0], sizes = [2, 16, 16, 24], strides = [1, 1, 1, 1]} : vector<2x16x18x24xf32> to vector<2x16x16x24xf32>
    %11 = vector.shape_cast %10 : vector<2x16x16x24xf32> to vector<512x24xf32>
    %c0_11 = arith.constant 0 : index
    %c0_12 = arith.constant 0 : index
    %c0_13 = arith.constant 0 : index
    %12 = vector.load %arg2[%c0_11, %c0_12, %c0_13] : memref<3x24x8xf32, #tpu.memory_space<vmem>>, vector<1x24x8xf32>
    %13 = vector.shape_cast %12 : vector<1x24x8xf32> to vector<24x8xf32>
    %cst = arith.constant dense<0.000000e+00> : vector<512x8xf32>
    %14 = tpu.matmul %11, %13, %cst {dimension_numbers = #tpu.dot_dimension_numbers<[1], [0], [0], [1], [0, 0, 1, 1], [], []>} : vector<512x24xf32>, vector<24x8xf32>, vector<512x8xf32> -> vector<512x8xf32>
    %15 = vector.extract_strided_slice %9 {offsets = [0, 0, 1, 0], sizes = [2, 16, 16, 24], strides = [1, 1, 1, 1]} : vector<2x16x18x24xf32> to vector<2x16x16x24xf32>
    %16 = vector.shape_cast %15 : vector<2x16x16x24xf32> to vector<512x24xf32>
    %c1_14 = arith.constant 1 : index
    %c0_15 = arith.constant 0 : index
    %c0_16 = arith.constant 0 : index
    %17 = vector.load %arg2[%c1_14, %c0_15, %c0_16] : memref<3x24x8xf32, #tpu.memory_space<vmem>>, vector<1x24x8xf32>
    %18 = vector.shape_cast %17 : vector<1x24x8xf32> to vector<24x8xf32>
    %cst_17 = arith.constant dense<0.000000e+00> : vector<512x8xf32>
    %19 = tpu.matmul %16, %18, %cst_17 {dimension_numbers = #tpu.dot_dimension_numbers<[1], [0], [0], [1], [0, 0, 1, 1], [], []>} : vector<512x24xf32>, vector<24x8xf32>, vector<512x8xf32> -> vector<512x8xf32>
    %20 = arith.addf %14, %19 : vector<512x8xf32>
    %21 = vector.extract_strided_slice %9 {offsets = [0, 0, 2, 0], sizes = [2, 16, 16, 24], strides = [1, 1, 1, 1]} : vector<2x16x18x24xf32> to vector<2x16x16x24xf32>
    %22 = vector.shape_cast %21 : vector<2x16x16x24xf32> to vector<512x24xf32>
    %c2 = arith.constant 2 : index
    %c0_18 = arith.constant 0 : index
    %c0_19 = arith.constant 0 : index
    %23 = vector.load %arg2[%c2, %c0_18, %c0_19] : memref<3x24x8xf32, #tpu.memory_space<vmem>>, vector<1x24x8xf32>
    %24 = vector.shape_cast %23 : vector<1x24x8xf32> to vector<24x8xf32>
    %cst_20 = arith.constant dense<0.000000e+00> : vector<512x8xf32>
    %25 = tpu.matmul %22, %24, %cst_20 {dimension_numbers = #tpu.dot_dimension_numbers<[1], [0], [0], [1], [0, 0, 1, 1], [], []>} : vector<512x24xf32>, vector<24x8xf32>, vector<512x8xf32> -> vector<512x8xf32>
    %26 = arith.addf %20, %25 : vector<512x8xf32>
    %c0_21 = arith.constant 0 : index
    %c0_22 = arith.constant 0 : index
    %27 = vector.load %arg3[%c0_21, %c0_22] : memref<1x8xf32, #tpu.memory_space<vmem>>, vector<1x8xf32>
    %28 = vector.broadcast %27 : vector<1x8xf32> to vector<512x8xf32>
    %29 = arith.addf %26, %28 : vector<512x8xf32>
    %cst_23 = arith.constant 0.000000e+00 : f32
    %30 = vector.broadcast %cst_23 : f32 to vector<512x8xf32>
    %31 = arith.maximumf %29, %30 : vector<512x8xf32>
    %32 = vector.shape_cast %31 : vector<512x8xf32> to vector<2x16x16x8xf32>
    %c0_24 = arith.constant 0 : index
    %c1_25 = arith.constant 1 : index
    %c1_26 = arith.constant 1 : index
    %c0_27 = arith.constant 0 : index
    %33 = vector.load %arg8[%c0_24, %c1_25, %c1_26, %c0_27] : memref<2x18x18x8xf32, #tpu.memory_space<vmem>>, vector<2x16x16x8xf32>
    tpu.vector_store %arg8[%c0_24, %c1_25, %c1_26, %c0_27], %32 {strides = array<i32>} : memref<2x18x18x8xf32, #tpu.memory_space<vmem>>, vector<2x16x16x8xf32>,
    %c0_28 = arith.constant 0 : index
    %c0_29 = arith.constant 0 : index
    %c0_30 = arith.constant 0 : index
    %c0_31 = arith.constant 0 : index
    %34 = vector.load %arg8[%c0_28, %c0_29, %c0_30, %c0_31] : memref<2x18x18x8xf32, #tpu.memory_space<vmem>>, vector<2x18x18x8xf32>
    %35 = vector.extract_strided_slice %34 {offsets = [0, 0, 0, 0], sizes = [2, 16, 18, 8], strides = [1, 1, 1, 1]} : vector<2x18x18x8xf32> to vector<2x16x18x8xf32>
    %36 = vector.extract_strided_slice %34 {offsets = [0, 1, 0, 0], sizes = [2, 16, 18, 8], strides = [1, 1, 1, 1]} : vector<2x18x18x8xf32> to vector<2x16x18x8xf32>
    %37 = vector.extract_strided_slice %34 {offsets = [0, 2, 0, 0], sizes = [2, 16, 18, 8], strides = [1, 1, 1, 1]} : vector<2x18x18x8xf32> to vector<2x16x18x8xf32>
    %38 = tpu.concatenate %35, %36, %37 in 3 : vector<2x16x18x8xf32>, vector<2x16x18x8xf32>, vector<2x16x18x8xf32> -> vector<2x16x18x24xf32>
    %39 = vector.extract_strided_slice %38 {offsets = [0, 0, 0, 0], sizes = [2, 16, 16, 24], strides = [1, 1, 1, 1]} : vector<2x16x18x24xf32> to vector<2x16x16x24xf32>
    %40 = vector.shape_cast %39 : vector<2x16x16x24xf32> to vector<512x24xf32>
    %c0_32 = arith.constant 0 : index
    %c0_33 = arith.constant 0 : index
    %c0_34 = arith.constant 0 : index
    %41 = vector.load %arg4[%c0_32, %c0_33, %c0_34] : memref<3x24x128xf32, #tpu.memory_space<vmem>>, vector<1x24x128xf32>
    %42 = vector.shape_cast %41 : vector<1x24x128xf32> to vector<24x128xf32>
    %cst_35 = arith.constant dense<0.000000e+00> : vector<512x128xf32>
    %43 = tpu.matmul %40, %42, %cst_35 {dimension_numbers = #tpu.dot_dimension_numbers<[1], [0], [0], [1], [0, 0, 1, 1], [], []>} : vector<512x24xf32>, vector<24x128xf32>, vector<512x128xf32> -> vector<512x128xf32>
    %44 = vector.extract_strided_slice %38 {offsets = [0, 0, 1, 0], sizes = [2, 16, 16, 24], strides = [1, 1, 1, 1]} : vector<2x16x18x24xf32> to vector<2x16x16x24xf32>
    %45 = vector.shape_cast %44 : vector<2x16x16x24xf32> to vector<512x24xf32>
    %c1_36 = arith.constant 1 : index
    %c0_37 = arith.constant 0 : index
    %c0_38 = arith.constant 0 : index
    %46 = vector.load %arg4[%c1_36, %c0_37, %c0_38] : memref<3x24x128xf32, #tpu.memory_space<vmem>>, vector<1x24x128xf32>
    %47 = vector.shape_cast %46 : vector<1x24x128xf32> to vector<24x128xf32>
    %cst_39 = arith.constant dense<0.000000e+00> : vector<512x128xf32>
    %48 = tpu.matmul %45, %47, %cst_39 {dimension_numbers = #tpu.dot_dimension_numbers<[1], [0], [0], [1], [0, 0, 1, 1], [], []>} : vector<512x24xf32>, vector<24x128xf32>, vector<512x128xf32> -> vector<512x128xf32>
    %49 = arith.addf %43, %48 : vector<512x128xf32>
    %50 = vector.extract_strided_slice %38 {offsets = [0, 0, 2, 0], sizes = [2, 16, 16, 24], strides = [1, 1, 1, 1]} : vector<2x16x18x24xf32> to vector<2x16x16x24xf32>
    %51 = vector.shape_cast %50 : vector<2x16x16x24xf32> to vector<512x24xf32>
    %c2_40 = arith.constant 2 : index
    %c0_41 = arith.constant 0 : index
    %c0_42 = arith.constant 0 : index
    %52 = vector.load %arg4[%c2_40, %c0_41, %c0_42] : memref<3x24x128xf32, #tpu.memory_space<vmem>>, vector<1x24x128xf32>
    %53 = vector.shape_cast %52 : vector<1x24x128xf32> to vector<24x128xf32>
    %cst_43 = arith.constant dense<0.000000e+00> : vector<512x128xf32>
    %54 = tpu.matmul %51, %53, %cst_43 {dimension_numbers = #tpu.dot_dimension_numbers<[1], [0], [0], [1], [0, 0, 1, 1], [], []>} : vector<512x24xf32>, vector<24x128xf32>, vector<512x128xf32> -> vector<512x128xf32>
    %55 = arith.addf %49, %54 : vector<512x128xf32>
    %c0_44 = arith.constant 0 : index
    %c0_45 = arith.constant 0 : index
    %56 = vector.load %arg5[%c0_44, %c0_45] : memref<1x128xf32, #tpu.memory_space<vmem>>, vector<1x128xf32>
    %57 = vector.broadcast %56 : vector<1x128xf32> to vector<512x128xf32>
    %58 = arith.addf %55, %57 : vector<512x128xf32>
    %cst_46 = arith.constant 0.000000e+00 : f32
    %59 = vector.broadcast %cst_46 : f32 to vector<512x128xf32>
    %60 = arith.maximumf %58, %59 : vector<512x128xf32>
    %61 = vector.shape_cast %60 : vector<512x128xf32> to vector<2x16x16x128xf32>
    %c0_47 = arith.constant 0 : index
    %c0_48 = arith.constant 0 : index
    %c0_49 = arith.constant 0 : index
    %c0_50 = arith.constant 0 : index
    %62 = vector.load %arg6[%c0_47, %c0_48, %c0_49, %c0_50] : memref<2x16x16x128xf32, #tpu.memory_space<vmem>>, vector<2x16x16x128xf32>
    tpu.vector_store %arg6[%c0_47, %c0_48, %c0_49, %c0_50], %61 {strides = array<i32>} : memref<2x16x16x128xf32, #tpu.memory_space<vmem>>, vector<2x16x16x128xf32>,
    return
  }
  func.func @transform_0(%arg0: i32) -> (i32, i32, i32, i32) {
    %c0_i32 = arith.constant 0 : i32
    %c0_i32_0 = arith.constant 0 : i32
    %c0_i32_1 = arith.constant 0 : i32
    %c0_i32_2 = arith.constant 0 : i32
    return %arg0, %c0_i32, %c0_i32_0, %c0_i32_1 : i32, i32, i32, i32
  }
  func.func @transform_1(%arg0: i32) -> (i32, i32, i32) {
    %c0_i32 = arith.constant 0 : i32
    %c0_i32_0 = arith.constant 0 : i32
    %c0_i32_1 = arith.constant 0 : i32
    %c0_i32_2 = arith.constant 0 : i32
    return %c0_i32, %c0_i32_0, %c0_i32_1 : i32, i32, i32
  }
  func.func @transform_2(%arg0: i32) -> (i32, i32) {
    %c0_i32 = arith.constant 0 : i32
    %c0_i32_0 = arith.constant 0 : i32
    %c0_i32_1 = arith.constant 0 : i32
    return %c0_i32, %c0_i32_0 : i32, i32
  }
  func.func @transform_3(%arg0: i32) -> (i32, i32, i32) {
    %c0_i32 = arith.constant 0 : i32
    %c0_i32_0 = arith.constant 0 : i32
    %c0_i32_1 = arith.constant 0 : i32
    %c0_i32_2 = arith.constant 0 : i32
    return %c0_i32, %c0_i32_0, %c0_i32_1 : i32, i32, i32
  }
  func.func @transform_4(%arg0: i32) -> (i32, i32) {
    %c0_i32 = arith.constant 0 : i32
    %c0_i32_0 = arith.constant 0 : i32
    %c0_i32_1 = arith.constant 0 : i32
    return %c0_i32, %c0_i32_0 : i32, i32
  }
  func.func @transform_5(%arg0: i32) -> (i32, i32, i32, i32) {
    %c0_i32 = arith.constant 0 : i32
    %c0_i32_0 = arith.constant 0 : i32
    %c0_i32_1 = arith.constant 0 : i32
    %c0_i32_2 = arith.constant 0 : i32
    return %arg0, %c0_i32, %c0_i32_0, %c0_i32_1 : i32, i32, i32, i32
  }
}

</mosaic_0001>

<llo_original>
// kernel: double_conv_forward.1
$region0: #{double_conv_forward.1}
  #allocation0 [shape = 'u32[]', space=smem, size = 0x4, offset = 0x4, fixed_abs, tag = 'smem constant byte address 0x4 - core index']
  #allocation1 [shape = 'u32[144,128]{1,0:T(1,128)}', space=vmem, size = 0x12000, scoped, tag = 'internal scratch']
  #allocation2 [shape = 'f32[2,18,18,8]{3,2,1,0:T(8,128)}', space=vmem, size = 0x6c000, scoped, tag = 'scratch operand']
  #allocation3 [shape = 'f32[2,18,18,8]{3,2,1,0:T(8,128)}', space=vmem, size = 0x6c000, scoped, tag = 'scratch operand']
  %s0 = inlined_call_operand.vmem [shape: f32[2,16,16,8], index: 0, kind: input, shape index: {}]
  %s1 = inlined_call_operand.vmem [shape: f32[3,24,8], index: 1, kind: input, shape index: {}]
  %s2 = inlined_call_operand.vmem [shape: f32[1,8], index: 2, kind: input, shape index: {}]
  %s3 = inlined_call_operand.vmem [shape: f32[3,24,128], index: 3, kind: input, shape index: {}]
  %s4 = inlined_call_operand.vmem [shape: f32[1,128], index: 4, kind: input, shape index: {}]
  %s5 = inlined_call_operand.vmem [shape: f32[2,16,16,128], index: 5, kind: output, shape index: {}]
  %s6 = sld [smem:[#allocation0]]
  $region34: #{double_conv_forward.1} parent=0
    _
  %s8 = ssub.s32 1, %s6
  %s9 = scalar_select 0, %s8, %s6
  // Predicated region
  $region2: #{double_conv_forward.1} parent=0 // pred_check
    _
  $region3: #{double_conv_forward.1} parent=0 // pred_check_branch
    %11 = sbr.rel (0) target = $region5
  $region4: #{double_conv_forward.1} parent=0 // pred_region
    _
  $region5: #{double_conv_forward.1} parent=0 // pred_fallthru
    _
  // Predicated region
  $region6: #{double_conv_forward.1} parent=0 // pred_check
    _
  $region7: #{double_conv_forward.1} parent=0 // pred_check_branch
    %13 = sbr.rel (0) target = $region9
  $region8: #{double_conv_forward.1} parent=0 // pred_region
    _
  $region9: #{double_conv_forward.1} parent=0 // pred_fallthru
    _
  // Predicated region
  $region10: #{double_conv_forward.1} parent=0 // pred_check
    _
  $region11: #{double_conv_forward.1} parent=0 // pred_check_branch
    %15 = sbr.rel (0) target = $region13
  $region12: #{double_conv_forward.1} parent=0 // pred_region
    _
  $region13: #{double_conv_forward.1} parent=0 // pred_fallthru
    _
  // Predicated region
  $region14: #{double_conv_forward.1} parent=0 // pred_check
    _
  $region15: #{double_conv_forward.1} parent=0 // pred_check_branch
    %17 = sbr.rel (0) target = $region17
  $region16: #{double_conv_forward.1} parent=0 // pred_region
    _
  $region17: #{double_conv_forward.1} parent=0 // pred_fallthru
    _
  // Predicated region
  $region18: #{double_conv_forward.1} parent=0 // pred_check
    _
  $region19: #{double_conv_forward.1} parent=0 // pred_check_branch
    %19 = sbr.rel (0) target = $region21
  $region20: #{double_conv_forward.1} parent=0 // pred_region
    _
  $region21: #{double_conv_forward.1} parent=0 // pred_fallthru
    _
  %p20 = scmp.eq.s32.totalorder 0, 0
  // Predicated region
  $region22: #{double_conv_forward.1} parent=0 // pred_check
    %p21 = pneg %p20
  $region23: #{double_conv_forward.1} parent=0 // pred_check_branch
    %23 = sbr.rel (%p21) target = $region25
  $region24: #{double_conv_forward.1} parent=0 // pred_region
    %vm24 = vcmask 64512
    %25 = vst.msk [vmem:[#allocation2] sm:$0xff] %vm24, 0.0
    %26 = vst.msk [vmem:[#allocation2 + $0x8] sm:$0xff] %vm24, 0.0
    %vm27 = vcmask 58368
    %28 = vst.msk [vmem:[#allocation2 + $0x10] sm:$0x3] %vm27, 0.0
    %29 = vst.msk [vmem:[#allocation2 + $0x18] sm:$0xff] %vm24, 0.0
    %30 = vst.msk [vmem:[#allocation2 + $0x20] sm:$0xff] %vm24, 0.0
    %31 = vst.msk [vmem:[#allocation2 + $0x28] sm:$0x3] %vm27, 0.0
    %32 = vst.msk [vmem:[#allocation2 + $0x30] sm:$0xff] %vm24, 0.0
    %33 = vst.msk [vmem:[#allocation2 + $0x38] sm:$0xff] %vm24, 0.0
    %34 = vst.msk [vmem:[#allocation2 + $0x40] sm:$0x3] %vm27, 0.0
    %35 = vst.msk [vmem:[#allocation2 + $0x48] sm:$0xff] %vm24, 0.0
    %36 = vst.msk [vmem:[#allocation2 + $0x50] sm:$0xff] %vm24, 0.0
    %37 = vst.msk [vmem:[#allocation2 + $0x58] sm:$0x3] %vm27, 0.0
    %38 = vst.msk [vmem:[#allocation2 + $0x60] sm:$0xff] %vm24, 0.0
    %39 = vst.msk [vmem:[#allocation2 + $0x68] sm:$0xff] %vm24, 0.0
    %40 = vst.msk [vmem:[#allocation2 + $0x70] sm:$0x3] %vm27, 0.0
    %41 = vst.msk [vmem:[#allocation2 + $0x78] sm:$0xff] %vm24, 0.0
    %42 = vst.msk [vmem:[#allocation2 + $0x80] sm:$0xff] %vm24, 0.0
    %43 = vst.msk [vmem:[#allocation2 + $0x88] sm:$0x3] %vm27, 0.0
    %44 = vst.msk [vmem:[#allocation2 + $0x90] sm:$0xff] %vm24, 0.0
    %45 = vst.msk [vmem:[#allocation2 + $0x98] sm:$0xff] %vm24, 0.0
    %46 = vst.msk [vmem:[#allocation2 + $0xa0] sm:$0x3] %vm27, 0.0
    %47 = vst.msk [vmem:[#allocation2 + $0xa8] sm:$0xff] %vm24, 0.0
    %48 = vst.msk [vmem:[#allocation2 + $0xb0] sm:$0xff] %vm24, 0.0
    %49 = vst.msk [vmem:[#allocation2 + $0xb8] sm:$0x3] %vm27, 0.0
    %50 = vst.msk [vmem:[#allocation2 + $0xc0] sm:$0xff] %vm24, 0.0
    %51 = vst.msk [vmem:[#allocation2 + $0xc8] sm:$0xff] %vm24, 0.0
    %52 = vst.msk [vmem:[#allocation2 + $0xd0] sm:$0x3] %vm27, 0.0
    %53 = vst.msk [vmem:[#allocation2 + $0xd8] sm:$0xff] %vm24, 0.0
    %54 = vst.msk [vmem:[#allocation2 + $0xe0] sm:$0xff] %vm24, 0.0
    %55 = vst.msk [vmem:[#allocation2 + $0xe8] sm:$0x3] %vm27, 0.0
    %56 = vst.msk [vmem:[#allocation2 + $0xf0] sm:$0xff] %vm24, 0.0
    %57 = vst.msk [vmem:[#allocation2 + $0xf8] sm:$0xff] %vm24, 0.0
    %58 = vst.msk [vmem:[#allocation2 + $0x100] sm:$0x3] %vm27, 0.0
    %59 = vst.msk [vmem:[#allocation2 + $0x108] sm:$0xff] %vm24, 0.0
    %60 = vst.msk [vmem:[#allocation2 + $0x110] sm:$0xff] %vm24, 0.0
    %61 = vst.msk [vmem:[#allocation2 + $0x118] sm:$0x3] %vm27, 0.0
    %62 = vst.msk [vmem:[#allocation2 + $0x120] sm:$0xff] %vm24, 0.0
    %63 = vst.msk [vmem:[#allocation2 + $0x128] sm:$0xff] %vm24, 0.0
    %64 = vst.msk [vmem:[#allocation2 + $0x130] sm:$0x3] %vm27, 0.0
    %65 = vst.msk [vmem:[#allocation2 + $0x138] sm:$0xff] %vm24, 0.0
    %66 = vst.msk [vmem:[#allocation2 + $0x140] sm:$0xff] %vm24, 0.0
    %67 = vst.msk [vmem:[#allocation2 + $0x148] sm:$0x3] %vm27, 0.0
    %68 = vst.msk [vmem:[#allocation2 + $0x150] sm:$0xff] %vm24, 0.0
    %69 = vst.msk [vmem:[#allocation2 + $0x158] sm:$0xff] %vm24, 0.0
    %70 = vst.msk [vmem:[#allocation2 + $0x160] sm:$0x3] %vm27, 0.0
    %71 = vst.msk [vmem:[#allocation2 + $0x168] sm:$0xff] %vm24, 0.0
    %72 = vst.msk [vmem:[#allocation2 + $0x170] sm:$0xff] %vm24, 0.0
    %73 = vst.msk [vmem:[#allocation2 + $0x178] sm:$0x3] %vm27, 0.0
    %74 = vst.msk [vmem:[#allocation2 + $0x180] sm:$0xff] %vm24, 0.0
    %75 = vst.msk [vmem:[#allocation2 + $0x188] sm:$0xff] %vm24, 0.0
    %76 = vst.msk [vmem:[#allocation2 + $0x190] sm:$0x3] %vm27, 0.0
    %77 = vst.msk [vmem:[#allocation2 + $0x198] sm:$0xff] %vm24, 0.0
    %78 = vst.msk [vmem:[#allocation2 + $0x1a0] sm:$0xff] %vm24, 0.0
    %79 = vst.msk [vmem:[#allocation2 + $0x1a8] sm:$0x3] %vm27, 0.0
    %80 = vst.msk [vmem:[#allocation2 + $0x1b0] sm:$0xff] %vm24, 0.0
    %81 = vst.msk [vmem:[#allocation2 + $0x1b8] sm:$0xff] %vm24, 0.0
    %82 = vst.msk [vmem:[#allocation2 + $0x1c0] sm:$0x3] %vm27, 0.0
    %83 = vst.msk [vmem:[#allocation2 + $0x1c8] sm:$0xff] %vm24, 0.0
    %84 = vst.msk [vmem:[#allocation2 + $0x1d0] sm:$0xff] %vm24, 0.0
    %85 = vst.msk [vmem:[#allocation2 + $0x1d8] sm:$0x3] %vm27, 0.0
    %86 = vst.msk [vmem:[#allocation2 + $0x1e0] sm:$0xff] %vm24, 0.0
    %87 = vst.msk [vmem:[#allocation2 + $0x1e8] sm:$0xff] %vm24, 0.0
    %88 = vst.msk [vmem:[#allocation2 + $0x1f0] sm:$0x3] %vm27, 0.0
    %89 = vst.msk [vmem:[#allocation2 + $0x1f8] sm:$0xff] %vm24, 0.0
    %90 = vst.msk [vmem:[#allocation2 + $0x200] sm:$0xff] %vm24, 0.0
    %91 = vst.msk [vmem:[#allocation2 + $0x208] sm:$0x3] %vm27, 0.0
    %92 = vst.msk [vmem:[#allocation2 + $0x210] sm:$0xff] %vm24, 0.0
    %93 = vst.msk [vmem:[#allocation2 + $0x218] sm:$0xff] %vm24, 0.0
    %94 = vst.msk [vmem:[#allocation2 + $0x220] sm:$0x3] %vm27, 0.0
    %95 = vst.msk [vmem:[#allocation2 + $0x228] sm:$0xff] %vm24, 0.0
    %96 = vst.msk [vmem:[#allocation2 + $0x230] sm:$0xff] %vm24, 0.0
    %97 = vst.msk [vmem:[#allocation2 + $0x238] sm:$0x3] %vm27, 0.0
    %98 = vst.msk [vmem:[#allocation2 + $0x240] sm:$0xff] %vm24, 0.0
    %99 = vst.msk [vmem:[#allocation2 + $0x248] sm:$0xff] %vm24, 0.0
    %100 = vst.msk [vmem:[#allocation2 + $0x250] sm:$0x3] %vm27, 0.0
    %101 = vst.msk [vmem:[#allocation2 + $0x258] sm:$0xff] %vm24, 0.0
    %102 = vst.msk [vmem:[#allocation2 + $0x260] sm:$0xff] %vm24, 0.0
    %103 = vst.msk [vmem:[#allocation2 + $0x268] sm:$0x3] %vm27, 0.0
    %104 = vst.msk [vmem:[#allocation2 + $0x270] sm:$0xff] %vm24, 0.0
    %105 = vst.msk [vmem:[#allocation2 + $0x278] sm:$0xff] %vm24, 0.0
    %106 = vst.msk [vmem:[#allocation2 + $0x280] sm:$0x3] %vm27, 0.0
    %107 = vst.msk [vmem:[#allocation2 + $0x288] sm:$0xff] %vm24, 0.0
    %108 = vst.msk [vmem:[#allocation2 + $0x290] sm:$0xff] %vm24, 0.0
    %109 = vst.msk [vmem:[#allocation2 + $0x298] sm:$0x3] %vm27, 0.0
    %110 = vst.msk [vmem:[#allocation2 + $0x2a0] sm:$0xff] %vm24, 0.0
    %111 = vst.msk [vmem:[#allocation2 + $0x2a8] sm:$0xff] %vm24, 0.0
    %112 = vst.msk [vmem:[#allocation2 + $0x2b0] sm:$0x3] %vm27, 0.0
    %113 = vst.msk [vmem:[#allocation2 + $0x2b8] sm:$0xff] %vm24, 0.0
    %114 = vst.msk [vmem:[#allocation2 + $0x2c0] sm:$0xff] %vm24, 0.0
    %115 = vst.msk [vmem:[#allocation2 + $0x2c8] sm:$0x3] %vm27, 0.0
    %116 = vst.msk [vmem:[#allocation2 + $0x2d0] sm:$0xff] %vm24, 0.0
    %117 = vst.msk [vmem:[#allocation2 + $0x2d8] sm:$0xff] %vm24, 0.0
    %118 = vst.msk [vmem:[#allocation2 + $0x2e0] sm:$0x3] %vm27, 0.0
    %119 = vst.msk [vmem:[#allocation2 + $0x2e8] sm:$0xff] %vm24, 0.0
    %120 = vst.msk [vmem:[#allocation2 + $0x2f0] sm:$0xff] %vm24, 0.0
    %121 = vst.msk [vmem:[#allocation2 + $0x2f8] sm:$0x3] %vm27, 0.0
    %122 = vst.msk [vmem:[#allocation2 + $0x300] sm:$0xff] %vm24, 0.0
    %123 = vst.msk [vmem:[#allocation2 + $0x308] sm:$0xff] %vm24, 0.0
    %124 = vst.msk [vmem:[#allocation2 + $0x310] sm:$0x3] %vm27, 0.0
    %125 = vst.msk [vmem:[#allocation2 + $0x318] sm:$0xff] %vm24, 0.0
    %126 = vst.msk [vmem:[#allocation2 + $0x320] sm:$0xff] %vm24, 0.0
    %127 = vst.msk [vmem:[#allocation2 + $0x328] sm:$0x3] %vm27, 0.0
    %128 = vst.msk [vmem:[#allocation2 + $0x330] sm:$0xff] %vm24, 0.0
    %129 = vst.msk [vmem:[#allocation2 + $0x338] sm:$0xff] %vm24, 0.0
    %130 = vst.msk [vmem:[#allocation2 + $0x340] sm:$0x3] %vm27, 0.0
    %131 = vst.msk [vmem:[#allocation2 + $0x348] sm:$0xff] %vm24, 0.0
    %132 = vst.msk [vmem:[#allocation2 + $0x350] sm:$0xff] %vm24, 0.0
    %133 = vst.msk [vmem:[#allocation2 + $0x358] sm:$0x3] %vm27, 0.0
    %134 = vst.msk [vmem:[#allocation3] sm:$0xff] %vm24, 0.0
    %135 = vst.msk [vmem:[#allocation3 + $0x8] sm:$0xff] %vm24, 0.0
    %136 = vst.msk [vmem:[#allocation3 + $0x10] sm:$0x3] %vm27, 0.0
    %137 = vst.msk [vmem:[#allocation3 + $0x18] sm:$0xff] %vm24, 0.0
    %138 = vst.msk [vmem:[#allocation3 + $0x20] sm:$0xff] %vm24, 0.0
    %139 = vst.msk [vmem:[#allocation3 + $0x28] sm:$0x3] %vm27, 0.0
    %140 = vst.msk [vmem:[#allocation3 + $0x30] sm:$0xff] %vm24, 0.0
    %141 = vst.msk [vmem:[#allocation3 + $0x38] sm:$0xff] %vm24, 0.0
    %142 = vst.msk [vmem:[#allocation3 + $0x40] sm:$0x3] %vm27, 0.0
    %143 = vst.msk [vmem:[#allocation3 + $0x48] sm:$0xff] %vm24, 0.0
    %144 = vst.msk [vmem:[#allocation3 + $0x50] sm:$0xff] %vm24, 0.0
    %145 = vst.msk [vmem:[#allocation3 + $0x58] sm:$0x3] %vm27, 0.0
    %146 = vst.msk [vmem:[#allocation3 + $0x60] sm:$0xff] %vm24, 0.0
    %147 = vst.msk [vmem:[#allocation3 + $0x68] sm:$0xff] %vm24, 0.0
    %148 = vst.msk [vmem:[#allocation3 + $0x70] sm:$0x3] %vm27, 0.0
    %149 = vst.msk [vmem:[#allocation3 + $0x78] sm:$0xff] %vm24, 0.0
    %150 = vst.msk [vmem:[#allocation3 + $0x80] sm:$0xff] %vm24, 0.0
    %151 = vst.msk [vmem:[#allocation3 + $0x88] sm:$0x3] %vm27, 0.0
    %152 = vst.msk [vmem:[#allocation3 + $0x90] sm:$0xff] %vm24, 0.0
    %153 = vst.msk [vmem:[#allocation3 + $0x98] sm:$0xff] %vm24, 0.0
    %154 = vst.msk [vmem:[#allocation3 + $0xa0] sm:$0x3] %vm27, 0.0
    %155 = vst.msk [vmem:[#allocation3 + $0xa8] sm:$0xff] %vm24, 0.0
    %156 = vst.msk [vmem:[#allocation3 + $0xb0] sm:$0xff] %vm24, 0.0
    %157 = vst.msk [vmem:[#allocation3 + $0xb8] sm:$0x3] %vm27, 0.0
    %158 = vst.msk [vmem:[#allocation3 + $0xc0] sm:$0xff] %vm24, 0.0
    %159 = vst.msk [vmem:[#allocation3 + $0xc8] sm:$0xff] %vm24, 0.0
    %160 = vst.msk [vmem:[#allocation3 + $0xd0] sm:$0x3] %vm27, 0.0
    %161 = vst.msk [vmem:[#allocation3 + $0xd8] sm:$0xff] %vm24, 0.0
    %162 = vst.msk [vmem:[#allocation3 + $0xe0] sm:$0xff] %vm24, 0.0
    %163 = vst.msk [vmem:[#allocation3 + $0xe8] sm:$0x3] %vm27, 0.0
    %164 = vst.msk [vmem:[#allocation3 + $0xf0] sm:$0xff] %vm24, 0.0
    %165 = vst.msk [vmem:[#allocation3 + $0xf8] sm:$0xff] %vm24, 0.0
    %166 = vst.msk [vmem:[#allocation3 + $0x100] sm:$0x3] %vm27, 0.0
    %167 = vst.msk [vmem:[#allocation3 + $0x108] sm:$0xff] %vm24, 0.0
    %168 = vst.msk [vmem:[#allocation3 + $0x110] sm:$0xff] %vm24, 0.0
    %169 = vst.msk [vmem:[#allocation3 + $0x118] sm:$0x3] %vm27, 0.0
    %170 = vst.msk [vmem:[#allocation3 + $0x120] sm:$0xff] %vm24, 0.0
    %171 = vst.msk [vmem:[#allocation3 + $0x128] sm:$0xff] %vm24, 0.0
    %172 = vst.msk [vmem:[#allocation3 + $0x130] sm:$0x3] %vm27, 0.0
    %173 = vst.msk [vmem:[#allocation3 + $0x138] sm:$0xff] %vm24, 0.0
    %174 = vst.msk [vmem:[#allocation3 + $0x140] sm:$0xff] %vm24, 0.0
    %175 = vst.msk [vmem:[#allocation3 + $0x148] sm:$0x3] %vm27, 0.0
    %176 = vst.msk [vmem:[#allocation3 + $0x150] sm:$0xff] %vm24, 0.0
    %177 = vst.msk [vmem:[#allocation3 + $0x158] sm:$0xff] %vm24, 0.0
    %178 = vst.msk [vmem:[#allocation3 + $0x160] sm:$0x3] %vm27, 0.0
    %179 = vst.msk [vmem:[#allocation3 + $0x168] sm:$0xff] %vm24, 0.0
    %180 = vst.msk [vmem:[#allocation3 + $0x170] sm:$0xff] %vm24, 0.0
    %181 = vst.msk [vmem:[#allocation3 + $0x178] sm:$0x3] %vm27, 0.0
    %182 = vst.msk [vmem:[#allocation3 + $0x180] sm:$0xff] %vm24, 0.0
    %183 = vst.msk [vmem:[#allocation3 + $0x188] sm:$0xff] %vm24, 0.0
    %184 = vst.msk [vmem:[#allocation3 + $0x190] sm:$0x3] %vm27, 0.0
    %185 = vst.msk [vmem:[#allocation3 + $0x198] sm:$0xff] %vm24, 0.0
    %186 = vst.msk [vmem:[#allocation3 + $0x1a0] sm:$0xff] %vm24, 0.0
    %187 = vst.msk [vmem:[#allocation3 + $0x1a8] sm:$0x3] %vm27, 0.0
    %188 = vst.msk [vmem:[#allocation3 + $0x1b0] sm:$0xff] %vm24, 0.0
    %189 = vst.msk [vmem:[#allocation3 + $0x1b8] sm:$0xff] %vm24, 0.0
    %190 = vst.msk [vmem:[#allocation3 + $0x1c0] sm:$0x3] %vm27, 0.0
    %191 = vst.msk [vmem:[#allocation3 + $0x1c8] sm:$0xff] %vm24, 0.0
    %192 = vst.msk [vmem:[#allocation3 + $0x1d0] sm:$0xff] %vm24, 0.0
    %193 = vst.msk [vmem:[#allocation3 + $0x1d8] sm:$0x3] %vm27, 0.0
    %194 = vst.msk [vmem:[#allocation3 + $0x1e0] sm:$0xff] %vm24, 0.0
    %195 = vst.msk [vmem:[#allocation3 + $0x1e8] sm:$0xff] %vm24, 0.0
    %196 = vst.msk [vmem:[#allocation3 + $0x1f0] sm:$0x3] %vm27, 0.0
    %197 = vst.msk [vmem:[#allocation3 + $0x1f8] sm:$0xff] %vm24, 0.0
    %198 = vst.msk [vmem:[#allocation3 + $0x200] sm:$0xff] %vm24, 0.0
    %199 = vst.msk [vmem:[#allocation3 + $0x208] sm:$0x3] %vm27, 0.0
    %200 = vst.msk [vmem:[#allocation3 + $0x210] sm:$0xff] %vm24, 0.0
    %201 = vst.msk [vmem:[#allocation3 + $0x218] sm:$0xff] %vm24, 0.0
    %202 = vst.msk [vmem:[#allocation3 + $0x220] sm:$0x3] %vm27, 0.0
    %203 = vst.msk [vmem:[#allocation3 + $0x228] sm:$0xff] %vm24, 0.0
    %204 = vst.msk [vmem:[#allocation3 + $0x230] sm:$0xff] %vm24, 0.0
    %205 = vst.msk [vmem:[#allocation3 + $0x238] sm:$0x3] %vm27, 0.0
    %206 = vst.msk [vmem:[#allocation3 + $0x240] sm:$0xff] %vm24, 0.0
    %207 = vst.msk [vmem:[#allocation3 + $0x248] sm:$0xff] %vm24, 0.0
    %208 = vst.msk [vmem:[#allocation3 + $0x250] sm:$0x3] %vm27, 0.0
    %209 = vst.msk [vmem:[#allocation3 + $0x258] sm:$0xff] %vm24, 0.0
    %210 = vst.msk [vmem:[#allocation3 + $0x260] sm:$0xff] %vm24, 0.0
    %211 = vst.msk [vmem:[#allocation3 + $0x268] sm:$0x3] %vm27, 0.0
    %212 = vst.msk [vmem:[#allocation3 + $0x270] sm:$0xff] %vm24, 0.0
    %213 = vst.msk [vmem:[#allocation3 + $0x278] sm:$0xff] %vm24, 0.0
    %214 = vst.msk [vmem:[#allocation3 + $0x280] sm:$0x3] %vm27, 0.0
    %215 = vst.msk [vmem:[#allocation3 + $0x288] sm:$0xff] %vm24, 0.0
    %216 = vst.msk [vmem:[#allocation3 + $0x290] sm:$0xff] %vm24, 0.0
    %217 = vst.msk [vmem:[#allocation3 + $0x298] sm:$0x3] %vm27, 0.0
    %218 = vst.msk [vmem:[#allocation3 + $0x2a0] sm:$0xff] %vm24, 0.0
    %219 = vst.msk [vmem:[#allocation3 + $0x2a8] sm:$0xff] %vm24, 0.0
    %220 = vst.msk [vmem:[#allocation3 + $0x2b0] sm:$0x3] %vm27, 0.0
    %221 = vst.msk [vmem:[#allocation3 + $0x2b8] sm:$0xff] %vm24, 0.0
    %222 = vst.msk [vmem:[#allocation3 + $0x2c0] sm:$0xff] %vm24, 0.0
    %223 = vst.msk [vmem:[#allocation3 + $0x2c8] sm:$0x3] %vm27, 0.0
    %224 = vst.msk [vmem:[#allocation3 + $0x2d0] sm:$0xff] %vm24, 0.0
    %225 = vst.msk [vmem:[#allocation3 + $0x2d8] sm:$0xff] %vm24, 0.0
    %226 = vst.msk [vmem:[#allocation3 + $0x2e0] sm:$0x3] %vm27, 0.0
    %227 = vst.msk [vmem:[#allocation3 + $0x2e8] sm:$0xff] %vm24, 0.0
    %228 = vst.msk [vmem:[#allocation3 + $0x2f0] sm:$0xff] %vm24, 0.0
    %229 = vst.msk [vmem:[#allocation3 + $0x2f8] sm:$0x3] %vm27, 0.0
    %230 = vst.msk [vmem:[#allocation3 + $0x300] sm:$0xff] %vm24, 0.0
    %231 = vst.msk [vmem:[#allocation3 + $0x308] sm:$0xff] %vm24, 0.0
    %232 = vst.msk [vmem:[#allocation3 + $0x310] sm:$0x3] %vm27, 0.0
    %233 = vst.msk [vmem:[#allocation3 + $0x318] sm:$0xff] %vm24, 0.0
    %234 = vst.msk [vmem:[#allocation3 + $0x320] sm:$0xff] %vm24, 0.0
    %235 = vst.msk [vmem:[#allocation3 + $0x328] sm:$0x3] %vm27, 0.0
    %236 = vst.msk [vmem:[#allocation3 + $0x330] sm:$0xff] %vm24, 0.0
    %237 = vst.msk [vmem:[#allocation3 + $0x338] sm:$0xff] %vm24, 0.0
    %238 = vst.msk [vmem:[#allocation3 + $0x340] sm:$0x3] %vm27, 0.0
    %239 = vst.msk [vmem:[#allocation3 + $0x348] sm:$0xff] %vm24, 0.0
    %240 = vst.msk [vmem:[#allocation3 + $0x350] sm:$0xff] %vm24, 0.0
    %241 = vst.msk [vmem:[#allocation3 + $0x358] sm:$0x3] %vm27, 0.0
  $region25: #{double_conv_forward.1} parent=0 // pred_fallthru
    _
  %v242 = vld [vmem:[%s0] sm:$0xff]
  %v243 = vld [vmem:[%s0 + $0x8] sm:$0xff]
  %v244 = vld [vmem:[%s0 + $0x10] sm:$0xff]
  %v245 = vld [vmem:[%s0 + $0x18] sm:$0xff]
  %v246 = vld [vmem:[%s0 + $0x20] sm:$0xff]
  %v247 = vld [vmem:[%s0 + $0x28] sm:$0xff]
  %v248 = vld [vmem:[%s0 + $0x30] sm:$0xff]
  %v249 = vld [vmem:[%s0 + $0x38] sm:$0xff]
  %v250 = vld [vmem:[%s0 + $0x40] sm:$0xff]
  %v251 = vld [vmem:[%s0 + $0x48] sm:$0xff]
  %v252 = vld [vmem:[%s0 + $0x50] sm:$0xff]
  %v253 = vld [vmem:[%s0 + $0x58] sm:$0xff]
  %v254 = vld [vmem:[%s0 + $0x60] sm:$0xff]
  %v255 = vld [vmem:[%s0 + $0x68] sm:$0xff]
  %v256 = vld [vmem:[%s0 + $0x70] sm:$0xff]
  %v257 = vld [vmem:[%s0 + $0x78] sm:$0xff]
  %v258 = vld [vmem:[%s0 + $0x80] sm:$0xff]
  %v259 = vld [vmem:[%s0 + $0x88] sm:$0xff]
  %v260 = vld [vmem:[%s0 + $0x90] sm:$0xff]
  %v261 = vld [vmem:[%s0 + $0x98] sm:$0xff]
  %v262 = vld [vmem:[%s0 + $0xa0] sm:$0xff]
  %v263 = vld [vmem:[%s0 + $0xa8] sm:$0xff]
  %v264 = vld [vmem:[%s0 + $0xb0] sm:$0xff]
  %v265 = vld [vmem:[%s0 + $0xb8] sm:$0xff]
  %v266 = vld [vmem:[%s0 + $0xc0] sm:$0xff]
  %v267 = vld [vmem:[%s0 + $0xc8] sm:$0xff]
  %v268 = vld [vmem:[%s0 + $0xd0] sm:$0xff]
  %v269 = vld [vmem:[%s0 + $0xd8] sm:$0xff]
  %v270 = vld [vmem:[%s0 + $0xe0] sm:$0xff]
  %v271 = vld [vmem:[%s0 + $0xe8] sm:$0xff]
  %v272 = vld [vmem:[%s0 + $0xf0] sm:$0xff]
  %v273 = vld [vmem:[%s0 + $0xf8] sm:$0xff]
  %v274 = vld [vmem:[%s0 + $0x100] sm:$0xff]
  %v275 = vld [vmem:[%s0 + $0x108] sm:$0xff]
  %v276 = vld [vmem:[%s0 + $0x110] sm:$0xff]
  %v277 = vld [vmem:[%s0 + $0x118] sm:$0xff]
  %v278 = vld [vmem:[%s0 + $0x120] sm:$0xff]
  %v279 = vld [vmem:[%s0 + $0x128] sm:$0xff]
  %v280 = vld [vmem:[%s0 + $0x130] sm:$0xff]
  %v281 = vld [vmem:[%s0 + $0x138] sm:$0xff]
  %v282 = vld [vmem:[%s0 + $0x140] sm:$0xff]
  %v283 = vld [vmem:[%s0 + $0x148] sm:$0xff]
  %v284 = vld [vmem:[%s0 + $0x150] sm:$0xff]
  %v285 = vld [vmem:[%s0 + $0x158] sm:$0xff]
  %v286 = vld [vmem:[%s0 + $0x160] sm:$0xff]
  %v287 = vld [vmem:[%s0 + $0x168] sm:$0xff]
  %v288 = vld [vmem:[%s0 + $0x170] sm:$0xff]
  %v289 = vld [vmem:[%s0 + $0x178] sm:$0xff]
  %v290 = vld [vmem:[%s0 + $0x180] sm:$0xff]
  %v291 = vld [vmem:[%s0 + $0x188] sm:$0xff]
  %v292 = vld [vmem:[%s0 + $0x190] sm:$0xff]
  %v293 = vld [vmem:[%s0 + $0x198] sm:$0xff]
  %v294 = vld [vmem:[%s0 + $0x1a0] sm:$0xff]
  %v295 = vld [vmem:[%s0 + $0x1a8] sm:$0xff]
  %v296 = vld [vmem:[%s0 + $0x1b0] sm:$0xff]
  %v297 = vld [vmem:[%s0 + $0x1b8] sm:$0xff]
  %v298 = vld [vmem:[%s0 + $0x1c0] sm:$0xff]
  %v299 = vld [vmem:[%s0 + $0x1c8] sm:$0xff]
  %v300 = vld [vmem:[%s0 + $0x1d0] sm:$0xff]
  %v301 = vld [vmem:[%s0 + $0x1d8] sm:$0xff]
  %v302 = vld [vmem:[%s0 + $0x1e0] sm:$0xff]
  %v303 = vld [vmem:[%s0 + $0x1e8] sm:$0xff]
  %v304 = vld [vmem:[%s0 + $0x1f0] sm:$0xff]
  %v305 = vld [vmem:[%s0 + $0x1f8] sm:$0xff]
  %s306 = scalar_lea.vmem [#allocation2], 24
  %vm307 = vcmask 64512
  %308 = vst.msk [vmem:[%s306 + $0x1] sm:$0xff] %vm307, %v242
  %309 = vst.msk [vmem:[%s306 + $0x9] sm:$0xff] %vm307, %v243
  %310 = vst.msk [vmem:[%s306 + $0x19] sm:$0xff] %vm307, %v244
  %311 = vst.msk [vmem:[%s306 + $0x21] sm:$0xff] %vm307, %v245
  %312 = vst.msk [vmem:[%s306 + $0x31] sm:$0xff] %vm307, %v246
  %313 = vst.msk [vmem:[%s306 + $0x39] sm:$0xff] %vm307, %v247
  %314 = vst.msk [vmem:[%s306 + $0x49] sm:$0xff] %vm307, %v248
  %315 = vst.msk [vmem:[%s306 + $0x51] sm:$0xff] %vm307, %v249
  %316 = vst.msk [vmem:[%s306 + $0x61] sm:$0xff] %vm307, %v250
  %317 = vst.msk [vmem:[%s306 + $0x69] sm:$0xff] %vm307, %v251
  %318 = vst.msk [vmem:[%s306 + $0x79] sm:$0xff] %vm307, %v252
  %319 = vst.msk [vmem:[%s306 + $0x81] sm:$0xff] %vm307, %v253
  %320 = vst.msk [vmem:[%s306 + $0x91] sm:$0xff] %vm307, %v254
  %321 = vst.msk [vmem:[%s306 + $0x99] sm:$0xff] %vm307, %v255
  %322 = vst.msk [vmem:[%s306 + $0xa9] sm:$0xff] %vm307, %v256
  %323 = vst.msk [vmem:[%s306 + $0xb1] sm:$0xff] %vm307, %v257
  %324 = vst.msk [vmem:[%s306 + $0xc1] sm:$0xff] %vm307, %v258
  %325 = vst.msk [vmem:[%s306 + $0xc9] sm:$0xff] %vm307, %v259
  %326 = vst.msk [vmem:[%s306 + $0xd9] sm:$0xff] %vm307, %v260
  %327 = vst.msk [vmem:[%s306 + $0xe1] sm:$0xff] %vm307, %v261
  %328 = vst.msk [vmem:[%s306 + $0xf1] sm:$0xff] %vm307, %v262
  %329 = vst.msk [vmem:[%s306 + $0xf9] sm:$0xff] %vm307, %v263
  %330 = vst.msk [vmem:[%s306 + $0x109] sm:$0xff] %vm307, %v264
  %331 = vst.msk [vmem:[%s306 + $0x111] sm:$0xff] %vm307, %v265
  %332 = vst.msk [vmem:[%s306 + $0x121] sm:$0xff] %vm307, %v266
  %333 = vst.msk [vmem:[%s306 + $0x129] sm:$0xff] %vm307, %v267
  %334 = vst.msk [vmem:[%s306 + $0x139] sm:$0xff] %vm307, %v268
  %335 = vst.msk [vmem:[%s306 + $0x141] sm:$0xff] %vm307, %v269
  %336 = vst.msk [vmem:[%s306 + $0x151] sm:$0xff] %vm307, %v270
  %337 = vst.msk [vmem:[%s306 + $0x159] sm:$0xff] %vm307, %v271
  %338 = vst.msk [vmem:[%s306 + $0x169] sm:$0xff] %vm307, %v272
  %339 = vst.msk [vmem:[%s306 + $0x171] sm:$0xff] %vm307, %v273
  %340 = vst.msk [vmem:[%s306 + $0x1b1] sm:$0xff] %vm307, %v274
  %341 = vst.msk [vmem:[%s306 + $0x1b9] sm:$0xff] %vm307, %v275
  %342 = vst.msk [vmem:[%s306 + $0x1c9] sm:$0xff] %vm307, %v276
  %343 = vst.msk [vmem:[%s306 + $0x1d1] sm:$0xff] %vm307, %v277
  %344 = vst.msk [vmem:[%s306 + $0x1e1] sm:$0xff] %vm307, %v278
  %345 = vst.msk [vmem:[%s306 + $0x1e9] sm:$0xff] %vm307, %v279
  %346 = vst.msk [vmem:[%s306 + $0x1f9] sm:$0xff] %vm307, %v280
  %347 = vst.msk [vmem:[%s306 + $0x201] sm:$0xff] %vm307, %v281
  %348 = vst.msk [vmem:[%s306 + $0x211] sm:$0xff] %vm307, %v282
  %349 = vst.msk [vmem:[%s306 + $0x219] sm:$0xff] %vm307, %v283
  %350 = vst.msk [vmem:[%s306 + $0x229] sm:$0xff] %vm307, %v284
  %351 = vst.msk [vmem:[%s306 + $0x231] sm:$0xff] %vm307, %v285
  %352 = vst.msk [vmem:[%s306 + $0x241] sm:$0xff] %vm307, %v286
  %353 = vst.msk [vmem:[%s306 + $0x249] sm:$0xff] %vm307, %v287
  %354 = vst.msk [vmem:[%s306 + $0x259] sm:$0xff] %vm307, %v288
  %355 = vst.msk [vmem:[%s306 + $0x261] sm:$0xff] %vm307, %v289
  %356 = vst.msk [vmem:[%s306 + $0x271] sm:$0xff] %vm307, %v290
  %357 = vst.msk [vmem:[%s306 + $0x279] sm:$0xff] %vm307, %v291
  %358 = vst.msk [vmem:[%s306 + $0x289] sm:$0xff] %vm307, %v292
  %359 = vst.msk [vmem:[%s306 + $0x291] sm:$0xff] %vm307, %v293
  %360 = vst.msk [vmem:[%s306 + $0x2a1] sm:$0xff] %vm307, %v294
  %361 = vst.msk [vmem:[%s306 + $0x2a9] sm:$0xff] %vm307, %v295
  %362 = vst.msk [vmem:[%s306 + $0x2b9] sm:$0xff] %vm307, %v296
  %363 = vst.msk [vmem:[%s306 + $0x2c1] sm:$0xff] %vm307, %v297
  %364 = vst.msk [vmem:[%s306 + $0x2d1] sm:$0xff] %vm307, %v298
  %365 = vst.msk [vmem:[%s306 + $0x2d9] sm:$0xff] %vm307, %v299
  %366 = vst.msk [vmem:[%s306 + $0x2e9] sm:$0xff] %vm307, %v300
  %367 = vst.msk [vmem:[%s306 + $0x2f1] sm:$0xff] %vm307, %v301
  %368 = vst.msk [vmem:[%s306 + $0x301] sm:$0xff] %vm307, %v302
  %369 = vst.msk [vmem:[%s306 + $0x309] sm:$0xff] %vm307, %v303
  %370 = vst.msk [vmem:[%s306 + $0x319] sm:$0xff] %vm307, %v304
  %371 = vst.msk [vmem:[%s306 + $0x321] sm:$0xff] %vm307, %v305
  %v372 = vld [vmem:[#allocation2] sm:$0xff]
  %v373 = vld [vmem:[#allocation2 + $0x8] sm:$0xff]
  %v374 = vld [vmem:[#allocation2 + $0x10] sm:$0x3]
  %v375 = vld [vmem:[#allocation2 + $0x18] sm:$0xff]
  %v376 = vld [vmem:[#allocation2 + $0x20] sm:$0xff]
  %v377 = vld [vmem:[#allocation2 + $0x28] sm:$0x3]
  %v378 = vld [vmem:[#allocation2 + $0x30] sm:$0xff]
  %v379 = vld [vmem:[#allocation2 + $0x38] sm:$0xff]
  %v380 = vld [vmem:[#allocation2 + $0x40] sm:$0x3]
  %v381 = vld [vmem:[#allocation2 + $0x48] sm:$0xff]
  %v382 = vld [vmem:[#allocation2 + $0x50] sm:$0xff]
  %v383 = vld [vmem:[#allocation2 + $0x58] sm:$0x3]
  %v384 = vld [vmem:[#allocation2 + $0x60] sm:$0xff]
  %v385 = vld [vmem:[#allocation2 + $0x68] sm:$0xff]
  %v386 = vld [vmem:[#allocation2 + $0x70] sm:$0x3]
  %v387 = vld [vmem:[#allocation2 + $0x78] sm:$0xff]
  %v388 = vld [vmem:[#allocation2 + $0x80] sm:$0xff]
  %v389 = vld [vmem:[#allocation2 + $0x88] sm:$0x3]
  %v390 = vld [vmem:[#allocation2 + $0x90] sm:$0xff]
  %v391 = vld [vmem:[#allocation2 + $0x98] sm:$0xff]
  %v392 = vld [vmem:[#allocation2 + $0xa0] sm:$0x3]
  %v393 = vld [vmem:[#allocation2 + $0xa8] sm:$0xff]
  %v394 = vld [vmem:[#allocation2 + $0xb0] sm:$0xff]
  %v395 = vld [vmem:[#allocation2 + $0xb8] sm:$0x3]
  %v396 = vld [vmem:[#allocation2 + $0xc0] sm:$0xff]
  %v397 = vld [vmem:[#allocation2 + $0xc8] sm:$0xff]
  %v398 = vld [vmem:[#allocation2 + $0xd0] sm:$0x3]
  %v399 = vld [vmem:[#allocation2 + $0xd8] sm:$0xff]
  %v400 = vld [vmem:[#allocation2 + $0xe0] sm:$0xff]
  %v401 = vld [vmem:[#allocation2 + $0xe8] sm:$0x3]
  %v402 = vld [vmem:[#allocation2 + $0xf0] sm:$0xff]
  %v403 = vld [vmem:[#allocation2 + $0xf8] sm:$0xff]
  %v404 = vld [vmem:[#allocation2 + $0x100] sm:$0x3]
  %v405 = vld [vmem:[#allocation2 + $0x108] sm:$0xff]
  %v406 = vld [vmem:[#allocation2 + $0x110] sm:$0xff]
  %v407 = vld [vmem:[#allocation2 + $0x118] sm:$0x3]
  %v408 = vld [vmem:[#allocation2 + $0x120] sm:$0xff]
  %v409 = vld [vmem:[#allocation2 + $0x128] sm:$0xff]
  %v410 = vld [vmem:[#allocation2 + $0x130] sm:$0x3]
  %v411 = vld [vmem:[#allocation2 + $0x138] sm:$0xff]
  %v412 = vld [vmem:[#allocation2 + $0x140] sm:$0xff]
  %v413 = vld [vmem:[#allocation2 + $0x148] sm:$0x3]
  %v414 = vld [vmem:[#allocation2 + $0x150] sm:$0xff]
  %v415 = vld [vmem:[#allocation2 + $0x158] sm:$0xff]
  %v416 = vld [vmem:[#allocation2 + $0x160] sm:$0x3]
  %v417 = vld [vmem:[#allocation2 + $0x168] sm:$0xff]
  %v418 = vld [vmem:[#allocation2 + $0x170] sm:$0xff]
  %v419 = vld [vmem:[#allocation2 + $0x178] sm:$0x3]
  %v420 = vld [vmem:[#allocation2 + $0x180] sm:$0xff]
  %v421 = vld [vmem:[#allocation2 + $0x188] sm:$0xff]
  %v422 = vld [vmem:[#allocation2 + $0x190] sm:$0x3]
  %v423 = vld [vmem:[#allocation2 + $0x198] sm:$0xff]
  %v424 = vld [vmem:[#allocation2 + $0x1a0] sm:$0xff]
  %v425 = vld [vmem:[#allocation2 + $0x1a8] sm:$0x3]
  %v426 = vld [vmem:[#allocation2 + $0x1b0] sm:$0xff]
  %v427 = vld [vmem:[#allocation2 + $0x1b8] sm:$0xff]
  %v428 = vld [vmem:[#allocation2 + $0x1c0] sm:$0x3]
  %v429 = vld [vmem:[#allocation2 + $0x1c8] sm:$0xff]
  %v430 = vld [vmem:[#allocation2 + $0x1d0] sm:$0xff]
  %v431 = vld [vmem:[#allocation2 + $0x1d8] sm:$0x3]
  %v432 = vld [vmem:[#allocation2 + $0x1e0] sm:$0xff]
  %v433 = vld [vmem:[#allocation2 + $0x1e8] sm:$0xff]
  %v434 = vld [vmem:[#allocation2 + $0x1f0] sm:$0x3]
  %v435 = vld [vmem:[#allocation2 + $0x1f8] sm:$0xff]
  %v436 = vld [vmem:[#allocation2 + $0x200] sm:$0xff]
  %v437 = vld [vmem:[#allocation2 + $0x208] sm:$0x3]
  %v438 = vld [vmem:[#allocation2 + $0x210] sm:$0xff]
  %v439 = vld [vmem:[#allocation2 + $0x218] sm:$0xff]
  %v440 = vld [vmem:[#allocation2 + $0x220] sm:$0x3]
  %v441 = vld [vmem:[#allocation2 + $0x228] sm:$0xff]
  %v442 = vld [vmem:[#allocation2 + $0x230] sm:$0xff]
  %v443 = vld [vmem:[#allocation2 + $0x238] sm:$0x3]
  %v444 = vld [vmem:[#allocation2 + $0x240] sm:$0xff]
  %v445 = vld [vmem:[#allocation2 + $0x248] sm:$0xff]
  %v446 = vld [vmem:[#allocation2 + $0x250] sm:$0x3]
  %v447 = vld [vmem:[#allocation2 + $0x258] sm:$0xff]
  %v448 = vld [vmem:[#allocation2 + $0x260] sm:$0xff]
  %v449 = vld [vmem:[#allocation2 + $0x268] sm:$0x3]
  %v450 = vld [vmem:[#allocation2 + $0x270] sm:$0xff]
  %v451 = vld [vmem:[#allocation2 + $0x278] sm:$0xff]
  %v452 = vld [vmem:[#allocation2 + $0x280] sm:$0x3]
  %v453 = vld [vmem:[#allocation2 + $0x288] sm:$0xff]
  %v454 = vld [vmem:[#allocation2 + $0x290] sm:$0xff]
  %v455 = vld [vmem:[#allocation2 + $0x298] sm:$0x3]
  %v456 = vld [vmem:[#allocation2 + $0x2a0] sm:$0xff]
  %v457 = vld [vmem:[#allocation2 + $0x2a8] sm:$0xff]
  %v458 = vld [vmem:[#allocation2 + $0x2b0] sm:$0x3]
  %v459 = vld [vmem:[#allocation2 + $0x2b8] sm:$0xff]
  %v460 = vld [vmem:[#allocation2 + $0x2c0] sm:$0xff]
  %v461 = vld [vmem:[#allocation2 + $0x2c8] sm:$0x3]
  %v462 = vld [vmem:[#allocation2 + $0x2d0] sm:$0xff]
  %v463 = vld [vmem:[#allocation2 + $0x2d8] sm:$0xff]
  %v464 = vld [vmem:[#allocation2 + $0x2e0] sm:$0x3]
  %v465 = vld [vmem:[#allocation2 + $0x2e8] sm:$0xff]
  %v466 = vld [vmem:[#allocation2 + $0x2f0] sm:$0xff]
  %v467 = vld [vmem:[#allocation2 + $0x2f8] sm:$0x3]
  %v468 = vld [vmem:[#allocation2 + $0x300] sm:$0xff]
  %v469 = vld [vmem:[#allocation2 + $0x308] sm:$0xff]
  %v470 = vld [vmem:[#allocation2 + $0x310] sm:$0x3]
  %v471 = vld [vmem:[#allocation2 + $0x318] sm:$0xff]
  %v472 = vld [vmem:[#allocation2 + $0x320] sm:$0xff]
  %v473 = vld [vmem:[#allocation2 + $0x328] sm:$0x3]
  %v474 = vld [vmem:[#allocation2 + $0x330] sm:$0xff]
  %v475 = vld [vmem:[#allocation2 + $0x338] sm:$0xff]
  %v476 = vld [vmem:[#allocation2 + $0x340] sm:$0x3]
  %v477 = vld [vmem:[#allocation2 + $0x348] sm:$0xff]
  %v478 = vld [vmem:[#allocation2 + $0x350] sm:$0xff]
  %v479 = vld [vmem:[#allocation2 + $0x358] sm:$0x3]
  %576 = vrot.lane.b32.xlu0 %v375, 8
  %v577 = vpop.permute.xlu0 %576
  %578 = vrot.lane.b32.xlu0 %v376, 8
  %v579 = vpop.permute.xlu0 %578
  %580 = vrot.lane.b32.xlu0 %v377, 8
  %v581 = vpop.permute.xlu0 %580
  %582 = vrot.lane.b32.xlu0 %v378, 8
  %v583 = vpop.permute.xlu0 %582
  %584 = vrot.lane.b32.xlu0 %v379, 8
  %v585 = vpop.permute.xlu0 %584
  %586 = vrot.lane.b32.xlu0 %v380, 8
  %v587 = vpop.permute.xlu0 %586
  %588 = vrot.lane.b32.xlu0 %v381, 8
  %v589 = vpop.permute.xlu0 %588
  %590 = vrot.lane.b32.xlu0 %v382, 8
  %v591 = vpop.permute.xlu0 %590
  %592 = vrot.lane.b32.xlu0 %v383, 8
  %v593 = vpop.permute.xlu0 %592
  %594 = vrot.lane.b32.xlu0 %v384, 8
  %v595 = vpop.permute.xlu0 %594
  %596 = vrot.lane.b32.xlu0 %v385, 8
  %v597 = vpop.permute.xlu0 %596
  %598 = vrot.lane.b32.xlu0 %v386, 8
  %v599 = vpop.permute.xlu0 %598
  %600 = vrot.lane.b32.xlu0 %v387, 8
  %v601 = vpop.permute.xlu0 %600
  %602 = vrot.lane.b32.xlu0 %v388, 8
  %v603 = vpop.permute.xlu0 %602
  %604 = vrot.lane.b32.xlu0 %v389, 8
  %v605 = vpop.permute.xlu0 %604
  %606 = vrot.lane.b32.xlu0 %v390, 8
  %v607 = vpop.permute.xlu0 %606
  %608 = vrot.lane.b32.xlu0 %v391, 8
  %v609 = vpop.permute.xlu0 %608
  %610 = vrot.lane.b32.xlu0 %v392, 8
  %v611 = vpop.permute.xlu0 %610
  %612 = vrot.lane.b32.xlu0 %v393, 8
  %v613 = vpop.permute.xlu0 %612
  %614 = vrot.lane.b32.xlu0 %v394, 8
  %v615 = vpop.permute.xlu0 %614
  %616 = vrot.lane.b32.xlu0 %v395, 8
  %v617 = vpop.permute.xlu0 %616
  %618 = vrot.lane.b32.xlu0 %v396, 8
  %v619 = vpop.permute.xlu0 %618
  %620 = vrot.lane.b32.xlu0 %v397, 8
  %v621 = vpop.permute.xlu0 %620
  %622 = vrot.lane.b32.xlu0 %v398, 8
  %v623 = vpop.permute.xlu0 %622
  %624 = vrot.lane.b32.xlu0 %v399, 8
  %v625 = vpop.permute.xlu0 %624
  %626 = vrot.lane.b32.xlu0 %v400, 8
  %v627 = vpop.permute.xlu0 %626
  %628 = vrot.lane.b32.xlu0 %v401, 8
  %v629 = vpop.permute.xlu0 %628
  %630 = vrot.lane.b32.xlu0 %v402, 8
  %v631 = vpop.permute.xlu0 %630
  %632 = vrot.lane.b32.xlu0 %v403, 8
  %v633 = vpop.permute.xlu0 %632
  %634 = vrot.lane.b32.xlu0 %v404, 8
  %v635 = vpop.permute.xlu0 %634
  %636 = vrot.lane.b32.xlu0 %v405, 8
  %v637 = vpop.permute.xlu0 %636
  %638 = vrot.lane.b32.xlu0 %v406, 8
  %v639 = vpop.permute.xlu0 %638
  %640 = vrot.lane.b32.xlu0 %v407, 8
  %v641 = vpop.permute.xlu0 %640
  %642 = vrot.lane.b32.xlu0 %v408, 8
  %v643 = vpop.permute.xlu0 %642
  %644 = vrot.lane.b32.xlu0 %v409, 8
  %v645 = vpop.permute.xlu0 %644
  %646 = vrot.lane.b32.xlu0 %v410, 8
  %v647 = vpop.permute.xlu0 %646
  %648 = vrot.lane.b32.xlu0 %v411, 8
  %v649 = vpop.permute.xlu0 %648
  %650 = vrot.lane.b32.xlu0 %v412, 8
  %v651 = vpop.permute.xlu0 %650
  %652 = vrot.lane.b32.xlu0 %v413, 8
  %v653 = vpop.permute.xlu0 %652
  %654 = vrot.lane.b32.xlu0 %v414, 8
  %v655 = vpop.permute.xlu0 %654
  %656 = vrot.lane.b32.xlu0 %v415, 8
  %v657 = vpop.permute.xlu0 %656
  %658 = vrot.lane.b32.xlu0 %v416, 8
  %v659 = vpop.permute.xlu0 %658
  %660 = vrot.lane.b32.xlu0 %v417, 8
  %v661 = vpop.permute.xlu0 %660
  %662 = vrot.lane.b32.xlu0 %v418, 8
  %v663 = vpop.permute.xlu0 %662
  %664 = vrot.lane.b32.xlu0 %v419, 8
  %v665 = vpop.permute.xlu0 %664
  %666 = vrot.lane.b32.xlu0 %v420, 8
  %v667 = vpop.permute.xlu0 %666
  %668 = vrot.lane.b32.xlu0 %v421, 8
  %v669 = vpop.permute.xlu0 %668
  %670 = vrot.lane.b32.xlu0 %v422, 8
  %v671 = vpop.permute.xlu0 %670
  %672 = vrot.lane.b32.xlu0 %v429, 8
  %v673 = vpop.permute.xlu0 %672
  %674 = vrot.lane.b32.xlu0 %v430, 8
  %v675 = vpop.permute.xlu0 %674
  %676 = vrot.lane.b32.xlu0 %v431, 8
  %v677 = vpop.permute.xlu0 %676
  %678 = vrot.lane.b32.xlu0 %v432, 8
  %v679 = vpop.permute.xlu0 %678
  %680 = vrot.lane.b32.xlu0 %v433, 8
  %v681 = vpop.permute.xlu0 %680
  %682 = vrot.lane.b32.xlu0 %v434, 8
  %v683 = vpop.permute.xlu0 %682
  %684 = vrot.lane.b32.xlu0 %v435, 8
  %v685 = vpop.permute.xlu0 %684
  %686 = vrot.lane.b32.xlu0 %v436, 8
  %v687 = vpop.permute.xlu0 %686
  %688 = vrot.lane.b32.xlu0 %v437, 8
  %v689 = vpop.permute.xlu0 %688
  %690 = vrot.lane.b32.xlu0 %v438, 8
  %v691 = vpop.permute.xlu0 %690
  %692 = vrot.lane.b32.xlu0 %v439, 8
  %v693 = vpop.permute.xlu0 %692
  %694 = vrot.lane.b32.xlu0 %v440, 8
  %v695 = vpop.permute.xlu0 %694
  %696 = vrot.lane.b32.xlu0 %v441, 8
  %v697 = vpop.permute.xlu0 %696
  %698 = vrot.lane.b32.xlu0 %v442, 8
  %v699 = vpop.permute.xlu0 %698
  %700 = vrot.lane.b32.xlu0 %v443, 8
  %v701 = vpop.permute.xlu0 %700
  %702 = vrot.lane.b32.xlu0 %v444, 8
  %v703 = vpop.permute.xlu0 %702
  %704 = vrot.lane.b32.xlu0 %v445, 8
  %v705 = vpop.permute.xlu0 %704
  %706 = vrot.lane.b32.xlu0 %v446, 8
  %v707 = vpop.permute.xlu0 %706
  %708 = vrot.lane.b32.xlu0 %v447, 8
  %v709 = vpop.permute.xlu0 %708
  %710 = vrot.lane.b32.xlu0 %v448, 8
  %v711 = vpop.permute.xlu0 %710
  %712 = vrot.lane.b32.xlu0 %v449, 8
  %v713 = vpop.permute.xlu0 %712
  %714 = vrot.lane.b32.xlu0 %v450, 8
  %v715 = vpop.permute.xlu0 %714
  %716 = vrot.lane.b32.xlu0 %v451, 8
  %v717 = vpop.permute.xlu0 %716
  %718 = vrot.lane.b32.xlu0 %v452, 8
  %v719 = vpop.permute.xlu0 %718
  %720 = vrot.lane.b32.xlu0 %v453, 8
  %v721 = vpop.permute.xlu0 %720
  %722 = vrot.lane.b32.xlu0 %v454, 8
  %v723 = vpop.permute.xlu0 %722
  %724 = vrot.lane.b32.xlu0 %v455, 8
  %v725 = vpop.permute.xlu0 %724
  %726 = vrot.lane.b32.xlu0 %v456, 8
  %v727 = vpop.permute.xlu0 %726
  %728 = vrot.lane.b32.xlu0 %v457, 8
  %v729 = vpop.permute.xlu0 %728
  %730 = vrot.lane.b32.xlu0 %v458, 8
  %v731 = vpop.permute.xlu0 %730
  %732 = vrot.lane.b32.xlu0 %v459, 8
  %v733 = vpop.permute.xlu0 %732
  %734 = vrot.lane.b32.xlu0 %v460, 8
  %v735 = vpop.permute.xlu0 %734
  %736 = vrot.lane.b32.xlu0 %v461, 8
  %v737 = vpop.permute.xlu0 %736
  %738 = vrot.lane.b32.xlu0 %v462, 8
  %v739 = vpop.permute.xlu0 %738
  %740 = vrot.lane.b32.xlu0 %v463, 8
  %v741 = vpop.permute.xlu0 %740
  %742 = vrot.lane.b32.xlu0 %v464, 8
  %v743 = vpop.permute.xlu0 %742
  %744 = vrot.lane.b32.xlu0 %v465, 8
  %v745 = vpop.permute.xlu0 %744
  %746 = vrot.lane.b32.xlu0 %v466, 8
  %v747 = vpop.permute.xlu0 %746
  %748 = vrot.lane.b32.xlu0 %v467, 8
  %v749 = vpop.permute.xlu0 %748
  %750 = vrot.lane.b32.xlu0 %v468, 8
  %v751 = vpop.permute.xlu0 %750
  %752 = vrot.lane.b32.xlu0 %v469, 8
  %v753 = vpop.permute.xlu0 %752
  %754 = vrot.lane.b32.xlu0 %v470, 8
  %v755 = vpop.permute.xlu0 %754
  %756 = vrot.lane.b32.xlu0 %v471, 8
  %v757 = vpop.permute.xlu0 %756
  %758 = vrot.lane.b32.xlu0 %v472, 8
  %v759 = vpop.permute.xlu0 %758
  %760 = vrot.lane.b32.xlu0 %v473, 8
  %v761 = vpop.permute.xlu0 %760
  %762 = vrot.lane.b32.xlu0 %v474, 8
  %v763 = vpop.permute.xlu0 %762
  %764 = vrot.lane.b32.xlu0 %v475, 8
  %v765 = vpop.permute.xlu0 %764
  %766 = vrot.lane.b32.xlu0 %v476, 8
  %v767 = vpop.permute.xlu0 %766
  %870 = vrot.lane.b32.xlu0 %v378, 16
  %v871 = vpop.permute.xlu0 %870
  %872 = vrot.lane.b32.xlu0 %v379, 16
  %v873 = vpop.permute.xlu0 %872
  %874 = vrot.lane.b32.xlu0 %v380, 16
  %v875 = vpop.permute.xlu0 %874
  %876 = vrot.lane.b32.xlu0 %v381, 16
  %v877 = vpop.permute.xlu0 %876
  %878 = vrot.lane.b32.xlu0 %v382, 16
  %v879 = vpop.permute.xlu0 %878
  %880 = vrot.lane.b32.xlu0 %v383, 16
  %v881 = vpop.permute.xlu0 %880
  %882 = vrot.lane.b32.xlu0 %v384, 16
  %v883 = vpop.permute.xlu0 %882
  %884 = vrot.lane.b32.xlu0 %v385, 16
  %v885 = vpop.permute.xlu0 %884
  %886 = vrot.lane.b32.xlu0 %v386, 16
  %v887 = vpop.permute.xlu0 %886
  %888 = vrot.lane.b32.xlu0 %v387, 16
  %v889 = vpop.permute.xlu0 %888
  %890 = vrot.lane.b32.xlu0 %v388, 16
  %v891 = vpop.permute.xlu0 %890
  %892 = vrot.lane.b32.xlu0 %v389, 16
  %v893 = vpop.permute.xlu0 %892
  %894 = vrot.lane.b32.xlu0 %v390, 16
  %v895 = vpop.permute.xlu0 %894
  %896 = vrot.lane.b32.xlu0 %v391, 16
  %v897 = vpop.permute.xlu0 %896
  %898 = vrot.lane.b32.xlu0 %v392, 16
  %v899 = vpop.permute.xlu0 %898
  %900 = vrot.lane.b32.xlu0 %v393, 16
  %v901 = vpop.permute.xlu0 %900
  %902 = vrot.lane.b32.xlu0 %v394, 16
  %v903 = vpop.permute.xlu0 %902
  %904 = vrot.lane.b32.xlu0 %v395, 16
  %v905 = vpop.permute.xlu0 %904
  %906 = vrot.lane.b32.xlu0 %v396, 16
  %v907 = vpop.permute.xlu0 %906
  %908 = vrot.lane.b32.xlu0 %v397, 16
  %v909 = vpop.permute.xlu0 %908
  %910 = vrot.lane.b32.xlu0 %v398, 16
  %v911 = vpop.permute.xlu0 %910
  %912 = vrot.lane.b32.xlu0 %v399, 16
  %v913 = vpop.permute.xlu0 %912
  %914 = vrot.lane.b32.xlu0 %v400, 16
  %v915 = vpop.permute.xlu0 %914
  %916 = vrot.lane.b32.xlu0 %v401, 16
  %v917 = vpop.permute.xlu0 %916
  %918 = vrot.lane.b32.xlu0 %v402, 16
  %v919 = vpop.permute.xlu0 %918
  %920 = vrot.lane.b32.xlu0 %v403, 16
  %v921 = vpop.permute.xlu0 %920
  %922 = vrot.lane.b32.xlu0 %v404, 16
  %v923 = vpop.permute.xlu0 %922
  %924 = vrot.lane.b32.xlu0 %v405, 16
  %v925 = vpop.permute.xlu0 %924
  %926 = vrot.lane.b32.xlu0 %v406, 16
  %v927 = vpop.permute.xlu0 %926
  %928 = vrot.lane.b32.xlu0 %v407, 16
  %v929 = vpop.permute.xlu0 %928
  %930 = vrot.lane.b32.xlu0 %v408, 16
  %v931 = vpop.permute.xlu0 %930
  %932 = vrot.lane.b32.xlu0 %v409, 16
  %v933 = vpop.permute.xlu0 %932
  %934 = vrot.lane.b32.xlu0 %v410, 16
  %v935 = vpop.permute.xlu0 %934
  %936 = vrot.lane.b32.xlu0 %v411, 16
  %v937 = vpop.permute.xlu0 %936
  %938 = vrot.lane.b32.xlu0 %v412, 16
  %v939 = vpop.permute.xlu0 %938
  %940 = vrot.lane.b32.xlu0 %v413, 16
  %v941 = vpop.permute.xlu0 %940
  %942 = vrot.lane.b32.xlu0 %v414, 16
  %v943 = vpop.permute.xlu0 %942
  %944 = vrot.lane.b32.xlu0 %v415, 16
  %v945 = vpop.permute.xlu0 %944
  %946 = vrot.lane.b32.xlu0 %v416, 16
  %v947 = vpop.permute.xlu0 %946
  %948 = vrot.lane.b32.xlu0 %v417, 16
  %v949 = vpop.permute.xlu0 %948
  %950 = vrot.lane.b32.xlu0 %v418, 16
  %v951 = vpop.permute.xlu0 %950
  %952 = vrot.lane.b32.xlu0 %v419, 16
  %v953 = vpop.permute.xlu0 %952
  %954 = vrot.lane.b32.xlu0 %v420, 16
  %v955 = vpop.permute.xlu0 %954
  %956 = vrot.lane.b32.xlu0 %v421, 16
  %v957 = vpop.permute.xlu0 %956
  %958 = vrot.lane.b32.xlu0 %v422, 16
  %v959 = vpop.permute.xlu0 %958
  %960 = vrot.lane.b32.xlu0 %v423, 16
  %v961 = vpop.permute.xlu0 %960
  %962 = vrot.lane.b32.xlu0 %v424, 16
  %v963 = vpop.permute.xlu0 %962
  %964 = vrot.lane.b32.xlu0 %v425, 16
  %v965 = vpop.permute.xlu0 %964
  %966 = vrot.lane.b32.xlu0 %v432, 16
  %v967 = vpop.permute.xlu0 %966
  %968 = vrot.lane.b32.xlu0 %v433, 16
  %v969 = vpop.permute.xlu0 %968
  %970 = vrot.lane.b32.xlu0 %v434, 16
  %v971 = vpop.permute.xlu0 %970
  %972 = vrot.lane.b32.xlu0 %v435, 16
  %v973 = vpop.permute.xlu0 %972
  %974 = vrot.lane.b32.xlu0 %v436, 16
  %v975 = vpop.permute.xlu0 %974
  %976 = vrot.lane.b32.xlu0 %v437, 16
  %v977 = vpop.permute.xlu0 %976
  %978 = vrot.lane.b32.xlu0 %v438, 16
  %v979 = vpop.permute.xlu0 %978
  %980 = vrot.lane.b32.xlu0 %v439, 16
  %v981 = vpop.permute.xlu0 %980
  %982 = vrot.lane.b32.xlu0 %v440, 16
  %v983 = vpop.permute.xlu0 %982
  %984 = vrot.lane.b32.xlu0 %v441, 16
  %v985 = vpop.permute.xlu0 %984
  %986 = vrot.lane.b32.xlu0 %v442, 16
  %v987 = vpop.permute.xlu0 %986
  %988 = vrot.lane.b32.xlu0 %v443, 16
  %v989 = vpop.permute.xlu0 %988
  %990 = vrot.lane.b32.xlu0 %v444, 16
  %v991 = vpop.permute.xlu0 %990
  %992 = vrot.lane.b32.xlu0 %v445, 16
  %v993 = vpop.permute.xlu0 %992
  %994 = vrot.lane.b32.xlu0 %v446, 16
  %v995 = vpop.permute.xlu0 %994
  %996 = vrot.lane.b32.xlu0 %v447, 16
  %v997 = vpop.permute.xlu0 %996
  %998 = vrot.lane.b32.xlu0 %v448, 16
  %v999 = vpop.permute.xlu0 %998
  %1000 = vrot.lane.b32.xlu0 %v449, 16
  %v1001 = vpop.permute.xlu0 %1000
  %1002 = vrot.lane.b32.xlu0 %v450, 16
  %v1003 = vpop.permute.xlu0 %1002
  %1004 = vrot.lane.b32.xlu0 %v451, 16
  %v1005 = vpop.permute.xlu0 %1004
  %1006 = vrot.lane.b32.xlu0 %v452, 16
  %v1007 = vpop.permute.xlu0 %1006
  %1008 = vrot.lane.b32.xlu0 %v453, 16
  %v1009 = vpop.permute.xlu0 %1008
  %1010 = vrot.lane.b32.xlu0 %v454, 16
  %v1011 = vpop.permute.xlu0 %1010
  %1012 = vrot.lane.b32.xlu0 %v455, 16
  %v1013 = vpop.permute.xlu0 %1012
  %1014 = vrot.lane.b32.xlu0 %v456, 16
  %v1015 = vpop.permute.xlu0 %1014
  %1016 = vrot.lane.b32.xlu0 %v457, 16
  %v1017 = vpop.permute.xlu0 %1016
  %1018 = vrot.lane.b32.xlu0 %v458, 16
  %v1019 = vpop.permute.xlu0 %1018
  %1020 = vrot.lane.b32.xlu0 %v459, 16
  %v1021 = vpop.permute.xlu0 %1020
  %1022 = vrot.lane.b32.xlu0 %v460, 16
  %v1023 = vpop.permute.xlu0 %1022
  %1024 = vrot.lane.b32.xlu0 %v461, 16
  %v1025 = vpop.permute.xlu0 %1024
  %1026 = vrot.lane.b32.xlu0 %v462, 16
  %v1027 = vpop.permute.xlu0 %1026
  %1028 = vrot.lane.b32.xlu0 %v463, 16
  %v1029 = vpop.permute.xlu0 %1028
  %1030 = vrot.lane.b32.xlu0 %v464, 16
  %v1031 = vpop.permute.xlu0 %1030
  %1032 = vrot.lane.b32.xlu0 %v465, 16
  %v1033 = vpop.permute.xlu0 %1032
  %1034 = vrot.lane.b32.xlu0 %v466, 16
  %v1035 = vpop.permute.xlu0 %1034
  %1036 = vrot.lane.b32.xlu0 %v467, 16
  %v1037 = vpop.permute.xlu0 %1036
  %1038 = vrot.lane.b32.xlu0 %v468, 16
  %v1039 = vpop.permute.xlu0 %1038
  %1040 = vrot.lane.b32.xlu0 %v469, 16
  %v1041 = vpop.permute.xlu0 %1040
  %1042 = vrot.lane.b32.xlu0 %v470, 16
  %v1043 = vpop.permute.xlu0 %1042
  %1044 = vrot.lane.b32.xlu0 %v471, 16
  %v1045 = vpop.permute.xlu0 %1044
  %1046 = vrot.lane.b32.xlu0 %v472, 16
  %v1047 = vpop.permute.xlu0 %1046
  %1048 = vrot.lane.b32.xlu0 %v473, 16
  %v1049 = vpop.permute.xlu0 %1048
  %1050 = vrot.lane.b32.xlu0 %v474, 16
  %v1051 = vpop.permute.xlu0 %1050
  %1052 = vrot.lane.b32.xlu0 %v475, 16
  %v1053 = vpop.permute.xlu0 %1052
  %1054 = vrot.lane.b32.xlu0 %v476, 16
  %v1055 = vpop.permute.xlu0 %1054
  %1056 = vrot.lane.b32.xlu0 %v477, 16
  %v1057 = vpop.permute.xlu0 %1056
  %1058 = vrot.lane.b32.xlu0 %v478, 16
  %v1059 = vpop.permute.xlu0 %1058
  %1060 = vrot.lane.b32.xlu0 %v479, 16
  %v1061 = vpop.permute.xlu0 %1060
  %v1158 = vsel %vm307, %v372, %v577
  %v1159 = vsel %vm307, %v373, %v579
  %v1160 = vsel %vm307, %v374, %v581
  %v1161 = vsel %vm307, %v375, %v583
  %v1162 = vsel %vm307, %v376, %v585
  %v1163 = vsel %vm307, %v377, %v587
  %v1164 = vsel %vm307, %v378, %v589
  %v1165 = vsel %vm307, %v379, %v591
  %v1166 = vsel %vm307, %v380, %v593
  %v1167 = vsel %vm307, %v381, %v595
  %v1168 = vsel %vm307, %v382, %v597
  %v1169 = vsel %vm307, %v383, %v599
  %v1170 = vsel %vm307, %v384, %v601
  %v1171 = vsel %vm307, %v385, %v603
  %v1172 = vsel %vm307, %v386, %v605
  %v1173 = vsel %vm307, %v387, %v607
  %v1174 = vsel %vm307, %v388, %v609
  %v1175 = vsel %vm307, %v389, %v611
  %v1176 = vsel %vm307, %v390, %v613
  %v1177 = vsel %vm307, %v391, %v615
  %v1178 = vsel %vm307, %v392, %v617
  %v1179 = vsel %vm307, %v393, %v619
  %v1180 = vsel %vm307, %v394, %v621
  %v1181 = vsel %vm307, %v395, %v623
  %v1182 = vsel %vm307, %v396, %v625
  %v1183 = vsel %vm307, %v397, %v627
  %v1184 = vsel %vm307, %v398, %v629
  %v1185 = vsel %vm307, %v399, %v631
  %v1186 = vsel %vm307, %v400, %v633
  %v1187 = vsel %vm307, %v401, %v635
  %v1188 = vsel %vm307, %v402, %v637
  %v1189 = vsel %vm307, %v403, %v639
  %v1190 = vsel %vm307, %v404, %v641
  %v1191 = vsel %vm307, %v405, %v643
  %v1192 = vsel %vm307, %v406, %v645
  %v1193 = vsel %vm307, %v407, %v647
  %v1194 = vsel %vm307, %v408, %v649
  %v1195 = vsel %vm307, %v409, %v651
  %v1196 = vsel %vm307, %v410, %v653
  %v1197 = vsel %vm307, %v411, %v655
  %v1198 = vsel %vm307, %v412, %v657
  %v1199 = vsel %vm307, %v413, %v659
  %v1200 = vsel %vm307, %v414, %v661
  %v1201 = vsel %vm307, %v415, %v663
  %v1202 = vsel %vm307, %v416, %v665
  %v1203 = vsel %vm307, %v417, %v667
  %v1204 = vsel %vm307, %v418, %v669
  %v1205 = vsel %vm307, %v419, %v671
  %v1206 = vsel %vm307, %v426, %v673
  %v1207 = vsel %vm307, %v427, %v675
  %v1208 = vsel %vm307, %v428, %v677
  %v1209 = vsel %vm307, %v429, %v679
  %v1210 = vsel %vm307, %v430, %v681
  %v1211 = vsel %vm307, %v431, %v683
  %v1212 = vsel %vm307, %v432, %v685
  %v1213 = vsel %vm307, %v433, %v687
  %v1214 = vsel %vm307, %v434, %v689
  %v1215 = vsel %vm307, %v435, %v691
  %v1216 = vsel %vm307, %v436, %v693
  %v1217 = vsel %vm307, %v437, %v695
  %v1218 = vsel %vm307, %v438, %v697
  %v1219 = vsel %vm307, %v439, %v699
  %v1220 = vsel %vm307, %v440, %v701
  %v1221 = vsel %vm307, %v441, %v703
  %v1222 = vsel %vm307, %v442, %v705
  %v1223 = vsel %vm307, %v443, %v707
  %v1224 = vsel %vm307, %v444, %v709
  %v1225 = vsel %vm307, %v445, %v711
  %v1226 = vsel %vm307, %v446, %v713
  %v1227 = vsel %vm307, %v447, %v715
  %v1228 = vsel %vm307, %v448, %v717
  %v1229 = vsel %vm307, %v449, %v719
  %v1230 = vsel %vm307, %v450, %v721
  %v1231 = vsel %vm307, %v451, %v723
  %v1232 = vsel %vm307, %v452, %v725
  %v1233 = vsel %vm307, %v453, %v727
  %v1234 = vsel %vm307, %v454, %v729
  %v1235 = vsel %vm307, %v455, %v731
  %v1236 = vsel %vm307, %v456, %v733
  %v1237 = vsel %vm307, %v457, %v735
  %v1238 = vsel %vm307, %v458, %v737
  %v1239 = vsel %vm307, %v459, %v739
  %v1240 = vsel %vm307, %v460, %v741
  %v1241 = vsel %vm307, %v461, %v743
  %v1242 = vsel %vm307, %v462, %v745
  %v1243 = vsel %vm307, %v463, %v747
  %v1244 = vsel %vm307, %v464, %v749
  %v1245 = vsel %vm307, %v465, %v751
  %v1246 = vsel %vm307, %v466, %v753
  %v1247 = vsel %vm307, %v467, %v755
  %v1248 = vsel %vm307, %v468, %v757
  %v1249 = vsel %vm307, %v469, %v759
  %v1250 = vsel %vm307, %v470, %v761
  %v1251 = vsel %vm307, %v471, %v763
  %v1252 = vsel %vm307, %v472, %v765
  %v1253 = vsel %vm307, %v473, %v767
  %vm1254 = vcmask 130048
  %v1255 = vsel %vm1254, %v1158, %v871
  %v1256 = vsel %vm1254, %v1159, %v873
  %v1257 = vsel %vm1254, %v1160, %v875
  %v1258 = vsel %vm1254, %v1161, %v877
  %v1259 = vsel %vm1254, %v1162, %v879
  %v1260 = vsel %vm1254, %v1163, %v881
  %v1261 = vsel %vm1254, %v1164, %v883
  %v1262 = vsel %vm1254, %v1165, %v885
  %v1263 = vsel %vm1254, %v1166, %v887
  %v1264 = vsel %vm1254, %v1167, %v889
  %v1265 = vsel %vm1254, %v1168, %v891
  %v1266 = vsel %vm1254, %v1169, %v893
  %v1267 = vsel %vm1254, %v1170, %v895
  %v1268 = vsel %vm1254, %v1171, %v897
  %v1269 = vsel %vm1254, %v1172, %v899
  %v1270 = vsel %vm1254, %v1173, %v901
  %v1271 = vsel %vm1254, %v1174, %v903
  %v1272 = vsel %vm1254, %v1175, %v905
  %v1273 = vsel %vm1254, %v1176, %v907
  %v1274 = vsel %vm1254, %v1177, %v909
  %v1275 = vsel %vm1254, %v1178, %v911
  %v1276 = vsel %vm1254, %v1179, %v913
  %v1277 = vsel %vm1254, %v1180, %v915
  %v1278 = vsel %vm1254, %v1181, %v917
  %v1279 = vsel %vm1254, %v1182, %v919
  %v1280 = vsel %vm1254, %v1183, %v921
  %v1281 = vsel %vm1254, %v1184, %v923
  %v1282 = vsel %vm1254, %v1185, %v925
  %v1283 = vsel %vm1254, %v1186, %v927
  %v1284 = vsel %vm1254, %v1187, %v929
  %v1285 = vsel %vm1254, %v1188, %v931
  %v1286 = vsel %vm1254, %v1189, %v933
  %v1287 = vsel %vm1254, %v1190, %v935
  %v1288 = vsel %vm1254, %v1191, %v937
  %v1289 = vsel %vm1254, %v1192, %v939
  %v1290 = vsel %vm1254, %v1193, %v941
  %v1291 = vsel %vm1254, %v1194, %v943
  %v1292 = vsel %vm1254, %v1195, %v945
  %v1293 = vsel %vm1254, %v1196, %v947
  %v1294 = vsel %vm1254, %v1197, %v949
  %v1295 = vsel %vm1254, %v1198, %v951
  %v1296 = vsel %vm1254, %v1199, %v953
  %v1297 = vsel %vm1254, %v1200, %v955
  %v1298 = vsel %vm1254, %v1201, %v957
  %v1299 = vsel %vm1254, %v1202, %v959
  %v1300 = vsel %vm1254, %v1203, %v961
  %v1301 = vsel %vm1254, %v1204, %v963
  %v1302 = vsel %vm1254, %v1205, %v965
  %v1303 = vsel %vm1254, %v1206, %v967
  %v1304 = vsel %vm1254, %v1207, %v969
  %v1305 = vsel %vm1254, %v1208, %v971
  %v1306 = vsel %vm1254, %v1209, %v973
  %v1307 = vsel %vm1254, %v1210, %v975
  %v1308 = vsel %vm1254, %v1211, %v977
  %v1309 = vsel %vm1254, %v1212, %v979
  %v1310 = vsel %vm1254, %v1213, %v981
  %v1311 = vsel %vm1254, %v1214, %v983
  %v1312 = vsel %vm1254, %v1215, %v985
  %v1313 = vsel %vm1254, %v1216, %v987
  %v1314 = vsel %vm1254, %v1217, %v989
  %v1315 = vsel %vm1254, %v1218, %v991
  %v1316 = vsel %vm1254, %v1219, %v993
  %v1317 = vsel %vm1254, %v1220, %v995
  %v1318 = vsel %vm1254, %v1221, %v997
  %v1319 = vsel %vm1254, %v1222, %v999
  %v1320 = vsel %vm1254, %v1223, %v1001
  %v1321 = vsel %vm1254, %v1224, %v1003
  %v1322 = vsel %vm1254, %v1225, %v1005
  %v1323 = vsel %vm1254, %v1226, %v1007
  %v1324 = vsel %vm1254, %v1227, %v1009
  %v1325 = vsel %vm1254, %v1228, %v1011
  %v1326 = vsel %vm1254, %v1229, %v1013
  %v1327 = vsel %vm1254, %v1230, %v1015
  %v1328 = vsel %vm1254, %v1231, %v1017
  %v1329 = vsel %vm1254, %v1232, %v1019
  %v1330 = vsel %vm1254, %v1233, %v1021
  %v1331 = vsel %vm1254, %v1234, %v1023
  %v1332 = vsel %vm1254, %v1235, %v1025
  %v1333 = vsel %vm1254, %v1236, %v1027
  %v1334 = vsel %vm1254, %v1237, %v1029
  %v1335 = vsel %vm1254, %v1238, %v1031
  %v1336 = vsel %vm1254, %v1239, %v1033
  %v1337 = vsel %vm1254, %v1240, %v1035
  %v1338 = vsel %vm1254, %v1241, %v1037
  %v1339 = vsel %vm1254, %v1242, %v1039
  %v1340 = vsel %vm1254, %v1243, %v1041
  %v1341 = vsel %vm1254, %v1244, %v1043
  %v1342 = vsel %vm1254, %v1245, %v1045
  %v1343 = vsel %vm1254, %v1246, %v1047
  %v1344 = vsel %vm1254, %v1247, %v1049
  %v1345 = vsel %vm1254, %v1248, %v1051
  %v1346 = vsel %vm1254, %v1249, %v1053
  %v1347 = vsel %vm1254, %v1250, %v1055
  %v1348 = vsel %vm1254, %v1251, %v1057
  %v1349 = vsel %vm1254, %v1252, %v1059
  %v1350 = vsel %vm1254, %v1253, %v1061
  %v1351 = vld [vmem:[%s1] sm:$0xff]
  %v1352 = vld [vmem:[%s1 + $0x8] sm:$0xff]
  %v1353 = vld [vmem:[%s1 + $0x10] sm:$0xff]
  %vm1450 = vcmask 1046528
  %v1451 = vrot.slane %v1255, 1
  %v1452 = vrot.slane %v1256, 1
  %v1453 = vsel %vm1450, %v1451, %v1452
  %v1454 = vrot.slane %v1257, 1
  %v1455 = vsel %vm1450, %v1452, %v1454
  %v1456 = vrot.slane %v1258, 1
  %v1457 = vrot.slane %v1259, 1
  %v1458 = vsel %vm1450, %v1456, %v1457
  %v1459 = vrot.slane %v1260, 1
  %v1460 = vsel %vm1450, %v1457, %v1459
  %v1461 = vrot.slane %v1261, 1
  %v1462 = vrot.slane %v1262, 1
  %v1463 = vsel %vm1450, %v1461, %v1462
  %v1464 = vrot.slane %v1263, 1
  %v1465 = vsel %vm1450, %v1462, %v1464
  %v1466 = vrot.slane %v1264, 1
  %v1467 = vrot.slane %v1265, 1
  %v1468 = vsel %vm1450, %v1466, %v1467
  %v1469 = vrot.slane %v1266, 1
  %v1470 = vsel %vm1450, %v1467, %v1469
  %v1471 = vrot.slane %v1267, 1
  %v1472 = vrot.slane %v1268, 1
  %v1473 = vsel %vm1450, %v1471, %v1472
  %v1474 = vrot.slane %v1269, 1
  %v1475 = vsel %vm1450, %v1472, %v1474
  %v1476 = vrot.slane %v1270, 1
  %v1477 = vrot.slane %v1271, 1
  %v1478 = vsel %vm1450, %v1476, %v1477
  %v1479 = vrot.slane %v1272, 1
  %v1480 = vsel %vm1450, %v1477, %v1479
  %v1481 = vrot.slane %v1273, 1
  %v1482 = vrot.slane %v1274, 1
  %v1483 = vsel %vm1450, %v1481, %v1482
  %v1484 = vrot.slane %v1275, 1
  %v1485 = vsel %vm1450, %v1482, %v1484
  %v1486 = vrot.slane %v1276, 1
  %v1487 = vrot.slane %v1277, 1
  %v1488 = vsel %vm1450, %v1486, %v1487
  %v1489 = vrot.slane %v1278, 1
  %v1490 = vsel %vm1450, %v1487, %v1489
  %v1491 = vrot.slane %v1279, 1
  %v1492 = vrot.slane %v1280, 1
  %v1493 = vsel %vm1450, %v1491, %v1492
  %v1494 = vrot.slane %v1281, 1
  %v1495 = vsel %vm1450, %v1492, %v1494
  %v1496 = vrot.slane %v1282, 1
  %v1497 = vrot.slane %v1283, 1
  %v1498 = vsel %vm1450, %v1496, %v1497
  %v1499 = vrot.slane %v1284, 1
  %v1500 = vsel %vm1450, %v1497, %v1499
  %v1501 = vrot.slane %v1285, 1
  %v1502 = vrot.slane %v1286, 1
  %v1503 = vsel %vm1450, %v1501, %v1502
  %v1504 = vrot.slane %v1287, 1
  %v1505 = vsel %vm1450, %v1502, %v1504
  %v1506 = vrot.slane %v1288, 1
  %v1507 = vrot.slane %v1289, 1
  %v1508 = vsel %vm1450, %v1506, %v1507
  %v1509 = vrot.slane %v1290, 1
  %v1510 = vsel %vm1450, %v1507, %v1509
  %v1511 = vrot.slane %v1291, 1
  %v1512 = vrot.slane %v1292, 1
  %v1513 = vsel %vm1450, %v1511, %v1512
  %v1514 = vrot.slane %v1293, 1
  %v1515 = vsel %vm1450, %v1512, %v1514
  %v1516 = vrot.slane %v1294, 1
  %v1517 = vrot.slane %v1295, 1
  %v1518 = vsel %vm1450, %v1516, %v1517
  %v1519 = vrot.slane %v1296, 1
  %v1520 = vsel %vm1450, %v1517, %v1519
  %v1521 = vrot.slane %v1297, 1
  %v1522 = vrot.slane %v1298, 1
  %v1523 = vsel %vm1450, %v1521, %v1522
  %v1524 = vrot.slane %v1299, 1
  %v1525 = vsel %vm1450, %v1522, %v1524
  %v1526 = vrot.slane %v1300, 1
  %v1527 = vrot.slane %v1301, 1
  %v1528 = vsel %vm1450, %v1526, %v1527
  %v1529 = vrot.slane %v1302, 1
  %v1530 = vsel %vm1450, %v1527, %v1529
  %v1531 = vrot.slane %v1303, 1
  %v1532 = vrot.slane %v1304, 1
  %v1533 = vsel %vm1450, %v1531, %v1532
  %v1534 = vrot.slane %v1305, 1
  %v1535 = vsel %vm1450, %v1532, %v1534
  %v1536 = vrot.slane %v1306, 1
  %v1537 = vrot.slane %v1307, 1
  %v1538 = vsel %vm1450, %v1536, %v1537
  %v1539 = vrot.slane %v1308, 1
  %v1540 = vsel %vm1450, %v1537, %v1539
  %v1541 = vrot.slane %v1309, 1
  %v1542 = vrot.slane %v1310, 1
  %v1543 = vsel %vm1450, %v1541, %v1542
  %v1544 = vrot.slane %v1311, 1
  %v1545 = vsel %vm1450, %v1542, %v1544
  %v1546 = vrot.slane %v1312, 1
  %v1547 = vrot.slane %v1313, 1
  %v1548 = vsel %vm1450, %v1546, %v1547
  %v1549 = vrot.slane %v1314, 1
  %v1550 = vsel %vm1450, %v1547, %v1549
  %v1551 = vrot.slane %v1315, 1
  %v1552 = vrot.slane %v1316, 1
  %v1553 = vsel %vm1450, %v1551, %v1552
  %v1554 = vrot.slane %v1317, 1
  %v1555 = vsel %vm1450, %v1552, %v1554
  %v1556 = vrot.slane %v1318, 1
  %v1557 = vrot.slane %v1319, 1
  %v1558 = vsel %vm1450, %v1556, %v1557
  %v1559 = vrot.slane %v1320, 1
  %v1560 = vsel %vm1450, %v1557, %v1559
  %v1561 = vrot.slane %v1321, 1
  %v1562 = vrot.slane %v1322, 1
  %v1563 = vsel %vm1450, %v1561, %v1562
  %v1564 = vrot.slane %v1323, 1
  %v1565 = vsel %vm1450, %v1562, %v1564
  %v1566 = vrot.slane %v1324, 1
  %v1567 = vrot.slane %v1325, 1
  %v1568 = vsel %vm1450, %v1566, %v1567
  %v1569 = vrot.slane %v1326, 1
  %v1570 = vsel %vm1450, %v1567, %v1569
  %v1571 = vrot.slane %v1327, 1
  %v1572 = vrot.slane %v1328, 1
  %v1573 = vsel %vm1450, %v1571, %v1572
  %v1574 = vrot.slane %v1329, 1
  %v1575 = vsel %vm1450, %v1572, %v1574
  %v1576 = vrot.slane %v1330, 1
  %v1577 = vrot.slane %v1331, 1
  %v1578 = vsel %vm1450, %v1576, %v1577
  %v1579 = vrot.slane %v1332, 1
  %v1580 = vsel %vm1450, %v1577, %v1579
  %v1581 = vrot.slane %v1333, 1
  %v1582 = vrot.slane %v1334, 1
  %v1583 = vsel %vm1450, %v1581, %v1582
  %v1584 = vrot.slane %v1335, 1
  %v1585 = vsel %vm1450, %v1582, %v1584
  %v1586 = vrot.slane %v1336, 1
  %v1587 = vrot.slane %v1337, 1
  %v1588 = vsel %vm1450, %v1586, %v1587
  %v1589 = vrot.slane %v1338, 1
  %v1590 = vsel %vm1450, %v1587, %v1589
  %v1591 = vrot.slane %v1339, 1
  %v1592 = vrot.slane %v1340, 1
  %v1593 = vsel %vm1450, %v1591, %v1592
  %v1594 = vrot.slane %v1341, 1
  %v1595 = vsel %vm1450, %v1592, %v1594
  %v1596 = vrot.slane %v1342, 1
  %v1597 = vrot.slane %v1343, 1
  %v1598 = vsel %vm1450, %v1596, %v1597
  %v1599 = vrot.slane %v1344, 1
  %v1600 = vsel %vm1450, %v1597, %v1599
  %v1601 = vrot.slane %v1345, 1
  %v1602 = vrot.slane %v1346, 1
  %v1603 = vsel %vm1450, %v1601, %v1602
  %v1604 = vrot.slane %v1347, 1
  %v1605 = vsel %vm1450, %v1602, %v1604
  %v1606 = vrot.slane %v1348, 1
  %v1607 = vrot.slane %v1349, 1
  %v1608 = vsel %vm1450, %v1606, %v1607
  %v1609 = vrot.slane %v1350, 1
  %v1610 = vsel %vm1450, %v1607, %v1609
  %s1611 = scalar_lea.vmem %s1, 24
  %v1612 = vld [vmem:[%s1611] sm:$0xff]
  %v1613 = vld [vmem:[%s1611 + $0x8] sm:$0xff]
  %v1614 = vld [vmem:[%s1611 + $0x10] sm:$0xff]
  %vm1615 = vcmask 195584
  %v1616 = vsel %vm1615, %v1453, 0
  %v1618 = vsel %vm1615, %v1455, 0
  %v1620 = vsel %vm1615, %v1458, 0
  %v1622 = vsel %vm1615, %v1460, 0
  %v1624 = vsel %vm1615, %v1463, 0
  %v1626 = vsel %vm1615, %v1465, 0
  %v1628 = vsel %vm1615, %v1468, 0
  %v1630 = vsel %vm1615, %v1470, 0
  %v1632 = vsel %vm1615, %v1473, 0
  %v1634 = vsel %vm1615, %v1475, 0
  %v1636 = vsel %vm1615, %v1478, 0
  %v1638 = vsel %vm1615, %v1480, 0
  %v1640 = vsel %vm1615, %v1483, 0
  %v1642 = vsel %vm1615, %v1485, 0
  %v1644 = vsel %vm1615, %v1488, 0
  %v1646 = vsel %vm1615, %v1490, 0
  %v1648 = vsel %vm1615, %v1493, 0
  %v1650 = vsel %vm1615, %v1495, 0
  %v1652 = vsel %vm1615, %v1498, 0
  %v1654 = vsel %vm1615, %v1500, 0
  %v1656 = vsel %vm1615, %v1503, 0
  %v1658 = vsel %vm1615, %v1505, 0
  %v1660 = vsel %vm1615, %v1508, 0
  %v1662 = vsel %vm1615, %v1510, 0
  %v1664 = vsel %vm1615, %v1513, 0
  %v1666 = vsel %vm1615, %v1515, 0
  %v1668 = vsel %vm1615, %v1518, 0
  %v1670 = vsel %vm1615, %v1520, 0
  %v1672 = vsel %vm1615, %v1523, 0
  %v1674 = vsel %vm1615, %v1525, 0
  %v1676 = vsel %vm1615, %v1528, 0
  %v1678 = vsel %vm1615, %v1530, 0
  %v1680 = vsel %vm1615, %v1533, 0
  %v1682 = vsel %vm1615, %v1535, 0
  %v1684 = vsel %vm1615, %v1538, 0
  %v1686 = vsel %vm1615, %v1540, 0
  %v1688 = vsel %vm1615, %v1543, 0
  %v1690 = vsel %vm1615, %v1545, 0
  %v1692 = vsel %vm1615, %v1548, 0
  %v1694 = vsel %vm1615, %v1550, 0
  %v1696 = vsel %vm1615, %v1553, 0
  %v1698 = vsel %vm1615, %v1555, 0
  %v1700 = vsel %vm1615, %v1558, 0
  %v1702 = vsel %vm1615, %v1560, 0
  %v1704 = vsel %vm1615, %v1563, 0
  %v1706 = vsel %vm1615, %v1565, 0
  %v1708 = vsel %vm1615, %v1568, 0
  %v1710 = vsel %vm1615, %v1570, 0
  %v1712 = vsel %vm1615, %v1573, 0
  %v1714 = vsel %vm1615, %v1575, 0
  %v1716 = vsel %vm1615, %v1578, 0
  %v1718 = vsel %vm1615, %v1580, 0
  %v1720 = vsel %vm1615, %v1583, 0
  %v1722 = vsel %vm1615, %v1585, 0
  %v1724 = vsel %vm1615, %v1588, 0
  %v1726 = vsel %vm1615, %v1590, 0
  %v1728 = vsel %vm1615, %v1593, 0
  %v1730 = vsel %vm1615, %v1595, 0
  %v1732 = vsel %vm1615, %v1598, 0
  %v1734 = vsel %vm1615, %v1600, 0
  %v1736 = vsel %vm1615, %v1603, 0
  %v1738 = vsel %vm1615, %v1605, 0
  %v1740 = vsel %vm1615, %v1608, 0
  %v1742 = vsel %vm1615, %v1610, 0
  %1744 = vmatprep.subr.mxu0 0.0
  %1745 = vmatpush1.msra.mxu0 %v1612
  %1746 = vmatprep.subr.mxu0 0.0
  %1747 = vmatpush1.msra.mxu0 %v1613
  %1748 = vmatprep.subr.mxu0 0.0
  %1749 = vmatpush1.msra.mxu0 %v1614
  %1750 = vmatprep.subr.mxu0 0.0
  %1751 = vmatpush1.msra.mxu0 0.0
  %1752 = vmatprep.subr.mxu0 0.0
  %1753 = vmatpush1.msra.mxu0 0.0
  %1754 = vmatprep.subr.mxu0 0.0
  %1755 = vmatpush1.msra.mxu0 0.0
  %1756 = vmatprep.subr.mxu0 0.0
  %1757 = vmatpush1.msra.mxu0 0.0
  %1758 = vmatprep.subr.mxu0 0.0
  %1759 = vmatpush1.msra.mxu0 0.0
  %1760 = vmatprep.subr.mxu0 0.0
  %1761 = vmatpush1.msra.mxu0 0.0
  %1762 = vmatprep.subr.mxu0 0.0
  %1763 = vmatpush1.msra.mxu0 0.0
  %1764 = vmatprep.subr.mxu0 0.0
  %1765 = vmatpush1.msra.mxu0 0.0
  %1766 = vmatprep.subr.mxu0 0.0
  %1767 = vmatpush1.msra.mxu0 0.0
  %1768 = vmatprep.subr.mxu0 0.0
  %1769 = vmatpush1.msra.mxu0 0.0
  %1770 = vmatprep.subr.mxu0 0.0
  %1771 = vmatpush1.msra.mxu0 0.0
  %1772 = vmatprep.subr.mxu0 0.0
  %1773 = vmatpush1.msra.mxu0 0.0
  %1774 = vmatprep.subr.mxu0 0.0
  %1775 = vmatpush1.msra.mxu0 0.0
  %1776 = vmatprep.subr.mxu0 0.0
  %1777 = vmatpush1.msra.mxu0 0.0
  %1778 = vmatprep.subr.mxu0 0.0
  %1779 = vmatpush1.msra.mxu0 0.0
  %1780 = vmatprep.subr.mxu0 0.0
  %1781 = vmatpush1.msra.mxu0 0.0
  %1782 = vmatprep.subr.mxu0 0.0
  %1783 = vmatpush1.msra.mxu0 0.0
  %1784 = vmatprep.subr.mxu0 0.0
  %1785 = vmatpush1.msra.mxu0 0.0
  %1786 = vmatprep.subr.mxu0 0.0
  %1787 = vmatpush1.msra.mxu0 0.0
  %1788 = vmatprep.subr.mxu0 0.0
  %1789 = vmatpush1.msra.mxu0 0.0
  %1790 = vmatprep.subr.mxu0 0.0
  %1791 = vmatpush1.msra.mxu0 0.0
  %1792 = vmatprep.subr.mxu0 0.0
  %1793 = vmatpush1.msra.mxu0 0.0
  %1794 = vmatprep.subr.mxu0 0.0
  %1795 = vmatpush1.msra.mxu0 0.0
  %1796 = vmatprep.subr.mxu0 0.0
  %1797 = vmatpush1.msra.mxu0 0.0
  %1798 = vmatprep.subr.mxu0 0.0
  %1799 = vmatpush1.msra.mxu0 0.0
  %1800 = vmatprep.subr.mxu0 0.0
  %1801 = vmatpush1.msra.mxu0 0.0
  %1802 = vmatprep.subr.mxu0 0.0
  %1803 = vmatpush1.msra.mxu0 0.0
  %1804 = vmatprep.subr.mxu0 0.0
  %1805 = vmatpush1.msra.mxu0 0.0
  %1806 = vmatprep.subr.mxu0 0.0
  %1807 = vmatpush1.msra.mxu0 0.0
  %1808 = vmatprep.mubr.f32.mxu0 0.0
  %1809 = vmatmul.mubr.f32.gmra.mrb[0].mxu0 %v1616
  %v1810 = vpop.f32.mrb[0].mxu0
  %v1811 = vadd.f32 0.0, %v1810
  %v1812 = vpop.f32.mrb[0].mxu0
  %1813 = vmatprep.mubr.f32.mxu0 0.0
  %1814 = vmatmul.mubr.f32.gmra.mrb[0].mxu0 %v1618
  %v1815 = vpop.f32.mrb[0].mxu0
  %v1816 = vadd.f32 0.0, %v1815
  %v1817 = vpop.f32.mrb[0].mxu0
  %1818 = vmatprep.mubr.f32.mxu0 0.0
  %1819 = vmatmul.mubr.f32.gmra.mrb[0].mxu0 %v1620
  %v1820 = vpop.f32.mrb[0].mxu0
  %v1821 = vadd.f32 0.0, %v1820
  %v1822 = vpop.f32.mrb[0].mxu0
  %1823 = vmatprep.mubr.f32.mxu0 0.0
  %1824 = vmatmul.mubr.f32.gmra.mrb[0].mxu0 %v1622
  %v1825 = vpop.f32.mrb[0].mxu0
  %v1826 = vadd.f32 0.0, %v1825
  %v1827 = vpop.f32.mrb[0].mxu0
  %1828 = vmatprep.mubr.f32.mxu0 0.0
  %1829 = vmatmul.mubr.f32.gmra.mrb[0].mxu0 %v1624
  %v1830 = vpop.f32.mrb[0].mxu0
  %v1831 = vadd.f32 0.0, %v1830
  %v1832 = vpop.f32.mrb[0].mxu0
  %1833 = vmatprep.mubr.f32.mxu0 0.0
  %1834 = vmatmul.mubr.f32.gmra.mrb[0].mxu0 %v1626
  %v1835 = vpop.f32.mrb[0].mxu0
  %v1836 = vadd.f32 0.0, %v1835
  %v1837 = vpop.f32.mrb[0].mxu0
  %1838 = vmatprep.mubr.f32.mxu0 0.0
  %1839 = vmatmul.mubr.f32.gmra.mrb[0].mxu0 %v1628
  %v1840 = vpop.f32.mrb[0].mxu0
  %v1841 = vadd.f32 0.0, %v1840
  %v1842 = vpop.f32.mrb[0].mxu0
  %1843 = vmatprep.mubr.f32.mxu0 0.0
  %1844 = vmatmul.mubr.f32.gmra.mrb[0].mxu0 %v1630
  %v1845 = vpop.f32.mrb[0].mxu0
  %v1846 = vadd.f32 0.0, %v1845
  %v1847 = vpop.f32.mrb[0].mxu0
  %1848 = vmatprep.mubr.f32.mxu0 0.0
  %1849 = vmatmul.mubr.f32.gmra.mrb[0].mxu0 %v1632
  %v1850 = vpop.f32.mrb[0].mxu0
  %v1851 = vadd.f32 0.0, %v1850
  %v1852 = vpop.f32.mrb[0].mxu0
  %1853 = vmatprep.mubr.f32.mxu0 0.0
  %1854 = vmatmul.mubr.f32.gmra.mrb[0].mxu0 %v1634
  %v1855 = vpop.f32.mrb[0].mxu0
  %v1856 = vadd.f32 0.0, %v1855
  %v1857 = vpop.f32.mrb[0].mxu0
  %1858 = vmatprep.mubr.f32.mxu0 0.0
  %1859 = vmatmul.mubr.f32.gmra.mrb[0].mxu0 %v1636
  %v1860 = vpop.f32.mrb[0].mxu0
  %v1861 = vadd.f32 0.0, %v1860
  %v1862 = vpop.f32.mrb[0].mxu0
  %1863 = vmatprep.mubr.f32.mxu0 0.0
  %1864 = vmatmul.mubr.f32.gmra.mrb[0].mxu0 %v1638
  %v1865 = vpop.f32.mrb[0].mxu0
  %v1866 = vadd.f32 0.0, %v1865
  %v1867 = vpop.f32.mrb[0].mxu0
  %1868 = vmatprep.mubr.f32.mxu0 0.0
  %1869 = vmatmul.mubr.f32.gmra.mrb[0].mxu0 %v1640
  %v1870 = vpop.f32.mrb[0].mxu0
  %v1871 = vadd.f32 0.0, %v1870
  %v1872 = vpop.f32.mrb[0].mxu0
  %1873 = vmatprep.mubr.f32.mxu0 0.0
  %1874 = vmatmul.mubr.f32.gmra.mrb[0].mxu0 %v1642
  %v1875 = vpop.f32.mrb[0].mxu0
  %v1876 = vadd.f32 0.0, %v1875
  %v1877 = vpop.f32.mrb[0].mxu0
  %1878 = vmatprep.mubr.f32.mxu0 0.0
  %1879 = vmatmul.mubr.f32.gmra.mrb[0].mxu0 %v1644
  %v1880 = vpop.f32.mrb[0].mxu0
  %v1881 = vadd.f32 0.0, %v1880
  %v1882 = vpop.f32.mrb[0].mxu0
  %1883 = vmatprep.mubr.f32.mxu0 0.0
  %1884 = vmatmul.mubr.f32.gmra.mrb[0].mxu0 %v1646
  %v1885 = vpop.f32.mrb[0].mxu0
  %v1886 = vadd.f32 0.0, %v1885
  %v1887 = vpop.f32.mrb[0].mxu0
  %1888 = vmatprep.mubr.f32.mxu0 0.0
  %1889 = vmatmul.mubr.f32.gmra.mrb[0].mxu0 %v1648
  %v1890 = vpop.f32.mrb[0].mxu0
  %v1891 = vadd.f32 0.0, %v1890
  %v1892 = vpop.f32.mrb[0].mxu0
  %1893 = vmatprep.mubr.f32.mxu0 0.0
  %1894 = vmatmul.mubr.f32.gmra.mrb[0].mxu0 %v1650
  %v1895 = vpop.f32.mrb[0].mxu0
  %v1896 = vadd.f32 0.0, %v1895
  %v1897 = vpop.f32.mrb[0].mxu0
  %1898 = vmatprep.mubr.f32.mxu0 0.0
  %1899 = vmatmul.mubr.f32.gmra.mrb[0].mxu0 %v1652
  %v1900 = vpop.f32.mrb[0].mxu0
  %v1901 = vadd.f32 0.0, %v1900
  %v1902 = vpop.f32.mrb[0].mxu0
  %1903 = vmatprep.mubr.f32.mxu0 0.0
  %1904 = vmatmul.mubr.f32.gmra.mrb[0].mxu0 %v1654
  %v1905 = vpop.f32.mrb[0].mxu0
  %v1906 = vadd.f32 0.0, %v1905
  %v1907 = vpop.f32.mrb[0].mxu0
  %1908 = vmatprep.mubr.f32.mxu0 0.0
  %1909 = vmatmul.mubr.f32.gmra.mrb[0].mxu0 %v1656
  %v1910 = vpop.f32.mrb[0].mxu0
  %v1911 = vadd.f32 0.0, %v1910
  %v1912 = vpop.f32.mrb[0].mxu0
  %1913 = vmatprep.mubr.f32.mxu0 0.0
  %1914 = vmatmul.mubr.f32.gmra.mrb[0].mxu0 %v1658
  %v1915 = vpop.f32.mrb[0].mxu0
  %v1916 = vadd.f32 0.0, %v1915
  %v1917 = vpop.f32.mrb[0].mxu0
  %1918 = vmatprep.mubr.f32.mxu0 0.0
  %1919 = vmatmul.mubr.f32.gmra.mrb[0].mxu0 %v1660
  %v1920 = vpop.f32.mrb[0].mxu0
  %v1921 = vadd.f32 0.0, %v1920
  %v1922 = vpop.f32.mrb[0].mxu0
  %1923 = vmatprep.mubr.f32.mxu0 0.0
  %1924 = vmatmul.mubr.f32.gmra.mrb[0].mxu0 %v1662
  %v1925 = vpop.f32.mrb[0].mxu0
  %v1926 = vadd.f32 0.0, %v1925
  %v1927 = vpop.f32.mrb[0].mxu0
  %1928 = vmatprep.mubr.f32.mxu0 0.0
  %1929 = vmatmul.mubr.f32.gmra.mrb[0].mxu0 %v1664
  %v1930 = vpop.f32.mrb[0].mxu0
  %v1931 = vadd.f32 0.0, %v1930
  %v1932 = vpop.f32.mrb[0].mxu0
  %1933 = vmatprep.mubr.f32.mxu0 0.0
  %1934 = vmatmul.mubr.f32.gmra.mrb[0].mxu0 %v1666
  %v1935 = vpop.f32.mrb[0].mxu0
  %v1936 = vadd.f32 0.0, %v1935
  %v1937 = vpop.f32.mrb[0].mxu0
  %1938 = vmatprep.mubr.f32.mxu0 0.0
  %1939 = vmatmul.mubr.f32.gmra.mrb[0].mxu0 %v1668
  %v1940 = vpop.f32.mrb[0].mxu0
  %v1941 = vadd.f32 0.0, %v1940
  %v1942 = vpop.f32.mrb[0].mxu0
  %1943 = vmatprep.mubr.f32.mxu0 0.0
  %1944 = vmatmul.mubr.f32.gmra.mrb[0].mxu0 %v1670
  %v1945 = vpop.f32.mrb[0].mxu0
  %v1946 = vadd.f32 0.0, %v1945
  %v1947 = vpop.f32.mrb[0].mxu0
  %1948 = vmatprep.mubr.f32.mxu0 0.0
  %1949 = vmatmul.mubr.f32.gmra.mrb[0].mxu0 %v1672
  %v1950 = vpop.f32.mrb[0].mxu0
  %v1951 = vadd.f32 0.0, %v1950
  %v1952 = vpop.f32.mrb[0].mxu0
  %1953 = vmatprep.mubr.f32.mxu0 0.0
  %1954 = vmatmul.mubr.f32.gmra.mrb[0].mxu0 %v1674
  %v1955 = vpop.f32.mrb[0].mxu0
  %v1956 = vadd.f32 0.0, %v1955
  %v1957 = vpop.f32.mrb[0].mxu0
  %1958 = vmatprep.mubr.f32.mxu0 0.0
  %1959 = vmatmul.mubr.f32.gmra.mrb[0].mxu0 %v1676
  %v1960 = vpop.f32.mrb[0].mxu0
  %v1961 = vadd.f32 0.0, %v1960
  %v1962 = vpop.f32.mrb[0].mxu0
  %1963 = vmatprep.mubr.f32.mxu0 0.0
  %1964 = vmatmul.mubr.f32.gmra.mrb[0].mxu0 %v1678
  %v1965 = vpop.f32.mrb[0].mxu0
  %v1966 = vadd.f32 0.0, %v1965
  %v1967 = vpop.f32.mrb[0].mxu0
  %1968 = vmatprep.mubr.f32.mxu0 0.0
  %1969 = vmatmul.mubr.f32.gmra.mrb[0].mxu0 %v1680
  %v1970 = vpop.f32.mrb[0].mxu0
  %v1971 = vadd.f32 0.0, %v1970
  %v1972 = vpop.f32.mrb[0].mxu0
  %1973 = vmatprep.mubr.f32.mxu0 0.0
  %1974 = vmatmul.mubr.f32.gmra.mrb[0].mxu0 %v1682
  %v1975 = vpop.f32.mrb[0].mxu0
  %v1976 = vadd.f32 0.0, %v1975
  %v1977 = vpop.f32.mrb[0].mxu0
  %1978 = vmatprep.mubr.f32.mxu0 0.0
  %1979 = vmatmul.mubr.f32.gmra.mrb[0].mxu0 %v1684
  %v1980 = vpop.f32.mrb[0].mxu0
  %v1981 = vadd.f32 0.0, %v1980
  %v1982 = vpop.f32.mrb[0].mxu0
  %1983 = vmatprep.mubr.f32.mxu0 0.0
  %1984 = vmatmul.mubr.f32.gmra.mrb[0].mxu0 %v1686
  %v1985 = vpop.f32.mrb[0].mxu0
  %v1986 = vadd.f32 0.0, %v1985
  %v1987 = vpop.f32.mrb[0].mxu0
  %1988 = vmatprep.mubr.f32.mxu0 0.0
  %1989 = vmatmul.mubr.f32.gmra.mrb[0].mxu0 %v1688
  %v1990 = vpop.f32.mrb[0].mxu0
  %v1991 = vadd.f32 0.0, %v1990
  %v1992 = vpop.f32.mrb[0].mxu0
  %1993 = vmatprep.mubr.f32.mxu0 0.0
  %1994 = vmatmul.mubr.f32.gmra.mrb[0].mxu0 %v1690
  %v1995 = vpop.f32.mrb[0].mxu0
  %v1996 = vadd.f32 0.0, %v1995
  %v1997 = vpop.f32.mrb[0].mxu0
  %1998 = vmatprep.mubr.f32.mxu0 0.0
  %1999 = vmatmul.mubr.f32.gmra.mrb[0].mxu0 %v1692
  %v2000 = vpop.f32.mrb[0].mxu0
  %v2001 = vadd.f32 0.0, %v2000
  %v2002 = vpop.f32.mrb[0].mxu0
  %2003 = vmatprep.mubr.f32.mxu0 0.0
  %2004 = vmatmul.mubr.f32.gmra.mrb[0].mxu0 %v1694
  %v2005 = vpop.f32.mrb[0].mxu0
  %v2006 = vadd.f32 0.0, %v2005
  %v2007 = vpop.f32.mrb[0].mxu0
  %2008 = vmatprep.mubr.f32.mxu0 0.0
  %2009 = vmatmul.mubr.f32.gmra.mrb[0].mxu0 %v1696
  %v2010 = vpop.f32.mrb[0].mxu0
  %v2011 = vadd.f32 0.0, %v2010
  %v2012 = vpop.f32.mrb[0].mxu0
  %2013 = vmatprep.mubr.f32.mxu0 0.0
  %2014 = vmatmul.mubr.f32.gmra.mrb[0].mxu0 %v1698
  %v2015 = vpop.f32.mrb[0].mxu0
  %v2016 = vadd.f32 0.0, %v2015
  %v2017 = vpop.f32.mrb[0].mxu0
  %2018 = vmatprep.mubr.f32.mxu0 0.0
  %2019 = vmatmul.mubr.f32.gmra.mrb[0].mxu0 %v1700
  %v2020 = vpop.f32.mrb[0].mxu0
  %v2021 = vadd.f32 0.0, %v2020
  %v2022 = vpop.f32.mrb[0].mxu0
  %2023 = vmatprep.mubr.f32.mxu0 0.0
  %2024 = vmatmul.mubr.f32.gmra.mrb[0].mxu0 %v1702
  %v2025 = vpop.f32.mrb[0].mxu0
  %v2026 = vadd.f32 0.0, %v2025
  %v2027 = vpop.f32.mrb[0].mxu0
  %2028 = vmatprep.mubr.f32.mxu0 0.0
  %2029 = vmatmul.mubr.f32.gmra.mrb[0].mxu0 %v1704
  %v2030 = vpop.f32.mrb[0].mxu0
  %v2031 = vadd.f32 0.0, %v2030
  %v2032 = vpop.f32.mrb[0].mxu0
  %2033 = vmatprep.mubr.f32.mxu0 0.0
  %2034 = vmatmul.mubr.f32.gmra.mrb[0].mxu0 %v1706
  %v2035 = vpop.f32.mrb[0].mxu0
  %v2036 = vadd.f32 0.0, %v2035
  %v2037 = vpop.f32.mrb[0].mxu0
  %2038 = vmatprep.mubr.f32.mxu0 0.0
  %2039 = vmatmul.mubr.f32.gmra.mrb[0].mxu0 %v1708
  %v2040 = vpop.f32.mrb[0].mxu0
  %v2041 = vadd.f32 0.0, %v2040
  %v2042 = vpop.f32.mrb[0].mxu0
  %2043 = vmatprep.mubr.f32.mxu0 0.0
  %2044 = vmatmul.mubr.f32.gmra.mrb[0].mxu0 %v1710
  %v2045 = vpop.f32.mrb[0].mxu0
  %v2046 = vadd.f32 0.0, %v2045
  %v2047 = vpop.f32.mrb[0].mxu0
  %2048 = vmatprep.mubr.f32.mxu0 0.0
  %2049 = vmatmul.mubr.f32.gmra.mrb[0].mxu0 %v1712
  %v2050 = vpop.f32.mrb[0].mxu0
  %v2051 = vadd.f32 0.0, %v2050
  %v2052 = vpop.f32.mrb[0].mxu0
  %2053 = vmatprep.mubr.f32.mxu0 0.0
  %2054 = vmatmul.mubr.f32.gmra.mrb[0].mxu0 %v1714
  %v2055 = vpop.f32.mrb[0].mxu0
  %v2056 = vadd.f32 0.0, %v2055
  %v2057 = vpop.f32.mrb[0].mxu0
  %2058 = vmatprep.mubr.f32.mxu0 0.0
  %2059 = vmatmul.mubr.f32.gmra.mrb[0].mxu0 %v1716
  %v2060 = vpop.f32.mrb[0].mxu0
  %v2061 = vadd.f32 0.0, %v2060
  %v2062 = vpop.f32.mrb[0].mxu0
  %2063 = vmatprep.mubr.f32.mxu0 0.0
  %2064 = vmatmul.mubr.f32.gmra.mrb[0].mxu0 %v1718
  %v2065 = vpop.f32.mrb[0].mxu0
  %v2066 = vadd.f32 0.0, %v2065
  %v2067 = vpop.f32.mrb[0].mxu0
  %2068 = vmatprep.mubr.f32.mxu0 0.0
  %2069 = vmatmul.mubr.f32.gmra.mrb[0].mxu0 %v1720
  %v2070 = vpop.f32.mrb[0].mxu0
  %v2071 = vadd.f32 0.0, %v2070
  %v2072 = vpop.f32.mrb[0].mxu0
  %2073 = vmatprep.mubr.f32.mxu0 0.0
  %2074 = vmatmul.mubr.f32.gmra.mrb[0].mxu0 %v1722
  %v2075 = vpop.f32.mrb[0].mxu0
  %v2076 = vadd.f32 0.0, %v2075
  %v2077 = vpop.f32.mrb[0].mxu0
  %2078 = vmatprep.mubr.f32.mxu0 0.0
  %2079 = vmatmul.mubr.f32.gmra.mrb[0].mxu0 %v1724
  %v2080 = vpop.f32.mrb[0].mxu0
  %v2081 = vadd.f32 0.0, %v2080
  %v2082 = vpop.f32.mrb[0].mxu0
  %2083 = vmatprep.mubr.f32.mxu0 0.0
  %2084 = vmatmul.mubr.f32.gmra.mrb[0].mxu0 %v1726
  %v2085 = vpop.f32.mrb[0].mxu0
  %v2086 = vadd.f32 0.0, %v2085
  %v2087 = vpop.f32.mrb[0].mxu0
  %2088 = vmatprep.mubr.f32.mxu0 0.0
  %2089 = vmatmul.mubr.f32.gmra.mrb[0].mxu0 %v1728
  %v2090 = vpop.f32.mrb[0].mxu0
  %v2091 = vadd.f32 0.0, %v2090
  %v2092 = vpop.f32.mrb[0].mxu0
  %2093 = vmatprep.mubr.f32.mxu0 0.0
  %2094 = vmatmul.mubr.f32.gmra.mrb[0].mxu0 %v1730
  %v2095 = vpop.f32.mrb[0].mxu0
  %v2096 = vadd.f32 0.0, %v2095
  %v2097 = vpop.f32.mrb[0].mxu0
  %2098 = vmatprep.mubr.f32.mxu0 0.0
  %2099 = vmatmul.mubr.f32.gmra.mrb[0].mxu0 %v1732
  %v2100 = vpop.f32.mrb[0].mxu0
  %v2101 = vadd.f32 0.0, %v2100
  %v2102 = vpop.f32.mrb[0].mxu0
  %2103 = vmatprep.mubr.f32.mxu0 0.0
  %2104 = vmatmul.mubr.f32.gmra.mrb[0].mxu0 %v1734
  %v2105 = vpop.f32.mrb[0].mxu0
  %v2106 = vadd.f32 0.0, %v2105
  %v2107 = vpop.f32.mrb[0].mxu0
  %2108 = vmatprep.mubr.f32.mxu0 0.0
  %2109 = vmatmul.mubr.f32.gmra.mrb[0].mxu0 %v1736
  %v2110 = vpop.f32.mrb[0].mxu0
  %v2111 = vadd.f32 0.0, %v2110
  %v2112 = vpop.f32.mrb[0].mxu0
  %2113 = vmatprep.mubr.f32.mxu0 0.0
  %2114 = vmatmul.mubr.f32.gmra.mrb[0].mxu0 %v1738
  %v2115 = vpop.f32.mrb[0].mxu0
  %v2116 = vadd.f32 0.0, %v2115
  %v2117 = vpop.f32.mrb[0].mxu0
  %2118 = vmatprep.mubr.f32.mxu0 0.0
  %2119 = vmatmul.mubr.f32.gmra.mrb[0].mxu0 %v1740
  %v2120 = vpop.f32.mrb[0].mxu0
  %v2121 = vadd.f32 0.0, %v2120
  %v2122 = vpop.f32.mrb[0].mxu0
  %2123 = vmatprep.mubr.f32.mxu0 0.0
  %2124 = vmatmul.mubr.f32.gmra.mrb[0].mxu0 %v1742
  %v2125 = vpop.f32.mrb[0].mxu0
  %v2126 = vadd.f32 0.0, %v2125
  %v2127 = vpop.f32.mrb[0].mxu0
  %2128 = vdwg.mxu0
  %v2129 = vsel %vm1615, %v1255, 0
  %v2131 = vsel %vm1615, %v1256, 0
  %v2133 = vsel %vm1615, %v1258, 0
  %v2135 = vsel %vm1615, %v1259, 0
  %v2137 = vsel %vm1615, %v1261, 0
  %v2139 = vsel %vm1615, %v1262, 0
  %v2141 = vsel %vm1615, %v1264, 0
  %v2143 = vsel %vm1615, %v1265, 0
  %v2145 = vsel %vm1615, %v1267, 0
  %v2147 = vsel %vm1615, %v1268, 0
  %v2149 = vsel %vm1615, %v1270, 0
  %v2151 = vsel %vm1615, %v1271, 0
  %v2153 = vsel %vm1615, %v1273, 0
  %v2155 = vsel %vm1615, %v1274, 0
  %v2157 = vsel %vm1615, %v1276, 0
  %v2159 = vsel %vm1615, %v1277, 0
  %v2161 = vsel %vm1615, %v1279, 0
  %v2163 = vsel %vm1615, %v1280, 0
  %v2165 = vsel %vm1615, %v1282, 0
  %v2167 = vsel %vm1615, %v1283, 0
  %v2169 = vsel %vm1615, %v1285, 0
  %v2171 = vsel %vm1615, %v1286, 0
  %v2173 = vsel %vm1615, %v1288, 0
  %v2175 = vsel %vm1615, %v1289, 0
  %v2177 = vsel %vm1615, %v1291, 0
  %v2179 = vsel %vm1615, %v1292, 0
  %v2181 = vsel %vm1615, %v1294, 0
  %v2183 = vsel %vm1615, %v1295, 0
  %v2185 = vsel %vm1615, %v1297, 0
  %v2187 = vsel %vm1615, %v1298, 0
  %v2189 = vsel %vm1615, %v1300, 0
  %v2191 = vsel %vm1615, %v1301, 0
  %v2193 = vsel %vm1615, %v1303, 0
  %v2195 = vsel %vm1615, %v1304, 0
  %v2197 = vsel %vm1615, %v1306, 0
  %v2199 = vsel %vm1615, %v1307, 0
  %v2201 = vsel %vm1615, %v1309, 0
  %v2203 = vsel %vm1615, %v1310, 0
  %v2205 = vsel %vm1615, %v1312, 0
  %v2207 = vsel %vm1615, %v1313, 0
  %v2209 = vsel %vm1615, %v1315, 0
  %v2211 = vsel %vm1615, %v1316, 0
  %v2213 = vsel %vm1615, %v1318, 0
  %v2215 = vsel %vm1615, %v1319, 0
  %v2217 = vsel %vm1615, %v1321, 0
  %v2219 = vsel %vm1615, %v1322, 0
  %v2221 = vsel %vm1615, %v1324, 0
  %v2223 = vsel %vm1615, %v1325, 0
  %v2225 = vsel %vm1615, %v1327, 0
  %v2227 = vsel %vm1615, %v1328, 0
  %v2229 = vsel %vm1615, %v1330, 0
  %v2231 = vsel %vm1615, %v1331, 0
  %v2233 = vsel %vm1615, %v1333, 0
  %v2235 = vsel %vm1615, %v1334, 0
  %v2237 = vsel %vm1615, %v1336, 0
  %v2239 = vsel %vm1615, %v1337, 0
  %v2241 = vsel %vm1615, %v1339, 0
  %v2243 = vsel %vm1615, %v1340, 0
  %v2245 = vsel %vm1615, %v1342, 0
  %v2247 = vsel %vm1615, %v1343, 0
  %v2249 = vsel %vm1615, %v1345, 0
  %v2251 = vsel %vm1615, %v1346, 0
  %v2253 = vsel %vm1615, %v1348, 0
  %v2255 = vsel %vm1615, %v1349, 0
  %2257 = vmatprep.subr.mxu0 0.0
  %2258 = vmatpush1.msra.mxu0 %v1351
  %2259 = vmatprep.subr.mxu0 0.0
  %2260 = vmatpush1.msra.mxu0 %v1352
  %2261 = vmatprep.subr.mxu0 0.0
  %2262 = vmatpush1.msra.mxu0 %v1353
  %2263 = vmatprep.subr.mxu0 0.0
  %2264 = vmatpush1.msra.mxu0 0.0
  %2265 = vmatprep.subr.mxu0 0.0
  %2266 = vmatpush1.msra.mxu0 0.0
  %2267 = vmatprep.subr.mxu0 0.0
  %2268 = vmatpush1.msra.mxu0 0.0
  %2269 = vmatprep.subr.mxu0 0.0
  %2270 = vmatpush1.msra.mxu0 0.0
  %2271 = vmatprep.subr.mxu0 0.0
  %2272 = vmatpush1.msra.mxu0 0.0
  %2273 = vmatprep.subr.mxu0 0.0
  %2274 = vmatpush1.msra.mxu0 0.0
  %2275 = vmatprep.subr.mxu0 0.0
  %2276 = vmatpush1.msra.mxu0 0.0
  %2277 = vmatprep.subr.mxu0 0.0
  %2278 = vmatpush1.msra.mxu0 0.0
  %2279 = vmatprep.subr.mxu0 0.0
  %2280 = vmatpush1.msra.mxu0 0.0
  %2281 = vmatprep.subr.mxu0 0.0
  %2282 = vmatpush1.msra.mxu0 0.0
  %2283 = vmatprep.subr.mxu0 0.0
  %2284 = vmatpush1.msra.mxu0 0.0
  %2285 = vmatprep.subr.mxu0 0.0
  %2286 = vmatpush1.msra.mxu0 0.0
  %2287 = vmatprep.subr.mxu0 0.0
  %2288 = vmatpush1.msra.mxu0 0.0
  %2289 = vmatprep.subr.mxu0 0.0
  %2290 = vmatpush1.msra.mxu0 0.0
  %2291 = vmatprep.subr.mxu0 0.0
  %2292 = vmatpush1.msra.mxu0 0.0
  %2293 = vmatprep.subr.mxu0 0.0
  %2294 = vmatpush1.msra.mxu0 0.0
  %2295 = vmatprep.subr.mxu0 0.0
  %2296 = vmatpush1.msra.mxu0 0.0
  %2297 = vmatprep.subr.mxu0 0.0
  %2298 = vmatpush1.msra.mxu0 0.0
  %2299 = vmatprep.subr.mxu0 0.0
  %2300 = vmatpush1.msra.mxu0 0.0
  %2301 = vmatprep.subr.mxu0 0.0
  %2302 = vmatpush1.msra.mxu0 0.0
  %2303 = vmatprep.subr.mxu0 0.0
  %2304 = vmatpush1.msra.mxu0 0.0
  %2305 = vmatprep.subr.mxu0 0.0
  %2306 = vmatpush1.msra.mxu0 0.0
  %2307 = vmatprep.subr.mxu0 0.0
  %2308 = vmatpush1.msra.mxu0 0.0
  %2309 = vmatprep.subr.mxu0 0.0
  %2310 = vmatpush1.msra.mxu0 0.0
  %2311 = vmatprep.subr.mxu0 0.0
  %2312 = vmatpush1.msra.mxu0 0.0
  %2313 = vmatprep.subr.mxu0 0.0
  %2314 = vmatpush1.msra.mxu0 0.0
  %2315 = vmatprep.subr.mxu0 0.0
  %2316 = vmatpush1.msra.mxu0 0.0
  %2317 = vmatprep.subr.mxu0 0.0
  %2318 = vmatpush1.msra.mxu0 0.0
  %2319 = vmatprep.subr.mxu0 0.0
  %2320 = vmatpush1.msra.mxu0 0.0
  %2321 = vmatprep.mubr.f32.mxu0 0.0
  %2322 = vmatmul.mubr.f32.gmra.mrb[0].mxu0 %v2129
  %v2323 = vpop.f32.mrb[0].mxu0
  %v2324 = vadd.f32 %v1811, %v2323
  %v2325 = vpop.f32.mrb[0].mxu0
  %2326 = vmatprep.mubr.f32.mxu0 0.0
  %2327 = vmatmul.mubr.f32.gmra.mrb[0].mxu0 %v2131
  %v2328 = vpop.f32.mrb[0].mxu0
  %v2329 = vadd.f32 %v1816, %v2328
  %v2330 = vpop.f32.mrb[0].mxu0
  %2331 = vmatprep.mubr.f32.mxu0 0.0
  %2332 = vmatmul.mubr.f32.gmra.mrb[0].mxu0 %v2133
  %v2333 = vpop.f32.mrb[0].mxu0
  %v2334 = vadd.f32 %v1821, %v2333
  %v2335 = vpop.f32.mrb[0].mxu0
  %2336 = vmatprep.mubr.f32.mxu0 0.0
  %2337 = vmatmul.mubr.f32.gmra.mrb[0].mxu0 %v2135
  %v2338 = vpop.f32.mrb[0].mxu0
  %v2339 = vadd.f32 %v1826, %v2338
  %v2340 = vpop.f32.mrb[0].mxu0
  %2341 = vmatprep.mubr.f32.mxu0 0.0
  %2342 = vmatmul.mubr.f32.gmra.mrb[0].mxu0 %v2137
  %v2343 = vpop.f32.mrb[0].mxu0
  %v2344 = vadd.f32 %v1831, %v2343
  %v2345 = vpop.f32.mrb[0].mxu0
  %2346 = vmatprep.mubr.f32.mxu0 0.0
  %2347 = vmatmul.mubr.f32.gmra.mrb[0].mxu0 %v2139
  %v2348 = vpop.f32.mrb[0].mxu0
  %v2349 = vadd.f32 %v1836, %v2348
  %v2350 = vpop.f32.mrb[0].mxu0
  %2351 = vmatprep.mubr.f32.mxu0 0.0
  %2352 = vmatmul.mubr.f32.gmra.mrb[0].mxu0 %v2141
  %v2353 = vpop.f32.mrb[0].mxu0
  %v2354 = vadd.f32 %v1841, %v2353
  %v2355 = vpop.f32.mrb[0].mxu0
  %2356 = vmatprep.mubr.f32.mxu0 0.0
  %2357 = vmatmul.mubr.f32.gmra.mrb[0].mxu0 %v2143
  %v2358 = vpop.f32.mrb[0].mxu0
  %v2359 = vadd.f32 %v1846, %v2358
  %v2360 = vpop.f32.mrb[0].mxu0
  %2361 = vmatprep.mubr.f32.mxu0 0.0
  %2362 = vmatmul.mubr.f32.gmra.mrb[0].mxu0 %v2145
  %v2363 = vpop.f32.mrb[0].mxu0
  %v2364 = vadd.f32 %v1851, %v2363
  %v2365 = vpop.f32.mrb[0].mxu0
  %2366 = vmatprep.mubr.f32.mxu0 0.0
  %2367 = vmatmul.mubr.f32.gmra.mrb[0].mxu0 %v2147
  %v2368 = vpop.f32.mrb[0].mxu0
  %v2369 = vadd.f32 %v1856, %v2368
  %v2370 = vpop.f32.mrb[0].mxu0
  %2371 = vmatprep.mubr.f32.mxu0 0.0
  %2372 = vmatmul.mubr.f32.gmra.mrb[0].mxu0 %v2149
  %v2373 = vpop.f32.mrb[0].mxu0
  %v2374 = vadd.f32 %v1861, %v2373
  %v2375 = vpop.f32.mrb[0].mxu0
  %2376 = vmatprep.mubr.f32.mxu0 0.0
  %2377 = vmatmul.mubr.f32.gmra.mrb[0].mxu0 %v2151
  %v2378 = vpop.f32.mrb[0].mxu0
  %v2379 = vadd.f32 %v1866, %v2378
  %v2380 = vpop.f32.mrb[0].mxu0
  %2381 = vmatprep.mubr.f32.mxu0 0.0
  %2382 = vmatmul.mubr.f32.gmra.mrb[0].mxu0 %v2153
  %v2383 = vpop.f32.mrb[0].mxu0
  %v2384 = vadd.f32 %v1871, %v2383
  %v2385 = vpop.f32.mrb[0].mxu0
  %2386 = vmatprep.mubr.f32.mxu0 0.0
  %2387 = vmatmul.mubr.f32.gmra.mrb[0].mxu0 %v2155
  %v2388 = vpop.f32.mrb[0].mxu0
  %v2389 = vadd.f32 %v1876, %v2388
  %v2390 = vpop.f32.mrb[0].mxu0
  %2391 = vmatprep.mubr.f32.mxu0 0.0
  %2392 = vmatmul.mubr.f32.gmra.mrb[0].mxu0 %v2157
  %v2393 = vpop.f32.mrb[0].mxu0
  %v2394 = vadd.f32 %v1881, %v2393
  %v2395 = vpop.f32.mrb[0].mxu0
  %2396 = vmatprep.mubr.f32.mxu0 0.0
  %2397 = vmatmul.mubr.f32.gmra.mrb[0].mxu0 %v2159
  %v2398 = vpop.f32.mrb[0].mxu0
  %v2399 = vadd.f32 %v1886, %v2398
  %v2400 = vpop.f32.mrb[0].mxu0
  %2401 = vmatprep.mubr.f32.mxu0 0.0
  %2402 = vmatmul.mubr.f32.gmra.mrb[0].mxu0 %v2161
  %v2403 = vpop.f32.mrb[0].mxu0
  %v2404 = vadd.f32 %v1891, %v2403
  %v2405 = vpop.f32.mrb[0].mxu0
  %2406 = vmatprep.mubr.f32.mxu0 0.0
  %2407 = vmatmul.mubr.f32.gmra.mrb[0].mxu0 %v2163
  %v2408 = vpop.f32.mrb[0].mxu0
  %v2409 = vadd.f32 %v1896, %v2408
  %v2410 = vpop.f32.mrb[0].mxu0
  %2411 = vmatprep.mubr.f32.mxu0 0.0
  %2412 = vmatmul.mubr.f32.gmra.mrb[0].mxu0 %v2165
  %v2413 = vpop.f32.mrb[0].mxu0
  %v2414 = vadd.f32 %v1901, %v2413
  %v2415 = vpop.f32.mrb[0].mxu0
  %2416 = vmatprep.mubr.f32.mxu0 0.0
  %2417 = vmatmul.mubr.f32.gmra.mrb[0].mxu0 %v2167
  %v2418 = vpop.f32.mrb[0].mxu0
  %v2419 = vadd.f32 %v1906, %v2418
  %v2420 = vpop.f32.mrb[0].mxu0
  %2421 = vmatprep.mubr.f32.mxu0 0.0
  %2422 = vmatmul.mubr.f32.gmra.mrb[0].mxu0 %v2169
  %v2423 = vpop.f32.mrb[0].mxu0
  %v2424 = vadd.f32 %v1911, %v2423
  %v2425 = vpop.f32.mrb[0].mxu0
  %2426 = vmatprep.mubr.f32.mxu0 0.0
  %2427 = vmatmul.mubr.f32.gmra.mrb[0].mxu0 %v2171
  %v2428 = vpop.f32.mrb[0].mxu0
  %v2429 = vadd.f32 %v1916, %v2428
  %v2430 = vpop.f32.mrb[0].mxu0
  %2431 = vmatprep.mubr.f32.mxu0 0.0
  %2432 = vmatmul.mubr.f32.gmra.mrb[0].mxu0 %v2173
  %v2433 = vpop.f32.mrb[0].mxu0
  %v2434 = vadd.f32 %v1921, %v2433
  %v2435 = vpop.f32.mrb[0].mxu0
  %2436 = vmatprep.mubr.f32.mxu0 0.0
  %2437 = vmatmul.mubr.f32.gmra.mrb[0].mxu0 %v2175
  %v2438 = vpop.f32.mrb[0].mxu0
  %v2439 = vadd.f32 %v1926, %v2438
  %v2440 = vpop.f32.mrb[0].mxu0
  %2441 = vmatprep.mubr.f32.mxu0 0.0
  %2442 = vmatmul.mubr.f32.gmra.mrb[0].mxu0 %v2177
  %v2443 = vpop.f32.mrb[0].mxu0
  %v2444 = vadd.f32 %v1931, %v2443
  %v2445 = vpop.f32.mrb[0].mxu0
  %2446 = vmatprep.mubr.f32.mxu0 0.0
  %2447 = vmatmul.mubr.f32.gmra.mrb[0].mxu0 %v2179
  %v2448 = vpop.f32.mrb[0].mxu0
  %v2449 = vadd.f32 %v1936, %v2448
  %v2450 = vpop.f32.mrb[0].mxu0
  %2451 = vmatprep.mubr.f32.mxu0 0.0
  %2452 = vmatmul.mubr.f32.gmra.mrb[0].mxu0 %v2181
  %v2453 = vpop.f32.mrb[0].mxu0
  %v2454 = vadd.f32 %v1941, %v2453
  %v2455 = vpop.f32.mrb[0].mxu0
  %2456 = vmatprep.mubr.f32.mxu0 0.0
  %2457 = vmatmul.mubr.f32.gmra.mrb[0].mxu0 %v2183
  %v2458 = vpop.f32.mrb[0].mxu0
  %v2459 = vadd.f32 %v1946, %v2458
  %v2460 = vpop.f32.mrb[0].mxu0
  %2461 = vmatprep.mubr.f32.mxu0 0.0
  %2462 = vmatmul.mubr.f32.gmra.mrb[0].mxu0 %v2185
  %v2463 = vpop.f32.mrb[0].mxu0
  %v2464 = vadd.f32 %v1951, %v2463
  %v2465 = vpop.f32.mrb[0].mxu0
  %2466 = vmatprep.mubr.f32.mxu0 0.0
  %2467 = vmatmul.mubr.f32.gmra.mrb[0].mxu0 %v2187
  %v2468 = vpop.f32.mrb[0].mxu0
  %v2469 = vadd.f32 %v1956, %v2468
  %v2470 = vpop.f32.mrb[0].mxu0
  %2471 = vmatprep.mubr.f32.mxu0 0.0
  %2472 = vmatmul.mubr.f32.gmra.mrb[0].mxu0 %v2189
  %v2473 = vpop.f32.mrb[0].mxu0
  %v2474 = vadd.f32 %v1961, %v2473
  %v2475 = vpop.f32.mrb[0].mxu0
  %2476 = vmatprep.mubr.f32.mxu0 0.0
  %2477 = vmatmul.mubr.f32.gmra.mrb[0].mxu0 %v2191
  %v2478 = vpop.f32.mrb[0].mxu0
  %v2479 = vadd.f32 %v1966, %v2478
  %v2480 = vpop.f32.mrb[0].mxu0
  %2481 = vmatprep.mubr.f32.mxu0 0.0
  %2482 = vmatmul.mubr.f32.gmra.mrb[0].mxu0 %v2193
  %v2483 = vpop.f32.mrb[0].mxu0
  %v2484 = vadd.f32 %v1971, %v2483
  %v2485 = vpop.f32.mrb[0].mxu0
  %2486 = vmatprep.mubr.f32.mxu0 0.0
  %2487 = vmatmul.mubr.f32.gmra.mrb[0].mxu0 %v2195
  %v2488 = vpop.f32.mrb[0].mxu0
  %v2489 = vadd.f32 %v1976, %v2488
  %v2490 = vpop.f32.mrb[0].mxu0
  %2491 = vmatprep.mubr.f32.mxu0 0.0
  %2492 = vmatmul.mubr.f32.gmra.mrb[0].mxu0 %v2197
  %v2493 = vpop.f32.mrb[0].mxu0
  %v2494 = vadd.f32 %v1981, %v2493
  %v2495 = vpop.f32.mrb[0].mxu0
  %2496 = vmatprep.mubr.f32.mxu0 0.0
  %2497 = vmatmul.mubr.f32.gmra.mrb[0].mxu0 %v2199
  %v2498 = vpop.f32.mrb[0].mxu0
  %v2499 = vadd.f32 %v1986, %v2498
  %v2500 = vpop.f32.mrb[0].mxu0
  %2501 = vmatprep.mubr.f32.mxu0 0.0
  %2502 = vmatmul.mubr.f32.gmra.mrb[0].mxu0 %v2201
  %v2503 = vpop.f32.mrb[0].mxu0
  %v2504 = vadd.f32 %v1991, %v2503
  %v2505 = vpop.f32.mrb[0].mxu0
  %2506 = vmatprep.mubr.f32.mxu0 0.0
  %2507 = vmatmul.mubr.f32.gmra.mrb[0].mxu0 %v2203
  %v2508 = vpop.f32.mrb[0].mxu0
  %v2509 = vadd.f32 %v1996, %v2508
  %v2510 = vpop.f32.mrb[0].mxu0
  %2511 = vmatprep.mubr.f32.mxu0 0.0
  %2512 = vmatmul.mubr.f32.gmra.mrb[0].mxu0 %v2205
  %v2513 = vpop.f32.mrb[0].mxu0
  %v2514 = vadd.f32 %v2001, %v2513
  %v2515 = vpop.f32.mrb[0].mxu0
  %2516 = vmatprep.mubr.f32.mxu0 0.0
  %2517 = vmatmul.mubr.f32.gmra.mrb[0].mxu0 %v2207
  %v2518 = vpop.f32.mrb[0].mxu0
  %v2519 = vadd.f32 %v2006, %v2518
  %v2520 = vpop.f32.mrb[0].mxu0
  %2521 = vmatprep.mubr.f32.mxu0 0.0
  %2522 = vmatmul.mubr.f32.gmra.mrb[0].mxu0 %v2209
  %v2523 = vpop.f32.mrb[0].mxu0
  %v2524 = vadd.f32 %v2011, %v2523
  %v2525 = vpop.f32.mrb[0].mxu0
  %2526 = vmatprep.mubr.f32.mxu0 0.0
  %2527 = vmatmul.mubr.f32.gmra.mrb[0].mxu0 %v2211
  %v2528 = vpop.f32.mrb[0].mxu0
  %v2529 = vadd.f32 %v2016, %v2528
  %v2530 = vpop.f32.mrb[0].mxu0
  %2531 = vmatprep.mubr.f32.mxu0 0.0
  %2532 = vmatmul.mubr.f32.gmra.mrb[0].mxu0 %v2213
  %v2533 = vpop.f32.mrb[0].mxu0
  %v2534 = vadd.f32 %v2021, %v2533
  %v2535 = vpop.f32.mrb[0].mxu0
  %2536 = vmatprep.mubr.f32.mxu0 0.0
  %2537 = vmatmul.mubr.f32.gmra.mrb[0].mxu0 %v2215
  %v2538 = vpop.f32.mrb[0].mxu0
  %v2539 = vadd.f32 %v2026, %v2538
  %v2540 = vpop.f32.mrb[0].mxu0
  %2541 = vmatprep.mubr.f32.mxu0 0.0
  %2542 = vmatmul.mubr.f32.gmra.mrb[0].mxu0 %v2217
  %v2543 = vpop.f32.mrb[0].mxu0
  %v2544 = vadd.f32 %v2031, %v2543
  %v2545 = vpop.f32.mrb[0].mxu0
  %2546 = vmatprep.mubr.f32.mxu0 0.0
  %2547 = vmatmul.mubr.f32.gmra.mrb[0].mxu0 %v2219
  %v2548 = vpop.f32.mrb[0].mxu0
  %v2549 = vadd.f32 %v2036, %v2548
  %v2550 = vpop.f32.mrb[0].mxu0
  %2551 = vmatprep.mubr.f32.mxu0 0.0
  %2552 = vmatmul.mubr.f32.gmra.mrb[0].mxu0 %v2221
  %v2553 = vpop.f32.mrb[0].mxu0
  %v2554 = vadd.f32 %v2041, %v2553
  %v2555 = vpop.f32.mrb[0].mxu0
  %2556 = vmatprep.mubr.f32.mxu0 0.0
  %2557 = vmatmul.mubr.f32.gmra.mrb[0].mxu0 %v2223
  %v2558 = vpop.f32.mrb[0].mxu0
  %v2559 = vadd.f32 %v2046, %v2558
  %v2560 = vpop.f32.mrb[0].mxu0
  %2561 = vmatprep.mubr.f32.mxu0 0.0
  %2562 = vmatmul.mubr.f32.gmra.mrb[0].mxu0 %v2225
  %v2563 = vpop.f32.mrb[0].mxu0
  %v2564 = vadd.f32 %v2051, %v2563
  %v2565 = vpop.f32.mrb[0].mxu0
  %2566 = vmatprep.mubr.f32.mxu0 0.0
  %2567 = vmatmul.mubr.f32.gmra.mrb[0].mxu0 %v2227
  %v2568 = vpop.f32.mrb[0].mxu0
  %v2569 = vadd.f32 %v2056, %v2568
  %v2570 = vpop.f32.mrb[0].mxu0
  %2571 = vmatprep.mubr.f32.mxu0 0.0
  %2572 = vmatmul.mubr.f32.gmra.mrb[0].mxu0 %v2229
  %v2573 = vpop.f32.mrb[0].mxu0
  %v2574 = vadd.f32 %v2061, %v2573
  %v2575 = vpop.f32.mrb[0].mxu0
  %2576 = vmatprep.mubr.f32.mxu0 0.0
  %2577 = vmatmul.mubr.f32.gmra.mrb[0].mxu0 %v2231
  %v2578 = vpop.f32.mrb[0].mxu0
  %v2579 = vadd.f32 %v2066, %v2578
  %v2580 = vpop.f32.mrb[0].mxu0
  %2581 = vmatprep.mubr.f32.mxu0 0.0
  %2582 = vmatmul.mubr.f32.gmra.mrb[0].mxu0 %v2233
  %v2583 = vpop.f32.mrb[0].mxu0
  %v2584 = vadd.f32 %v2071, %v2583
  %v2585 = vpop.f32.mrb[0].mxu0
  %2586 = vmatprep.mubr.f32.mxu0 0.0
  %2587 = vmatmul.mubr.f32.gmra.mrb[0].mxu0 %v2235
  %v2588 = vpop.f32.mrb[0].mxu0
  %v2589 = vadd.f32 %v2076, %v2588
  %v2590 = vpop.f32.mrb[0].mxu0
  %2591 = vmatprep.mubr.f32.mxu0 0.0
  %2592 = vmatmul.mubr.f32.gmra.mrb[0].mxu0 %v2237
  %v2593 = vpop.f32.mrb[0].mxu0
  %v2594 = vadd.f32 %v2081, %v2593
  %v2595 = vpop.f32.mrb[0].mxu0
  %2596 = vmatprep.mubr.f32.mxu0 0.0
  %2597 = vmatmul.mubr.f32.gmra.mrb[0].mxu0 %v2239
  %v2598 = vpop.f32.mrb[0].mxu0
  %v2599 = vadd.f32 %v2086, %v2598
  %v2600 = vpop.f32.mrb[0].mxu0
  %2601 = vmatprep.mubr.f32.mxu0 0.0
  %2602 = vmatmul.mubr.f32.gmra.mrb[0].mxu0 %v2241
  %v2603 = vpop.f32.mrb[0].mxu0
  %v2604 = vadd.f32 %v2091, %v2603
  %v2605 = vpop.f32.mrb[0].mxu0
  %2606 = vmatprep.mubr.f32.mxu0 0.0
  %2607 = vmatmul.mubr.f32.gmra.mrb[0].mxu0 %v2243
  %v2608 = vpop.f32.mrb[0].mxu0
  %v2609 = vadd.f32 %v2096, %v2608
  %v2610 = vpop.f32.mrb[0].mxu0
  %2611 = vmatprep.mubr.f32.mxu0 0.0
  %2612 = vmatmul.mubr.f32.gmra.mrb[0].mxu0 %v2245
  %v2613 = vpop.f32.mrb[0].mxu0
  %v2614 = vadd.f32 %v2101, %v2613
  %v2615 = vpop.f32.mrb[0].mxu0
  %2616 = vmatprep.mubr.f32.mxu0 0.0
  %2617 = vmatmul.mubr.f32.gmra.mrb[0].mxu0 %v2247
  %v2618 = vpop.f32.mrb[0].mxu0
  %v2619 = vadd.f32 %v2106, %v2618
  %v2620 = vpop.f32.mrb[0].mxu0
  %2621 = vmatprep.mubr.f32.mxu0 0.0
  %2622 = vmatmul.mubr.f32.gmra.mrb[0].mxu0 %v2249
  %v2623 = vpop.f32.mrb[0].mxu0
  %v2624 = vadd.f32 %v2111, %v2623
  %v2625 = vpop.f32.mrb[0].mxu0
  %2626 = vmatprep.mubr.f32.mxu0 0.0
  %2627 = vmatmul.mubr.f32.gmra.mrb[0].mxu0 %v2251
  %v2628 = vpop.f32.mrb[0].mxu0
  %v2629 = vadd.f32 %v2116, %v2628
  %v2630 = vpop.f32.mrb[0].mxu0
  %2631 = vmatprep.mubr.f32.mxu0 0.0
  %2632 = vmatmul.mubr.f32.gmra.mrb[0].mxu0 %v2253
  %v2633 = vpop.f32.mrb[0].mxu0
  %v2634 = vadd.f32 %v2121, %v2633
  %v2635 = vpop.f32.mrb[0].mxu0
  %2636 = vmatprep.mubr.f32.mxu0 0.0
  %2637 = vmatmul.mubr.f32.gmra.mrb[0].mxu0 %v2255
  %v2638 = vpop.f32.mrb[0].mxu0
  %v2639 = vadd.f32 %v2126, %v2638
  %v2640 = vpop.f32.mrb[0].mxu0
  %2641 = vdwg.mxu0
  %vm2642 = vcmask 1045504
  %v2643 = vrot.slane %v1255, 2
  %v2644 = vrot.slane %v1256, 2
  %v2645 = vsel %vm2642, %v2643, %v2644
  %v2646 = vrot.slane %v1257, 2
  %v2647 = vsel %vm2642, %v2644, %v2646
  %v2648 = vrot.slane %v1258, 2
  %v2649 = vrot.slane %v1259, 2
  %v2650 = vsel %vm2642, %v2648, %v2649
  %v2651 = vrot.slane %v1260, 2
  %v2652 = vsel %vm2642, %v2649, %v2651
  %v2653 = vrot.slane %v1261, 2
  %v2654 = vrot.slane %v1262, 2
  %v2655 = vsel %vm2642, %v2653, %v2654
  %v2656 = vrot.slane %v1263, 2
  %v2657 = vsel %vm2642, %v2654, %v2656
  %v2658 = vrot.slane %v1264, 2
  %v2659 = vrot.slane %v1265, 2
  %v2660 = vsel %vm2642, %v2658, %v2659
  %v2661 = vrot.slane %v1266, 2
  %v2662 = vsel %vm2642, %v2659, %v2661
  %v2663 = vrot.slane %v1267, 2
  %v2664 = vrot.slane %v1268, 2
  %v2665 = vsel %vm2642, %v2663, %v2664
  %v2666 = vrot.slane %v1269, 2
  %v2667 = vsel %vm2642, %v2664, %v2666
  %v2668 = vrot.slane %v1270, 2
  %v2669 = vrot.slane %v1271, 2
  %v2670 = vsel %vm2642, %v2668, %v2669
  %v2671 = vrot.slane %v1272, 2
  %v2672 = vsel %vm2642, %v2669, %v2671
  %v2673 = vrot.slane %v1273, 2
  %v2674 = vrot.slane %v1274, 2
  %v2675 = vsel %vm2642, %v2673, %v2674
  %v2676 = vrot.slane %v1275, 2
  %v2677 = vsel %vm2642, %v2674, %v2676
  %v2678 = vrot.slane %v1276, 2
  %v2679 = vrot.slane %v1277, 2
  %v2680 = vsel %vm2642, %v2678, %v2679
  %v2681 = vrot.slane %v1278, 2
  %v2682 = vsel %vm2642, %v2679, %v2681
  %v2683 = vrot.slane %v1279, 2
  %v2684 = vrot.slane %v1280, 2
  %v2685 = vsel %vm2642, %v2683, %v2684
  %v2686 = vrot.slane %v1281, 2
  %v2687 = vsel %vm2642, %v2684, %v2686
  %v2688 = vrot.slane %v1282, 2
  %v2689 = vrot.slane %v1283, 2
  %v2690 = vsel %vm2642, %v2688, %v2689
  %v2691 = vrot.slane %v1284, 2
  %v2692 = vsel %vm2642, %v2689, %v2691
  %v2693 = vrot.slane %v1285, 2
  %v2694 = vrot.slane %v1286, 2
  %v2695 = vsel %vm2642, %v2693, %v2694
  %v2696 = vrot.slane %v1287, 2
  %v2697 = vsel %vm2642, %v2694, %v2696
  %v2698 = vrot.slane %v1288, 2
  %v2699 = vrot.slane %v1289, 2
  %v2700 = vsel %vm2642, %v2698, %v2699
  %v2701 = vrot.slane %v1290, 2
  %v2702 = vsel %vm2642, %v2699, %v2701
  %v2703 = vrot.slane %v1291, 2
  %v2704 = vrot.slane %v1292, 2
  %v2705 = vsel %vm2642, %v2703, %v2704
  %v2706 = vrot.slane %v1293, 2
  %v2707 = vsel %vm2642, %v2704, %v2706
  %v2708 = vrot.slane %v1294, 2
  %v2709 = vrot.slane %v1295, 2
  %v2710 = vsel %vm2642, %v2708, %v2709
  %v2711 = vrot.slane %v1296, 2
  %v2712 = vsel %vm2642, %v2709, %v2711
  %v2713 = vrot.slane %v1297, 2
  %v2714 = vrot.slane %v1298, 2
  %v2715 = vsel %vm2642, %v2713, %v2714
  %v2716 = vrot.slane %v1299, 2
  %v2717 = vsel %vm2642, %v2714, %v2716
  %v2718 = vrot.slane %v1300, 2
  %v2719 = vrot.slane %v1301, 2
  %v2720 = vsel %vm2642, %v2718, %v2719
  %v2721 = vrot.slane %v1302, 2
  %v2722 = vsel %vm2642, %v2719, %v2721
  %v2723 = vrot.slane %v1303, 2
  %v2724 = vrot.slane %v1304, 2
  %v2725 = vsel %vm2642, %v2723, %v2724
  %v2726 = vrot.slane %v1305, 2
  %v2727 = vsel %vm2642, %v2724, %v2726
  %v2728 = vrot.slane %v1306, 2
  %v2729 = vrot.slane %v1307, 2
  %v2730 = vsel %vm2642, %v2728, %v2729
  %v2731 = vrot.slane %v1308, 2
  %v2732 = vsel %vm2642, %v2729, %v2731
  %v2733 = vrot.slane %v1309, 2
  %v2734 = vrot.slane %v1310, 2
  %v2735 = vsel %vm2642, %v2733, %v2734
  %v2736 = vrot.slane %v1311, 2
  %v2737 = vsel %vm2642, %v2734, %v2736
  %v2738 = vrot.slane %v1312, 2
  %v2739 = vrot.slane %v1313, 2
  %v2740 = vsel %vm2642, %v2738, %v2739
  %v2741 = vrot.slane %v1314, 2
  %v2742 = vsel %vm2642, %v2739, %v2741
  %v2743 = vrot.slane %v1315, 2
  %v2744 = vrot.slane %v1316, 2
  %v2745 = vsel %vm2642, %v2743, %v2744
  %v2746 = vrot.slane %v1317, 2
  %v2747 = vsel %vm2642, %v2744, %v2746
  %v2748 = vrot.slane %v1318, 2
  %v2749 = vrot.slane %v1319, 2
  %v2750 = vsel %vm2642, %v2748, %v2749
  %v2751 = vrot.slane %v1320, 2
  %v2752 = vsel %vm2642, %v2749, %v2751
  %v2753 = vrot.slane %v1321, 2
  %v2754 = vrot.slane %v1322, 2
  %v2755 = vsel %vm2642, %v2753, %v2754
  %v2756 = vrot.slane %v1323, 2
  %v2757 = vsel %vm2642, %v2754, %v2756
  %v2758 = vrot.slane %v1324, 2
  %v2759 = vrot.slane %v1325, 2
  %v2760 = vsel %vm2642, %v2758, %v2759
  %v2761 = vrot.slane %v1326, 2
  %v2762 = vsel %vm2642, %v2759, %v2761
  %v2763 = vrot.slane %v1327, 2
  %v2764 = vrot.slane %v1328, 2
  %v2765 = vsel %vm2642, %v2763, %v2764
  %v2766 = vrot.slane %v1329, 2
  %v2767 = vsel %vm2642, %v2764, %v2766
  %v2768 = vrot.slane %v1330, 2
  %v2769 = vrot.slane %v1331, 2
  %v2770 = vsel %vm2642, %v2768, %v2769
  %v2771 = vrot.slane %v1332, 2
  %v2772 = vsel %vm2642, %v2769, %v2771
  %v2773 = vrot.slane %v1333, 2
  %v2774 = vrot.slane %v1334, 2
  %v2775 = vsel %vm2642, %v2773, %v2774
  %v2776 = vrot.slane %v1335, 2
  %v2777 = vsel %vm2642, %v2774, %v2776
  %v2778 = vrot.slane %v1336, 2
  %v2779 = vrot.slane %v1337, 2
  %v2780 = vsel %vm2642, %v2778, %v2779
  %v2781 = vrot.slane %v1338, 2
  %v2782 = vsel %vm2642, %v2779, %v2781
  %v2783 = vrot.slane %v1339, 2
  %v2784 = vrot.slane %v1340, 2
  %v2785 = vsel %vm2642, %v2783, %v2784
  %v2786 = vrot.slane %v1341, 2
  %v2787 = vsel %vm2642, %v2784, %v2786
  %v2788 = vrot.slane %v1342, 2
  %v2789 = vrot.slane %v1343, 2
  %v2790 = vsel %vm2642, %v2788, %v2789
  %v2791 = vrot.slane %v1344, 2
  %v2792 = vsel %vm2642, %v2789, %v2791
  %v2793 = vrot.slane %v1345, 2
  %v2794 = vrot.slane %v1346, 2
  %v2795 = vsel %vm2642, %v2793, %v2794
  %v2796 = vrot.slane %v1347, 2
  %v2797 = vsel %vm2642, %v2794, %v2796
  %v2798 = vrot.slane %v1348, 2
  %v2799 = vrot.slane %v1349, 2
  %v2800 = vsel %vm2642, %v2798, %v2799
  %v2801 = vrot.slane %v1350, 2
  %v2802 = vsel %vm2642, %v2799, %v2801
  %s2803 = scalar_lea.vmem %s1, 48
  %v2804 = vld [vmem:[%s2803] sm:$0xff]
  %v2805 = vld [vmem:[%s2803 + $0x8] sm:$0xff]
  %v2806 = vld [vmem:[%s2803 + $0x10] sm:$0xff]
  %v2807 = vsel %vm1615, %v2645, 0
  %v2809 = vsel %vm1615, %v2647, 0
  %v2811 = vsel %vm1615, %v2650, 0
  %v2813 = vsel %vm1615, %v2652, 0
  %v2815 = vsel %vm1615, %v2655, 0
  %v2817 = vsel %vm1615, %v2657, 0
  %v2819 = vsel %vm1615, %v2660, 0
  %v2821 = vsel %vm1615, %v2662, 0
  %v2823 = vsel %vm1615, %v2665, 0
  %v2825 = vsel %vm1615, %v2667, 0
  %v2827 = vsel %vm1615, %v2670, 0
  %v2829 = vsel %vm1615, %v2672, 0
  %v2831 = vsel %vm1615, %v2675, 0
  %v2833 = vsel %vm1615, %v2677, 0
  %v2835 = vsel %vm1615, %v2680, 0
  %v2837 = vsel %vm1615, %v2682, 0
  %v2839 = vsel %vm1615, %v2685, 0
  %v2841 = vsel %vm1615, %v2687, 0
  %v2843 = vsel %vm1615, %v2690, 0
  %v2845 = vsel %vm1615, %v2692, 0
  %v2847 = vsel %vm1615, %v2695, 0
  %v2849 = vsel %vm1615, %v2697, 0
  %v2851 = vsel %vm1615, %v2700, 0
  %v2853 = vsel %vm1615, %v2702, 0
  %v2855 = vsel %vm1615, %v2705, 0
  %v2857 = vsel %vm1615, %v2707, 0
  %v2859 = vsel %vm1615, %v2710, 0
  %v2861 = vsel %vm1615, %v2712, 0
  %v2863 = vsel %vm1615, %v2715, 0
  %v2865 = vsel %vm1615, %v2717, 0
  %v2867 = vsel %vm1615, %v2720, 0
  %v2869 = vsel %vm1615, %v2722, 0
  %v2871 = vsel %vm1615, %v2725, 0
  %v2873 = vsel %vm1615, %v2727, 0
  %v2875 = vsel %vm1615, %v2730, 0
  %v2877 = vsel %vm1615, %v2732, 0
  %v2879 = vsel %vm1615, %v2735, 0
  %v2881 = vsel %vm1615, %v2737, 0
  %v2883 = vsel %vm1615, %v2740, 0
  %v2885 = vsel %vm1615, %v2742, 0
  %v2887 = vsel %vm1615, %v2745, 0
  %v2889 = vsel %vm1615, %v2747, 0
  %v2891 = vsel %vm1615, %v2750, 0
  %v2893 = vsel %vm1615, %v2752, 0
  %v2895 = vsel %vm1615, %v2755, 0
  %v2897 = vsel %vm1615, %v2757, 0
  %v2899 = vsel %vm1615, %v2760, 0
  %v2901 = vsel %vm1615, %v2762, 0
  %v2903 = vsel %vm1615, %v2765, 0
  %v2905 = vsel %vm1615, %v2767, 0
  %v2907 = vsel %vm1615, %v2770, 0
  %v2909 = vsel %vm1615, %v2772, 0
  %v2911 = vsel %vm1615, %v2775, 0
  %v2913 = vsel %vm1615, %v2777, 0
  %v2915 = vsel %vm1615, %v2780, 0
  %v2917 = vsel %vm1615, %v2782, 0
  %v2919 = vsel %vm1615, %v2785, 0
  %v2921 = vsel %vm1615, %v2787, 0
  %v2923 = vsel %vm1615, %v2790, 0
  %v2925 = vsel %vm1615, %v2792, 0
  %v2927 = vsel %vm1615, %v2795, 0
  %v2929 = vsel %vm1615, %v2797, 0
  %v2931 = vsel %vm1615, %v2800, 0
  %v2933 = vsel %vm1615, %v2802, 0
  %2935 = vmatprep.subr.mxu0 0.0
  %2936 = vmatpush1.msra.mxu0 %v2804
  %2937 = vmatprep.subr.mxu0 0.0
  %2938 = vmatpush1.msra.mxu0 %v2805
  %2939 = vmatprep.subr.mxu0 0.0
  %2940 = vmatpush1.msra.mxu0 %v2806
  %2941 = vmatprep.subr.mxu0 0.0
  %2942 = vmatpush1.msra.mxu0 0.0
  %2943 = vmatprep.subr.mxu0 0.0
  %2944 = vmatpush1.msra.mxu0 0.0
  %2945 = vmatprep.subr.mxu0 0.0
  %2946 = vmatpush1.msra.mxu0 0.0
  %2947 = vmatprep.subr.mxu0 0.0
  %2948 = vmatpush1.msra.mxu0 0.0
  %2949 = vmatprep.subr.mxu0 0.0
  %2950 = vmatpush1.msra.mxu0 0.0
  %2951 = vmatprep.subr.mxu0 0.0
  %2952 = vmatpush1.msra.mxu0 0.0
  %2953 = vmatprep.subr.mxu0 0.0
  %2954 = vmatpush1.msra.mxu0 0.0
  %2955 = vmatprep.subr.mxu0 0.0
  %2956 = vmatpush1.msra.mxu0 0.0
  %2957 = vmatprep.subr.mxu0 0.0
  %2958 = vmatpush1.msra.mxu0 0.0
  %2959 = vmatprep.subr.mxu0 0.0
  %2960 = vmatpush1.msra.mxu0 0.0
  %2961 = vmatprep.subr.mxu0 0.0
  %2962 = vmatpush1.msra.mxu0 0.0
  %2963 = vmatprep.subr.mxu0 0.0
  %2964 = vmatpush1.msra.mxu0 0.0
  %2965 = vmatprep.subr.mxu0 0.0
  %2966 = vmatpush1.msra.mxu0 0.0
  %2967 = vmatprep.subr.mxu0 0.0
  %2968 = vmatpush1.msra.mxu0 0.0
  %2969 = vmatprep.subr.mxu0 0.0
  %2970 = vmatpush1.msra.mxu0 0.0
  %2971 = vmatprep.subr.mxu0 0.0
  %2972 = vmatpush1.msra.mxu0 0.0
  %2973 = vmatprep.subr.mxu0 0.0
  %2974 = vmatpush1.msra.mxu0 0.0
  %2975 = vmatprep.subr.mxu0 0.0
  %2976 = vmatpush1.msra.mxu0 0.0
  %2977 = vmatprep.subr.mxu0 0.0
  %2978 = vmatpush1.msra.mxu0 0.0
  %2979 = vmatprep.subr.mxu0 0.0
  %2980 = vmatpush1.msra.mxu0 0.0
  %2981 = vmatprep.subr.mxu0 0.0
  %2982 = vmatpush1.msra.mxu0 0.0
  %2983 = vmatprep.subr.mxu0 0.0
  %2984 = vmatpush1.msra.mxu0 0.0
  %2985 = vmatprep.subr.mxu0 0.0
  %2986 = vmatpush1.msra.mxu0 0.0
  %2987 = vmatprep.subr.mxu0 0.0
  %2988 = vmatpush1.msra.mxu0 0.0
  %2989 = vmatprep.subr.mxu0 0.0
  %2990 = vmatpush1.msra.mxu0 0.0
  %2991 = vmatprep.subr.mxu0 0.0
  %2992 = vmatpush1.msra.mxu0 0.0
  %2993 = vmatprep.subr.mxu0 0.0
  %2994 = vmatpush1.msra.mxu0 0.0
  %2995 = vmatprep.subr.mxu0 0.0
  %2996 = vmatpush1.msra.mxu0 0.0
  %2997 = vmatprep.subr.mxu0 0.0
  %2998 = vmatpush1.msra.mxu0 0.0
  %2999 = vmatprep.mubr.f32.mxu0 0.0
  %3000 = vmatmul.mubr.f32.gmra.mrb[0].mxu0 %v2807
  %v3001 = vpop.f32.mrb[0].mxu0
  %v3002 = vadd.f32 0.0, %v3001
  %v3003 = vpop.f32.mrb[0].mxu0
  %3004 = vmatprep.mubr.f32.mxu0 0.0
  %3005 = vmatmul.mubr.f32.gmra.mrb[0].mxu0 %v2809
  %v3006 = vpop.f32.mrb[0].mxu0
  %v3007 = vadd.f32 0.0, %v3006
  %v3008 = vpop.f32.mrb[0].mxu0
  %3009 = vmatprep.mubr.f32.mxu0 0.0
  %3010 = vmatmul.mubr.f32.gmra.mrb[0].mxu0 %v2811
  %v3011 = vpop.f32.mrb[0].mxu0
  %v3012 = vadd.f32 0.0, %v3011
  %v3013 = vpop.f32.mrb[0].mxu0
  %3014 = vmatprep.mubr.f32.mxu0 0.0
  %3015 = vmatmul.mubr.f32.gmra.mrb[0].mxu0 %v2813
  %v3016 = vpop.f32.mrb[0].mxu0
  %v3017 = vadd.f32 0.0, %v3016
  %v3018 = vpop.f32.mrb[0].mxu0
  %3019 = vmatprep.mubr.f32.mxu0 0.0
  %3020 = vmatmul.mubr.f32.gmra.mrb[0].mxu0 %v2815
  %v3021 = vpop.f32.mrb[0].mxu0
  %v3022 = vadd.f32 0.0, %v3021
  %v3023 = vpop.f32.mrb[0].mxu0
  %3024 = vmatprep.mubr.f32.mxu0 0.0
  %3025 = vmatmul.mubr.f32.gmra.mrb[0].mxu0 %v2817
  %v3026 = vpop.f32.mrb[0].mxu0
  %v3027 = vadd.f32 0.0, %v3026
  %v3028 = vpop.f32.mrb[0].mxu0
  %3029 = vmatprep.mubr.f32.mxu0 0.0
  %3030 = vmatmul.mubr.f32.gmra.mrb[0].mxu0 %v2819
  %v3031 = vpop.f32.mrb[0].mxu0
  %v3032 = vadd.f32 0.0, %v3031
  %v3033 = vpop.f32.mrb[0].mxu0
  %3034 = vmatprep.mubr.f32.mxu0 0.0
  %3035 = vmatmul.mubr.f32.gmra.mrb[0].mxu0 %v2821
  %v3036 = vpop.f32.mrb[0].mxu0
  %v3037 = vadd.f32 0.0, %v3036
  %v3038 = vpop.f32.mrb[0].mxu0
  %3039 = vmatprep.mubr.f32.mxu0 0.0
  %3040 = vmatmul.mubr.f32.gmra.mrb[0].mxu0 %v2823
  %v3041 = vpop.f32.mrb[0].mxu0
  %v3042 = vadd.f32 0.0, %v3041
  %v3043 = vpop.f32.mrb[0].mxu0
  %3044 = vmatprep.mubr.f32.mxu0 0.0
  %3045 = vmatmul.mubr.f32.gmra.mrb[0].mxu0 %v2825
  %v3046 = vpop.f32.mrb[0].mxu0
  %v3047 = vadd.f32 0.0, %v3046
  %v3048 = vpop.f32.mrb[0].mxu0
  %3049 = vmatprep.mubr.f32.mxu0 0.0
  %3050 = vmatmul.mubr.f32.gmra.mrb[0].mxu0 %v2827
  %v3051 = vpop.f32.mrb[0].mxu0
  %v3052 = vadd.f32 0.0, %v3051
  %v3053 = vpop.f32.mrb[0].mxu0
  %3054 = vmatprep.mubr.f32.mxu0 0.0
  %3055 = vmatmul.mubr.f32.gmra.mrb[0].mxu0 %v2829
  %v3056 = vpop.f32.mrb[0].mxu0
  %v3057 = vadd.f32 0.0, %v3056
  %v3058 = vpop.f32.mrb[0].mxu0
  %3059 = vmatprep.mubr.f32.mxu0 0.0
  %3060 = vmatmul.mubr.f32.gmra.mrb[0].mxu0 %v2831
  %v3061 = vpop.f32.mrb[0].mxu0
  %v3062 = vadd.f32 0.0, %v3061
  %v3063 = vpop.f32.mrb[0].mxu0
  %3064 = vmatprep.mubr.f32.mxu0 0.0
  %3065 = vmatmul.mubr.f32.gmra.mrb[0].mxu0 %v2833
  %v3066 = vpop.f32.mrb[0].mxu0
  %v3067 = vadd.f32 0.0, %v3066
  %v3068 = vpop.f32.mrb[0].mxu0
  %3069 = vmatprep.mubr.f32.mxu0 0.0
  %3070 = vmatmul.mubr.f32.gmra.mrb[0].mxu0 %v2835
  %v3071 = vpop.f32.mrb[0].mxu0
  %v3072 = vadd.f32 0.0, %v3071
  %v3073 = vpop.f32.mrb[0].mxu0
  %3074 = vmatprep.mubr.f32.mxu0 0.0
  %3075 = vmatmul.mubr.f32.gmra.mrb[0].mxu0 %v2837
  %v3076 = vpop.f32.mrb[0].mxu0
  %v3077 = vadd.f32 0.0, %v3076
  %v3078 = vpop.f32.mrb[0].mxu0
  %3079 = vmatprep.mubr.f32.mxu0 0.0
  %3080 = vmatmul.mubr.f32.gmra.mrb[0].mxu0 %v2839
  %v3081 = vpop.f32.mrb[0].mxu0
  %v3082 = vadd.f32 0.0, %v3081
  %v3083 = vpop.f32.mrb[0].mxu0
  %3084 = vmatprep.mubr.f32.mxu0 0.0
  %3085 = vmatmul.mubr.f32.gmra.mrb[0].mxu0 %v2841
  %v3086 = vpop.f32.mrb[0].mxu0
  %v3087 = vadd.f32 0.0, %v3086
  %v3088 = vpop.f32.mrb[0].mxu0
  %3089 = vmatprep.mubr.f32.mxu0 0.0
  %3090 = vmatmul.mubr.f32.gmra.mrb[0].mxu0 %v2843
  %v3091 = vpop.f32.mrb[0].mxu0
  %v3092 = vadd.f32 0.0, %v3091
  %v3093 = vpop.f32.mrb[0].mxu0
  %3094 = vmatprep.mubr.f32.mxu0 0.0
  %3095 = vmatmul.mubr.f32.gmra.mrb[0].mxu0 %v2845
  %v3096 = vpop.f32.mrb[0].mxu0
  %v3097 = vadd.f32 0.0, %v3096
  %v3098 = vpop.f32.mrb[0].mxu0
  %3099 = vmatprep.mubr.f32.mxu0 0.0
  %3100 = vmatmul.mubr.f32.gmra.mrb[0].mxu0 %v2847
  %v3101 = vpop.f32.mrb[0].mxu0
  %v3102 = vadd.f32 0.0, %v3101
  %v3103 = vpop.f32.mrb[0].mxu0
  %3104 = vmatprep.mubr.f32.mxu0 0.0
  %3105 = vmatmul.mubr.f32.gmra.mrb[0].mxu0 %v2849
  %v3106 = vpop.f32.mrb[0].mxu0
  %v3107 = vadd.f32 0.0, %v3106
  %v3108 = vpop.f32.mrb[0].mxu0
  %3109 = vmatprep.mubr.f32.mxu0 0.0
  %3110 = vmatmul.mubr.f32.gmra.mrb[0].mxu0 %v2851
  %v3111 = vpop.f32.mrb[0].mxu0
  %v3112 = vadd.f32 0.0, %v3111
  %v3113 = vpop.f32.mrb[0].mxu0
  %3114 = vmatprep.mubr.f32.mxu0 0.0
  %3115 = vmatmul.mubr.f32.gmra.mrb[0].mxu0 %v2853
  %v3116 = vpop.f32.mrb[0].mxu0
  %v3117 = vadd.f32 0.0, %v3116
  %v3118 = vpop.f32.mrb[0].mxu0
  %3119 = vmatprep.mubr.f32.mxu0 0.0
  %3120 = vmatmul.mubr.f32.gmra.mrb[0].mxu0 %v2855
  %v3121 = vpop.f32.mrb[0].mxu0
  %v3122 = vadd.f32 0.0, %v3121
  %v3123 = vpop.f32.mrb[0].mxu0
  %3124 = vmatprep.mubr.f32.mxu0 0.0
  %3125 = vmatmul.mubr.f32.gmra.mrb[0].mxu0 %v2857
  %v3126 = vpop.f32.mrb[0].mxu0
  %v3127 = vadd.f32 0.0, %v3126
  %v3128 = vpop.f32.mrb[0].mxu0
  %3129 = vmatprep.mubr.f32.mxu0 0.0
  %3130 = vmatmul.mubr.f32.gmra.mrb[0].mxu0 %v2859
  %v3131 = vpop.f32.mrb[0].mxu0
  %v3132 = vadd.f32 0.0, %v3131
  %v3133 = vpop.f32.mrb[0].mxu0
  %3134 = vmatprep.mubr.f32.mxu0 0.0
  %3135 = vmatmul.mubr.f32.gmra.mrb[0].mxu0 %v2861
  %v3136 = vpop.f32.mrb[0].mxu0
  %v3137 = vadd.f32 0.0, %v3136
  %v3138 = vpop.f32.mrb[0].mxu0
  %3139 = vmatprep.mubr.f32.mxu0 0.0
  %3140 = vmatmul.mubr.f32.gmra.mrb[0].mxu0 %v2863
  %v3141 = vpop.f32.mrb[0].mxu0
  %v3142 = vadd.f32 0.0, %v3141
  %v3143 = vpop.f32.mrb[0].mxu0
  %3144 = vmatprep.mubr.f32.mxu0 0.0
  %3145 = vmatmul.mubr.f32.gmra.mrb[0].mxu0 %v2865
  %v3146 = vpop.f32.mrb[0].mxu0
  %v3147 = vadd.f32 0.0, %v3146
  %v3148 = vpop.f32.mrb[0].mxu0
  %3149 = vmatprep.mubr.f32.mxu0 0.0
  %3150 = vmatmul.mubr.f32.gmra.mrb[0].mxu0 %v2867
  %v3151 = vpop.f32.mrb[0].mxu0
  %v3152 = vadd.f32 0.0, %v3151
  %v3153 = vpop.f32.mrb[0].mxu0
  %3154 = vmatprep.mubr.f32.mxu0 0.0
  %3155 = vmatmul.mubr.f32.gmra.mrb[0].mxu0 %v2869
  %v3156 = vpop.f32.mrb[0].mxu0
  %v3157 = vadd.f32 0.0, %v3156
  %v3158 = vpop.f32.mrb[0].mxu0
  %3159 = vmatprep.mubr.f32.mxu0 0.0
  %3160 = vmatmul.mubr.f32.gmra.mrb[0].mxu0 %v2871
  %v3161 = vpop.f32.mrb[0].mxu0
  %v3162 = vadd.f32 0.0, %v3161
  %v3163 = vpop.f32.mrb[0].mxu0
  %3164 = vmatprep.mubr.f32.mxu0 0.0
  %3165 = vmatmul.mubr.f32.gmra.mrb[0].mxu0 %v2873
  %v3166 = vpop.f32.mrb[0].mxu0
  %v3167 = vadd.f32 0.0, %v3166
  %v3168 = vpop.f32.mrb[0].mxu0
  %3169 = vmatprep.mubr.f32.mxu0 0.0
  %3170 = vmatmul.mubr.f32.gmra.mrb[0].mxu0 %v2875
  %v3171 = vpop.f32.mrb[0].mxu0
  %v3172 = vadd.f32 0.0, %v3171
  %v3173 = vpop.f32.mrb[0].mxu0
  %3174 = vmatprep.mubr.f32.mxu0 0.0
  %3175 = vmatmul.mubr.f32.gmra.mrb[0].mxu0 %v2877
  %v3176 = vpop.f32.mrb[0].mxu0
  %v3177 = vadd.f32 0.0, %v3176
  %v3178 = vpop.f32.mrb[0].mxu0
  %3179 = vmatprep.mubr.f32.mxu0 0.0
  %3180 = vmatmul.mubr.f32.gmra.mrb[0].mxu0 %v2879
  %v3181 = vpop.f32.mrb[0].mxu0
  %v3182 = vadd.f32 0.0, %v3181
  %v3183 = vpop.f32.mrb[0].mxu0
  %3184 = vmatprep.mubr.f32.mxu0 0.0
  %3185 = vmatmul.mubr.f32.gmra.mrb[0].mxu0 %v2881
  %v3186 = vpop.f32.mrb[0].mxu0
  %v3187 = vadd.f32 0.0, %v3186
  %v3188 = vpop.f32.mrb[0].mxu0
  %3189 = vmatprep.mubr.f32.mxu0 0.0
  %3190 = vmatmul.mubr.f32.gmra.mrb[0].mxu0 %v2883
  %v3191 = vpop.f32.mrb[0].mxu0
  %v3192 = vadd.f32 0.0, %v3191
  %v3193 = vpop.f32.mrb[0].mxu0
  %3194 = vmatprep.mubr.f32.mxu0 0.0
  %3195 = vmatmul.mubr.f32.gmra.mrb[0].mxu0 %v2885
  %v3196 = vpop.f32.mrb[0].mxu0
  %v3197 = vadd.f32 0.0, %v3196
  %v3198 = vpop.f32.mrb[0].mxu0
  %3199 = vmatprep.mubr.f32.mxu0 0.0
  %3200 = vmatmul.mubr.f32.gmra.mrb[0].mxu0 %v2887
  %v3201 = vpop.f32.mrb[0].mxu0
  %v3202 = vadd.f32 0.0, %v3201
  %v3203 = vpop.f32.mrb[0].mxu0
  %3204 = vmatprep.mubr.f32.mxu0 0.0
  %3205 = vmatmul.mubr.f32.gmra.mrb[0].mxu0 %v2889
  %v3206 = vpop.f32.mrb[0].mxu0
  %v3207 = vadd.f32 0.0, %v3206
  %v3208 = vpop.f32.mrb[0].mxu0
  %3209 = vmatprep.mubr.f32.mxu0 0.0
  %3210 = vmatmul.mubr.f32.gmra.mrb[0].mxu0 %v2891
  %v3211 = vpop.f32.mrb[0].mxu0
  %v3212 = vadd.f32 0.0, %v3211
  %v3213 = vpop.f32.mrb[0].mxu0
  %3214 = vmatprep.mubr.f32.mxu0 0.0
  %3215 = vmatmul.mubr.f32.gmra.mrb[0].mxu0 %v2893
  %v3216 = vpop.f32.mrb[0].mxu0
  %v3217 = vadd.f32 0.0, %v3216
  %v3218 = vpop.f32.mrb[0].mxu0
  %3219 = vmatprep.mubr.f32.mxu0 0.0
  %3220 = vmatmul.mubr.f32.gmra.mrb[0].mxu0 %v2895
  %v3221 = vpop.f32.mrb[0].mxu0
  %v3222 = vadd.f32 0.0, %v3221
  %v3223 = vpop.f32.mrb[0].mxu0
  %3224 = vmatprep.mubr.f32.mxu0 0.0
  %3225 = vmatmul.mubr.f32.gmra.mrb[0].mxu0 %v2897
  %v3226 = vpop.f32.mrb[0].mxu0
  %v3227 = vadd.f32 0.0, %v3226
  %v3228 = vpop.f32.mrb[0].mxu0
  %3229 = vmatprep.mubr.f32.mxu0 0.0
  %3230 = vmatmul.mubr.f32.gmra.mrb[0].mxu0 %v2899
  %v3231 = vpop.f32.mrb[0].mxu0
  %v3232 = vadd.f32 0.0, %v3231
  %v3233 = vpop.f32.mrb[0].mxu0
  %3234 = vmatprep.mubr.f32.mxu0 0.0
  %3235 = vmatmul.mubr.f32.gmra.mrb[0].mxu0 %v2901
  %v3236 = vpop.f32.mrb[0].mxu0
  %v3237 = vadd.f32 0.0, %v3236
  %v3238 = vpop.f32.mrb[0].mxu0
  %3239 = vmatprep.mubr.f32.mxu0 0.0
  %3240 = vmatmul.mubr.f32.gmra.mrb[0].mxu0 %v2903
  %v3241 = vpop.f32.mrb[0].mxu0
  %v3242 = vadd.f32 0.0, %v3241
  %v3243 = vpop.f32.mrb[0].mxu0
  %3244 = vmatprep.mubr.f32.mxu0 0.0
  %3245 = vmatmul.mubr.f32.gmra.mrb[0].mxu0 %v2905
  %v3246 = vpop.f32.mrb[0].mxu0
  %v3247 = vadd.f32 0.0, %v3246
  %v3248 = vpop.f32.mrb[0].mxu0
  %3249 = vmatprep.mubr.f32.mxu0 0.0
  %3250 = vmatmul.mubr.f32.gmra.mrb[0].mxu0 %v2907
  %v3251 = vpop.f32.mrb[0].mxu0
  %v3252 = vadd.f32 0.0, %v3251
  %v3253 = vpop.f32.mrb[0].mxu0
  %3254 = vmatprep.mubr.f32.mxu0 0.0
  %3255 = vmatmul.mubr.f32.gmra.mrb[0].mxu0 %v2909
  %v3256 = vpop.f32.mrb[0].mxu0
  %v3257 = vadd.f32 0.0, %v3256
  %v3258 = vpop.f32.mrb[0].mxu0
  %3259 = vmatprep.mubr.f32.mxu0 0.0
  %3260 = vmatmul.mubr.f32.gmra.mrb[0].mxu0 %v2911
  %v3261 = vpop.f32.mrb[0].mxu0
  %v3262 = vadd.f32 0.0, %v3261
  %v3263 = vpop.f32.mrb[0].mxu0
  %3264 = vmatprep.mubr.f32.mxu0 0.0
  %3265 = vmatmul.mubr.f32.gmra.mrb[0].mxu0 %v2913
  %v3266 = vpop.f32.mrb[0].mxu0
  %v3267 = vadd.f32 0.0, %v3266
  %v3268 = vpop.f32.mrb[0].mxu0
  %3269 = vmatprep.mubr.f32.mxu0 0.0
  %3270 = vmatmul.mubr.f32.gmra.mrb[0].mxu0 %v2915
  %v3271 = vpop.f32.mrb[0].mxu0
  %v3272 = vadd.f32 0.0, %v3271
  %v3273 = vpop.f32.mrb[0].mxu0
  %3274 = vmatprep.mubr.f32.mxu0 0.0
  %3275 = vmatmul.mubr.f32.gmra.mrb[0].mxu0 %v2917
  %v3276 = vpop.f32.mrb[0].mxu0
  %v3277 = vadd.f32 0.0, %v3276
  %v3278 = vpop.f32.mrb[0].mxu0
  %3279 = vmatprep.mubr.f32.mxu0 0.0
  %3280 = vmatmul.mubr.f32.gmra.mrb[0].mxu0 %v2919
  %v3281 = vpop.f32.mrb[0].mxu0
  %v3282 = vadd.f32 0.0, %v3281
  %v3283 = vpop.f32.mrb[0].mxu0
  %3284 = vmatprep.mubr.f32.mxu0 0.0
  %3285 = vmatmul.mubr.f32.gmra.mrb[0].mxu0 %v2921
  %v3286 = vpop.f32.mrb[0].mxu0
  %v3287 = vadd.f32 0.0, %v3286
  %v3288 = vpop.f32.mrb[0].mxu0
  %3289 = vmatprep.mubr.f32.mxu0 0.0
  %3290 = vmatmul.mubr.f32.gmra.mrb[0].mxu0 %v2923
  %v3291 = vpop.f32.mrb[0].mxu0
  %v3292 = vadd.f32 0.0, %v3291
  %v3293 = vpop.f32.mrb[0].mxu0
  %3294 = vmatprep.mubr.f32.mxu0 0.0
  %3295 = vmatmul.mubr.f32.gmra.mrb[0].mxu0 %v2925
  %v3296 = vpop.f32.mrb[0].mxu0
  %v3297 = vadd.f32 0.0, %v3296
  %v3298 = vpop.f32.mrb[0].mxu0
  %3299 = vmatprep.mubr.f32.mxu0 0.0
  %3300 = vmatmul.mubr.f32.gmra.mrb[0].mxu0 %v2927
  %v3301 = vpop.f32.mrb[0].mxu0
  %v3302 = vadd.f32 0.0, %v3301
  %v3303 = vpop.f32.mrb[0].mxu0
  %3304 = vmatprep.mubr.f32.mxu0 0.0
  %3305 = vmatmul.mubr.f32.gmra.mrb[0].mxu0 %v2929
  %v3306 = vpop.f32.mrb[0].mxu0
  %v3307 = vadd.f32 0.0, %v3306
  %v3308 = vpop.f32.mrb[0].mxu0
  %3309 = vmatprep.mubr.f32.mxu0 0.0
  %3310 = vmatmul.mubr.f32.gmra.mrb[0].mxu0 %v2931
  %v3311 = vpop.f32.mrb[0].mxu0
  %v3312 = vadd.f32 0.0, %v3311
  %v3313 = vpop.f32.mrb[0].mxu0
  %3314 = vmatprep.mubr.f32.mxu0 0.0
  %3315 = vmatmul.mubr.f32.gmra.mrb[0].mxu0 %v2933
  %v3316 = vpop.f32.mrb[0].mxu0
  %v3317 = vadd.f32 0.0, %v3316
  %v3318 = vpop.f32.mrb[0].mxu0
  %3319 = vdwg.mxu0
  %v3320 = vadd.f32 %v2324, %v3002
  %v3321 = vadd.f32 %v2329, %v3007
  %v3322 = vadd.f32 %v2334, %v3012
  %v3323 = vadd.f32 %v2339, %v3017
  %v3324 = vadd.f32 %v2344, %v3022
  %v3325 = vadd.f32 %v2349, %v3027
  %v3326 = vadd.f32 %v2354, %v3032
  %v3327 = vadd.f32 %v2359, %v3037
  %v3328 = vadd.f32 %v2364, %v3042
  %v3329 = vadd.f32 %v2369, %v3047
  %v3330 = vadd.f32 %v2374, %v3052
  %v3331 = vadd.f32 %v2379, %v3057
  %v3332 = vadd.f32 %v2384, %v3062
  %v3333 = vadd.f32 %v2389, %v3067
  %v3334 = vadd.f32 %v2394, %v3072
  %v3335 = vadd.f32 %v2399, %v3077
  %v3336 = vadd.f32 %v2404, %v3082
  %v3337 = vadd.f32 %v2409, %v3087
  %v3338 = vadd.f32 %v2414, %v3092
  %v3339 = vadd.f32 %v2419, %v3097
  %v3340 = vadd.f32 %v2424, %v3102
  %v3341 = vadd.f32 %v2429, %v3107
  %v3342 = vadd.f32 %v2434, %v3112
  %v3343 = vadd.f32 %v2439, %v3117
  %v3344 = vadd.f32 %v2444, %v3122
  %v3345 = vadd.f32 %v2449, %v3127
  %v3346 = vadd.f32 %v2454, %v3132
  %v3347 = vadd.f32 %v2459, %v3137
  %v3348 = vadd.f32 %v2464, %v3142
  %v3349 = vadd.f32 %v2469, %v3147
  %v3350 = vadd.f32 %v2474, %v3152
  %v3351 = vadd.f32 %v2479, %v3157
  %v3352 = vadd.f32 %v2484, %v3162
  %v3353 = vadd.f32 %v2489, %v3167
  %v3354 = vadd.f32 %v2494, %v3172
  %v3355 = vadd.f32 %v2499, %v3177
  %v3356 = vadd.f32 %v2504, %v3182
  %v3357 = vadd.f32 %v2509, %v3187
  %v3358 = vadd.f32 %v2514, %v3192
  %v3359 = vadd.f32 %v2519, %v3197
  %v3360 = vadd.f32 %v2524, %v3202
  %v3361 = vadd.f32 %v2529, %v3207
  %v3362 = vadd.f32 %v2534, %v3212
  %v3363 = vadd.f32 %v2539, %v3217
  %v3364 = vadd.f32 %v2544, %v3222
  %v3365 = vadd.f32 %v2549, %v3227
  %v3366 = vadd.f32 %v2554, %v3232
  %v3367 = vadd.f32 %v2559, %v3237
  %v3368 = vadd.f32 %v2564, %v3242
  %v3369 = vadd.f32 %v2569, %v3247
  %v3370 = vadd.f32 %v2574, %v3252
  %v3371 = vadd.f32 %v2579, %v3257
  %v3372 = vadd.f32 %v2584, %v3262
  %v3373 = vadd.f32 %v2589, %v3267
  %v3374 = vadd.f32 %v2594, %v3272
  %v3375 = vadd.f32 %v2599, %v3277
  %v3376 = vadd.f32 %v2604, %v3282
  %v3377 = vadd.f32 %v2609, %v3287
  %v3378 = vadd.f32 %v2614, %v3292
  %v3379 = vadd.f32 %v2619, %v3297
  %v3380 = vadd.f32 %v2624, %v3302
  %v3381 = vadd.f32 %v2629, %v3307
  %v3382 = vadd.f32 %v2634, %v3312
  %v3383 = vadd.f32 %v2639, %v3317
  %v3384 = vld [vmem:[%s2] sm:$0x1]
  %v3386 = vlaneseq
  %v3387 = vshrl.u32 %v3386, 7
  %v3388 = vsub.s32 0, %v3387
  %v3389 = vrot.slane %v3384, %v3388
  %v3391 = vadd.f32 %v3320, %v3389
  %v3392 = vadd.f32 %v3321, %v3389
  %v3393 = vadd.f32 %v3322, %v3389
  %v3394 = vadd.f32 %v3323, %v3389
  %v3395 = vadd.f32 %v3324, %v3389
  %v3396 = vadd.f32 %v3325, %v3389
  %v3397 = vadd.f32 %v3326, %v3389
  %v3398 = vadd.f32 %v3327, %v3389
  %v3399 = vadd.f32 %v3328, %v3389
  %v3400 = vadd.f32 %v3329, %v3389
  %v3401 = vadd.f32 %v3330, %v3389
  %v3402 = vadd.f32 %v3331, %v3389
  %v3403 = vadd.f32 %v3332, %v3389
  %v3404 = vadd.f32 %v3333, %v3389
  %v3405 = vadd.f32 %v3334, %v3389
  %v3406 = vadd.f32 %v3335, %v3389
  %v3407 = vadd.f32 %v3336, %v3389
  %v3408 = vadd.f32 %v3337, %v3389
  %v3409 = vadd.f32 %v3338, %v3389
  %v3410 = vadd.f32 %v3339, %v3389
  %v3411 = vadd.f32 %v3340, %v3389
  %v3412 = vadd.f32 %v3341, %v3389
  %v3413 = vadd.f32 %v3342, %v3389
  %v3414 = vadd.f32 %v3343, %v3389
  %v3415 = vadd.f32 %v3344, %v3389
  %v3416 = vadd.f32 %v3345, %v3389
  %v3417 = vadd.f32 %v3346, %v3389
  %v3418 = vadd.f32 %v3347, %v3389
  %v3419 = vadd.f32 %v3348, %v3389
  %v3420 = vadd.f32 %v3349, %v3389
  %v3421 = vadd.f32 %v3350, %v3389
  %v3422 = vadd.f32 %v3351, %v3389
  %v3423 = vadd.f32 %v3352, %v3389
  %v3424 = vadd.f32 %v3353, %v3389
  %v3425 = vadd.f32 %v3354, %v3389
  %v3426 = vadd.f32 %v3355, %v3389
  %v3427 = vadd.f32 %v3356, %v3389
  %v3428 = vadd.f32 %v3357, %v3389
  %v3429 = vadd.f32 %v3358, %v3389
  %v3430 = vadd.f32 %v3359, %v3389
  %v3431 = vadd.f32 %v3360, %v3389
  %v3432 = vadd.f32 %v3361, %v3389
  %v3433 = vadd.f32 %v3362, %v3389
  %v3434 = vadd.f32 %v3363, %v3389
  %v3435 = vadd.f32 %v3364, %v3389
  %v3436 = vadd.f32 %v3365, %v3389
  %v3437 = vadd.f32 %v3366, %v3389
  %v3438 = vadd.f32 %v3367, %v3389
  %v3439 = vadd.f32 %v3368, %v3389
  %v3440 = vadd.f32 %v3369, %v3389
  %v3441 = vadd.f32 %v3370, %v3389
  %v3442 = vadd.f32 %v3371, %v3389
  %v3443 = vadd.f32 %v3372, %v3389
  %v3444 = vadd.f32 %v3373, %v3389
  %v3445 = vadd.f32 %v3374, %v3389
  %v3446 = vadd.f32 %v3375, %v3389
  %v3447 = vadd.f32 %v3376, %v3389
  %v3448 = vadd.f32 %v3377, %v3389
  %v3449 = vadd.f32 %v3378, %v3389
  %v3450 = vadd.f32 %v3379, %v3389
  %v3451 = vadd.f32 %v3380, %v3389
  %v3452 = vadd.f32 %v3381, %v3389
  %v3453 = vadd.f32 %v3382, %v3389
  %v3454 = vadd.f32 %v3383, %v3389
  %v3455 = vmax.f32 %v3391, 0.0
  %v3456 = vmax.f32 %v3392, 0.0
  %v3457 = vmax.f32 %v3393, 0.0
  %v3458 = vmax.f32 %v3394, 0.0
  %v3459 = vmax.f32 %v3395, 0.0
  %v3460 = vmax.f32 %v3396, 0.0
  %v3461 = vmax.f32 %v3397, 0.0
  %v3462 = vmax.f32 %v3398, 0.0
  %v3463 = vmax.f32 %v3399, 0.0
  %v3464 = vmax.f32 %v3400, 0.0
  %v3465 = vmax.f32 %v3401, 0.0
  %v3466 = vmax.f32 %v3402, 0.0
  %v3467 = vmax.f32 %v3403, 0.0
  %v3468 = vmax.f32 %v3404, 0.0
  %v3469 = vmax.f32 %v3405, 0.0
  %v3470 = vmax.f32 %v3406, 0.0
  %v3471 = vmax.f32 %v3407, 0.0
  %v3472 = vmax.f32 %v3408, 0.0
  %v3473 = vmax.f32 %v3409, 0.0
  %v3474 = vmax.f32 %v3410, 0.0
  %v3475 = vmax.f32 %v3411, 0.0
  %v3476 = vmax.f32 %v3412, 0.0
  %v3477 = vmax.f32 %v3413, 0.0
  %v3478 = vmax.f32 %v3414, 0.0
  %v3479 = vmax.f32 %v3415, 0.0
  %v3480 = vmax.f32 %v3416, 0.0
  %v3481 = vmax.f32 %v3417, 0.0
  %v3482 = vmax.f32 %v3418, 0.0
  %v3483 = vmax.f32 %v3419, 0.0
  %v3484 = vmax.f32 %v3420, 0.0
  %v3485 = vmax.f32 %v3421, 0.0
  %v3486 = vmax.f32 %v3422, 0.0
  %v3487 = vmax.f32 %v3423, 0.0
  %v3488 = vmax.f32 %v3424, 0.0
  %v3489 = vmax.f32 %v3425, 0.0
  %v3490 = vmax.f32 %v3426, 0.0
  %v3491 = vmax.f32 %v3427, 0.0
  %v3492 = vmax.f32 %v3428, 0.0
  %v3493 = vmax.f32 %v3429, 0.0
  %v3494 = vmax.f32 %v3430, 0.0
  %v3495 = vmax.f32 %v3431, 0.0
  %v3496 = vmax.f32 %v3432, 0.0
  %v3497 = vmax.f32 %v3433, 0.0
  %v3498 = vmax.f32 %v3434, 0.0
  %v3499 = vmax.f32 %v3435, 0.0
  %v3500 = vmax.f32 %v3436, 0.0
  %v3501 = vmax.f32 %v3437, 0.0
  %v3502 = vmax.f32 %v3438, 0.0
  %v3503 = vmax.f32 %v3439, 0.0
  %v3504 = vmax.f32 %v3440, 0.0
  %v3505 = vmax.f32 %v3441, 0.0
  %v3506 = vmax.f32 %v3442, 0.0
  %v3507 = vmax.f32 %v3443, 0.0
  %v3508 = vmax.f32 %v3444, 0.0
  %v3509 = vmax.f32 %v3445, 0.0
  %v3510 = vmax.f32 %v3446, 0.0
  %v3511 = vmax.f32 %v3447, 0.0
  %v3512 = vmax.f32 %v3448, 0.0
  %v3513 = vmax.f32 %v3449, 0.0
  %v3514 = vmax.f32 %v3450, 0.0
  %v3515 = vmax.f32 %v3451, 0.0
  %v3516 = vmax.f32 %v3452, 0.0
  %v3517 = vmax.f32 %v3453, 0.0
  %v3518 = vmax.f32 %v3454, 0.0
  %s3519 = scalar_lea.vmem [#allocation3], 24
  %3520 = vst.msk [vmem:[%s3519 + $0x1] sm:$0xff] %vm307, %v3455
  %3521 = vst.msk [vmem:[%s3519 + $0x9] sm:$0xff] %vm307, %v3456
  %3522 = vst.msk [vmem:[%s3519 + $0x19] sm:$0xff] %vm307, %v3457
  %3523 = vst.msk [vmem:[%s3519 + $0x21] sm:$0xff] %vm307, %v3458
  %3524 = vst.msk [vmem:[%s3519 + $0x31] sm:$0xff] %vm307, %v3459
  %3525 = vst.msk [vmem:[%s3519 + $0x39] sm:$0xff] %vm307, %v3460
  %3526 = vst.msk [vmem:[%s3519 + $0x49] sm:$0xff] %vm307, %v3461
  %3527 = vst.msk [vmem:[%s3519 + $0x51] sm:$0xff] %vm307, %v3462
  %3528 = vst.msk [vmem:[%s3519 + $0x61] sm:$0xff] %vm307, %v3463
  %3529 = vst.msk [vmem:[%s3519 + $0x69] sm:$0xff] %vm307, %v3464
  %3530 = vst.msk [vmem:[%s3519 + $0x79] sm:$0xff] %vm307, %v3465
  %3531 = vst.msk [vmem:[%s3519 + $0x81] sm:$0xff] %vm307, %v3466
  %3532 = vst.msk [vmem:[%s3519 + $0x91] sm:$0xff] %vm307, %v3467
  %3533 = vst.msk [vmem:[%s3519 + $0x99] sm:$0xff] %vm307, %v3468
  %3534 = vst.msk [vmem:[%s3519 + $0xa9] sm:$0xff] %vm307, %v3469
  %3535 = vst.msk [vmem:[%s3519 + $0xb1] sm:$0xff] %vm307, %v3470
  %3536 = vst.msk [vmem:[%s3519 + $0xc1] sm:$0xff] %vm307, %v3471
  %3537 = vst.msk [vmem:[%s3519 + $0xc9] sm:$0xff] %vm307, %v3472
  %3538 = vst.msk [vmem:[%s3519 + $0xd9] sm:$0xff] %vm307, %v3473
  %3539 = vst.msk [vmem:[%s3519 + $0xe1] sm:$0xff] %vm307, %v3474
  %3540 = vst.msk [vmem:[%s3519 + $0xf1] sm:$0xff] %vm307, %v3475
  %3541 = vst.msk [vmem:[%s3519 + $0xf9] sm:$0xff] %vm307, %v3476
  %3542 = vst.msk [vmem:[%s3519 + $0x109] sm:$0xff] %vm307, %v3477
  %3543 = vst.msk [vmem:[%s3519 + $0x111] sm:$0xff] %vm307, %v3478
  %3544 = vst.msk [vmem:[%s3519 + $0x121] sm:$0xff] %vm307, %v3479
  %3545 = vst.msk [vmem:[%s3519 + $0x129] sm:$0xff] %vm307, %v3480
  %3546 = vst.msk [vmem:[%s3519 + $0x139] sm:$0xff] %vm307, %v3481
  %3547 = vst.msk [vmem:[%s3519 + $0x141] sm:$0xff] %vm307, %v3482
  %3548 = vst.msk [vmem:[%s3519 + $0x151] sm:$0xff] %vm307, %v3483
  %3549 = vst.msk [vmem:[%s3519 + $0x159] sm:$0xff] %vm307, %v3484
  %3550 = vst.msk [vmem:[%s3519 + $0x169] sm:$0xff] %vm307, %v3485
  %3551 = vst.msk [vmem:[%s3519 + $0x171] sm:$0xff] %vm307, %v3486
  %3552 = vst.msk [vmem:[%s3519 + $0x1b1] sm:$0xff] %vm307, %v3487
  %3553 = vst.msk [vmem:[%s3519 + $0x1b9] sm:$0xff] %vm307, %v3488
  %3554 = vst.msk [vmem:[%s3519 + $0x1c9] sm:$0xff] %vm307, %v3489
  %3555 = vst.msk [vmem:[%s3519 + $0x1d1] sm:$0xff] %vm307, %v3490
  %3556 = vst.msk [vmem:[%s3519 + $0x1e1] sm:$0xff] %vm307, %v3491
  %3557 = vst.msk [vmem:[%s3519 + $0x1e9] sm:$0xff] %vm307, %v3492
  %3558 = vst.msk [vmem:[%s3519 + $0x1f9] sm:$0xff] %vm307, %v3493
  %3559 = vst.msk [vmem:[%s3519 + $0x201] sm:$0xff] %vm307, %v3494
  %3560 = vst.msk [vmem:[%s3519 + $0x211] sm:$0xff] %vm307, %v3495
  %3561 = vst.msk [vmem:[%s3519 + $0x219] sm:$0xff] %vm307, %v3496
  %3562 = vst.msk [vmem:[%s3519 + $0x229] sm:$0xff] %vm307, %v3497
  %3563 = vst.msk [vmem:[%s3519 + $0x231] sm:$0xff] %vm307, %v3498
  %3564 = vst.msk [vmem:[%s3519 + $0x241] sm:$0xff] %vm307, %v3499
  %3565 = vst.msk [vmem:[%s3519 + $0x249] sm:$0xff] %vm307, %v3500
  %3566 = vst.msk [vmem:[%s3519 + $0x259] sm:$0xff] %vm307, %v3501
  %3567 = vst.msk [vmem:[%s3519 + $0x261] sm:$0xff] %vm307, %v3502
  %3568 = vst.msk [vmem:[%s3519 + $0x271] sm:$0xff] %vm307, %v3503
  %3569 = vst.msk [vmem:[%s3519 + $0x279] sm:$0xff] %vm307, %v3504
  %3570 = vst.msk [vmem:[%s3519 + $0x289] sm:$0xff] %vm307, %v3505
  %3571 = vst.msk [vmem:[%s3519 + $0x291] sm:$0xff] %vm307, %v3506
  %3572 = vst.msk [vmem:[%s3519 + $0x2a1] sm:$0xff] %vm307, %v3507
  %3573 = vst.msk [vmem:[%s3519 + $0x2a9] sm:$0xff] %vm307, %v3508
  %3574 = vst.msk [vmem:[%s3519 + $0x2b9] sm:$0xff] %vm307, %v3509
  %3575 = vst.msk [vmem:[%s3519 + $0x2c1] sm:$0xff] %vm307, %v3510
  %3576 = vst.msk [vmem:[%s3519 + $0x2d1] sm:$0xff] %vm307, %v3511
  %3577 = vst.msk [vmem:[%s3519 + $0x2d9] sm:$0xff] %vm307, %v3512
  %3578 = vst.msk [vmem:[%s3519 + $0x2e9] sm:$0xff] %vm307, %v3513
  %3579 = vst.msk [vmem:[%s3519 + $0x2f1] sm:$0xff] %vm307, %v3514
  %3580 = vst.msk [vmem:[%s3519 + $0x301] sm:$0xff] %vm307, %v3515
  %3581 = vst.msk [vmem:[%s3519 + $0x309] sm:$0xff] %vm307, %v3516
  %3582 = vst.msk [vmem:[%s3519 + $0x319] sm:$0xff] %vm307, %v3517
  %3583 = vst.msk [vmem:[%s3519 + $0x321] sm:$0xff] %vm307, %v3518
  %v3584 = vld [vmem:[#allocation3] sm:$0xff]
  %v3585 = vld [vmem:[#allocation3 + $0x8] sm:$0xff]
  %v3586 = vld [vmem:[#allocation3 + $0x10] sm:$0x3]
  %v3587 = vld [vmem:[#allocation3 + $0x18] sm:$0xff]
  %v3588 = vld [vmem:[#allocation3 + $0x20] sm:$0xff]
  %v3589 = vld [vmem:[#allocation3 + $0x28] sm:$0x3]
  %v3590 = vld [vmem:[#allocation3 + $0x30] sm:$0xff]
  %v3591 = vld [vmem:[#allocation3 + $0x38] sm:$0xff]
  %v3592 = vld [vmem:[#allocation3 + $0x40] sm:$0x3]
  %v3593 = vld [vmem:[#allocation3 + $0x48] sm:$0xff]
  %v3594 = vld [vmem:[#allocation3 + $0x50] sm:$0xff]
  %v3595 = vld [vmem:[#allocation3 + $0x58] sm:$0x3]
  %v3596 = vld [vmem:[#allocation3 + $0x60] sm:$0xff]
  %v3597 = vld [vmem:[#allocation3 + $0x68] sm:$0xff]
  %v3598 = vld [vmem:[#allocation3 + $0x70] sm:$0x3]
  %v3599 = vld [vmem:[#allocation3 + $0x78] sm:$0xff]
  %v3600 = vld [vmem:[#allocation3 + $0x80] sm:$0xff]
  %v3601 = vld [vmem:[#allocation3 + $0x88] sm:$0x3]
  %v3602 = vld [vmem:[#allocation3 + $0x90] sm:$0xff]
  %v3603 = vld [vmem:[#allocation3 + $0x98] sm:$0xff]
  %v3604 = vld [vmem:[#allocation3 + $0xa0] sm:$0x3]
  %v3605 = vld [vmem:[#allocation3 + $0xa8] sm:$0xff]
  %v3606 = vld [vmem:[#allocation3 + $0xb0] sm:$0xff]
  %v3607 = vld [vmem:[#allocation3 + $0xb8] sm:$0x3]
  %v3608 = vld [vmem:[#allocation3 + $0xc0] sm:$0xff]
  %v3609 = vld [vmem:[#allocation3 + $0xc8] sm:$0xff]
  %v3610 = vld [vmem:[#allocation3 + $0xd0] sm:$0x3]
  %v3611 = vld [vmem:[#allocation3 + $0xd8] sm:$0xff]
  %v3612 = vld [vmem:[#allocation3 + $0xe0] sm:$0xff]
  %v3613 = vld [vmem:[#allocation3 + $0xe8] sm:$0x3]
  %v3614 = vld [vmem:[#allocation3 + $0xf0] sm:$0xff]
  %v3615 = vld [vmem:[#allocation3 + $0xf8] sm:$0xff]
  %v3616 = vld [vmem:[#allocation3 + $0x100] sm:$0x3]
  %v3617 = vld [vmem:[#allocation3 + $0x108] sm:$0xff]
  %v3618 = vld [vmem:[#allocation3 + $0x110] sm:$0xff]
  %v3619 = vld [vmem:[#allocation3 + $0x118] sm:$0x3]
  %v3620 = vld [vmem:[#allocation3 + $0x120] sm:$0xff]
  %v3621 = vld [vmem:[#allocation3 + $0x128] sm:$0xff]
  %v3622 = vld [vmem:[#allocation3 + $0x130] sm:$0x3]
  %v3623 = vld [vmem:[#allocation3 + $0x138] sm:$0xff]
  %v3624 = vld [vmem:[#allocation3 + $0x140] sm:$0xff]
  %v3625 = vld [vmem:[#allocation3 + $0x148] sm:$0x3]
  %v3626 = vld [vmem:[#allocation3 + $0x150] sm:$0xff]
  %v3627 = vld [vmem:[#allocation3 + $0x158] sm:$0xff]
  %v3628 = vld [vmem:[#allocation3 + $0x160] sm:$0x3]
  %v3629 = vld [vmem:[#allocation3 + $0x168] sm:$0xff]
  %v3630 = vld [vmem:[#allocation3 + $0x170] sm:$0xff]
  %v3631 = vld [vmem:[#allocation3 + $0x178] sm:$0x3]
  %v3632 = vld [vmem:[#allocation3 + $0x180] sm:$0xff]
  %v3633 = vld [vmem:[#allocation3 + $0x188] sm:$0xff]
  %v3634 = vld [vmem:[#allocation3 + $0x190] sm:$0x3]
  %v3635 = vld [vmem:[#allocation3 + $0x198] sm:$0xff]
  %v3636 = vld [vmem:[#allocation3 + $0x1a0] sm:$0xff]
  %v3637 = vld [vmem:[#allocation3 + $0x1a8] sm:$0x3]
  %v3638 = vld [vmem:[#allocation3 + $0x1b0] sm:$0xff]
  %v3639 = vld [vmem:[#allocation3 + $0x1b8] sm:$0xff]
  %v3640 = vld [vmem:[#allocation3 + $0x1c0] sm:$0x3]
  %v3641 = vld [vmem:[#allocation3 + $0x1c8] sm:$0xff]
  %v3642 = vld [vmem:[#allocation3 + $0x1d0] sm:$0xff]
  %v3643 = vld [vmem:[#allocation3 + $0x1d8] sm:$0x3]
  %v3644 = vld [vmem:[#allocation3 + $0x1e0] sm:$0xff]
  %v3645 = vld [vmem:[#allocation3 + $0x1e8] sm:$0xff]
  %v3646 = vld [vmem:[#allocation3 + $0x1f0] sm:$0x3]
  %v3647 = vld [vmem:[#allocation3 + $0x1f8] sm:$0xff]
  %v3648 = vld [vmem:[#allocation3 + $0x200] sm:$0xff]
  %v3649 = vld [vmem:[#allocation3 + $0x208] sm:$0x3]
  %v3650 = vld [vmem:[#allocation3 + $0x210] sm:$0xff]
  %v3651 = vld [vmem:[#allocation3 + $0x218] sm:$0xff]
  %v3652 = vld [vmem:[#allocation3 + $0x220] sm:$0x3]
  %v3653 = vld [vmem:[#allocation3 + $0x228] sm:$0xff]
  %v3654 = vld [vmem:[#allocation3 + $0x230] sm:$0xff]
  %v3655 = vld [vmem:[#allocation3 + $0x238] sm:$0x3]
  %v3656 = vld [vmem:[#allocation3 + $0x240] sm:$0xff]
  %v3657 = vld [vmem:[#allocation3 + $0x248] sm:$0xff]
  %v3658 = vld [vmem:[#allocation3 + $0x250] sm:$0x3]
  %v3659 = vld [vmem:[#allocation3 + $0x258] sm:$0xff]
  %v3660 = vld [vmem:[#allocation3 + $0x260] sm:$0xff]
  %v3661 = vld [vmem:[#allocation3 + $0x268] sm:$0x3]
  %v3662 = vld [vmem:[#allocation3 + $0x270] sm:$0xff]
  %v3663 = vld [vmem:[#allocation3 + $0x278] sm:$0xff]
  %v3664 = vld [vmem:[#allocation3 + $0x280] sm:$0x3]
  %v3665 = vld [vmem:[#allocation3 + $0x288] sm:$0xff]
  %v3666 = vld [vmem:[#allocation3 + $0x290] sm:$0xff]
  %v3667 = vld [vmem:[#allocation3 + $0x298] sm:$0x3]
  %v3668 = vld [vmem:[#allocation3 + $0x2a0] sm:$0xff]
  %v3669 = vld [vmem:[#allocation3 + $0x2a8] sm:$0xff]
  %v3670 = vld [vmem:[#allocation3 + $0x2b0] sm:$0x3]
  %v3671 = vld [vmem:[#allocation3 + $0x2b8] sm:$0xff]
  %v3672 = vld [vmem:[#allocation3 + $0x2c0] sm:$0xff]
  %v3673 = vld [vmem:[#allocation3 + $0x2c8] sm:$0x3]
  %v3674 = vld [vmem:[#allocation3 + $0x2d0] sm:$0xff]
  %v3675 = vld [vmem:[#allocation3 + $0x2d8] sm:$0xff]
  %v3676 = vld [vmem:[#allocation3 + $0x2e0] sm:$0x3]
  %v3677 = vld [vmem:[#allocation3 + $0x2e8] sm:$0xff]
  %v3678 = vld [vmem:[#allocation3 + $0x2f0] sm:$0xff]
  %v3679 = vld [vmem:[#allocation3 + $0x2f8] sm:$0x3]
  %v3680 = vld [vmem:[#allocation3 + $0x300] sm:$0xff]
  %v3681 = vld [vmem:[#allocation3 + $0x308] sm:$0xff]
  %v3682 = vld [vmem:[#allocation3 + $0x310] sm:$0x3]
  %v3683 = vld [vmem:[#allocation3 + $0x318] sm:$0xff]
  %v3684 = vld [vmem:[#allocation3 + $0x320] sm:$0xff]
  %v3685 = vld [vmem:[#allocation3 + $0x328] sm:$0x3]
  %v3686 = vld [vmem:[#allocation3 + $0x330] sm:$0xff]
  %v3687 = vld [vmem:[#allocation3 + $0x338] sm:$0xff]
  %v3688 = vld [vmem:[#allocation3 + $0x340] sm:$0x3]
  %v3689 = vld [vmem:[#allocation3 + $0x348] sm:$0xff]
  %v3690 = vld [vmem:[#allocation3 + $0x350] sm:$0xff]
  %v3691 = vld [vmem:[#allocation3 + $0x358] sm:$0x3]
  %3788 = vrot.lane.b32.xlu0 %v3587, 8
  %v3789 = vpop.permute.xlu0 %3788
  %3790 = vrot.lane.b32.xlu0 %v3588, 8
  %v3791 = vpop.permute.xlu0 %3790
  %3792 = vrot.lane.b32.xlu0 %v3589, 8
  %v3793 = vpop.permute.xlu0 %3792
  %3794 = vrot.lane.b32.xlu0 %v3590, 8
  %v3795 = vpop.permute.xlu0 %3794
  %3796 = vrot.lane.b32.xlu0 %v3591, 8
  %v3797 = vpop.permute.xlu0 %3796
  %3798 = vrot.lane.b32.xlu0 %v3592, 8
  %v3799 = vpop.permute.xlu0 %3798
  %3800 = vrot.lane.b32.xlu0 %v3593, 8
  %v3801 = vpop.permute.xlu0 %3800
  %3802 = vrot.lane.b32.xlu0 %v3594, 8
  %v3803 = vpop.permute.xlu0 %3802
  %3804 = vrot.lane.b32.xlu0 %v3595, 8
  %v3805 = vpop.permute.xlu0 %3804
  %3806 = vrot.lane.b32.xlu0 %v3596, 8
  %v3807 = vpop.permute.xlu0 %3806
  %3808 = vrot.lane.b32.xlu0 %v3597, 8
  %v3809 = vpop.permute.xlu0 %3808
  %3810 = vrot.lane.b32.xlu0 %v3598, 8
  %v3811 = vpop.permute.xlu0 %3810
  %3812 = vrot.lane.b32.xlu0 %v3599, 8
  %v3813 = vpop.permute.xlu0 %3812
  %3814 = vrot.lane.b32.xlu0 %v3600, 8
  %v3815 = vpop.permute.xlu0 %3814
  %3816 = vrot.lane.b32.xlu0 %v3601, 8
  %v3817 = vpop.permute.xlu0 %3816
  %3818 = vrot.lane.b32.xlu0 %v3602, 8
  %v3819 = vpop.permute.xlu0 %3818
  %3820 = vrot.lane.b32.xlu0 %v3603, 8
  %v3821 = vpop.permute.xlu0 %3820
  %3822 = vrot.lane.b32.xlu0 %v3604, 8
  %v3823 = vpop.permute.xlu0 %3822
  %3824 = vrot.lane.b32.xlu0 %v3605, 8
  %v3825 = vpop.permute.xlu0 %3824
  %3826 = vrot.lane.b32.xlu0 %v3606, 8
  %v3827 = vpop.permute.xlu0 %3826
  %3828 = vrot.lane.b32.xlu0 %v3607, 8
  %v3829 = vpop.permute.xlu0 %3828
  %3830 = vrot.lane.b32.xlu0 %v3608, 8
  %v3831 = vpop.permute.xlu0 %3830
  %3832 = vrot.lane.b32.xlu0 %v3609, 8
  %v3833 = vpop.permute.xlu0 %3832
  %3834 = vrot.lane.b32.xlu0 %v3610, 8
  %v3835 = vpop.permute.xlu0 %3834
  %3836 = vrot.lane.b32.xlu0 %v3611, 8
  %v3837 = vpop.permute.xlu0 %3836
  %3838 = vrot.lane.b32.xlu0 %v3612, 8
  %v3839 = vpop.permute.xlu0 %3838
  %3840 = vrot.lane.b32.xlu0 %v3613, 8
  %v3841 = vpop.permute.xlu0 %3840
  %3842 = vrot.lane.b32.xlu0 %v3614, 8
  %v3843 = vpop.permute.xlu0 %3842
  %3844 = vrot.lane.b32.xlu0 %v3615, 8
  %v3845 = vpop.permute.xlu0 %3844
  %3846 = vrot.lane.b32.xlu0 %v3616, 8
  %v3847 = vpop.permute.xlu0 %3846
  %3848 = vrot.lane.b32.xlu0 %v3617, 8
  %v3849 = vpop.permute.xlu0 %3848
  %3850 = vrot.lane.b32.xlu0 %v3618, 8
  %v3851 = vpop.permute.xlu0 %3850
  %3852 = vrot.lane.b32.xlu0 %v3619, 8
  %v3853 = vpop.permute.xlu0 %3852
  %3854 = vrot.lane.b32.xlu0 %v3620, 8
  %v3855 = vpop.permute.xlu0 %3854
  %3856 = vrot.lane.b32.xlu0 %v3621, 8
  %v3857 = vpop.permute.xlu0 %3856
  %3858 = vrot.lane.b32.xlu0 %v3622, 8
  %v3859 = vpop.permute.xlu0 %3858
  %3860 = vrot.lane.b32.xlu0 %v3623, 8
  %v3861 = vpop.permute.xlu0 %3860
  %3862 = vrot.lane.b32.xlu0 %v3624, 8
  %v3863 = vpop.permute.xlu0 %3862
  %3864 = vrot.lane.b32.xlu0 %v3625, 8
  %v3865 = vpop.permute.xlu0 %3864
  %3866 = vrot.lane.b32.xlu0 %v3626, 8
  %v3867 = vpop.permute.xlu0 %3866
  %3868 = vrot.lane.b32.xlu0 %v3627, 8
  %v3869 = vpop.permute.xlu0 %3868
  %3870 = vrot.lane.b32.xlu0 %v3628, 8
  %v3871 = vpop.permute.xlu0 %3870
  %3872 = vrot.lane.b32.xlu0 %v3629, 8
  %v3873 = vpop.permute.xlu0 %3872
  %3874 = vrot.lane.b32.xlu0 %v3630, 8
  %v3875 = vpop.permute.xlu0 %3874
  %3876 = vrot.lane.b32.xlu0 %v3631, 8
  %v3877 = vpop.permute.xlu0 %3876
  %3878 = vrot.lane.b32.xlu0 %v3632, 8
  %v3879 = vpop.permute.xlu0 %3878
  %3880 = vrot.lane.b32.xlu0 %v3633, 8
  %v3881 = vpop.permute.xlu0 %3880
  %3882 = vrot.lane.b32.xlu0 %v3634, 8
  %v3883 = vpop.permute.xlu0 %3882
  %3884 = vrot.lane.b32.xlu0 %v3641, 8
  %v3885 = vpop.permute.xlu0 %3884
  %3886 = vrot.lane.b32.xlu0 %v3642, 8
  %v3887 = vpop.permute.xlu0 %3886
  %3888 = vrot.lane.b32.xlu0 %v3643, 8
  %v3889 = vpop.permute.xlu0 %3888
  %3890 = vrot.lane.b32.xlu0 %v3644, 8
  %v3891 = vpop.permute.xlu0 %3890
  %3892 = vrot.lane.b32.xlu0 %v3645, 8
  %v3893 = vpop.permute.xlu0 %3892
  %3894 = vrot.lane.b32.xlu0 %v3646, 8
  %v3895 = vpop.permute.xlu0 %3894
  %3896 = vrot.lane.b32.xlu0 %v3647, 8
  %v3897 = vpop.permute.xlu0 %3896
  %3898 = vrot.lane.b32.xlu0 %v3648, 8
  %v3899 = vpop.permute.xlu0 %3898
  %3900 = vrot.lane.b32.xlu0 %v3649, 8
  %v3901 = vpop.permute.xlu0 %3900
  %3902 = vrot.lane.b32.xlu0 %v3650, 8
  %v3903 = vpop.permute.xlu0 %3902
  %3904 = vrot.lane.b32.xlu0 %v3651, 8
  %v3905 = vpop.permute.xlu0 %3904
  %3906 = vrot.lane.b32.xlu0 %v3652, 8
  %v3907 = vpop.permute.xlu0 %3906
  %3908 = vrot.lane.b32.xlu0 %v3653, 8
  %v3909 = vpop.permute.xlu0 %3908
  %3910 = vrot.lane.b32.xlu0 %v3654, 8
  %v3911 = vpop.permute.xlu0 %3910
  %3912 = vrot.lane.b32.xlu0 %v3655, 8
  %v3913 = vpop.permute.xlu0 %3912
  %3914 = vrot.lane.b32.xlu0 %v3656, 8
  %v3915 = vpop.permute.xlu0 %3914
  %3916 = vrot.lane.b32.xlu0 %v3657, 8
  %v3917 = vpop.permute.xlu0 %3916
  %3918 = vrot.lane.b32.xlu0 %v3658, 8
  %v3919 = vpop.permute.xlu0 %3918
  %3920 = vrot.lane.b32.xlu0 %v3659, 8
  %v3921 = vpop.permute.xlu0 %3920
  %3922 = vrot.lane.b32.xlu0 %v3660, 8
  %v3923 = vpop.permute.xlu0 %3922
  %3924 = vrot.lane.b32.xlu0 %v3661, 8
  %v3925 = vpop.permute.xlu0 %3924
  %3926 = vrot.lane.b32.xlu0 %v3662, 8
  %v3927 = vpop.permute.xlu0 %3926
  %3928 = vrot.lane.b32.xlu0 %v3663, 8
  %v3929 = vpop.permute.xlu0 %3928
  %3930 = vrot.lane.b32.xlu0 %v3664, 8
  %v3931 = vpop.permute.xlu0 %3930
  %3932 = vrot.lane.b32.xlu0 %v3665, 8
  %v3933 = vpop.permute.xlu0 %3932
  %3934 = vrot.lane.b32.xlu0 %v3666, 8
  %v3935 = vpop.permute.xlu0 %3934
  %3936 = vrot.lane.b32.xlu0 %v3667, 8
  %v3937 = vpop.permute.xlu0 %3936
  %3938 = vrot.lane.b32.xlu0 %v3668, 8
  %v3939 = vpop.permute.xlu0 %3938
  %3940 = vrot.lane.b32.xlu0 %v3669, 8
  %v3941 = vpop.permute.xlu0 %3940
  %3942 = vrot.lane.b32.xlu0 %v3670, 8
  %v3943 = vpop.permute.xlu0 %3942
  %3944 = vrot.lane.b32.xlu0 %v3671, 8
  %v3945 = vpop.permute.xlu0 %3944
  %3946 = vrot.lane.b32.xlu0 %v3672, 8
  %v3947 = vpop.permute.xlu0 %3946
  %3948 = vrot.lane.b32.xlu0 %v3673, 8
  %v3949 = vpop.permute.xlu0 %3948
  %3950 = vrot.lane.b32.xlu0 %v3674, 8
  %v3951 = vpop.permute.xlu0 %3950
  %3952 = vrot.lane.b32.xlu0 %v3675, 8
  %v3953 = vpop.permute.xlu0 %3952
  %3954 = vrot.lane.b32.xlu0 %v3676, 8
  %v3955 = vpop.permute.xlu0 %3954
  %3956 = vrot.lane.b32.xlu0 %v3677, 8
  %v3957 = vpop.permute.xlu0 %3956
  %3958 = vrot.lane.b32.xlu0 %v3678, 8
  %v3959 = vpop.permute.xlu0 %3958
  %3960 = vrot.lane.b32.xlu0 %v3679, 8
  %v3961 = vpop.permute.xlu0 %3960
  %3962 = vrot.lane.b32.xlu0 %v3680, 8
  %v3963 = vpop.permute.xlu0 %3962
  %3964 = vrot.lane.b32.xlu0 %v3681, 8
  %v3965 = vpop.permute.xlu0 %3964
  %3966 = vrot.lane.b32.xlu0 %v3682, 8
  %v3967 = vpop.permute.xlu0 %3966
  %3968 = vrot.lane.b32.xlu0 %v3683, 8
  %v3969 = vpop.permute.xlu0 %3968
  %3970 = vrot.lane.b32.xlu0 %v3684, 8
  %v3971 = vpop.permute.xlu0 %3970
  %3972 = vrot.lane.b32.xlu0 %v3685, 8
  %v3973 = vpop.permute.xlu0 %3972
  %3974 = vrot.lane.b32.xlu0 %v3686, 8
  %v3975 = vpop.permute.xlu0 %3974
  %3976 = vrot.lane.b32.xlu0 %v3687, 8
  %v3977 = vpop.permute.xlu0 %3976
  %3978 = vrot.lane.b32.xlu0 %v3688, 8
  %v3979 = vpop.permute.xlu0 %3978
  %4082 = vrot.lane.b32.xlu0 %v3590, 16
  %v4083 = vpop.permute.xlu0 %4082
  %4084 = vrot.lane.b32.xlu0 %v3591, 16
  %v4085 = vpop.permute.xlu0 %4084
  %4086 = vrot.lane.b32.xlu0 %v3592, 16
  %v4087 = vpop.permute.xlu0 %4086
  %4088 = vrot.lane.b32.xlu0 %v3593, 16
  %v4089 = vpop.permute.xlu0 %4088
  %4090 = vrot.lane.b32.xlu0 %v3594, 16
  %v4091 = vpop.permute.xlu0 %4090
  %4092 = vrot.lane.b32.xlu0 %v3595, 16
  %v4093 = vpop.permute.xlu0 %4092
  %4094 = vrot.lane.b32.xlu0 %v3596, 16
  %v4095 = vpop.permute.xlu0 %4094
  %4096 = vrot.lane.b32.xlu0 %v3597, 16
  %v4097 = vpop.permute.xlu0 %4096
  %4098 = vrot.lane.b32.xlu0 %v3598, 16
  %v4099 = vpop.permute.xlu0 %4098
  %4100 = vrot.lane.b32.xlu0 %v3599, 16
  %v4101 = vpop.permute.xlu0 %4100
  %4102 = vrot.lane.b32.xlu0 %v3600, 16
  %v4103 = vpop.permute.xlu0 %4102
  %4104 = vrot.lane.b32.xlu0 %v3601, 16
  %v4105 = vpop.permute.xlu0 %4104
  %4106 = vrot.lane.b32.xlu0 %v3602, 16
  %v4107 = vpop.permute.xlu0 %4106
  %4108 = vrot.lane.b32.xlu0 %v3603, 16
  %v4109 = vpop.permute.xlu0 %4108
  %4110 = vrot.lane.b32.xlu0 %v3604, 16
  %v4111 = vpop.permute.xlu0 %4110
  %4112 = vrot.lane.b32.xlu0 %v3605, 16
  %v4113 = vpop.permute.xlu0 %4112
  %4114 = vrot.lane.b32.xlu0 %v3606, 16
  %v4115 = vpop.permute.xlu0 %4114
  %4116 = vrot.lane.b32.xlu0 %v3607, 16
  %v4117 = vpop.permute.xlu0 %4116
  %4118 = vrot.lane.b32.xlu0 %v3608, 16
  %v4119 = vpop.permute.xlu0 %4118
  %4120 = vrot.lane.b32.xlu0 %v3609, 16
  %v4121 = vpop.permute.xlu0 %4120
  %4122 = vrot.lane.b32.xlu0 %v3610, 16
  %v4123 = vpop.permute.xlu0 %4122
  %4124 = vrot.lane.b32.xlu0 %v3611, 16
  %v4125 = vpop.permute.xlu0 %4124
  %4126 = vrot.lane.b32.xlu0 %v3612, 16
  %v4127 = vpop.permute.xlu0 %4126
  %4128 = vrot.lane.b32.xlu0 %v3613, 16
  %v4129 = vpop.permute.xlu0 %4128
  %4130 = vrot.lane.b32.xlu0 %v3614, 16
  %v4131 = vpop.permute.xlu0 %4130
  %4132 = vrot.lane.b32.xlu0 %v3615, 16
  %v4133 = vpop.permute.xlu0 %4132
  %4134 = vrot.lane.b32.xlu0 %v3616, 16
  %v4135 = vpop.permute.xlu0 %4134
  %4136 = vrot.lane.b32.xlu0 %v3617, 16
  %v4137 = vpop.permute.xlu0 %4136
  %4138 = vrot.lane.b32.xlu0 %v3618, 16
  %v4139 = vpop.permute.xlu0 %4138
  %4140 = vrot.lane.b32.xlu0 %v3619, 16
  %v4141 = vpop.permute.xlu0 %4140
  %4142 = vrot.lane.b32.xlu0 %v3620, 16
  %v4143 = vpop.permute.xlu0 %4142
  %4144 = vrot.lane.b32.xlu0 %v3621, 16
  %v4145 = vpop.permute.xlu0 %4144
  %4146 = vrot.lane.b32.xlu0 %v3622, 16
  %v4147 = vpop.permute.xlu0 %4146
  %4148 = vrot.lane.b32.xlu0 %v3623, 16
  %v4149 = vpop.permute.xlu0 %4148
  %4150 = vrot.lane.b32.xlu0 %v3624, 16
  %v4151 = vpop.permute.xlu0 %4150
  %4152 = vrot.lane.b32.xlu0 %v3625, 16
  %v4153 = vpop.permute.xlu0 %4152
  %4154 = vrot.lane.b32.xlu0 %v3626, 16
  %v4155 = vpop.permute.xlu0 %4154
  %4156 = vrot.lane.b32.xlu0 %v3627, 16
  %v4157 = vpop.permute.xlu0 %4156
  %4158 = vrot.lane.b32.xlu0 %v3628, 16
  %v4159 = vpop.permute.xlu0 %4158
  %4160 = vrot.lane.b32.xlu0 %v3629, 16
  %v4161 = vpop.permute.xlu0 %4160
  %4162 = vrot.lane.b32.xlu0 %v3630, 16
  %v4163 = vpop.permute.xlu0 %4162
  %4164 = vrot.lane.b32.xlu0 %v3631, 16
  %v4165 = vpop.permute.xlu0 %4164
  %4166 = vrot.lane.b32.xlu0 %v3632, 16
  %v4167 = vpop.permute.xlu0 %4166
  %4168 = vrot.lane.b32.xlu0 %v3633, 16
  %v4169 = vpop.permute.xlu0 %4168
  %4170 = vrot.lane.b32.xlu0 %v3634, 16
  %v4171 = vpop.permute.xlu0 %4170
  %4172 = vrot.lane.b32.xlu0 %v3635, 16
  %v4173 = vpop.permute.xlu0 %4172
  %4174 = vrot.lane.b32.xlu0 %v3636, 16
  %v4175 = vpop.permute.xlu0 %4174
  %4176 = vrot.lane.b32.xlu0 %v3637, 16
  %v4177 = vpop.permute.xlu0 %4176
  %4178 = vrot.lane.b32.xlu0 %v3644, 16
  %v4179 = vpop.permute.xlu0 %4178
  %4180 = vrot.lane.b32.xlu0 %v3645, 16
  %v4181 = vpop.permute.xlu0 %4180
  %4182 = vrot.lane.b32.xlu0 %v3646, 16
  %v4183 = vpop.permute.xlu0 %4182
  %4184 = vrot.lane.b32.xlu0 %v3647, 16
  %v4185 = vpop.permute.xlu0 %4184
  %4186 = vrot.lane.b32.xlu0 %v3648, 16
  %v4187 = vpop.permute.xlu0 %4186
  %4188 = vrot.lane.b32.xlu0 %v3649, 16
  %v4189 = vpop.permute.xlu0 %4188
  %4190 = vrot.lane.b32.xlu0 %v3650, 16
  %v4191 = vpop.permute.xlu0 %4190
  %4192 = vrot.lane.b32.xlu0 %v3651, 16
  %v4193 = vpop.permute.xlu0 %4192
  %4194 = vrot.lane.b32.xlu0 %v3652, 16
  %v4195 = vpop.permute.xlu0 %4194
  %4196 = vrot.lane.b32.xlu0 %v3653, 16
  %v4197 = vpop.permute.xlu0 %4196
  %4198 = vrot.lane.b32.xlu0 %v3654, 16
  %v4199 = vpop.permute.xlu0 %4198
  %4200 = vrot.lane.b32.xlu0 %v3655, 16
  %v4201 = vpop.permute.xlu0 %4200
  %4202 = vrot.lane.b32.xlu0 %v3656, 16
  %v4203 = vpop.permute.xlu0 %4202
  %4204 = vrot.lane.b32.xlu0 %v3657, 16
  %v4205 = vpop.permute.xlu0 %4204
  %4206 = vrot.lane.b32.xlu0 %v3658, 16
  %v4207 = vpop.permute.xlu0 %4206
  %4208 = vrot.lane.b32.xlu0 %v3659, 16
  %v4209 = vpop.permute.xlu0 %4208
  %4210 = vrot.lane.b32.xlu0 %v3660, 16
  %v4211 = vpop.permute.xlu0 %4210
  %4212 = vrot.lane.b32.xlu0 %v3661, 16
  %v4213 = vpop.permute.xlu0 %4212
  %4214 = vrot.lane.b32.xlu0 %v3662, 16
  %v4215 = vpop.permute.xlu0 %4214
  %4216 = vrot.lane.b32.xlu0 %v3663, 16
  %v4217 = vpop.permute.xlu0 %4216
  %4218 = vrot.lane.b32.xlu0 %v3664, 16
  %v4219 = vpop.permute.xlu0 %4218
  %4220 = vrot.lane.b32.xlu0 %v3665, 16
  %v4221 = vpop.permute.xlu0 %4220
  %4222 = vrot.lane.b32.xlu0 %v3666, 16
  %v4223 = vpop.permute.xlu0 %4222
  %4224 = vrot.lane.b32.xlu0 %v3667, 16
  %v4225 = vpop.permute.xlu0 %4224
  %4226 = vrot.lane.b32.xlu0 %v3668, 16
  %v4227 = vpop.permute.xlu0 %4226
  %4228 = vrot.lane.b32.xlu0 %v3669, 16
  %v4229 = vpop.permute.xlu0 %4228
  %4230 = vrot.lane.b32.xlu0 %v3670, 16
  %v4231 = vpop.permute.xlu0 %4230
  %4232 = vrot.lane.b32.xlu0 %v3671, 16
  %v4233 = vpop.permute.xlu0 %4232
  %4234 = vrot.lane.b32.xlu0 %v3672, 16
  %v4235 = vpop.permute.xlu0 %4234
  %4236 = vrot.lane.b32.xlu0 %v3673, 16
  %v4237 = vpop.permute.xlu0 %4236
  %4238 = vrot.lane.b32.xlu0 %v3674, 16
  %v4239 = vpop.permute.xlu0 %4238
  %4240 = vrot.lane.b32.xlu0 %v3675, 16
  %v4241 = vpop.permute.xlu0 %4240
  %4242 = vrot.lane.b32.xlu0 %v3676, 16
  %v4243 = vpop.permute.xlu0 %4242
  %4244 = vrot.lane.b32.xlu0 %v3677, 16
  %v4245 = vpop.permute.xlu0 %4244
  %4246 = vrot.lane.b32.xlu0 %v3678, 16
  %v4247 = vpop.permute.xlu0 %4246
  %4248 = vrot.lane.b32.xlu0 %v3679, 16
  %v4249 = vpop.permute.xlu0 %4248
  %4250 = vrot.lane.b32.xlu0 %v3680, 16
  %v4251 = vpop.permute.xlu0 %4250
  %4252 = vrot.lane.b32.xlu0 %v3681, 16
  %v4253 = vpop.permute.xlu0 %4252
  %4254 = vrot.lane.b32.xlu0 %v3682, 16
  %v4255 = vpop.permute.xlu0 %4254
  %4256 = vrot.lane.b32.xlu0 %v3683, 16
  %v4257 = vpop.permute.xlu0 %4256
  %4258 = vrot.lane.b32.xlu0 %v3684, 16
  %v4259 = vpop.permute.xlu0 %4258
  %4260 = vrot.lane.b32.xlu0 %v3685, 16
  %v4261 = vpop.permute.xlu0 %4260
  %4262 = vrot.lane.b32.xlu0 %v3686, 16
  %v4263 = vpop.permute.xlu0 %4262
  %4264 = vrot.lane.b32.xlu0 %v3687, 16
  %v4265 = vpop.permute.xlu0 %4264
  %4266 = vrot.lane.b32.xlu0 %v3688, 16
  %v4267 = vpop.permute.xlu0 %4266
  %4268 = vrot.lane.b32.xlu0 %v3689, 16
  %v4269 = vpop.permute.xlu0 %4268
  %4270 = vrot.lane.b32.xlu0 %v3690, 16
  %v4271 = vpop.permute.xlu0 %4270
  %4272 = vrot.lane.b32.xlu0 %v3691, 16
  %v4273 = vpop.permute.xlu0 %4272
  %v4370 = vsel %vm307, %v3584, %v3789
  %v4371 = vsel %vm307, %v3585, %v3791
  %v4372 = vsel %vm307, %v3586, %v3793
  %v4373 = vsel %vm307, %v3587, %v3795
  %v4374 = vsel %vm307, %v3588, %v3797
  %v4375 = vsel %vm307, %v3589, %v3799
  %v4376 = vsel %vm307, %v3590, %v3801
  %v4377 = vsel %vm307, %v3591, %v3803
  %v4378 = vsel %vm307, %v3592, %v3805
  %v4379 = vsel %vm307, %v3593, %v3807
  %v4380 = vsel %vm307, %v3594, %v3809
  %v4381 = vsel %vm307, %v3595, %v3811
  %v4382 = vsel %vm307, %v3596, %v3813
  %v4383 = vsel %vm307, %v3597, %v3815
  %v4384 = vsel %vm307, %v3598, %v3817
  %v4385 = vsel %vm307, %v3599, %v3819
  %v4386 = vsel %vm307, %v3600, %v3821
  %v4387 = vsel %vm307, %v3601, %v3823
  %v4388 = vsel %vm307, %v3602, %v3825
  %v4389 = vsel %vm307, %v3603, %v3827
  %v4390 = vsel %vm307, %v3604, %v3829
  %v4391 = vsel %vm307, %v3605, %v3831
  %v4392 = vsel %vm307, %v3606, %v3833
  %v4393 = vsel %vm307, %v3607, %v3835
  %v4394 = vsel %vm307, %v3608, %v3837
  %v4395 = vsel %vm307, %v3609, %v3839
  %v4396 = vsel %vm307, %v3610, %v3841
  %v4397 = vsel %vm307, %v3611, %v3843
  %v4398 = vsel %vm307, %v3612, %v3845
  %v4399 = vsel %vm307, %v3613, %v3847
  %v4400 = vsel %vm307, %v3614, %v3849
  %v4401 = vsel %vm307, %v3615, %v3851
  %v4402 = vsel %vm307, %v3616, %v3853
  %v4403 = vsel %vm307, %v3617, %v3855
  %v4404 = vsel %vm307, %v3618, %v3857
  %v4405 = vsel %vm307, %v3619, %v3859
  %v4406 = vsel %vm307, %v3620, %v3861
  %v4407 = vsel %vm307, %v3621, %v3863
  %v4408 = vsel %vm307, %v3622, %v3865
  %v4409 = vsel %vm307, %v3623, %v3867
  %v4410 = vsel %vm307, %v3624, %v3869
  %v4411 = vsel %vm307, %v3625, %v3871
  %v4412 = vsel %vm307, %v3626, %v3873
  %v4413 = vsel %vm307, %v3627, %v3875
  %v4414 = vsel %vm307, %v3628, %v3877
  %v4415 = vsel %vm307, %v3629, %v3879
  %v4416 = vsel %vm307, %v3630, %v3881
  %v4417 = vsel %vm307, %v3631, %v3883
  %v4418 = vsel %vm307, %v3638, %v3885
  %v4419 = vsel %vm307, %v3639, %v3887
  %v4420 = vsel %vm307, %v3640, %v3889
  %v4421 = vsel %vm307, %v3641, %v3891
  %v4422 = vsel %vm307, %v3642, %v3893
  %v4423 = vsel %vm307, %v3643, %v3895
  %v4424 = vsel %vm307, %v3644, %v3897
  %v4425 = vsel %vm307, %v3645, %v3899
  %v4426 = vsel %vm307, %v3646, %v3901
  %v4427 = vsel %vm307, %v3647, %v3903
  %v4428 = vsel %vm307, %v3648, %v3905
  %v4429 = vsel %vm307, %v3649, %v3907
  %v4430 = vsel %vm307, %v3650, %v3909
  %v4431 = vsel %vm307, %v3651, %v3911
  %v4432 = vsel %vm307, %v3652, %v3913
  %v4433 = vsel %vm307, %v3653, %v3915
  %v4434 = vsel %vm307, %v3654, %v3917
  %v4435 = vsel %vm307, %v3655, %v3919
  %v4436 = vsel %vm307, %v3656, %v3921
  %v4437 = vsel %vm307, %v3657, %v3923
  %v4438 = vsel %vm307, %v3658, %v3925
  %v4439 = vsel %vm307, %v3659, %v3927
  %v4440 = vsel %vm307, %v3660, %v3929
  %v4441 = vsel %vm307, %v3661, %v3931
  %v4442 = vsel %vm307, %v3662, %v3933
  %v4443 = vsel %vm307, %v3663, %v3935
  %v4444 = vsel %vm307, %v3664, %v3937
  %v4445 = vsel %vm307, %v3665, %v3939
  %v4446 = vsel %vm307, %v3666, %v3941
  %v4447 = vsel %vm307, %v3667, %v3943
  %v4448 = vsel %vm307, %v3668, %v3945
  %v4449 = vsel %vm307, %v3669, %v3947
  %v4450 = vsel %vm307, %v3670, %v3949
  %v4451 = vsel %vm307, %v3671, %v3951
  %v4452 = vsel %vm307, %v3672, %v3953
  %v4453 = vsel %vm307, %v3673, %v3955
  %v4454 = vsel %vm307, %v3674, %v3957
  %v4455 = vsel %vm307, %v3675, %v3959
  %v4456 = vsel %vm307, %v3676, %v3961
  %v4457 = vsel %vm307, %v3677, %v3963
  %v4458 = vsel %vm307, %v3678, %v3965
  %v4459 = vsel %vm307, %v3679, %v3967
  %v4460 = vsel %vm307, %v3680, %v3969
  %v4461 = vsel %vm307, %v3681, %v3971
  %v4462 = vsel %vm307, %v3682, %v3973
  %v4463 = vsel %vm307, %v3683, %v3975
  %v4464 = vsel %vm307, %v3684, %v3977
  %v4465 = vsel %vm307, %v3685, %v3979
  %v4466 = vsel %vm1254, %v4370, %v4083
  %v4467 = vsel %vm1254, %v4371, %v4085
  %v4468 = vsel %vm1254, %v4372, %v4087
  %v4469 = vsel %vm1254, %v4373, %v4089
  %v4470 = vsel %vm1254, %v4374, %v4091
  %v4471 = vsel %vm1254, %v4375, %v4093
  %v4472 = vsel %vm1254, %v4376, %v4095
  %v4473 = vsel %vm1254, %v4377, %v4097
  %v4474 = vsel %vm1254, %v4378, %v4099
  %v4475 = vsel %vm1254, %v4379, %v4101
  %v4476 = vsel %vm1254, %v4380, %v4103
  %v4477 = vsel %vm1254, %v4381, %v4105
  %v4478 = vsel %vm1254, %v4382, %v4107
  %v4479 = vsel %vm1254, %v4383, %v4109
  %v4480 = vsel %vm1254, %v4384, %v4111
  %v4481 = vsel %vm1254, %v4385, %v4113
  %v4482 = vsel %vm1254, %v4386, %v4115
  %v4483 = vsel %vm1254, %v4387, %v4117
  %v4484 = vsel %vm1254, %v4388, %v4119
  %v4485 = vsel %vm1254, %v4389, %v4121
  %v4486 = vsel %vm1254, %v4390, %v4123
  %v4487 = vsel %vm1254, %v4391, %v4125
  %v4488 = vsel %vm1254, %v4392, %v4127
  %v4489 = vsel %vm1254, %v4393, %v4129
  %v4490 = vsel %vm1254, %v4394, %v4131
  %v4491 = vsel %vm1254, %v4395, %v4133
  %v4492 = vsel %vm1254, %v4396, %v4135
  %v4493 = vsel %vm1254, %v4397, %v4137
  %v4494 = vsel %vm1254, %v4398, %v4139
  %v4495 = vsel %vm1254, %v4399, %v4141
  %v4496 = vsel %vm1254, %v4400, %v4143
  %v4497 = vsel %vm1254, %v4401, %v4145
  %v4498 = vsel %vm1254, %v4402, %v4147
  %v4499 = vsel %vm1254, %v4403, %v4149
  %v4500 = vsel %vm1254, %v4404, %v4151
  %v4501 = vsel %vm1254, %v4405, %v4153
  %v4502 = vsel %vm1254, %v4406, %v4155
  %v4503 = vsel %vm1254, %v4407, %v4157
  %v4504 = vsel %vm1254, %v4408, %v4159
  %v4505 = vsel %vm1254, %v4409, %v4161
  %v4506 = vsel %vm1254, %v4410, %v4163
  %v4507 = vsel %vm1254, %v4411, %v4165
  %v4508 = vsel %vm1254, %v4412, %v4167
  %v4509 = vsel %vm1254, %v4413, %v4169
  %v4510 = vsel %vm1254, %v4414, %v4171
  %v4511 = vsel %vm1254, %v4415, %v4173
  %v4512 = vsel %vm1254, %v4416, %v4175
  %v4513 = vsel %vm1254, %v4417, %v4177
  %v4514 = vsel %vm1254, %v4418, %v4179
  %v4515 = vsel %vm1254, %v4419, %v4181
  %v4516 = vsel %vm1254, %v4420, %v4183
  %v4517 = vsel %vm1254, %v4421, %v4185
  %v4518 = vsel %vm1254, %v4422, %v4187
  %v4519 = vsel %vm1254, %v4423, %v4189
  %v4520 = vsel %vm1254, %v4424, %v4191
  %v4521 = vsel %vm1254, %v4425, %v4193
  %v4522 = vsel %vm1254, %v4426, %v4195
  %v4523 = vsel %vm1254, %v4427, %v4197
  %v4524 = vsel %vm1254, %v4428, %v4199
  %v4525 = vsel %vm1254, %v4429, %v4201
  %v4526 = vsel %vm1254, %v4430, %v4203
  %v4527 = vsel %vm1254, %v4431, %v4205
  %v4528 = vsel %vm1254, %v4432, %v4207
  %v4529 = vsel %vm1254, %v4433, %v4209
  %v4530 = vsel %vm1254, %v4434, %v4211
  %v4531 = vsel %vm1254, %v4435, %v4213
  %v4532 = vsel %vm1254, %v4436, %v4215
  %v4533 = vsel %vm1254, %v4437, %v4217
  %v4534 = vsel %vm1254, %v4438, %v4219
  %v4535 = vsel %vm1254, %v4439, %v4221
  %v4536 = vsel %vm1254, %v4440, %v4223
  %v4537 = vsel %vm1254, %v4441, %v4225
  %v4538 = vsel %vm1254, %v4442, %v4227
  %v4539 = vsel %vm1254, %v4443, %v4229
  %v4540 = vsel %vm1254, %v4444, %v4231
  %v4541 = vsel %vm1254, %v4445, %v4233
  %v4542 = vsel %vm1254, %v4446, %v4235
  %v4543 = vsel %vm1254, %v4447, %v4237
  %v4544 = vsel %vm1254, %v4448, %v4239
  %v4545 = vsel %vm1254, %v4449, %v4241
  %v4546 = vsel %vm1254, %v4450, %v4243
  %v4547 = vsel %vm1254, %v4451, %v4245
  %v4548 = vsel %vm1254, %v4452, %v4247
  %v4549 = vsel %vm1254, %v4453, %v4249
  %v4550 = vsel %vm1254, %v4454, %v4251
  %v4551 = vsel %vm1254, %v4455, %v4253
  %v4552 = vsel %vm1254, %v4456, %v4255
  %v4553 = vsel %vm1254, %v4457, %v4257
  %v4554 = vsel %vm1254, %v4458, %v4259
  %v4555 = vsel %vm1254, %v4459, %v4261
  %v4556 = vsel %vm1254, %v4460, %v4263
  %v4557 = vsel %vm1254, %v4461, %v4265
  %v4558 = vsel %vm1254, %v4462, %v4267
  %v4559 = vsel %vm1254, %v4463, %v4269
  %v4560 = vsel %vm1254, %v4464, %v4271
  %v4561 = vsel %vm1254, %v4465, %v4273
  %v4562 = vld [vmem:[%s3] sm:$0xff]
  %v4563 = vld [vmem:[%s3 + $0x8] sm:$0xff]
  %v4564 = vld [vmem:[%s3 + $0x10] sm:$0xff]
  %v4661 = vrot.slane %v4466, 1
  %v4662 = vrot.slane %v4467, 1
  %v4663 = vsel %vm1450, %v4661, %v4662
  %v4664 = vrot.slane %v4468, 1
  %v4665 = vsel %vm1450, %v4662, %v4664
  %v4666 = vrot.slane %v4469, 1
  %v4667 = vrot.slane %v4470, 1
  %v4668 = vsel %vm1450, %v4666, %v4667
  %v4669 = vrot.slane %v4471, 1
  %v4670 = vsel %vm1450, %v4667, %v4669
  %v4671 = vrot.slane %v4472, 1
  %v4672 = vrot.slane %v4473, 1
  %v4673 = vsel %vm1450, %v4671, %v4672
  %v4674 = vrot.slane %v4474, 1
  %v4675 = vsel %vm1450, %v4672, %v4674
  %v4676 = vrot.slane %v4475, 1
  %v4677 = vrot.slane %v4476, 1
  %v4678 = vsel %vm1450, %v4676, %v4677
  %v4679 = vrot.slane %v4477, 1
  %v4680 = vsel %vm1450, %v4677, %v4679
  %v4681 = vrot.slane %v4478, 1
  %v4682 = vrot.slane %v4479, 1
  %v4683 = vsel %vm1450, %v4681, %v4682
  %v4684 = vrot.slane %v4480, 1
  %v4685 = vsel %vm1450, %v4682, %v4684
  %v4686 = vrot.slane %v4481, 1
  %v4687 = vrot.slane %v4482, 1
  %v4688 = vsel %vm1450, %v4686, %v4687
  %v4689 = vrot.slane %v4483, 1
  %v4690 = vsel %vm1450, %v4687, %v4689
  %v4691 = vrot.slane %v4484, 1
  %v4692 = vrot.slane %v4485, 1
  %v4693 = vsel %vm1450, %v4691, %v4692
  %v4694 = vrot.slane %v4486, 1
  %v4695 = vsel %vm1450, %v4692, %v4694
  %v4696 = vrot.slane %v4487, 1
  %v4697 = vrot.slane %v4488, 1
  %v4698 = vsel %vm1450, %v4696, %v4697
  %v4699 = vrot.slane %v4489, 1
  %v4700 = vsel %vm1450, %v4697, %v4699
  %v4701 = vrot.slane %v4490, 1
  %v4702 = vrot.slane %v4491, 1
  %v4703 = vsel %vm1450, %v4701, %v4702
  %v4704 = vrot.slane %v4492, 1
  %v4705 = vsel %vm1450, %v4702, %v4704
  %v4706 = vrot.slane %v4493, 1
  %v4707 = vrot.slane %v4494, 1
  %v4708 = vsel %vm1450, %v4706, %v4707
  %v4709 = vrot.slane %v4495, 1
  %v4710 = vsel %vm1450, %v4707, %v4709
  %v4711 = vrot.slane %v4496, 1
  %v4712 = vrot.slane %v4497, 1
  %v4713 = vsel %vm1450, %v4711, %v4712
  %v4714 = vrot.slane %v4498, 1
  %v4715 = vsel %vm1450, %v4712, %v4714
  %v4716 = vrot.slane %v4499, 1
  %v4717 = vrot.slane %v4500, 1
  %v4718 = vsel %vm1450, %v4716, %v4717
  %v4719 = vrot.slane %v4501, 1
  %v4720 = vsel %vm1450, %v4717, %v4719
  %v4721 = vrot.slane %v4502, 1
  %v4722 = vrot.slane %v4503, 1
  %v4723 = vsel %vm1450, %v4721, %v4722
  %v4724 = vrot.slane %v4504, 1
  %v4725 = vsel %vm1450, %v4722, %v4724
  %v4726 = vrot.slane %v4505, 1
  %v4727 = vrot.slane %v4506, 1
  %v4728 = vsel %vm1450, %v4726, %v4727
  %v4729 = vrot.slane %v4507, 1
  %v4730 = vsel %vm1450, %v4727, %v4729
  %v4731 = vrot.slane %v4508, 1
  %v4732 = vrot.slane %v4509, 1
  %v4733 = vsel %vm1450, %v4731, %v4732
  %v4734 = vrot.slane %v4510, 1
  %v4735 = vsel %vm1450, %v4732, %v4734
  %v4736 = vrot.slane %v4511, 1
  %v4737 = vrot.slane %v4512, 1
  %v4738 = vsel %vm1450, %v4736, %v4737
  %v4739 = vrot.slane %v4513, 1
  %v4740 = vsel %vm1450, %v4737, %v4739
  %v4741 = vrot.slane %v4514, 1
  %v4742 = vrot.slane %v4515, 1
  %v4743 = vsel %vm1450, %v4741, %v4742
  %v4744 = vrot.slane %v4516, 1
  %v4745 = vsel %vm1450, %v4742, %v4744
  %v4746 = vrot.slane %v4517, 1
  %v4747 = vrot.slane %v4518, 1
  %v4748 = vsel %vm1450, %v4746, %v4747
  %v4749 = vrot.slane %v4519, 1
  %v4750 = vsel %vm1450, %v4747, %v4749
  %v4751 = vrot.slane %v4520, 1
  %v4752 = vrot.slane %v4521, 1
  %v4753 = vsel %vm1450, %v4751, %v4752
  %v4754 = vrot.slane %v4522, 1
  %v4755 = vsel %vm1450, %v4752, %v4754
  %v4756 = vrot.slane %v4523, 1
  %v4757 = vrot.slane %v4524, 1
  %v4758 = vsel %vm1450, %v4756, %v4757
  %v4759 = vrot.slane %v4525, 1
  %v4760 = vsel %vm1450, %v4757, %v4759
  %v4761 = vrot.slane %v4526, 1
  %v4762 = vrot.slane %v4527, 1
  %v4763 = vsel %vm1450, %v4761, %v4762
  %v4764 = vrot.slane %v4528, 1
  %v4765 = vsel %vm1450, %v4762, %v4764
  %v4766 = vrot.slane %v4529, 1
  %v4767 = vrot.slane %v4530, 1
  %v4768 = vsel %vm1450, %v4766, %v4767
  %v4769 = vrot.slane %v4531, 1
  %v4770 = vsel %vm1450, %v4767, %v4769
  %v4771 = vrot.slane %v4532, 1
  %v4772 = vrot.slane %v4533, 1
  %v4773 = vsel %vm1450, %v4771, %v4772
  %v4774 = vrot.slane %v4534, 1
  %v4775 = vsel %vm1450, %v4772, %v4774
  %v4776 = vrot.slane %v4535, 1
  %v4777 = vrot.slane %v4536, 1
  %v4778 = vsel %vm1450, %v4776, %v4777
  %v4779 = vrot.slane %v4537, 1
  %v4780 = vsel %vm1450, %v4777, %v4779
  %v4781 = vrot.slane %v4538, 1
  %v4782 = vrot.slane %v4539, 1
  %v4783 = vsel %vm1450, %v4781, %v4782
  %v4784 = vrot.slane %v4540, 1
  %v4785 = vsel %vm1450, %v4782, %v4784
  %v4786 = vrot.slane %v4541, 1
  %v4787 = vrot.slane %v4542, 1
  %v4788 = vsel %vm1450, %v4786, %v4787
  %v4789 = vrot.slane %v4543, 1
  %v4790 = vsel %vm1450, %v4787, %v4789
  %v4791 = vrot.slane %v4544, 1
  %v4792 = vrot.slane %v4545, 1
  %v4793 = vsel %vm1450, %v4791, %v4792
  %v4794 = vrot.slane %v4546, 1
  %v4795 = vsel %vm1450, %v4792, %v4794
  %v4796 = vrot.slane %v4547, 1
  %v4797 = vrot.slane %v4548, 1
  %v4798 = vsel %vm1450, %v4796, %v4797
  %v4799 = vrot.slane %v4549, 1
  %v4800 = vsel %vm1450, %v4797, %v4799
  %v4801 = vrot.slane %v4550, 1
  %v4802 = vrot.slane %v4551, 1
  %v4803 = vsel %vm1450, %v4801, %v4802
  %v4804 = vrot.slane %v4552, 1
  %v4805 = vsel %vm1450, %v4802, %v4804
  %v4806 = vrot.slane %v4553, 1
  %v4807 = vrot.slane %v4554, 1
  %v4808 = vsel %vm1450, %v4806, %v4807
  %v4809 = vrot.slane %v4555, 1
  %v4810 = vsel %vm1450, %v4807, %v4809
  %v4811 = vrot.slane %v4556, 1
  %v4812 = vrot.slane %v4557, 1
  %v4813 = vsel %vm1450, %v4811, %v4812
  %v4814 = vrot.slane %v4558, 1
  %v4815 = vsel %vm1450, %v4812, %v4814
  %v4816 = vrot.slane %v4559, 1
  %v4817 = vrot.slane %v4560, 1
  %v4818 = vsel %vm1450, %v4816, %v4817
  %v4819 = vrot.slane %v4561, 1
  %v4820 = vsel %vm1450, %v4817, %v4819
  %s4821 = scalar_lea.vmem %s3, 24
  %v4822 = vld [vmem:[%s4821] sm:$0xff]
  %v4823 = vld [vmem:[%s4821 + $0x8] sm:$0xff]
  %v4824 = vld [vmem:[%s4821 + $0x10] sm:$0xff]
  %v4825 = vsel %vm1615, %v4663, 0
  %v4827 = vsel %vm1615, %v4665, 0
  %v4829 = vsel %vm1615, %v4668, 0
  %v4831 = vsel %vm1615, %v4670, 0
  %v4833 = vsel %vm1615, %v4673, 0
  %v4835 = vsel %vm1615, %v4675, 0
  %v4837 = vsel %vm1615, %v4678, 0
  %v4839 = vsel %vm1615, %v4680, 0
  %v4841 = vsel %vm1615, %v4683, 0
  %v4843 = vsel %vm1615, %v4685, 0
  %v4845 = vsel %vm1615, %v4688, 0
  %v4847 = vsel %vm1615, %v4690, 0
  %v4849 = vsel %vm1615, %v4693, 0
  %v4851 = vsel %vm1615, %v4695, 0
  %v4853 = vsel %vm1615, %v4698, 0
  %v4855 = vsel %vm1615, %v4700, 0
  %v4857 = vsel %vm1615, %v4703, 0
  %v4859 = vsel %vm1615, %v4705, 0
  %v4861 = vsel %vm1615, %v4708, 0
  %v4863 = vsel %vm1615, %v4710, 0
  %v4865 = vsel %vm1615, %v4713, 0
  %v4867 = vsel %vm1615, %v4715, 0
  %v4869 = vsel %vm1615, %v4718, 0
  %v4871 = vsel %vm1615, %v4720, 0
  %v4873 = vsel %vm1615, %v4723, 0
  %v4875 = vsel %vm1615, %v4725, 0
  %v4877 = vsel %vm1615, %v4728, 0
  %v4879 = vsel %vm1615, %v4730, 0
  %v4881 = vsel %vm1615, %v4733, 0
  %v4883 = vsel %vm1615, %v4735, 0
  %v4885 = vsel %vm1615, %v4738, 0
  %v4887 = vsel %vm1615, %v4740, 0
  %v4889 = vsel %vm1615, %v4743, 0
  %v4891 = vsel %vm1615, %v4745, 0
  %v4893 = vsel %vm1615, %v4748, 0
  %v4895 = vsel %vm1615, %v4750, 0
  %v4897 = vsel %vm1615, %v4753, 0
  %v4899 = vsel %vm1615, %v4755, 0
  %v4901 = vsel %vm1615, %v4758, 0
  %v4903 = vsel %vm1615, %v4760, 0
  %v4905 = vsel %vm1615, %v4763, 0
  %v4907 = vsel %vm1615, %v4765, 0
  %v4909 = vsel %vm1615, %v4768, 0
  %v4911 = vsel %vm1615, %v4770, 0
  %v4913 = vsel %vm1615, %v4773, 0
  %v4915 = vsel %vm1615, %v4775, 0
  %v4917 = vsel %vm1615, %v4778, 0
  %v4919 = vsel %vm1615, %v4780, 0
  %v4921 = vsel %vm1615, %v4783, 0
  %v4923 = vsel %vm1615, %v4785, 0
  %v4925 = vsel %vm1615, %v4788, 0
  %v4927 = vsel %vm1615, %v4790, 0
  %v4929 = vsel %vm1615, %v4793, 0
  %v4931 = vsel %vm1615, %v4795, 0
  %v4933 = vsel %vm1615, %v4798, 0
  %v4935 = vsel %vm1615, %v4800, 0
  %v4937 = vsel %vm1615, %v4803, 0
  %v4939 = vsel %vm1615, %v4805, 0
  %v4941 = vsel %vm1615, %v4808, 0
  %v4943 = vsel %vm1615, %v4810, 0
  %v4945 = vsel %vm1615, %v4813, 0
  %v4947 = vsel %vm1615, %v4815, 0
  %v4949 = vsel %vm1615, %v4818, 0
  %v4951 = vsel %vm1615, %v4820, 0
  %4953 = vmatprep.subr.mxu0 0.0
  %4954 = vmatpush1.msra.mxu0 %v4822
  %4955 = vmatprep.subr.mxu0 0.0
  %4956 = vmatpush1.msra.mxu0 %v4823
  %4957 = vmatprep.subr.mxu0 0.0
  %4958 = vmatpush1.msra.mxu0 %v4824
  %4959 = vmatprep.subr.mxu0 0.0
  %4960 = vmatpush1.msra.mxu0 0.0
  %4961 = vmatprep.subr.mxu0 0.0
  %4962 = vmatpush1.msra.mxu0 0.0
  %4963 = vmatprep.subr.mxu0 0.0
  %4964 = vmatpush1.msra.mxu0 0.0
  %4965 = vmatprep.subr.mxu0 0.0
  %4966 = vmatpush1.msra.mxu0 0.0
  %4967 = vmatprep.subr.mxu0 0.0
  %4968 = vmatpush1.msra.mxu0 0.0
  %4969 = vmatprep.subr.mxu0 0.0
  %4970 = vmatpush1.msra.mxu0 0.0
  %4971 = vmatprep.subr.mxu0 0.0
  %4972 = vmatpush1.msra.mxu0 0.0
  %4973 = vmatprep.subr.mxu0 0.0
  %4974 = vmatpush1.msra.mxu0 0.0
  %4975 = vmatprep.subr.mxu0 0.0
  %4976 = vmatpush1.msra.mxu0 0.0
  %4977 = vmatprep.subr.mxu0 0.0
  %4978 = vmatpush1.msra.mxu0 0.0
  %4979 = vmatprep.subr.mxu0 0.0
  %4980 = vmatpush1.msra.mxu0 0.0
  %4981 = vmatprep.subr.mxu0 0.0
  %4982 = vmatpush1.msra.mxu0 0.0
  %4983 = vmatprep.subr.mxu0 0.0
  %4984 = vmatpush1.msra.mxu0 0.0
  %4985 = vmatprep.subr.mxu0 0.0
  %4986 = vmatpush1.msra.mxu0 0.0
  %4987 = vmatprep.subr.mxu0 0.0
  %4988 = vmatpush1.msra.mxu0 0.0
  %4989 = vmatprep.subr.mxu0 0.0
  %4990 = vmatpush1.msra.mxu0 0.0
  %4991 = vmatprep.subr.mxu0 0.0
  %4992 = vmatpush1.msra.mxu0 0.0
  %4993 = vmatprep.subr.mxu0 0.0
  %4994 = vmatpush1.msra.mxu0 0.0
  %4995 = vmatprep.subr.mxu0 0.0
  %4996 = vmatpush1.msra.mxu0 0.0
  %4997 = vmatprep.subr.mxu0 0.0
  %4998 = vmatpush1.msra.mxu0 0.0
  %4999 = vmatprep.subr.mxu0 0.0
  %5000 = vmatpush1.msra.mxu0 0.0
  %5001 = vmatprep.subr.mxu0 0.0
  %5002 = vmatpush1.msra.mxu0 0.0
  %5003 = vmatprep.subr.mxu0 0.0
  %5004 = vmatpush1.msra.mxu0 0.0
  %5005 = vmatprep.subr.mxu0 0.0
  %5006 = vmatpush1.msra.mxu0 0.0
  %5007 = vmatprep.subr.mxu0 0.0
  %5008 = vmatpush1.msra.mxu0 0.0
  %5009 = vmatprep.subr.mxu0 0.0
  %5010 = vmatpush1.msra.mxu0 0.0
  %5011 = vmatprep.subr.mxu0 0.0
  %5012 = vmatpush1.msra.mxu0 0.0
  %5013 = vmatprep.subr.mxu0 0.0
  %5014 = vmatpush1.msra.mxu0 0.0
  %5015 = vmatprep.subr.mxu0 0.0
  %5016 = vmatpush1.msra.mxu0 0.0
  %5017 = vmatprep.mubr.f32.mxu0 0.0
  %5018 = vmatmul.mubr.f32.gmra.mrb[0].mxu0 %v4825
  %v5019 = vpop.f32.mrb[0].mxu0
  %v5020 = vadd.f32 0.0, %v5019
  %v5021 = vpop.f32.mrb[0].mxu0
  %5022 = vmatprep.mubr.f32.mxu0 0.0
  %5023 = vmatmul.mubr.f32.gmra.mrb[0].mxu0 %v4827
  %v5024 = vpop.f32.mrb[0].mxu0
  %v5025 = vadd.f32 0.0, %v5024
  %v5026 = vpop.f32.mrb[0].mxu0
  %5027 = vmatprep.mubr.f32.mxu0 0.0
  %5028 = vmatmul.mubr.f32.gmra.mrb[0].mxu0 %v4829
  %v5029 = vpop.f32.mrb[0].mxu0
  %v5030 = vadd.f32 0.0, %v5029
  %v5031 = vpop.f32.mrb[0].mxu0
  %5032 = vmatprep.mubr.f32.mxu0 0.0
  %5033 = vmatmul.mubr.f32.gmra.mrb[0].mxu0 %v4831
  %v5034 = vpop.f32.mrb[0].mxu0
  %v5035 = vadd.f32 0.0, %v5034
  %v5036 = vpop.f32.mrb[0].mxu0
  %5037 = vmatprep.mubr.f32.mxu0 0.0
  %5038 = vmatmul.mubr.f32.gmra.mrb[0].mxu0 %v4833
  %v5039 = vpop.f32.mrb[0].mxu0
  %v5040 = vadd.f32 0.0, %v5039
  %v5041 = vpop.f32.mrb[0].mxu0
  %5042 = vmatprep.mubr.f32.mxu0 0.0
  %5043 = vmatmul.mubr.f32.gmra.mrb[0].mxu0 %v4835
  %v5044 = vpop.f32.mrb[0].mxu0
  %v5045 = vadd.f32 0.0, %v5044
  %v5046 = vpop.f32.mrb[0].mxu0
  %5047 = vmatprep.mubr.f32.mxu0 0.0
  %5048 = vmatmul.mubr.f32.gmra.mrb[0].mxu0 %v4837
  %v5049 = vpop.f32.mrb[0].mxu0
  %v5050 = vadd.f32 0.0, %v5049
  %v5051 = vpop.f32.mrb[0].mxu0
  %5052 = vmatprep.mubr.f32.mxu0 0.0
  %5053 = vmatmul.mubr.f32.gmra.mrb[0].mxu0 %v4839
  %v5054 = vpop.f32.mrb[0].mxu0
  %v5055 = vadd.f32 0.0, %v5054
  %v5056 = vpop.f32.mrb[0].mxu0
  %5057 = vmatprep.mubr.f32.mxu0 0.0
  %5058 = vmatmul.mubr.f32.gmra.mrb[0].mxu0 %v4841
  %v5059 = vpop.f32.mrb[0].mxu0
  %v5060 = vadd.f32 0.0, %v5059
  %v5061 = vpop.f32.mrb[0].mxu0
  %5062 = vmatprep.mubr.f32.mxu0 0.0
  %5063 = vmatmul.mubr.f32.gmra.mrb[0].mxu0 %v4843
  %v5064 = vpop.f32.mrb[0].mxu0
  %v5065 = vadd.f32 0.0, %v5064
  %v5066 = vpop.f32.mrb[0].mxu0
  %5067 = vmatprep.mubr.f32.mxu0 0.0
  %5068 = vmatmul.mubr.f32.gmra.mrb[0].mxu0 %v4845
  %v5069 = vpop.f32.mrb[0].mxu0
  %v5070 = vadd.f32 0.0, %v5069
  %v5071 = vpop.f32.mrb[0].mxu0
  %5072 = vmatprep.mubr.f32.mxu0 0.0
  %5073 = vmatmul.mubr.f32.gmra.mrb[0].mxu0 %v4847
  %v5074 = vpop.f32.mrb[0].mxu0
  %v5075 = vadd.f32 0.0, %v5074
  %v5076 = vpop.f32.mrb[0].mxu0
  %5077 = vmatprep.mubr.f32.mxu0 0.0
  %5078 = vmatmul.mubr.f32.gmra.mrb[0].mxu0 %v4849
  %v5079 = vpop.f32.mrb[0].mxu0
  %v5080 = vadd.f32 0.0, %v5079
  %v5081 = vpop.f32.mrb[0].mxu0
  %5082 = vmatprep.mubr.f32.mxu0 0.0
  %5083 = vmatmul.mubr.f32.gmra.mrb[0].mxu0 %v4851
  %v5084 = vpop.f32.mrb[0].mxu0
  %v5085 = vadd.f32 0.0, %v5084
  %v5086 = vpop.f32.mrb[0].mxu0
  %5087 = vmatprep.mubr.f32.mxu0 0.0
  %5088 = vmatmul.mubr.f32.gmra.mrb[0].mxu0 %v4853
  %v5089 = vpop.f32.mrb[0].mxu0
  %v5090 = vadd.f32 0.0, %v5089
  %v5091 = vpop.f32.mrb[0].mxu0
  %5092 = vmatprep.mubr.f32.mxu0 0.0
  %5093 = vmatmul.mubr.f32.gmra.mrb[0].mxu0 %v4855
  %v5094 = vpop.f32.mrb[0].mxu0
  %v5095 = vadd.f32 0.0, %v5094
  %v5096 = vpop.f32.mrb[0].mxu0
  %5097 = vmatprep.mubr.f32.mxu0 0.0
  %5098 = vmatmul.mubr.f32.gmra.mrb[0].mxu0 %v4857
  %v5099 = vpop.f32.mrb[0].mxu0
  %v5100 = vadd.f32 0.0, %v5099
  %v5101 = vpop.f32.mrb[0].mxu0
  %5102 = vmatprep.mubr.f32.mxu0 0.0
  %5103 = vmatmul.mubr.f32.gmra.mrb[0].mxu0 %v4859
  %v5104 = vpop.f32.mrb[0].mxu0
  %v5105 = vadd.f32 0.0, %v5104
  %v5106 = vpop.f32.mrb[0].mxu0
  %5107 = vmatprep.mubr.f32.mxu0 0.0
  %5108 = vmatmul.mubr.f32.gmra.mrb[0].mxu0 %v4861
  %v5109 = vpop.f32.mrb[0].mxu0
  %v5110 = vadd.f32 0.0, %v5109
  %v5111 = vpop.f32.mrb[0].mxu0
  %5112 = vmatprep.mubr.f32.mxu0 0.0
  %5113 = vmatmul.mubr.f32.gmra.mrb[0].mxu0 %v4863
  %v5114 = vpop.f32.mrb[0].mxu0
  %v5115 = vadd.f32 0.0, %v5114
  %v5116 = vpop.f32.mrb[0].mxu0
  %5117 = vmatprep.mubr.f32.mxu0 0.0
  %5118 = vmatmul.mubr.f32.gmra.mrb[0].mxu0 %v4865
  %v5119 = vpop.f32.mrb[0].mxu0
  %v5120 = vadd.f32 0.0, %v5119
  %v5121 = vpop.f32.mrb[0].mxu0
  %5122 = vmatprep.mubr.f32.mxu0 0.0
  %5123 = vmatmul.mubr.f32.gmra.mrb[0].mxu0 %v4867
  %v5124 = vpop.f32.mrb[0].mxu0
  %v5125 = vadd.f32 0.0, %v5124
  %v5126 = vpop.f32.mrb[0].mxu0
  %5127 = vmatprep.mubr.f32.mxu0 0.0
  %5128 = vmatmul.mubr.f32.gmra.mrb[0].mxu0 %v4869
  %v5129 = vpop.f32.mrb[0].mxu0
  %v5130 = vadd.f32 0.0, %v5129
  %v5131 = vpop.f32.mrb[0].mxu0
  %5132 = vmatprep.mubr.f32.mxu0 0.0
  %5133 = vmatmul.mubr.f32.gmra.mrb[0].mxu0 %v4871
  %v5134 = vpop.f32.mrb[0].mxu0
  %v5135 = vadd.f32 0.0, %v5134
  %v5136 = vpop.f32.mrb[0].mxu0
  %5137 = vmatprep.mubr.f32.mxu0 0.0
  %5138 = vmatmul.mubr.f32.gmra.mrb[0].mxu0 %v4873
  %v5139 = vpop.f32.mrb[0].mxu0
  %v5140 = vadd.f32 0.0, %v5139
  %v5141 = vpop.f32.mrb[0].mxu0
  %5142 = vmatprep.mubr.f32.mxu0 0.0
  %5143 = vmatmul.mubr.f32.gmra.mrb[0].mxu0 %v4875
  %v5144 = vpop.f32.mrb[0].mxu0
  %v5145 = vadd.f32 0.0, %v5144
  %v5146 = vpop.f32.mrb[0].mxu0
  %5147 = vmatprep.mubr.f32.mxu0 0.0
  %5148 = vmatmul.mubr.f32.gmra.mrb[0].mxu0 %v4877
  %v5149 = vpop.f32.mrb[0].mxu0
  %v5150 = vadd.f32 0.0, %v5149
  %v5151 = vpop.f32.mrb[0].mxu0
  %5152 = vmatprep.mubr.f32.mxu0 0.0
  %5153 = vmatmul.mubr.f32.gmra.mrb[0].mxu0 %v4879
  %v5154 = vpop.f32.mrb[0].mxu0
  %v5155 = vadd.f32 0.0, %v5154
  %v5156 = vpop.f32.mrb[0].mxu0
  %5157 = vmatprep.mubr.f32.mxu0 0.0
  %5158 = vmatmul.mubr.f32.gmra.mrb[0].mxu0 %v4881
  %v5159 = vpop.f32.mrb[0].mxu0
  %v5160 = vadd.f32 0.0, %v5159
  %v5161 = vpop.f32.mrb[0].mxu0
  %5162 = vmatprep.mubr.f32.mxu0 0.0
  %5163 = vmatmul.mubr.f32.gmra.mrb[0].mxu0 %v4883
  %v5164 = vpop.f32.mrb[0].mxu0
  %v5165 = vadd.f32 0.0, %v5164
  %v5166 = vpop.f32.mrb[0].mxu0
  %5167 = vmatprep.mubr.f32.mxu0 0.0
  %5168 = vmatmul.mubr.f32.gmra.mrb[0].mxu0 %v4885
  %v5169 = vpop.f32.mrb[0].mxu0
  %v5170 = vadd.f32 0.0, %v5169
  %v5171 = vpop.f32.mrb[0].mxu0
  %5172 = vmatprep.mubr.f32.mxu0 0.0
  %5173 = vmatmul.mubr.f32.gmra.mrb[0].mxu0 %v4887
  %v5174 = vpop.f32.mrb[0].mxu0
  %v5175 = vadd.f32 0.0, %v5174
  %v5176 = vpop.f32.mrb[0].mxu0
  %5177 = vmatprep.mubr.f32.mxu0 0.0
  %5178 = vmatmul.mubr.f32.gmra.mrb[0].mxu0 %v4889
  %v5179 = vpop.f32.mrb[0].mxu0
  %v5180 = vadd.f32 0.0, %v5179
  %v5181 = vpop.f32.mrb[0].mxu0
  %5182 = vmatprep.mubr.f32.mxu0 0.0
  %5183 = vmatmul.mubr.f32.gmra.mrb[0].mxu0 %v4891
  %v5184 = vpop.f32.mrb[0].mxu0
  %v5185 = vadd.f32 0.0, %v5184
  %v5186 = vpop.f32.mrb[0].mxu0
  %5187 = vmatprep.mubr.f32.mxu0 0.0
  %5188 = vmatmul.mubr.f32.gmra.mrb[0].mxu0 %v4893
  %v5189 = vpop.f32.mrb[0].mxu0
  %v5190 = vadd.f32 0.0, %v5189
  %v5191 = vpop.f32.mrb[0].mxu0
  %5192 = vmatprep.mubr.f32.mxu0 0.0
  %5193 = vmatmul.mubr.f32.gmra.mrb[0].mxu0 %v4895
  %v5194 = vpop.f32.mrb[0].mxu0
  %v5195 = vadd.f32 0.0, %v5194
  %v5196 = vpop.f32.mrb[0].mxu0
  %5197 = vmatprep.mubr.f32.mxu0 0.0
  %5198 = vmatmul.mubr.f32.gmra.mrb[0].mxu0 %v4897
  %v5199 = vpop.f32.mrb[0].mxu0
  %v5200 = vadd.f32 0.0, %v5199
  %v5201 = vpop.f32.mrb[0].mxu0
  %5202 = vmatprep.mubr.f32.mxu0 0.0
  %5203 = vmatmul.mubr.f32.gmra.mrb[0].mxu0 %v4899
  %v5204 = vpop.f32.mrb[0].mxu0
  %v5205 = vadd.f32 0.0, %v5204
  %v5206 = vpop.f32.mrb[0].mxu0
  %5207 = vmatprep.mubr.f32.mxu0 0.0
  %5208 = vmatmul.mubr.f32.gmra.mrb[0].mxu0 %v4901
  %v5209 = vpop.f32.mrb[0].mxu0
  %v5210 = vadd.f32 0.0, %v5209
  %v5211 = vpop.f32.mrb[0].mxu0
  %5212 = vmatprep.mubr.f32.mxu0 0.0
  %5213 = vmatmul.mubr.f32.gmra.mrb[0].mxu0 %v4903
  %v5214 = vpop.f32.mrb[0].mxu0
  %v5215 = vadd.f32 0.0, %v5214
  %v5216 = vpop.f32.mrb[0].mxu0
  %5217 = vmatprep.mubr.f32.mxu0 0.0
  %5218 = vmatmul.mubr.f32.gmra.mrb[0].mxu0 %v4905
  %v5219 = vpop.f32.mrb[0].mxu0
  %v5220 = vadd.f32 0.0, %v5219
  %v5221 = vpop.f32.mrb[0].mxu0
  %5222 = vmatprep.mubr.f32.mxu0 0.0
  %5223 = vmatmul.mubr.f32.gmra.mrb[0].mxu0 %v4907
  %v5224 = vpop.f32.mrb[0].mxu0
  %v5225 = vadd.f32 0.0, %v5224
  %v5226 = vpop.f32.mrb[0].mxu0
  %5227 = vmatprep.mubr.f32.mxu0 0.0
  %5228 = vmatmul.mubr.f32.gmra.mrb[0].mxu0 %v4909
  %v5229 = vpop.f32.mrb[0].mxu0
  %v5230 = vadd.f32 0.0, %v5229
  %v5231 = vpop.f32.mrb[0].mxu0
  %5232 = vmatprep.mubr.f32.mxu0 0.0
  %5233 = vmatmul.mubr.f32.gmra.mrb[0].mxu0 %v4911
  %v5234 = vpop.f32.mrb[0].mxu0
  %v5235 = vadd.f32 0.0, %v5234
  %v5236 = vpop.f32.mrb[0].mxu0
  %5237 = vmatprep.mubr.f32.mxu0 0.0
  %5238 = vmatmul.mubr.f32.gmra.mrb[0].mxu0 %v4913
  %v5239 = vpop.f32.mrb[0].mxu0
  %v5240 = vadd.f32 0.0, %v5239
  %v5241 = vpop.f32.mrb[0].mxu0
  %5242 = vmatprep.mubr.f32.mxu0 0.0
  %5243 = vmatmul.mubr.f32.gmra.mrb[0].mxu0 %v4915
  %v5244 = vpop.f32.mrb[0].mxu0
  %v5245 = vadd.f32 0.0, %v5244
  %v5246 = vpop.f32.mrb[0].mxu0
  %5247 = vmatprep.mubr.f32.mxu0 0.0
  %5248 = vmatmul.mubr.f32.gmra.mrb[0].mxu0 %v4917
  %v5249 = vpop.f32.mrb[0].mxu0
  %v5250 = vadd.f32 0.0, %v5249
  %v5251 = vpop.f32.mrb[0].mxu0
  %5252 = vmatprep.mubr.f32.mxu0 0.0
  %5253 = vmatmul.mubr.f32.gmra.mrb[0].mxu0 %v4919
  %v5254 = vpop.f32.mrb[0].mxu0
  %v5255 = vadd.f32 0.0, %v5254
  %v5256 = vpop.f32.mrb[0].mxu0
  %5257 = vmatprep.mubr.f32.mxu0 0.0
  %5258 = vmatmul.mubr.f32.gmra.mrb[0].mxu0 %v4921
  %v5259 = vpop.f32.mrb[0].mxu0
  %v5260 = vadd.f32 0.0, %v5259
  %v5261 = vpop.f32.mrb[0].mxu0
  %5262 = vmatprep.mubr.f32.mxu0 0.0
  %5263 = vmatmul.mubr.f32.gmra.mrb[0].mxu0 %v4923
  %v5264 = vpop.f32.mrb[0].mxu0
  %v5265 = vadd.f32 0.0, %v5264
  %v5266 = vpop.f32.mrb[0].mxu0
  %5267 = vmatprep.mubr.f32.mxu0 0.0
  %5268 = vmatmul.mubr.f32.gmra.mrb[0].mxu0 %v4925
  %v5269 = vpop.f32.mrb[0].mxu0
  %v5270 = vadd.f32 0.0, %v5269
  %v5271 = vpop.f32.mrb[0].mxu0
  %5272 = vmatprep.mubr.f32.mxu0 0.0
  %5273 = vmatmul.mubr.f32.gmra.mrb[0].mxu0 %v4927
  %v5274 = vpop.f32.mrb[0].mxu0
  %v5275 = vadd.f32 0.0, %v5274
  %v5276 = vpop.f32.mrb[0].mxu0
  %5277 = vmatprep.mubr.f32.mxu0 0.0
  %5278 = vmatmul.mubr.f32.gmra.mrb[0].mxu0 %v4929
  %v5279 = vpop.f32.mrb[0].mxu0
  %v5280 = vadd.f32 0.0, %v5279
  %v5281 = vpop.f32.mrb[0].mxu0
  %5282 = vmatprep.mubr.f32.mxu0 0.0
  %5283 = vmatmul.mubr.f32.gmra.mrb[0].mxu0 %v4931
  %v5284 = vpop.f32.mrb[0].mxu0
  %v5285 = vadd.f32 0.0, %v5284
  %v5286 = vpop.f32.mrb[0].mxu0
  %5287 = vmatprep.mubr.f32.mxu0 0.0
  %5288 = vmatmul.mubr.f32.gmra.mrb[0].mxu0 %v4933
  %v5289 = vpop.f32.mrb[0].mxu0
  %v5290 = vadd.f32 0.0, %v5289
  %v5291 = vpop.f32.mrb[0].mxu0
  %5292 = vmatprep.mubr.f32.mxu0 0.0
  %5293 = vmatmul.mubr.f32.gmra.mrb[0].mxu0 %v4935
  %v5294 = vpop.f32.mrb[0].mxu0
  %v5295 = vadd.f32 0.0, %v5294
  %v5296 = vpop.f32.mrb[0].mxu0
  %5297 = vmatprep.mubr.f32.mxu0 0.0
  %5298 = vmatmul.mubr.f32.gmra.mrb[0].mxu0 %v4937
  %v5299 = vpop.f32.mrb[0].mxu0
  %v5300 = vadd.f32 0.0, %v5299
  %v5301 = vpop.f32.mrb[0].mxu0
  %5302 = vmatprep.mubr.f32.mxu0 0.0
  %5303 = vmatmul.mubr.f32.gmra.mrb[0].mxu0 %v4939
  %v5304 = vpop.f32.mrb[0].mxu0
  %v5305 = vadd.f32 0.0, %v5304
  %v5306 = vpop.f32.mrb[0].mxu0
  %5307 = vmatprep.mubr.f32.mxu0 0.0
  %5308 = vmatmul.mubr.f32.gmra.mrb[0].mxu0 %v4941
  %v5309 = vpop.f32.mrb[0].mxu0
  %v5310 = vadd.f32 0.0, %v5309
  %v5311 = vpop.f32.mrb[0].mxu0
  %5312 = vmatprep.mubr.f32.mxu0 0.0
  %5313 = vmatmul.mubr.f32.gmra.mrb[0].mxu0 %v4943
  %v5314 = vpop.f32.mrb[0].mxu0
  %v5315 = vadd.f32 0.0, %v5314
  %v5316 = vpop.f32.mrb[0].mxu0
  %5317 = vmatprep.mubr.f32.mxu0 0.0
  %5318 = vmatmul.mubr.f32.gmra.mrb[0].mxu0 %v4945
  %v5319 = vpop.f32.mrb[0].mxu0
  %v5320 = vadd.f32 0.0, %v5319
  %v5321 = vpop.f32.mrb[0].mxu0
  %5322 = vmatprep.mubr.f32.mxu0 0.0
  %5323 = vmatmul.mubr.f32.gmra.mrb[0].mxu0 %v4947
  %v5324 = vpop.f32.mrb[0].mxu0
  %v5325 = vadd.f32 0.0, %v5324
  %v5326 = vpop.f32.mrb[0].mxu0
  %5327 = vmatprep.mubr.f32.mxu0 0.0
  %5328 = vmatmul.mubr.f32.gmra.mrb[0].mxu0 %v4949
  %v5329 = vpop.f32.mrb[0].mxu0
  %v5330 = vadd.f32 0.0, %v5329
  %v5331 = vpop.f32.mrb[0].mxu0
  %5332 = vmatprep.mubr.f32.mxu0 0.0
  %5333 = vmatmul.mubr.f32.gmra.mrb[0].mxu0 %v4951
  %v5334 = vpop.f32.mrb[0].mxu0
  %v5335 = vadd.f32 0.0, %v5334
  %v5336 = vpop.f32.mrb[0].mxu0
  %5337 = vdwg.mxu0
  %v5338 = vsel %vm1615, %v4466, 0
  %v5340 = vsel %vm1615, %v4467, 0
  %v5342 = vsel %vm1615, %v4469, 0
  %v5344 = vsel %vm1615, %v4470, 0
  %v5346 = vsel %vm1615, %v4472, 0
  %v5348 = vsel %vm1615, %v4473, 0
  %v5350 = vsel %vm1615, %v4475, 0
  %v5352 = vsel %vm1615, %v4476, 0
  %v5354 = vsel %vm1615, %v4478, 0
  %v5356 = vsel %vm1615, %v4479, 0
  %v5358 = vsel %vm1615, %v4481, 0
  %v5360 = vsel %vm1615, %v4482, 0
  %v5362 = vsel %vm1615, %v4484, 0
  %v5364 = vsel %vm1615, %v4485, 0
  %v5366 = vsel %vm1615, %v4487, 0
  %v5368 = vsel %vm1615, %v4488, 0
  %v5370 = vsel %vm1615, %v4490, 0
  %v5372 = vsel %vm1615, %v4491, 0
  %v5374 = vsel %vm1615, %v4493, 0
  %v5376 = vsel %vm1615, %v4494, 0
  %v5378 = vsel %vm1615, %v4496, 0
  %v5380 = vsel %vm1615, %v4497, 0
  %v5382 = vsel %vm1615, %v4499, 0
  %v5384 = vsel %vm1615, %v4500, 0
  %v5386 = vsel %vm1615, %v4502, 0
  %v5388 = vsel %vm1615, %v4503, 0
  %v5390 = vsel %vm1615, %v4505, 0
  %v5392 = vsel %vm1615, %v4506, 0
  %v5394 = vsel %vm1615, %v4508, 0
  %v5396 = vsel %vm1615, %v4509, 0
  %v5398 = vsel %vm1615, %v4511, 0
  %v5400 = vsel %vm1615, %v4512, 0
  %v5402 = vsel %vm1615, %v4514, 0
  %v5404 = vsel %vm1615, %v4515, 0
  %v5406 = vsel %vm1615, %v4517, 0
  %v5408 = vsel %vm1615, %v4518, 0
  %v5410 = vsel %vm1615, %v4520, 0
  %v5412 = vsel %vm1615, %v4521, 0
  %v5414 = vsel %vm1615, %v4523, 0
  %v5416 = vsel %vm1615, %v4524, 0
  %v5418 = vsel %vm1615, %v4526, 0
  %v5420 = vsel %vm1615, %v4527, 0
  %v5422 = vsel %vm1615, %v4529, 0
  %v5424 = vsel %vm1615, %v4530, 0
  %v5426 = vsel %vm1615, %v4532, 0
  %v5428 = vsel %vm1615, %v4533, 0
  %v5430 = vsel %vm1615, %v4535, 0
  %v5432 = vsel %vm1615, %v4536, 0
  %v5434 = vsel %vm1615, %v4538, 0
  %v5436 = vsel %vm1615, %v4539, 0
  %v5438 = vsel %vm1615, %v4541, 0
  %v5440 = vsel %vm1615, %v4542, 0
  %v5442 = vsel %vm1615, %v4544, 0
  %v5444 = vsel %vm1615, %v4545, 0
  %v5446 = vsel %vm1615, %v4547, 0
  %v5448 = vsel %vm1615, %v4548, 0
  %v5450 = vsel %vm1615, %v4550, 0
  %v5452 = vsel %vm1615, %v4551, 0
  %v5454 = vsel %vm1615, %v4553, 0
  %v5456 = vsel %vm1615, %v4554, 0
  %v5458 = vsel %vm1615, %v4556, 0
  %v5460 = vsel %vm1615, %v4557, 0
  %v5462 = vsel %vm1615, %v4559, 0
  %v5464 = vsel %vm1615, %v4560, 0
  %5466 = vmatprep.subr.mxu0 0.0
  %5467 = vmatpush1.msra.mxu0 %v4562
  %5468 = vmatprep.subr.mxu0 0.0
  %5469 = vmatpush1.msra.mxu0 %v4563
  %5470 = vmatprep.subr.mxu0 0.0
  %5471 = vmatpush1.msra.mxu0 %v4564
  %5472 = vmatprep.subr.mxu0 0.0
  %5473 = vmatpush1.msra.mxu0 0.0
  %5474 = vmatprep.subr.mxu0 0.0
  %5475 = vmatpush1.msra.mxu0 0.0
  %5476 = vmatprep.subr.mxu0 0.0
  %5477 = vmatpush1.msra.mxu0 0.0
  %5478 = vmatprep.subr.mxu0 0.0
  %5479 = vmatpush1.msra.mxu0 0.0
  %5480 = vmatprep.subr.mxu0 0.0
  %5481 = vmatpush1.msra.mxu0 0.0
  %5482 = vmatprep.subr.mxu0 0.0
  %5483 = vmatpush1.msra.mxu0 0.0
  %5484 = vmatprep.subr.mxu0 0.0
  %5485 = vmatpush1.msra.mxu0 0.0
  %5486 = vmatprep.subr.mxu0 0.0
  %5487 = vmatpush1.msra.mxu0 0.0
  %5488 = vmatprep.subr.mxu0 0.0
  %5489 = vmatpush1.msra.mxu0 0.0
  %5490 = vmatprep.subr.mxu0 0.0
  %5491 = vmatpush1.msra.mxu0 0.0
  %5492 = vmatprep.subr.mxu0 0.0
  %5493 = vmatpush1.msra.mxu0 0.0
  %5494 = vmatprep.subr.mxu0 0.0
  %5495 = vmatpush1.msra.mxu0 0.0
  %5496 = vmatprep.subr.mxu0 0.0
  %5497 = vmatpush1.msra.mxu0 0.0
  %5498 = vmatprep.subr.mxu0 0.0
  %5499 = vmatpush1.msra.mxu0 0.0
  %5500 = vmatprep.subr.mxu0 0.0
  %5501 = vmatpush1.msra.mxu0 0.0
  %5502 = vmatprep.subr.mxu0 0.0
  %5503 = vmatpush1.msra.mxu0 0.0
  %5504 = vmatprep.subr.mxu0 0.0
  %5505 = vmatpush1.msra.mxu0 0.0
  %5506 = vmatprep.subr.mxu0 0.0
  %5507 = vmatpush1.msra.mxu0 0.0
  %5508 = vmatprep.subr.mxu0 0.0
  %5509 = vmatpush1.msra.mxu0 0.0
  %5510 = vmatprep.subr.mxu0 0.0
  %5511 = vmatpush1.msra.mxu0 0.0
  %5512 = vmatprep.subr.mxu0 0.0
  %5513 = vmatpush1.msra.mxu0 0.0
  %5514 = vmatprep.subr.mxu0 0.0
  %5515 = vmatpush1.msra.mxu0 0.0
  %5516 = vmatprep.subr.mxu0 0.0
  %5517 = vmatpush1.msra.mxu0 0.0
  %5518 = vmatprep.subr.mxu0 0.0
  %5519 = vmatpush1.msra.mxu0 0.0
  %5520 = vmatprep.subr.mxu0 0.0
  %5521 = vmatpush1.msra.mxu0 0.0
  %5522 = vmatprep.subr.mxu0 0.0
  %5523 = vmatpush1.msra.mxu0 0.0
  %5524 = vmatprep.subr.mxu0 0.0
  %5525 = vmatpush1.msra.mxu0 0.0
  %5526 = vmatprep.subr.mxu0 0.0
  %5527 = vmatpush1.msra.mxu0 0.0
  %5528 = vmatprep.subr.mxu0 0.0
  %5529 = vmatpush1.msra.mxu0 0.0
  %5530 = vmatprep.mubr.f32.mxu0 0.0
  %5531 = vmatmul.mubr.f32.gmra.mrb[0].mxu0 %v5338
  %v5532 = vpop.f32.mrb[0].mxu0
  %v5533 = vadd.f32 %v5020, %v5532
  %v5534 = vpop.f32.mrb[0].mxu0
  %5535 = vmatprep.mubr.f32.mxu0 0.0
  %5536 = vmatmul.mubr.f32.gmra.mrb[0].mxu0 %v5340
  %v5537 = vpop.f32.mrb[0].mxu0
  %v5538 = vadd.f32 %v5025, %v5537
  %v5539 = vpop.f32.mrb[0].mxu0
  %5540 = vmatprep.mubr.f32.mxu0 0.0
  %5541 = vmatmul.mubr.f32.gmra.mrb[0].mxu0 %v5342
  %v5542 = vpop.f32.mrb[0].mxu0
  %v5543 = vadd.f32 %v5030, %v5542
  %v5544 = vpop.f32.mrb[0].mxu0
  %5545 = vmatprep.mubr.f32.mxu0 0.0
  %5546 = vmatmul.mubr.f32.gmra.mrb[0].mxu0 %v5344
  %v5547 = vpop.f32.mrb[0].mxu0
  %v5548 = vadd.f32 %v5035, %v5547
  %v5549 = vpop.f32.mrb[0].mxu0
  %5550 = vmatprep.mubr.f32.mxu0 0.0
  %5551 = vmatmul.mubr.f32.gmra.mrb[0].mxu0 %v5346
  %v5552 = vpop.f32.mrb[0].mxu0
  %v5553 = vadd.f32 %v5040, %v5552
  %v5554 = vpop.f32.mrb[0].mxu0
  %5555 = vmatprep.mubr.f32.mxu0 0.0
  %5556 = vmatmul.mubr.f32.gmra.mrb[0].mxu0 %v5348
  %v5557 = vpop.f32.mrb[0].mxu0
  %v5558 = vadd.f32 %v5045, %v5557
  %v5559 = vpop.f32.mrb[0].mxu0
  %5560 = vmatprep.mubr.f32.mxu0 0.0
  %5561 = vmatmul.mubr.f32.gmra.mrb[0].mxu0 %v5350
  %v5562 = vpop.f32.mrb[0].mxu0
  %v5563 = vadd.f32 %v5050, %v5562
  %v5564 = vpop.f32.mrb[0].mxu0
  %5565 = vmatprep.mubr.f32.mxu0 0.0
  %5566 = vmatmul.mubr.f32.gmra.mrb[0].mxu0 %v5352
  %v5567 = vpop.f32.mrb[0].mxu0
  %v5568 = vadd.f32 %v5055, %v5567
  %v5569 = vpop.f32.mrb[0].mxu0
  %5570 = vmatprep.mubr.f32.mxu0 0.0
  %5571 = vmatmul.mubr.f32.gmra.mrb[0].mxu0 %v5354
  %v5572 = vpop.f32.mrb[0].mxu0
  %v5573 = vadd.f32 %v5060, %v5572
  %v5574 = vpop.f32.mrb[0].mxu0
  %5575 = vmatprep.mubr.f32.mxu0 0.0
  %5576 = vmatmul.mubr.f32.gmra.mrb[0].mxu0 %v5356
  %v5577 = vpop.f32.mrb[0].mxu0
  %v5578 = vadd.f32 %v5065, %v5577
  %v5579 = vpop.f32.mrb[0].mxu0
  %5580 = vmatprep.mubr.f32.mxu0 0.0
  %5581 = vmatmul.mubr.f32.gmra.mrb[0].mxu0 %v5358
  %v5582 = vpop.f32.mrb[0].mxu0
  %v5583 = vadd.f32 %v5070, %v5582
  %v5584 = vpop.f32.mrb[0].mxu0
  %5585 = vmatprep.mubr.f32.mxu0 0.0
  %5586 = vmatmul.mubr.f32.gmra.mrb[0].mxu0 %v5360
  %v5587 = vpop.f32.mrb[0].mxu0
  %v5588 = vadd.f32 %v5075, %v5587
  %v5589 = vpop.f32.mrb[0].mxu0
  %5590 = vmatprep.mubr.f32.mxu0 0.0
  %5591 = vmatmul.mubr.f32.gmra.mrb[0].mxu0 %v5362
  %v5592 = vpop.f32.mrb[0].mxu0
  %v5593 = vadd.f32 %v5080, %v5592
  %v5594 = vpop.f32.mrb[0].mxu0
  %5595 = vmatprep.mubr.f32.mxu0 0.0
  %5596 = vmatmul.mubr.f32.gmra.mrb[0].mxu0 %v5364
  %v5597 = vpop.f32.mrb[0].mxu0
  %v5598 = vadd.f32 %v5085, %v5597
  %v5599 = vpop.f32.mrb[0].mxu0
  %5600 = vmatprep.mubr.f32.mxu0 0.0
  %5601 = vmatmul.mubr.f32.gmra.mrb[0].mxu0 %v5366
  %v5602 = vpop.f32.mrb[0].mxu0
  %v5603 = vadd.f32 %v5090, %v5602
  %v5604 = vpop.f32.mrb[0].mxu0
  %5605 = vmatprep.mubr.f32.mxu0 0.0
  %5606 = vmatmul.mubr.f32.gmra.mrb[0].mxu0 %v5368
  %v5607 = vpop.f32.mrb[0].mxu0
  %v5608 = vadd.f32 %v5095, %v5607
  %v5609 = vpop.f32.mrb[0].mxu0
  %5610 = vmatprep.mubr.f32.mxu0 0.0
  %5611 = vmatmul.mubr.f32.gmra.mrb[0].mxu0 %v5370
  %v5612 = vpop.f32.mrb[0].mxu0
  %v5613 = vadd.f32 %v5100, %v5612
  %v5614 = vpop.f32.mrb[0].mxu0
  %5615 = vmatprep.mubr.f32.mxu0 0.0
  %5616 = vmatmul.mubr.f32.gmra.mrb[0].mxu0 %v5372
  %v5617 = vpop.f32.mrb[0].mxu0
  %v5618 = vadd.f32 %v5105, %v5617
  %v5619 = vpop.f32.mrb[0].mxu0
  %5620 = vmatprep.mubr.f32.mxu0 0.0
  %5621 = vmatmul.mubr.f32.gmra.mrb[0].mxu0 %v5374
  %v5622 = vpop.f32.mrb[0].mxu0
  %v5623 = vadd.f32 %v5110, %v5622
  %v5624 = vpop.f32.mrb[0].mxu0
  %5625 = vmatprep.mubr.f32.mxu0 0.0
  %5626 = vmatmul.mubr.f32.gmra.mrb[0].mxu0 %v5376
  %v5627 = vpop.f32.mrb[0].mxu0
  %v5628 = vadd.f32 %v5115, %v5627
  %v5629 = vpop.f32.mrb[0].mxu0
  %5630 = vmatprep.mubr.f32.mxu0 0.0
  %5631 = vmatmul.mubr.f32.gmra.mrb[0].mxu0 %v5378
  %v5632 = vpop.f32.mrb[0].mxu0
  %v5633 = vadd.f32 %v5120, %v5632
  %v5634 = vpop.f32.mrb[0].mxu0
  %5635 = vmatprep.mubr.f32.mxu0 0.0
  %5636 = vmatmul.mubr.f32.gmra.mrb[0].mxu0 %v5380
  %v5637 = vpop.f32.mrb[0].mxu0
  %v5638 = vadd.f32 %v5125, %v5637
  %v5639 = vpop.f32.mrb[0].mxu0
  %5640 = vmatprep.mubr.f32.mxu0 0.0
  %5641 = vmatmul.mubr.f32.gmra.mrb[0].mxu0 %v5382
  %v5642 = vpop.f32.mrb[0].mxu0
  %v5643 = vadd.f32 %v5130, %v5642
  %v5644 = vpop.f32.mrb[0].mxu0
  %5645 = vmatprep.mubr.f32.mxu0 0.0
  %5646 = vmatmul.mubr.f32.gmra.mrb[0].mxu0 %v5384
  %v5647 = vpop.f32.mrb[0].mxu0
  %v5648 = vadd.f32 %v5135, %v5647
  %v5649 = vpop.f32.mrb[0].mxu0
  %5650 = vmatprep.mubr.f32.mxu0 0.0
  %5651 = vmatmul.mubr.f32.gmra.mrb[0].mxu0 %v5386
  %v5652 = vpop.f32.mrb[0].mxu0
  %v5653 = vadd.f32 %v5140, %v5652
  %v5654 = vpop.f32.mrb[0].mxu0
  %5655 = vmatprep.mubr.f32.mxu0 0.0
  %5656 = vmatmul.mubr.f32.gmra.mrb[0].mxu0 %v5388
  %v5657 = vpop.f32.mrb[0].mxu0
  %v5658 = vadd.f32 %v5145, %v5657
  %v5659 = vpop.f32.mrb[0].mxu0
  %5660 = vmatprep.mubr.f32.mxu0 0.0
  %5661 = vmatmul.mubr.f32.gmra.mrb[0].mxu0 %v5390
  %v5662 = vpop.f32.mrb[0].mxu0
  %v5663 = vadd.f32 %v5150, %v5662
  %v5664 = vpop.f32.mrb[0].mxu0
  %5665 = vmatprep.mubr.f32.mxu0 0.0
  %5666 = vmatmul.mubr.f32.gmra.mrb[0].mxu0 %v5392
  %v5667 = vpop.f32.mrb[0].mxu0
  %v5668 = vadd.f32 %v5155, %v5667
  %v5669 = vpop.f32.mrb[0].mxu0
  %5670 = vmatprep.mubr.f32.mxu0 0.0
  %5671 = vmatmul.mubr.f32.gmra.mrb[0].mxu0 %v5394
  %v5672 = vpop.f32.mrb[0].mxu0
  %v5673 = vadd.f32 %v5160, %v5672
  %v5674 = vpop.f32.mrb[0].mxu0
  %5675 = vmatprep.mubr.f32.mxu0 0.0
  %5676 = vmatmul.mubr.f32.gmra.mrb[0].mxu0 %v5396
  %v5677 = vpop.f32.mrb[0].mxu0
  %v5678 = vadd.f32 %v5165, %v5677
  %v5679 = vpop.f32.mrb[0].mxu0
  %5680 = vmatprep.mubr.f32.mxu0 0.0
  %5681 = vmatmul.mubr.f32.gmra.mrb[0].mxu0 %v5398
  %v5682 = vpop.f32.mrb[0].mxu0
  %v5683 = vadd.f32 %v5170, %v5682
  %v5684 = vpop.f32.mrb[0].mxu0
  %5685 = vmatprep.mubr.f32.mxu0 0.0
  %5686 = vmatmul.mubr.f32.gmra.mrb[0].mxu0 %v5400
  %v5687 = vpop.f32.mrb[0].mxu0
  %v5688 = vadd.f32 %v5175, %v5687
  %v5689 = vpop.f32.mrb[0].mxu0
  %5690 = vmatprep.mubr.f32.mxu0 0.0
  %5691 = vmatmul.mubr.f32.gmra.mrb[0].mxu0 %v5402
  %v5692 = vpop.f32.mrb[0].mxu0
  %v5693 = vadd.f32 %v5180, %v5692
  %v5694 = vpop.f32.mrb[0].mxu0
  %5695 = vmatprep.mubr.f32.mxu0 0.0
  %5696 = vmatmul.mubr.f32.gmra.mrb[0].mxu0 %v5404
  %v5697 = vpop.f32.mrb[0].mxu0
  %v5698 = vadd.f32 %v5185, %v5697
  %v5699 = vpop.f32.mrb[0].mxu0
  %5700 = vmatprep.mubr.f32.mxu0 0.0
  %5701 = vmatmul.mubr.f32.gmra.mrb[0].mxu0 %v5406
  %v5702 = vpop.f32.mrb[0].mxu0
  %v5703 = vadd.f32 %v5190, %v5702
  %v5704 = vpop.f32.mrb[0].mxu0
  %5705 = vmatprep.mubr.f32.mxu0 0.0
  %5706 = vmatmul.mubr.f32.gmra.mrb[0].mxu0 %v5408
  %v5707 = vpop.f32.mrb[0].mxu0
  %v5708 = vadd.f32 %v5195, %v5707
  %v5709 = vpop.f32.mrb[0].mxu0
  %5710 = vmatprep.mubr.f32.mxu0 0.0
  %5711 = vmatmul.mubr.f32.gmra.mrb[0].mxu0 %v5410
  %v5712 = vpop.f32.mrb[0].mxu0
  %v5713 = vadd.f32 %v5200, %v5712
  %v5714 = vpop.f32.mrb[0].mxu0
  %5715 = vmatprep.mubr.f32.mxu0 0.0
  %5716 = vmatmul.mubr.f32.gmra.mrb[0].mxu0 %v5412
  %v5717 = vpop.f32.mrb[0].mxu0
  %v5718 = vadd.f32 %v5205, %v5717
  %v5719 = vpop.f32.mrb[0].mxu0
  %5720 = vmatprep.mubr.f32.mxu0 0.0
  %5721 = vmatmul.mubr.f32.gmra.mrb[0].mxu0 %v5414
  %v5722 = vpop.f32.mrb[0].mxu0
  %v5723 = vadd.f32 %v5210, %v5722
  %v5724 = vpop.f32.mrb[0].mxu0
  %5725 = vmatprep.mubr.f32.mxu0 0.0
  %5726 = vmatmul.mubr.f32.gmra.mrb[0].mxu0 %v5416
  %v5727 = vpop.f32.mrb[0].mxu0
  %v5728 = vadd.f32 %v5215, %v5727
  %v5729 = vpop.f32.mrb[0].mxu0
  %5730 = vmatprep.mubr.f32.mxu0 0.0
  %5731 = vmatmul.mubr.f32.gmra.mrb[0].mxu0 %v5418
  %v5732 = vpop.f32.mrb[0].mxu0
  %v5733 = vadd.f32 %v5220, %v5732
  %v5734 = vpop.f32.mrb[0].mxu0
  %5735 = vmatprep.mubr.f32.mxu0 0.0
  %5736 = vmatmul.mubr.f32.gmra.mrb[0].mxu0 %v5420
  %v5737 = vpop.f32.mrb[0].mxu0
  %v5738 = vadd.f32 %v5225, %v5737
  %v5739 = vpop.f32.mrb[0].mxu0
  %5740 = vmatprep.mubr.f32.mxu0 0.0
  %5741 = vmatmul.mubr.f32.gmra.mrb[0].mxu0 %v5422
  %v5742 = vpop.f32.mrb[0].mxu0
  %v5743 = vadd.f32 %v5230, %v5742
  %v5744 = vpop.f32.mrb[0].mxu0
  %5745 = vmatprep.mubr.f32.mxu0 0.0
  %5746 = vmatmul.mubr.f32.gmra.mrb[0].mxu0 %v5424
  %v5747 = vpop.f32.mrb[0].mxu0
  %v5748 = vadd.f32 %v5235, %v5747
  %v5749 = vpop.f32.mrb[0].mxu0
  %5750 = vmatprep.mubr.f32.mxu0 0.0
  %5751 = vmatmul.mubr.f32.gmra.mrb[0].mxu0 %v5426
  %v5752 = vpop.f32.mrb[0].mxu0
  %v5753 = vadd.f32 %v5240, %v5752
  %v5754 = vpop.f32.mrb[0].mxu0
  %5755 = vmatprep.mubr.f32.mxu0 0.0
  %5756 = vmatmul.mubr.f32.gmra.mrb[0].mxu0 %v5428
  %v5757 = vpop.f32.mrb[0].mxu0
  %v5758 = vadd.f32 %v5245, %v5757
  %v5759 = vpop.f32.mrb[0].mxu0
  %5760 = vmatprep.mubr.f32.mxu0 0.0
  %5761 = vmatmul.mubr.f32.gmra.mrb[0].mxu0 %v5430
  %v5762 = vpop.f32.mrb[0].mxu0
  %v5763 = vadd.f32 %v5250, %v5762
  %v5764 = vpop.f32.mrb[0].mxu0
  %5765 = vmatprep.mubr.f32.mxu0 0.0
  %5766 = vmatmul.mubr.f32.gmra.mrb[0].mxu0 %v5432
  %v5767 = vpop.f32.mrb[0].mxu0
  %v5768 = vadd.f32 %v5255, %v5767
  %v5769 = vpop.f32.mrb[0].mxu0
  %5770 = vmatprep.mubr.f32.mxu0 0.0
  %5771 = vmatmul.mubr.f32.gmra.mrb[0].mxu0 %v5434
  %v5772 = vpop.f32.mrb[0].mxu0
  %v5773 = vadd.f32 %v5260, %v5772
  %v5774 = vpop.f32.mrb[0].mxu0
  %5775 = vmatprep.mubr.f32.mxu0 0.0
  %5776 = vmatmul.mubr.f32.gmra.mrb[0].mxu0 %v5436
  %v5777 = vpop.f32.mrb[0].mxu0
  %v5778 = vadd.f32 %v5265, %v5777
  %v5779 = vpop.f32.mrb[0].mxu0
  %5780 = vmatprep.mubr.f32.mxu0 0.0
  %5781 = vmatmul.mubr.f32.gmra.mrb[0].mxu0 %v5438
  %v5782 = vpop.f32.mrb[0].mxu0
  %v5783 = vadd.f32 %v5270, %v5782
  %v5784 = vpop.f32.mrb[0].mxu0
  %5785 = vmatprep.mubr.f32.mxu0 0.0
  %5786 = vmatmul.mubr.f32.gmra.mrb[0].mxu0 %v5440
  %v5787 = vpop.f32.mrb[0].mxu0
  %v5788 = vadd.f32 %v5275, %v5787
  %v5789 = vpop.f32.mrb[0].mxu0
  %5790 = vmatprep.mubr.f32.mxu0 0.0
  %5791 = vmatmul.mubr.f32.gmra.mrb[0].mxu0 %v5442
  %v5792 = vpop.f32.mrb[0].mxu0
  %v5793 = vadd.f32 %v5280, %v5792
  %v5794 = vpop.f32.mrb[0].mxu0
  %5795 = vmatprep.mubr.f32.mxu0 0.0
  %5796 = vmatmul.mubr.f32.gmra.mrb[0].mxu0 %v5444
  %v5797 = vpop.f32.mrb[0].mxu0
  %v5798 = vadd.f32 %v5285, %v5797
  %v5799 = vpop.f32.mrb[0].mxu0
  %5800 = vmatprep.mubr.f32.mxu0 0.0
  %5801 = vmatmul.mubr.f32.gmra.mrb[0].mxu0 %v5446
  %v5802 = vpop.f32.mrb[0].mxu0
  %v5803 = vadd.f32 %v5290, %v5802
  %v5804 = vpop.f32.mrb[0].mxu0
  %5805 = vmatprep.mubr.f32.mxu0 0.0
  %5806 = vmatmul.mubr.f32.gmra.mrb[0].mxu0 %v5448
  %v5807 = vpop.f32.mrb[0].mxu0
  %v5808 = vadd.f32 %v5295, %v5807
  %v5809 = vpop.f32.mrb[0].mxu0
  %5810 = vmatprep.mubr.f32.mxu0 0.0
  %5811 = vmatmul.mubr.f32.gmra.mrb[0].mxu0 %v5450
  %v5812 = vpop.f32.mrb[0].mxu0
  %v5813 = vadd.f32 %v5300, %v5812
  %v5814 = vpop.f32.mrb[0].mxu0
  %5815 = vmatprep.mubr.f32.mxu0 0.0
  %5816 = vmatmul.mubr.f32.gmra.mrb[0].mxu0 %v5452
  %v5817 = vpop.f32.mrb[0].mxu0
  %v5818 = vadd.f32 %v5305, %v5817
  %v5819 = vpop.f32.mrb[0].mxu0
  %5820 = vmatprep.mubr.f32.mxu0 0.0
  %5821 = vmatmul.mubr.f32.gmra.mrb[0].mxu0 %v5454
  %v5822 = vpop.f32.mrb[0].mxu0
  %v5823 = vadd.f32 %v5310, %v5822
  %v5824 = vpop.f32.mrb[0].mxu0
  %5825 = vmatprep.mubr.f32.mxu0 0.0
  %5826 = vmatmul.mubr.f32.gmra.mrb[0].mxu0 %v5456
  %v5827 = vpop.f32.mrb[0].mxu0
  %v5828 = vadd.f32 %v5315, %v5827
  %v5829 = vpop.f32.mrb[0].mxu0
  %5830 = vmatprep.mubr.f32.mxu0 0.0
  %5831 = vmatmul.mubr.f32.gmra.mrb[0].mxu0 %v5458
  %v5832 = vpop.f32.mrb[0].mxu0
  %v5833 = vadd.f32 %v5320, %v5832
  %v5834 = vpop.f32.mrb[0].mxu0
  %5835 = vmatprep.mubr.f32.mxu0 0.0
  %5836 = vmatmul.mubr.f32.gmra.mrb[0].mxu0 %v5460
  %v5837 = vpop.f32.mrb[0].mxu0
  %v5838 = vadd.f32 %v5325, %v5837
  %v5839 = vpop.f32.mrb[0].mxu0
  %5840 = vmatprep.mubr.f32.mxu0 0.0
  %5841 = vmatmul.mubr.f32.gmra.mrb[0].mxu0 %v5462
  %v5842 = vpop.f32.mrb[0].mxu0
  %v5843 = vadd.f32 %v5330, %v5842
  %v5844 = vpop.f32.mrb[0].mxu0
  %5845 = vmatprep.mubr.f32.mxu0 0.0
  %5846 = vmatmul.mubr.f32.gmra.mrb[0].mxu0 %v5464
  %v5847 = vpop.f32.mrb[0].mxu0
  %v5848 = vadd.f32 %v5335, %v5847
  %v5849 = vpop.f32.mrb[0].mxu0
  %5850 = vdwg.mxu0
  %v5851 = vrot.slane %v4466, 2
  %v5852 = vrot.slane %v4467, 2
  %v5853 = vsel %vm2642, %v5851, %v5852
  %v5854 = vrot.slane %v4468, 2
  %v5855 = vsel %vm2642, %v5852, %v5854
  %v5856 = vrot.slane %v4469, 2
  %v5857 = vrot.slane %v4470, 2
  %v5858 = vsel %vm2642, %v5856, %v5857
  %v5859 = vrot.slane %v4471, 2
  %v5860 = vsel %vm2642, %v5857, %v5859
  %v5861 = vrot.slane %v4472, 2
  %v5862 = vrot.slane %v4473, 2
  %v5863 = vsel %vm2642, %v5861, %v5862
  %v5864 = vrot.slane %v4474, 2
  %v5865 = vsel %vm2642, %v5862, %v5864
  %v5866 = vrot.slane %v4475, 2
  %v5867 = vrot.slane %v4476, 2
  %v5868 = vsel %vm2642, %v5866, %v5867
  %v5869 = vrot.slane %v4477, 2
  %v5870 = vsel %vm2642, %v5867, %v5869
  %v5871 = vrot.slane %v4478, 2
  %v5872 = vrot.slane %v4479, 2
  %v5873 = vsel %vm2642, %v5871, %v5872
  %v5874 = vrot.slane %v4480, 2
  %v5875 = vsel %vm2642, %v5872, %v5874
  %v5876 = vrot.slane %v4481, 2
  %v5877 = vrot.slane %v4482, 2
  %v5878 = vsel %vm2642, %v5876, %v5877
  %v5879 = vrot.slane %v4483, 2
  %v5880 = vsel %vm2642, %v5877, %v5879
  %v5881 = vrot.slane %v4484, 2
  %v5882 = vrot.slane %v4485, 2
  %v5883 = vsel %vm2642, %v5881, %v5882
  %v5884 = vrot.slane %v4486, 2
  %v5885 = vsel %vm2642, %v5882, %v5884
  %v5886 = vrot.slane %v4487, 2
  %v5887 = vrot.slane %v4488, 2
  %v5888 = vsel %vm2642, %v5886, %v5887
  %v5889 = vrot.slane %v4489, 2
  %v5890 = vsel %vm2642, %v5887, %v5889
  %v5891 = vrot.slane %v4490, 2
  %v5892 = vrot.slane %v4491, 2
  %v5893 = vsel %vm2642, %v5891, %v5892
  %v5894 = vrot.slane %v4492, 2
  %v5895 = vsel %vm2642, %v5892, %v5894
  %v5896 = vrot.slane %v4493, 2
  %v5897 = vrot.slane %v4494, 2
  %v5898 = vsel %vm2642, %v5896, %v5897
  %v5899 = vrot.slane %v4495, 2
  %v5900 = vsel %vm2642, %v5897, %v5899
  %v5901 = vrot.slane %v4496, 2
  %v5902 = vrot.slane %v4497, 2
  %v5903 = vsel %vm2642, %v5901, %v5902
  %v5904 = vrot.slane %v4498, 2
  %v5905 = vsel %vm2642, %v5902, %v5904
  %v5906 = vrot.slane %v4499, 2
  %v5907 = vrot.slane %v4500, 2
  %v5908 = vsel %vm2642, %v5906, %v5907
  %v5909 = vrot.slane %v4501, 2
  %v5910 = vsel %vm2642, %v5907, %v5909
  %v5911 = vrot.slane %v4502, 2
  %v5912 = vrot.slane %v4503, 2
  %v5913 = vsel %vm2642, %v5911, %v5912
  %v5914 = vrot.slane %v4504, 2
  %v5915 = vsel %vm2642, %v5912, %v5914
  %v5916 = vrot.slane %v4505, 2
  %v5917 = vrot.slane %v4506, 2
  %v5918 = vsel %vm2642, %v5916, %v5917
  %v5919 = vrot.slane %v4507, 2
  %v5920 = vsel %vm2642, %v5917, %v5919
  %v5921 = vrot.slane %v4508, 2
  %v5922 = vrot.slane %v4509, 2
  %v5923 = vsel %vm2642, %v5921, %v5922
  %v5924 = vrot.slane %v4510, 2
  %v5925 = vsel %vm2642, %v5922, %v5924
  %v5926 = vrot.slane %v4511, 2
  %v5927 = vrot.slane %v4512, 2
  %v5928 = vsel %vm2642, %v5926, %v5927
  %v5929 = vrot.slane %v4513, 2
  %v5930 = vsel %vm2642, %v5927, %v5929
  %v5931 = vrot.slane %v4514, 2
  %v5932 = vrot.slane %v4515, 2
  %v5933 = vsel %vm2642, %v5931, %v5932
  %v5934 = vrot.slane %v4516, 2
  %v5935 = vsel %vm2642, %v5932, %v5934
  %v5936 = vrot.slane %v4517, 2
  %v5937 = vrot.slane %v4518, 2
  %v5938 = vsel %vm2642, %v5936, %v5937
  %v5939 = vrot.slane %v4519, 2
  %v5940 = vsel %vm2642, %v5937, %v5939
  %v5941 = vrot.slane %v4520, 2
  %v5942 = vrot.slane %v4521, 2
  %v5943 = vsel %vm2642, %v5941, %v5942
  %v5944 = vrot.slane %v4522, 2
  %v5945 = vsel %vm2642, %v5942, %v5944
  %v5946 = vrot.slane %v4523, 2
  %v5947 = vrot.slane %v4524, 2
  %v5948 = vsel %vm2642, %v5946, %v5947
  %v5949 = vrot.slane %v4525, 2
  %v5950 = vsel %vm2642, %v5947, %v5949
  %v5951 = vrot.slane %v4526, 2
  %v5952 = vrot.slane %v4527, 2
  %v5953 = vsel %vm2642, %v5951, %v5952
  %v5954 = vrot.slane %v4528, 2
  %v5955 = vsel %vm2642, %v5952, %v5954
  %v5956 = vrot.slane %v4529, 2
  %v5957 = vrot.slane %v4530, 2
  %v5958 = vsel %vm2642, %v5956, %v5957
  %v5959 = vrot.slane %v4531, 2
  %v5960 = vsel %vm2642, %v5957, %v5959
  %v5961 = vrot.slane %v4532, 2
  %v5962 = vrot.slane %v4533, 2
  %v5963 = vsel %vm2642, %v5961, %v5962
  %v5964 = vrot.slane %v4534, 2
  %v5965 = vsel %vm2642, %v5962, %v5964
  %v5966 = vrot.slane %v4535, 2
  %v5967 = vrot.slane %v4536, 2
  %v5968 = vsel %vm2642, %v5966, %v5967
  %v5969 = vrot.slane %v4537, 2
  %v5970 = vsel %vm2642, %v5967, %v5969
  %v5971 = vrot.slane %v4538, 2
  %v5972 = vrot.slane %v4539, 2
  %v5973 = vsel %vm2642, %v5971, %v5972
  %v5974 = vrot.slane %v4540, 2
  %v5975 = vsel %vm2642, %v5972, %v5974
  %v5976 = vrot.slane %v4541, 2
  %v5977 = vrot.slane %v4542, 2
  %v5978 = vsel %vm2642, %v5976, %v5977
  %v5979 = vrot.slane %v4543, 2
  %v5980 = vsel %vm2642, %v5977, %v5979
  %v5981 = vrot.slane %v4544, 2
  %v5982 = vrot.slane %v4545, 2
  %v5983 = vsel %vm2642, %v5981, %v5982
  %v5984 = vrot.slane %v4546, 2
  %v5985 = vsel %vm2642, %v5982, %v5984
  %v5986 = vrot.slane %v4547, 2
  %v5987 = vrot.slane %v4548, 2
  %v5988 = vsel %vm2642, %v5986, %v5987
  %v5989 = vrot.slane %v4549, 2
  %v5990 = vsel %vm2642, %v5987, %v5989
  %v5991 = vrot.slane %v4550, 2
  %v5992 = vrot.slane %v4551, 2
  %v5993 = vsel %vm2642, %v5991, %v5992
  %v5994 = vrot.slane %v4552, 2
  %v5995 = vsel %vm2642, %v5992, %v5994
  %v5996 = vrot.slane %v4553, 2
  %v5997 = vrot.slane %v4554, 2
  %v5998 = vsel %vm2642, %v5996, %v5997
  %v5999 = vrot.slane %v4555, 2
  %v6000 = vsel %vm2642, %v5997, %v5999
  %v6001 = vrot.slane %v4556, 2
  %v6002 = vrot.slane %v4557, 2
  %v6003 = vsel %vm2642, %v6001, %v6002
  %v6004 = vrot.slane %v4558, 2
  %v6005 = vsel %vm2642, %v6002, %v6004
  %v6006 = vrot.slane %v4559, 2
  %v6007 = vrot.slane %v4560, 2
  %v6008 = vsel %vm2642, %v6006, %v6007
  %v6009 = vrot.slane %v4561, 2
  %v6010 = vsel %vm2642, %v6007, %v6009
  %s6011 = scalar_lea.vmem %s3, 48
  %v6012 = vld [vmem:[%s6011] sm:$0xff]
  %v6013 = vld [vmem:[%s6011 + $0x8] sm:$0xff]
  %v6014 = vld [vmem:[%s6011 + $0x10] sm:$0xff]
  %v6015 = vsel %vm1615, %v5853, 0
  %v6017 = vsel %vm1615, %v5855, 0
  %v6019 = vsel %vm1615, %v5858, 0
  %v6021 = vsel %vm1615, %v5860, 0
  %v6023 = vsel %vm1615, %v5863, 0
  %v6025 = vsel %vm1615, %v5865, 0
  %v6027 = vsel %vm1615, %v5868, 0
  %v6029 = vsel %vm1615, %v5870, 0
  %v6031 = vsel %vm1615, %v5873, 0
  %v6033 = vsel %vm1615, %v5875, 0
  %v6035 = vsel %vm1615, %v5878, 0
  %v6037 = vsel %vm1615, %v5880, 0
  %v6039 = vsel %vm1615, %v5883, 0
  %v6041 = vsel %vm1615, %v5885, 0
  %v6043 = vsel %vm1615, %v5888, 0
  %v6045 = vsel %vm1615, %v5890, 0
  %v6047 = vsel %vm1615, %v5893, 0
  %v6049 = vsel %vm1615, %v5895, 0
  %v6051 = vsel %vm1615, %v5898, 0
  %v6053 = vsel %vm1615, %v5900, 0
  %v6055 = vsel %vm1615, %v5903, 0
  %v6057 = vsel %vm1615, %v5905, 0
  %v6059 = vsel %vm1615, %v5908, 0
  %v6061 = vsel %vm1615, %v5910, 0
  %v6063 = vsel %vm1615, %v5913, 0
  %v6065 = vsel %vm1615, %v5915, 0
  %v6067 = vsel %vm1615, %v5918, 0
  %v6069 = vsel %vm1615, %v5920, 0
  %v6071 = vsel %vm1615, %v5923, 0
  %v6073 = vsel %vm1615, %v5925, 0
  %v6075 = vsel %vm1615, %v5928, 0
  %v6077 = vsel %vm1615, %v5930, 0
  %v6079 = vsel %vm1615, %v5933, 0
  %v6081 = vsel %vm1615, %v5935, 0
  %v6083 = vsel %vm1615, %v5938, 0
  %v6085 = vsel %vm1615, %v5940, 0
  %v6087 = vsel %vm1615, %v5943, 0
  %v6089 = vsel %vm1615, %v5945, 0
  %v6091 = vsel %vm1615, %v5948, 0
  %v6093 = vsel %vm1615, %v5950, 0
  %v6095 = vsel %vm1615, %v5953, 0
  %v6097 = vsel %vm1615, %v5955, 0
  %v6099 = vsel %vm1615, %v5958, 0
  %v6101 = vsel %vm1615, %v5960, 0
  %v6103 = vsel %vm1615, %v5963, 0
  %v6105 = vsel %vm1615, %v5965, 0
  %v6107 = vsel %vm1615, %v5968, 0
  %v6109 = vsel %vm1615, %v5970, 0
  %v6111 = vsel %vm1615, %v5973, 0
  %v6113 = vsel %vm1615, %v5975, 0
  %v6115 = vsel %vm1615, %v5978, 0
  %v6117 = vsel %vm1615, %v5980, 0
  %v6119 = vsel %vm1615, %v5983, 0
  %v6121 = vsel %vm1615, %v5985, 0
  %v6123 = vsel %vm1615, %v5988, 0
  %v6125 = vsel %vm1615, %v5990, 0
  %v6127 = vsel %vm1615, %v5993, 0
  %v6129 = vsel %vm1615, %v5995, 0
  %v6131 = vsel %vm1615, %v5998, 0
  %v6133 = vsel %vm1615, %v6000, 0
  %v6135 = vsel %vm1615, %v6003, 0
  %v6137 = vsel %vm1615, %v6005, 0
  %v6139 = vsel %vm1615, %v6008, 0
  %v6141 = vsel %vm1615, %v6010, 0
  %6143 = vmatprep.subr.mxu0 0.0
  %6144 = vmatpush1.msra.mxu0 %v6012
  %6145 = vmatprep.subr.mxu0 0.0
  %6146 = vmatpush1.msra.mxu0 %v6013
  %6147 = vmatprep.subr.mxu0 0.0
  %6148 = vmatpush1.msra.mxu0 %v6014
  %6149 = vmatprep.subr.mxu0 0.0
  %6150 = vmatpush1.msra.mxu0 0.0
  %6151 = vmatprep.subr.mxu0 0.0
  %6152 = vmatpush1.msra.mxu0 0.0
  %6153 = vmatprep.subr.mxu0 0.0
  %6154 = vmatpush1.msra.mxu0 0.0
  %6155 = vmatprep.subr.mxu0 0.0
  %6156 = vmatpush1.msra.mxu0 0.0
  %6157 = vmatprep.subr.mxu0 0.0
  %6158 = vmatpush1.msra.mxu0 0.0
  %6159 = vmatprep.subr.mxu0 0.0
  %6160 = vmatpush1.msra.mxu0 0.0
  %6161 = vmatprep.subr.mxu0 0.0
  %6162 = vmatpush1.msra.mxu0 0.0
  %6163 = vmatprep.subr.mxu0 0.0
  %6164 = vmatpush1.msra.mxu0 0.0
  %6165 = vmatprep.subr.mxu0 0.0
  %6166 = vmatpush1.msra.mxu0 0.0
  %6167 = vmatprep.subr.mxu0 0.0
  %6168 = vmatpush1.msra.mxu0 0.0
  %6169 = vmatprep.subr.mxu0 0.0
  %6170 = vmatpush1.msra.mxu0 0.0
  %6171 = vmatprep.subr.mxu0 0.0
  %6172 = vmatpush1.msra.mxu0 0.0
  %6173 = vmatprep.subr.mxu0 0.0
  %6174 = vmatpush1.msra.mxu0 0.0
  %6175 = vmatprep.subr.mxu0 0.0
  %6176 = vmatpush1.msra.mxu0 0.0
  %6177 = vmatprep.subr.mxu0 0.0
  %6178 = vmatpush1.msra.mxu0 0.0
  %6179 = vmatprep.subr.mxu0 0.0
  %6180 = vmatpush1.msra.mxu0 0.0
  %6181 = vmatprep.subr.mxu0 0.0
  %6182 = vmatpush1.msra.mxu0 0.0
  %6183 = vmatprep.subr.mxu0 0.0
  %6184 = vmatpush1.msra.mxu0 0.0
  %6185 = vmatprep.subr.mxu0 0.0
  %6186 = vmatpush1.msra.mxu0 0.0
  %6187 = vmatprep.subr.mxu0 0.0
  %6188 = vmatpush1.msra.mxu0 0.0
  %6189 = vmatprep.subr.mxu0 0.0
  %6190 = vmatpush1.msra.mxu0 0.0
  %6191 = vmatprep.subr.mxu0 0.0
  %6192 = vmatpush1.msra.mxu0 0.0
  %6193 = vmatprep.subr.mxu0 0.0
  %6194 = vmatpush1.msra.mxu0 0.0
  %6195 = vmatprep.subr.mxu0 0.0
  %6196 = vmatpush1.msra.mxu0 0.0
  %6197 = vmatprep.subr.mxu0 0.0
  %6198 = vmatpush1.msra.mxu0 0.0
  %6199 = vmatprep.subr.mxu0 0.0
  %6200 = vmatpush1.msra.mxu0 0.0
  %6201 = vmatprep.subr.mxu0 0.0
  %6202 = vmatpush1.msra.mxu0 0.0
  %6203 = vmatprep.subr.mxu0 0.0
  %6204 = vmatpush1.msra.mxu0 0.0
  %6205 = vmatprep.subr.mxu0 0.0
  %6206 = vmatpush1.msra.mxu0 0.0
  %6207 = vmatprep.mubr.f32.mxu0 0.0
  %6208 = vmatmul.mubr.f32.gmra.mrb[0].mxu0 %v6015
  %v6209 = vpop.f32.mrb[0].mxu0
  %v6210 = vadd.f32 0.0, %v6209
  %v6211 = vpop.f32.mrb[0].mxu0
  %6212 = vmatprep.mubr.f32.mxu0 0.0
  %6213 = vmatmul.mubr.f32.gmra.mrb[0].mxu0 %v6017
  %v6214 = vpop.f32.mrb[0].mxu0
  %v6215 = vadd.f32 0.0, %v6214
  %v6216 = vpop.f32.mrb[0].mxu0
  %6217 = vmatprep.mubr.f32.mxu0 0.0
  %6218 = vmatmul.mubr.f32.gmra.mrb[0].mxu0 %v6019
  %v6219 = vpop.f32.mrb[0].mxu0
  %v6220 = vadd.f32 0.0, %v6219
  %v6221 = vpop.f32.mrb[0].mxu0
  %6222 = vmatprep.mubr.f32.mxu0 0.0
  %6223 = vmatmul.mubr.f32.gmra.mrb[0].mxu0 %v6021
  %v6224 = vpop.f32.mrb[0].mxu0
  %v6225 = vadd.f32 0.0, %v6224
  %v6226 = vpop.f32.mrb[0].mxu0
  %6227 = vmatprep.mubr.f32.mxu0 0.0
  %6228 = vmatmul.mubr.f32.gmra.mrb[0].mxu0 %v6023
  %v6229 = vpop.f32.mrb[0].mxu0
  %v6230 = vadd.f32 0.0, %v6229
  %v6231 = vpop.f32.mrb[0].mxu0
  %6232 = vmatprep.mubr.f32.mxu0 0.0
  %6233 = vmatmul.mubr.f32.gmra.mrb[0].mxu0 %v6025
  %v6234 = vpop.f32.mrb[0].mxu0
  %v6235 = vadd.f32 0.0, %v6234
  %v6236 = vpop.f32.mrb[0].mxu0
  %6237 = vmatprep.mubr.f32.mxu0 0.0
  %6238 = vmatmul.mubr.f32.gmra.mrb[0].mxu0 %v6027
  %v6239 = vpop.f32.mrb[0].mxu0
  %v6240 = vadd.f32 0.0, %v6239
  %v6241 = vpop.f32.mrb[0].mxu0
  %6242 = vmatprep.mubr.f32.mxu0 0.0
  %6243 = vmatmul.mubr.f32.gmra.mrb[0].mxu0 %v6029
  %v6244 = vpop.f32.mrb[0].mxu0
  %v6245 = vadd.f32 0.0, %v6244
  %v6246 = vpop.f32.mrb[0].mxu0
  %6247 = vmatprep.mubr.f32.mxu0 0.0
  %6248 = vmatmul.mubr.f32.gmra.mrb[0].mxu0 %v6031
  %v6249 = vpop.f32.mrb[0].mxu0
  %v6250 = vadd.f32 0.0, %v6249
  %v6251 = vpop.f32.mrb[0].mxu0
  %6252 = vmatprep.mubr.f32.mxu0 0.0
  %6253 = vmatmul.mubr.f32.gmra.mrb[0].mxu0 %v6033
  %v6254 = vpop.f32.mrb[0].mxu0
  %v6255 = vadd.f32 0.0, %v6254
  %v6256 = vpop.f32.mrb[0].mxu0
  %6257 = vmatprep.mubr.f32.mxu0 0.0
  %6258 = vmatmul.mubr.f32.gmra.mrb[0].mxu0 %v6035
  %v6259 = vpop.f32.mrb[0].mxu0
  %v6260 = vadd.f32 0.0, %v6259
  %v6261 = vpop.f32.mrb[0].mxu0
  %6262 = vmatprep.mubr.f32.mxu0 0.0
  %6263 = vmatmul.mubr.f32.gmra.mrb[0].mxu0 %v6037
  %v6264 = vpop.f32.mrb[0].mxu0
  %v6265 = vadd.f32 0.0, %v6264
  %v6266 = vpop.f32.mrb[0].mxu0
  %6267 = vmatprep.mubr.f32.mxu0 0.0
  %6268 = vmatmul.mubr.f32.gmra.mrb[0].mxu0 %v6039
  %v6269 = vpop.f32.mrb[0].mxu0
  %v6270 = vadd.f32 0.0, %v6269
  %v6271 = vpop.f32.mrb[0].mxu0
  %6272 = vmatprep.mubr.f32.mxu0 0.0
  %6273 = vmatmul.mubr.f32.gmra.mrb[0].mxu0 %v6041
  %v6274 = vpop.f32.mrb[0].mxu0
  %v6275 = vadd.f32 0.0, %v6274
  %v6276 = vpop.f32.mrb[0].mxu0
  %6277 = vmatprep.mubr.f32.mxu0 0.0
  %6278 = vmatmul.mubr.f32.gmra.mrb[0].mxu0 %v6043
  %v6279 = vpop.f32.mrb[0].mxu0
  %v6280 = vadd.f32 0.0, %v6279
  %v6281 = vpop.f32.mrb[0].mxu0
  %6282 = vmatprep.mubr.f32.mxu0 0.0
  %6283 = vmatmul.mubr.f32.gmra.mrb[0].mxu0 %v6045
  %v6284 = vpop.f32.mrb[0].mxu0
  %v6285 = vadd.f32 0.0, %v6284
  %v6286 = vpop.f32.mrb[0].mxu0
  %6287 = vmatprep.mubr.f32.mxu0 0.0
  %6288 = vmatmul.mubr.f32.gmra.mrb[0].mxu0 %v6047
  %v6289 = vpop.f32.mrb[0].mxu0
  %v6290 = vadd.f32 0.0, %v6289
  %v6291 = vpop.f32.mrb[0].mxu0
  %6292 = vmatprep.mubr.f32.mxu0 0.0
  %6293 = vmatmul.mubr.f32.gmra.mrb[0].mxu0 %v6049
  %v6294 = vpop.f32.mrb[0].mxu0
  %v6295 = vadd.f32 0.0, %v6294
  %v6296 = vpop.f32.mrb[0].mxu0
  %6297 = vmatprep.mubr.f32.mxu0 0.0
  %6298 = vmatmul.mubr.f32.gmra.mrb[0].mxu0 %v6051
  %v6299 = vpop.f32.mrb[0].mxu0
  %v6300 = vadd.f32 0.0, %v6299
  %v6301 = vpop.f32.mrb[0].mxu0
  %6302 = vmatprep.mubr.f32.mxu0 0.0
  %6303 = vmatmul.mubr.f32.gmra.mrb[0].mxu0 %v6053
  %v6304 = vpop.f32.mrb[0].mxu0
  %v6305 = vadd.f32 0.0, %v6304
  %v6306 = vpop.f32.mrb[0].mxu0
  %6307 = vmatprep.mubr.f32.mxu0 0.0
  %6308 = vmatmul.mubr.f32.gmra.mrb[0].mxu0 %v6055
  %v6309 = vpop.f32.mrb[0].mxu0
  %v6310 = vadd.f32 0.0, %v6309
  %v6311 = vpop.f32.mrb[0].mxu0
  %6312 = vmatprep.mubr.f32.mxu0 0.0
  %6313 = vmatmul.mubr.f32.gmra.mrb[0].mxu0 %v6057
  %v6314 = vpop.f32.mrb[0].mxu0
  %v6315 = vadd.f32 0.0, %v6314
  %v6316 = vpop.f32.mrb[0].mxu0
  %6317 = vmatprep.mubr.f32.mxu0 0.0
  %6318 = vmatmul.mubr.f32.gmra.mrb[0].mxu0 %v6059
  %v6319 = vpop.f32.mrb[0].mxu0
  %v6320 = vadd.f32 0.0, %v6319
  %v6321 = vpop.f32.mrb[0].mxu0
  %6322 = vmatprep.mubr.f32.mxu0 0.0
  %6323 = vmatmul.mubr.f32.gmra.mrb[0].mxu0 %v6061
  %v6324 = vpop.f32.mrb[0].mxu0
  %v6325 = vadd.f32 0.0, %v6324
  %v6326 = vpop.f32.mrb[0].mxu0
  %6327 = vmatprep.mubr.f32.mxu0 0.0
  %6328 = vmatmul.mubr.f32.gmra.mrb[0].mxu0 %v6063
  %v6329 = vpop.f32.mrb[0].mxu0
  %v6330 = vadd.f32 0.0, %v6329
  %v6331 = vpop.f32.mrb[0].mxu0
  %6332 = vmatprep.mubr.f32.mxu0 0.0
  %6333 = vmatmul.mubr.f32.gmra.mrb[0].mxu0 %v6065
  %v6334 = vpop.f32.mrb[0].mxu0
  %v6335 = vadd.f32 0.0, %v6334
  %v6336 = vpop.f32.mrb[0].mxu0
  %6337 = vmatprep.mubr.f32.mxu0 0.0
  %6338 = vmatmul.mubr.f32.gmra.mrb[0].mxu0 %v6067
  %v6339 = vpop.f32.mrb[0].mxu0
  %v6340 = vadd.f32 0.0, %v6339
  %v6341 = vpop.f32.mrb[0].mxu0
  %6342 = vmatprep.mubr.f32.mxu0 0.0
  %6343 = vmatmul.mubr.f32.gmra.mrb[0].mxu0 %v6069
  %v6344 = vpop.f32.mrb[0].mxu0
  %v6345 = vadd.f32 0.0, %v6344
  %v6346 = vpop.f32.mrb[0].mxu0
  %6347 = vmatprep.mubr.f32.mxu0 0.0
  %6348 = vmatmul.mubr.f32.gmra.mrb[0].mxu0 %v6071
  %v6349 = vpop.f32.mrb[0].mxu0
  %v6350 = vadd.f32 0.0, %v6349
  %v6351 = vpop.f32.mrb[0].mxu0
  %6352 = vmatprep.mubr.f32.mxu0 0.0
  %6353 = vmatmul.mubr.f32.gmra.mrb[0].mxu0 %v6073
  %v6354 = vpop.f32.mrb[0].mxu0
  %v6355 = vadd.f32 0.0, %v6354
  %v6356 = vpop.f32.mrb[0].mxu0
  %6357 = vmatprep.mubr.f32.mxu0 0.0
  %6358 = vmatmul.mubr.f32.gmra.mrb[0].mxu0 %v6075
  %v6359 = vpop.f32.mrb[0].mxu0
  %v6360 = vadd.f32 0.0, %v6359
  %v6361 = vpop.f32.mrb[0].mxu0
  %6362 = vmatprep.mubr.f32.mxu0 0.0
  %6363 = vmatmul.mubr.f32.gmra.mrb[0].mxu0 %v6077
  %v6364 = vpop.f32.mrb[0].mxu0
  %v6365 = vadd.f32 0.0, %v6364
  %v6366 = vpop.f32.mrb[0].mxu0
  %6367 = vmatprep.mubr.f32.mxu0 0.0
  %6368 = vmatmul.mubr.f32.gmra.mrb[0].mxu0 %v6079
  %v6369 = vpop.f32.mrb[0].mxu0
  %v6370 = vadd.f32 0.0, %v6369
  %v6371 = vpop.f32.mrb[0].mxu0
  %6372 = vmatprep.mubr.f32.mxu0 0.0
  %6373 = vmatmul.mubr.f32.gmra.mrb[0].mxu0 %v6081
  %v6374 = vpop.f32.mrb[0].mxu0
  %v6375 = vadd.f32 0.0, %v6374
  %v6376 = vpop.f32.mrb[0].mxu0
  %6377 = vmatprep.mubr.f32.mxu0 0.0
  %6378 = vmatmul.mubr.f32.gmra.mrb[0].mxu0 %v6083
  %v6379 = vpop.f32.mrb[0].mxu0
  %v6380 = vadd.f32 0.0, %v6379
  %v6381 = vpop.f32.mrb[0].mxu0
  %6382 = vmatprep.mubr.f32.mxu0 0.0
  %6383 = vmatmul.mubr.f32.gmra.mrb[0].mxu0 %v6085
  %v6384 = vpop.f32.mrb[0].mxu0
  %v6385 = vadd.f32 0.0, %v6384
  %v6386 = vpop.f32.mrb[0].mxu0
  %6387 = vmatprep.mubr.f32.mxu0 0.0
  %6388 = vmatmul.mubr.f32.gmra.mrb[0].mxu0 %v6087
  %v6389 = vpop.f32.mrb[0].mxu0
  %v6390 = vadd.f32 0.0, %v6389
  %v6391 = vpop.f32.mrb[0].mxu0
  %6392 = vmatprep.mubr.f32.mxu0 0.0
  %6393 = vmatmul.mubr.f32.gmra.mrb[0].mxu0 %v6089
  %v6394 = vpop.f32.mrb[0].mxu0
  %v6395 = vadd.f32 0.0, %v6394
  %v6396 = vpop.f32.mrb[0].mxu0
  %6397 = vmatprep.mubr.f32.mxu0 0.0
  %6398 = vmatmul.mubr.f32.gmra.mrb[0].mxu0 %v6091
  %v6399 = vpop.f32.mrb[0].mxu0
  %v6400 = vadd.f32 0.0, %v6399
  %v6401 = vpop.f32.mrb[0].mxu0
  %6402 = vmatprep.mubr.f32.mxu0 0.0
  %6403 = vmatmul.mubr.f32.gmra.mrb[0].mxu0 %v6093
  %v6404 = vpop.f32.mrb[0].mxu0
  %v6405 = vadd.f32 0.0, %v6404
  %v6406 = vpop.f32.mrb[0].mxu0
  %6407 = vmatprep.mubr.f32.mxu0 0.0
  %6408 = vmatmul.mubr.f32.gmra.mrb[0].mxu0 %v6095
  %v6409 = vpop.f32.mrb[0].mxu0
  %v6410 = vadd.f32 0.0, %v6409
  %v6411 = vpop.f32.mrb[0].mxu0
  %6412 = vmatprep.mubr.f32.mxu0 0.0
  %6413 = vmatmul.mubr.f32.gmra.mrb[0].mxu0 %v6097
  %v6414 = vpop.f32.mrb[0].mxu0
  %v6415 = vadd.f32 0.0, %v6414
  %v6416 = vpop.f32.mrb[0].mxu0
  %6417 = vmatprep.mubr.f32.mxu0 0.0
  %6418 = vmatmul.mubr.f32.gmra.mrb[0].mxu0 %v6099
  %v6419 = vpop.f32.mrb[0].mxu0
  %v6420 = vadd.f32 0.0, %v6419
  %v6421 = vpop.f32.mrb[0].mxu0
  %6422 = vmatprep.mubr.f32.mxu0 0.0
  %6423 = vmatmul.mubr.f32.gmra.mrb[0].mxu0 %v6101
  %v6424 = vpop.f32.mrb[0].mxu0
  %v6425 = vadd.f32 0.0, %v6424
  %v6426 = vpop.f32.mrb[0].mxu0
  %6427 = vmatprep.mubr.f32.mxu0 0.0
  %6428 = vmatmul.mubr.f32.gmra.mrb[0].mxu0 %v6103
  %v6429 = vpop.f32.mrb[0].mxu0
  %v6430 = vadd.f32 0.0, %v6429
  %v6431 = vpop.f32.mrb[0].mxu0
  %6432 = vmatprep.mubr.f32.mxu0 0.0
  %6433 = vmatmul.mubr.f32.gmra.mrb[0].mxu0 %v6105
  %v6434 = vpop.f32.mrb[0].mxu0
  %v6435 = vadd.f32 0.0, %v6434
  %v6436 = vpop.f32.mrb[0].mxu0
  %6437 = vmatprep.mubr.f32.mxu0 0.0
  %6438 = vmatmul.mubr.f32.gmra.mrb[0].mxu0 %v6107
  %v6439 = vpop.f32.mrb[0].mxu0
  %v6440 = vadd.f32 0.0, %v6439
  %v6441 = vpop.f32.mrb[0].mxu0
  %6442 = vmatprep.mubr.f32.mxu0 0.0
  %6443 = vmatmul.mubr.f32.gmra.mrb[0].mxu0 %v6109
  %v6444 = vpop.f32.mrb[0].mxu0
  %v6445 = vadd.f32 0.0, %v6444
  %v6446 = vpop.f32.mrb[0].mxu0
  %6447 = vmatprep.mubr.f32.mxu0 0.0
  %6448 = vmatmul.mubr.f32.gmra.mrb[0].mxu0 %v6111
  %v6449 = vpop.f32.mrb[0].mxu0
  %v6450 = vadd.f32 0.0, %v6449
  %v6451 = vpop.f32.mrb[0].mxu0
  %6452 = vmatprep.mubr.f32.mxu0 0.0
  %6453 = vmatmul.mubr.f32.gmra.mrb[0].mxu0 %v6113
  %v6454 = vpop.f32.mrb[0].mxu0
  %v6455 = vadd.f32 0.0, %v6454
  %v6456 = vpop.f32.mrb[0].mxu0
  %6457 = vmatprep.mubr.f32.mxu0 0.0
  %6458 = vmatmul.mubr.f32.gmra.mrb[0].mxu0 %v6115
  %v6459 = vpop.f32.mrb[0].mxu0
  %v6460 = vadd.f32 0.0, %v6459
  %v6461 = vpop.f32.mrb[0].mxu0
  %6462 = vmatprep.mubr.f32.mxu0 0.0
  %6463 = vmatmul.mubr.f32.gmra.mrb[0].mxu0 %v6117
  %v6464 = vpop.f32.mrb[0].mxu0
  %v6465 = vadd.f32 0.0, %v6464
  %v6466 = vpop.f32.mrb[0].mxu0
  %6467 = vmatprep.mubr.f32.mxu0 0.0
  %6468 = vmatmul.mubr.f32.gmra.mrb[0].mxu0 %v6119
  %v6469 = vpop.f32.mrb[0].mxu0
  %v6470 = vadd.f32 0.0, %v6469
  %v6471 = vpop.f32.mrb[0].mxu0
  %6472 = vmatprep.mubr.f32.mxu0 0.0
  %6473 = vmatmul.mubr.f32.gmra.mrb[0].mxu0 %v6121
  %v6474 = vpop.f32.mrb[0].mxu0
  %v6475 = vadd.f32 0.0, %v6474
  %v6476 = vpop.f32.mrb[0].mxu0
  %6477 = vmatprep.mubr.f32.mxu0 0.0
  %6478 = vmatmul.mubr.f32.gmra.mrb[0].mxu0 %v6123
  %v6479 = vpop.f32.mrb[0].mxu0
  %v6480 = vadd.f32 0.0, %v6479
  %v6481 = vpop.f32.mrb[0].mxu0
  %6482 = vmatprep.mubr.f32.mxu0 0.0
  %6483 = vmatmul.mubr.f32.gmra.mrb[0].mxu0 %v6125
  %v6484 = vpop.f32.mrb[0].mxu0
  %v6485 = vadd.f32 0.0, %v6484
  %v6486 = vpop.f32.mrb[0].mxu0
  %6487 = vmatprep.mubr.f32.mxu0 0.0
  %6488 = vmatmul.mubr.f32.gmra.mrb[0].mxu0 %v6127
  %v6489 = vpop.f32.mrb[0].mxu0
  %v6490 = vadd.f32 0.0, %v6489
  %v6491 = vpop.f32.mrb[0].mxu0
  %6492 = vmatprep.mubr.f32.mxu0 0.0
  %6493 = vmatmul.mubr.f32.gmra.mrb[0].mxu0 %v6129
  %v6494 = vpop.f32.mrb[0].mxu0
  %v6495 = vadd.f32 0.0, %v6494
  %v6496 = vpop.f32.mrb[0].mxu0
  %6497 = vmatprep.mubr.f32.mxu0 0.0
  %6498 = vmatmul.mubr.f32.gmra.mrb[0].mxu0 %v6131
  %v6499 = vpop.f32.mrb[0].mxu0
  %v6500 = vadd.f32 0.0, %v6499
  %v6501 = vpop.f32.mrb[0].mxu0
  %6502 = vmatprep.mubr.f32.mxu0 0.0
  %6503 = vmatmul.mubr.f32.gmra.mrb[0].mxu0 %v6133
  %v6504 = vpop.f32.mrb[0].mxu0
  %v6505 = vadd.f32 0.0, %v6504
  %v6506 = vpop.f32.mrb[0].mxu0
  %6507 = vmatprep.mubr.f32.mxu0 0.0
  %6508 = vmatmul.mubr.f32.gmra.mrb[0].mxu0 %v6135
  %v6509 = vpop.f32.mrb[0].mxu0
  %v6510 = vadd.f32 0.0, %v6509
  %v6511 = vpop.f32.mrb[0].mxu0
  %6512 = vmatprep.mubr.f32.mxu0 0.0
  %6513 = vmatmul.mubr.f32.gmra.mrb[0].mxu0 %v6137
  %v6514 = vpop.f32.mrb[0].mxu0
  %v6515 = vadd.f32 0.0, %v6514
  %v6516 = vpop.f32.mrb[0].mxu0
  %6517 = vmatprep.mubr.f32.mxu0 0.0
  %6518 = vmatmul.mubr.f32.gmra.mrb[0].mxu0 %v6139
  %v6519 = vpop.f32.mrb[0].mxu0
  %v6520 = vadd.f32 0.0, %v6519
  %v6521 = vpop.f32.mrb[0].mxu0
  %6522 = vmatprep.mubr.f32.mxu0 0.0
  %6523 = vmatmul.mubr.f32.gmra.mrb[0].mxu0 %v6141
  %v6524 = vpop.f32.mrb[0].mxu0
  %v6525 = vadd.f32 0.0, %v6524
  %v6526 = vpop.f32.mrb[0].mxu0
  %6527 = vdwg.mxu0
  %v6528 = vadd.f32 %v5533, %v6210
  %v6529 = vadd.f32 %v5538, %v6215
  %v6530 = vadd.f32 %v5543, %v6220
  %v6531 = vadd.f32 %v5548, %v6225
  %v6532 = vadd.f32 %v5553, %v6230
  %v6533 = vadd.f32 %v5558, %v6235
  %v6534 = vadd.f32 %v5563, %v6240
  %v6535 = vadd.f32 %v5568, %v6245
  %v6536 = vadd.f32 %v5573, %v6250
  %v6537 = vadd.f32 %v5578, %v6255
  %v6538 = vadd.f32 %v5583, %v6260
  %v6539 = vadd.f32 %v5588, %v6265
  %v6540 = vadd.f32 %v5593, %v6270
  %v6541 = vadd.f32 %v5598, %v6275
  %v6542 = vadd.f32 %v5603, %v6280
  %v6543 = vadd.f32 %v5608, %v6285
  %v6544 = vadd.f32 %v5613, %v6290
  %v6545 = vadd.f32 %v5618, %v6295
  %v6546 = vadd.f32 %v5623, %v6300
  %v6547 = vadd.f32 %v5628, %v6305
  %v6548 = vadd.f32 %v5633, %v6310
  %v6549 = vadd.f32 %v5638, %v6315
  %v6550 = vadd.f32 %v5643, %v6320
  %v6551 = vadd.f32 %v5648, %v6325
  %v6552 = vadd.f32 %v5653, %v6330
  %v6553 = vadd.f32 %v5658, %v6335
  %v6554 = vadd.f32 %v5663, %v6340
  %v6555 = vadd.f32 %v5668, %v6345
  %v6556 = vadd.f32 %v5673, %v6350
  %v6557 = vadd.f32 %v5678, %v6355
  %v6558 = vadd.f32 %v5683, %v6360
  %v6559 = vadd.f32 %v5688, %v6365
  %v6560 = vadd.f32 %v5693, %v6370
  %v6561 = vadd.f32 %v5698, %v6375
  %v6562 = vadd.f32 %v5703, %v6380
  %v6563 = vadd.f32 %v5708, %v6385
  %v6564 = vadd.f32 %v5713, %v6390
  %v6565 = vadd.f32 %v5718, %v6395
  %v6566 = vadd.f32 %v5723, %v6400
  %v6567 = vadd.f32 %v5728, %v6405
  %v6568 = vadd.f32 %v5733, %v6410
  %v6569 = vadd.f32 %v5738, %v6415
  %v6570 = vadd.f32 %v5743, %v6420
  %v6571 = vadd.f32 %v5748, %v6425
  %v6572 = vadd.f32 %v5753, %v6430
  %v6573 = vadd.f32 %v5758, %v6435
  %v6574 = vadd.f32 %v5763, %v6440
  %v6575 = vadd.f32 %v5768, %v6445
  %v6576 = vadd.f32 %v5773, %v6450
  %v6577 = vadd.f32 %v5778, %v6455
  %v6578 = vadd.f32 %v5783, %v6460
  %v6579 = vadd.f32 %v5788, %v6465
  %v6580 = vadd.f32 %v5793, %v6470
  %v6581 = vadd.f32 %v5798, %v6475
  %v6582 = vadd.f32 %v5803, %v6480
  %v6583 = vadd.f32 %v5808, %v6485
  %v6584 = vadd.f32 %v5813, %v6490
  %v6585 = vadd.f32 %v5818, %v6495
  %v6586 = vadd.f32 %v5823, %v6500
  %v6587 = vadd.f32 %v5828, %v6505
  %v6588 = vadd.f32 %v5833, %v6510
  %v6589 = vadd.f32 %v5838, %v6515
  %v6590 = vadd.f32 %v5843, %v6520
  %v6591 = vadd.f32 %v5848, %v6525
  %v6592 = vld [vmem:[%s4] sm:$0x1]
  %v6594 = vlaneseq
  %v6595 = vshrl.u32 %v6594, 7
  %v6596 = vsub.s32 0, %v6595
  %v6597 = vrot.slane %v6592, %v6596
  %v6599 = vadd.f32 %v6528, %v6597
  %v6600 = vadd.f32 %v6529, %v6597
  %v6601 = vadd.f32 %v6530, %v6597
  %v6602 = vadd.f32 %v6531, %v6597
  %v6603 = vadd.f32 %v6532, %v6597
  %v6604 = vadd.f32 %v6533, %v6597
  %v6605 = vadd.f32 %v6534, %v6597
  %v6606 = vadd.f32 %v6535, %v6597
  %v6607 = vadd.f32 %v6536, %v6597
  %v6608 = vadd.f32 %v6537, %v6597
  %v6609 = vadd.f32 %v6538, %v6597
  %v6610 = vadd.f32 %v6539, %v6597
  %v6611 = vadd.f32 %v6540, %v6597
  %v6612 = vadd.f32 %v6541, %v6597
  %v6613 = vadd.f32 %v6542, %v6597
  %v6614 = vadd.f32 %v6543, %v6597
  %v6615 = vadd.f32 %v6544, %v6597
  %v6616 = vadd.f32 %v6545, %v6597
  %v6617 = vadd.f32 %v6546, %v6597
  %v6618 = vadd.f32 %v6547, %v6597
  %v6619 = vadd.f32 %v6548, %v6597
  %v6620 = vadd.f32 %v6549, %v6597
  %v6621 = vadd.f32 %v6550, %v6597
  %v6622 = vadd.f32 %v6551, %v6597
  %v6623 = vadd.f32 %v6552, %v6597
  %v6624 = vadd.f32 %v6553, %v6597
  %v6625 = vadd.f32 %v6554, %v6597
  %v6626 = vadd.f32 %v6555, %v6597
  %v6627 = vadd.f32 %v6556, %v6597
  %v6628 = vadd.f32 %v6557, %v6597
  %v6629 = vadd.f32 %v6558, %v6597
  %v6630 = vadd.f32 %v6559, %v6597
  %v6631 = vadd.f32 %v6560, %v6597
  %v6632 = vadd.f32 %v6561, %v6597
  %v6633 = vadd.f32 %v6562, %v6597
  %v6634 = vadd.f32 %v6563, %v6597
  %v6635 = vadd.f32 %v6564, %v6597
  %v6636 = vadd.f32 %v6565, %v6597
  %v6637 = vadd.f32 %v6566, %v6597
  %v6638 = vadd.f32 %v6567, %v6597
  %v6639 = vadd.f32 %v6568, %v6597
  %v6640 = vadd.f32 %v6569, %v6597
  %v6641 = vadd.f32 %v6570, %v6597
  %v6642 = vadd.f32 %v6571, %v6597
  %v6643 = vadd.f32 %v6572, %v6597
  %v6644 = vadd.f32 %v6573, %v6597
  %v6645 = vadd.f32 %v6574, %v6597
  %v6646 = vadd.f32 %v6575, %v6597
  %v6647 = vadd.f32 %v6576, %v6597
  %v6648 = vadd.f32 %v6577, %v6597
  %v6649 = vadd.f32 %v6578, %v6597
  %v6650 = vadd.f32 %v6579, %v6597
  %v6651 = vadd.f32 %v6580, %v6597
  %v6652 = vadd.f32 %v6581, %v6597
  %v6653 = vadd.f32 %v6582, %v6597
  %v6654 = vadd.f32 %v6583, %v6597
  %v6655 = vadd.f32 %v6584, %v6597
  %v6656 = vadd.f32 %v6585, %v6597
  %v6657 = vadd.f32 %v6586, %v6597
  %v6658 = vadd.f32 %v6587, %v6597
  %v6659 = vadd.f32 %v6588, %v6597
  %v6660 = vadd.f32 %v6589, %v6597
  %v6661 = vadd.f32 %v6590, %v6597
  %v6662 = vadd.f32 %v6591, %v6597
  %v6663 = vmax.f32 %v6599, 0.0
  %v6664 = vmax.f32 %v6600, 0.0
  %v6665 = vmax.f32 %v6601, 0.0
  %v6666 = vmax.f32 %v6602, 0.0
  %v6667 = vmax.f32 %v6603, 0.0
  %v6668 = vmax.f32 %v6604, 0.0
  %v6669 = vmax.f32 %v6605, 0.0
  %v6670 = vmax.f32 %v6606, 0.0
  %v6671 = vmax.f32 %v6607, 0.0
  %v6672 = vmax.f32 %v6608, 0.0
  %v6673 = vmax.f32 %v6609, 0.0
  %v6674 = vmax.f32 %v6610, 0.0
  %v6675 = vmax.f32 %v6611, 0.0
  %v6676 = vmax.f32 %v6612, 0.0
  %v6677 = vmax.f32 %v6613, 0.0
  %v6678 = vmax.f32 %v6614, 0.0
  %v6679 = vmax.f32 %v6615, 0.0
  %v6680 = vmax.f32 %v6616, 0.0
  %v6681 = vmax.f32 %v6617, 0.0
  %v6682 = vmax.f32 %v6618, 0.0
  %v6683 = vmax.f32 %v6619, 0.0
  %v6684 = vmax.f32 %v6620, 0.0
  %v6685 = vmax.f32 %v6621, 0.0
  %v6686 = vmax.f32 %v6622, 0.0
  %v6687 = vmax.f32 %v6623, 0.0
  %v6688 = vmax.f32 %v6624, 0.0
  %v6689 = vmax.f32 %v6625, 0.0
  %v6690 = vmax.f32 %v6626, 0.0
  %v6691 = vmax.f32 %v6627, 0.0
  %v6692 = vmax.f32 %v6628, 0.0
  %v6693 = vmax.f32 %v6629, 0.0
  %v6694 = vmax.f32 %v6630, 0.0
  %v6695 = vmax.f32 %v6631, 0.0
  %v6696 = vmax.f32 %v6632, 0.0
  %v6697 = vmax.f32 %v6633, 0.0
  %v6698 = vmax.f32 %v6634, 0.0
  %v6699 = vmax.f32 %v6635, 0.0
  %v6700 = vmax.f32 %v6636, 0.0
  %v6701 = vmax.f32 %v6637, 0.0
  %v6702 = vmax.f32 %v6638, 0.0
  %v6703 = vmax.f32 %v6639, 0.0
  %v6704 = vmax.f32 %v6640, 0.0
  %v6705 = vmax.f32 %v6641, 0.0
  %v6706 = vmax.f32 %v6642, 0.0
  %v6707 = vmax.f32 %v6643, 0.0
  %v6708 = vmax.f32 %v6644, 0.0
  %v6709 = vmax.f32 %v6645, 0.0
  %v6710 = vmax.f32 %v6646, 0.0
  %v6711 = vmax.f32 %v6647, 0.0
  %v6712 = vmax.f32 %v6648, 0.0
  %v6713 = vmax.f32 %v6649, 0.0
  %v6714 = vmax.f32 %v6650, 0.0
  %v6715 = vmax.f32 %v6651, 0.0
  %v6716 = vmax.f32 %v6652, 0.0
  %v6717 = vmax.f32 %v6653, 0.0
  %v6718 = vmax.f32 %v6654, 0.0
  %v6719 = vmax.f32 %v6655, 0.0
  %v6720 = vmax.f32 %v6656, 0.0
  %v6721 = vmax.f32 %v6657, 0.0
  %v6722 = vmax.f32 %v6658, 0.0
  %v6723 = vmax.f32 %v6659, 0.0
  %v6724 = vmax.f32 %v6660, 0.0
  %v6725 = vmax.f32 %v6661, 0.0
  %v6726 = vmax.f32 %v6662, 0.0
  %6727 = vst [vmem:[%s5] sm:$0xff] %v6663
  %6728 = vst [vmem:[%s5 + $0x8] sm:$0xff] %v6664
  %6729 = vst [vmem:[%s5 + $0x10] sm:$0xff] %v6665
  %6730 = vst [vmem:[%s5 + $0x18] sm:$0xff] %v6666
  %6731 = vst [vmem:[%s5 + $0x20] sm:$0xff] %v6667
  %6732 = vst [vmem:[%s5 + $0x28] sm:$0xff] %v6668
  %6733 = vst [vmem:[%s5 + $0x30] sm:$0xff] %v6669
  %6734 = vst [vmem:[%s5 + $0x38] sm:$0xff] %v6670
  %6735 = vst [vmem:[%s5 + $0x40] sm:$0xff] %v6671
  %6736 = vst [vmem:[%s5 + $0x48] sm:$0xff] %v6672
  %6737 = vst [vmem:[%s5 + $0x50] sm:$0xff] %v6673
  %6738 = vst [vmem:[%s5 + $0x58] sm:$0xff] %v6674
  %6739 = vst [vmem:[%s5 + $0x60] sm:$0xff] %v6675
  %6740 = vst [vmem:[%s5 + $0x68] sm:$0xff] %v6676
  %6741 = vst [vmem:[%s5 + $0x70] sm:$0xff] %v6677
  %6742 = vst [vmem:[%s5 + $0x78] sm:$0xff] %v6678
  %6743 = vst [vmem:[%s5 + $0x80] sm:$0xff] %v6679
  %6744 = vst [vmem:[%s5 + $0x88] sm:$0xff] %v6680
  %6745 = vst [vmem:[%s5 + $0x90] sm:$0xff] %v6681
  %6746 = vst [vmem:[%s5 + $0x98] sm:$0xff] %v6682
  %6747 = vst [vmem:[%s5 + $0xa0] sm:$0xff] %v6683
  %6748 = vst [vmem:[%s5 + $0xa8] sm:$0xff] %v6684
  %6749 = vst [vmem:[%s5 + $0xb0] sm:$0xff] %v6685
  %6750 = vst [vmem:[%s5 + $0xb8] sm:$0xff] %v6686
  %6751 = vst [vmem:[%s5 + $0xc0] sm:$0xff] %v6687
  %6752 = vst [vmem:[%s5 + $0xc8] sm:$0xff] %v6688
  %6753 = vst [vmem:[%s5 + $0xd0] sm:$0xff] %v6689
  %6754 = vst [vmem:[%s5 + $0xd8] sm:$0xff] %v6690
  %6755 = vst [vmem:[%s5 + $0xe0] sm:$0xff] %v6691
  %6756 = vst [vmem:[%s5 + $0xe8] sm:$0xff] %v6692
  %6757 = vst [vmem:[%s5 + $0xf0] sm:$0xff] %v6693
  %6758 = vst [vmem:[%s5 + $0xf8] sm:$0xff] %v6694
  %6759 = vst [vmem:[%s5 + $0x100] sm:$0xff] %v6695
  %6760 = vst [vmem:[%s5 + $0x108] sm:$0xff] %v6696
  %6761 = vst [vmem:[%s5 + $0x110] sm:$0xff] %v6697
  %6762 = vst [vmem:[%s5 + $0x118] sm:$0xff] %v6698
  %6763 = vst [vmem:[%s5 + $0x120] sm:$0xff] %v6699
  %6764 = vst [vmem:[%s5 + $0x128] sm:$0xff] %v6700
  %6765 = vst [vmem:[%s5 + $0x130] sm:$0xff] %v6701
  %6766 = vst [vmem:[%s5 + $0x138] sm:$0xff] %v6702
  %6767 = vst [vmem:[%s5 + $0x140] sm:$0xff] %v6703
  %6768 = vst [vmem:[%s5 + $0x148] sm:$0xff] %v6704
  %6769 = vst [vmem:[%s5 + $0x150] sm:$0xff] %v6705
  %6770 = vst [vmem:[%s5 + $0x158] sm:$0xff] %v6706
  %6771 = vst [vmem:[%s5 + $0x160] sm:$0xff] %v6707
  %6772 = vst [vmem:[%s5 + $0x168] sm:$0xff] %v6708
  %6773 = vst [vmem:[%s5 + $0x170] sm:$0xff] %v6709
  %6774 = vst [vmem:[%s5 + $0x178] sm:$0xff] %v6710
  %6775 = vst [vmem:[%s5 + $0x180] sm:$0xff] %v6711
  %6776 = vst [vmem:[%s5 + $0x188] sm:$0xff] %v6712
  %6777 = vst [vmem:[%s5 + $0x190] sm:$0xff] %v6713
  %6778 = vst [vmem:[%s5 + $0x198] sm:$0xff] %v6714
  %6779 = vst [vmem:[%s5 + $0x1a0] sm:$0xff] %v6715
  %6780 = vst [vmem:[%s5 + $0x1a8] sm:$0xff] %v6716
  %6781 = vst [vmem:[%s5 + $0x1b0] sm:$0xff] %v6717
  %6782 = vst [vmem:[%s5 + $0x1b8] sm:$0xff] %v6718
  %6783 = vst [vmem:[%s5 + $0x1c0] sm:$0xff] %v6719
  %6784 = vst [vmem:[%s5 + $0x1c8] sm:$0xff] %v6720
  %6785 = vst [vmem:[%s5 + $0x1d0] sm:$0xff] %v6721
  %6786 = vst [vmem:[%s5 + $0x1d8] sm:$0xff] %v6722
  %6787 = vst [vmem:[%s5 + $0x1e0] sm:$0xff] %v6723
  %6788 = vst [vmem:[%s5 + $0x1e8] sm:$0xff] %v6724
  %6789 = vst [vmem:[%s5 + $0x1f0] sm:$0xff] %v6725
  %6790 = vst [vmem:[%s5 + $0x1f8] sm:$0xff] %v6726
  // Predicated region
  $region26: #{double_conv_forward.1} parent=0 // pred_check
    _
  $region27: #{double_conv_forward.1} parent=0 // pred_check_branch
    %6792 = sbr.rel (0) target = $region29
  $region28: #{double_conv_forward.1} parent=0 // pred_region
    _
  $region29: #{double_conv_forward.1} parent=0 // pred_fallthru
    _
  // Predicated region
  $region30: #{double_conv_forward.1} parent=0 // pred_check
    _
  $region31: #{double_conv_forward.1} parent=0 // pred_check_branch
    %6794 = sbr.rel (0) target = $region33
  $region32: #{double_conv_forward.1} parent=0 // pred_region
    _
  $region33: #{double_conv_forward.1} parent=0 // pred_fallthru
    _

</llo_original>
